<compile_context>
chip_gen: v7x
topology: tpu7x:2x2x1
jax: 0.10.0
libtpu: 0.0.40
codegen_flags: <defaults>
</compile_context>

<pallas_src>
import jax
import jax.numpy as jnp
from jax.experimental import pallas as pl
from jax.experimental.pallas import tpu as pltpu


def _round_up(x, m):
    return (x + m - 1) // m * m


def decoder_chunk_kernel(feat_ref, cap_ref, mask_ref, emb_ref,
                         w_cat_ref, b_ref, w_out_ref, b_out_ref,
                         out_ref, x_chunk, xh_scr, h_scr, c_scr, h_out):
    """One (batch-tile, time-chunk) grid step of the decoder."""
    tc = pl.program_id(1)

    ts, bm, d_in = x_chunk.shape
    num_layers, _, h_pad = h_scr.shape
    v_pad = emb_ref.shape[0]

    # Zero-init LSTM state at the first time-chunk of every batch tile
    # (PyTorch default h0 = c0 = 0).
    @pl.when(tc == 0)
    def _():
        h_scr[...] = jnp.zeros(h_scr.shape, jnp.float32)
        c_scr[...] = jnp.zeros(c_scr.shape, jnp.float32)

    # ---- chunk-batched embedding lookup + inverted dropout (one MXU matmul) --
    ids = cap_ref[...]                                            # (ts, bm, 1) i32
    onehot = (jax.lax.broadcasted_iota(jnp.int32, (ts, bm, v_pad), 2)
              == ids).astype(jnp.float32)                         # (ts, bm, Vp)
    onehot = onehot.reshape(ts * bm, v_pad).astype(emb_ref.dtype)
    emb = jnp.dot(onehot, emb_ref[...],
                  preferred_element_type=jnp.float32)             # (ts*bm, D)
    x_chunk[...] = emb.reshape(ts, bm, d_in) * mask_ref[...].astype(jnp.float32)

    # Global timestep 0 uses the image features (the module cats them in front).
    @pl.when(tc == 0)
    def _():
        x_chunk[0] = feat_ref[...].astype(jnp.float32)

    # ---- serial LSTM recurrence over the chunk (state carried in VMEM) ------
    for s in range(ts):                      # static unroll; ts is small (8-32)
        x = x_chunk[s]                                            # (bm, D) f32
        for layer in range(num_layers):
            h_prev = h_scr[layer]                                 # (bm, Hp) f32
            c_prev = c_scr[layer]
            # Stage [x | h_prev]; any unwritten/stale columns hit zero weight
            # rows of the packed matrix and contribute nothing.
            xh_scr[:, :x.shape[1]] = x
            xh_scr[:, d_in:] = h_prev
            gates = (jnp.dot(xh_scr[...].astype(w_cat_ref.dtype),
                             w_cat_ref[layer],
                             preferred_element_type=jnp.float32)
                     + b_ref[layer])                              # (bm, 4*Hp)

            i_g = jax.nn.sigmoid(gates[:, 0 * h_pad:1 * h_pad])   # lane-aligned
            f_g = jax.nn.sigmoid(gates[:, 1 * h_pad:2 * h_pad])
            g_g = jnp.tanh(gates[:, 2 * h_pad:3 * h_pad])
            o_g = jax.nn.sigmoid(gates[:, 3 * h_pad:4 * h_pad])

            c_new = f_g * c_prev + i_g * g_g
            h_new = o_g * jnp.tanh(c_new)

            h_scr[layer] = h_new
            c_scr[layer] = c_new
            x = h_new                         # (bm, Hp) input of the next layer
        h_out[s] = x                          # top-layer hidden state h_t

    # ---- chunk-batched output projection (one MXU matmul, lane-dense store) --
    h_flat = h_out[...].reshape(ts * bm, h_pad).astype(w_out_ref.dtype)
    logits = (jnp.dot(h_flat, w_out_ref[...],
                      preferred_element_type=jnp.float32)
              + b_out_ref[...])                                   # (ts*bm, Vp)
    out_ref[...] = logits.reshape(ts, bm, v_pad).astype(out_ref.dtype)


def pack_decoder_params(embed_w, w_ih_list, w_hh_list, b_ih_list, b_hh_list,
                        lin_w, lin_b):
    """PyTorch-layout DecoderRNN parameters -> fused, lane-aligned kernel layout."""
    num_layers = len(w_ih_list)
    four_h, embed_dim = w_ih_list[0].shape
    hidden = four_h // 4
    vocab = embed_w.shape[0]

    h_pad = _round_up(hidden, 128)
    d_in = max(_round_up(embed_dim, 128), h_pad)
    v_pad = _round_up(vocab, 128)

    # Embedding table, column-padded to the LSTM input width.
    embed = jnp.zeros((v_pad, d_in), jnp.float32)
    embed = embed.at[:vocab, :embed_dim].set(jnp.asarray(embed_w, jnp.float32))

    # Fused, gate-lane-aligned [W_ih ; W_hh]: (L, d_in + h_pad, 4*h_pad).
    w_cat = jnp.zeros((num_layers, d_in + h_pad, 4 * h_pad), jnp.float32)
    bias = jnp.zeros((num_layers, 1, 4 * h_pad), jnp.float32)
    for l in range(num_layers):
        in_dim = embed_dim if l == 0 else hidden
        w_ih_t = jnp.asarray(w_ih_list[l], jnp.float32).T          # (in_dim, 4H)
        w_hh_t = jnp.asarray(w_hh_list[l], jnp.float32).T          # (H, 4H)
        b = jnp.asarray(b_ih_list[l] + b_hh_list[l], jnp.float32)
        for g in range(4):                                         # i, f, g, o
            cols = slice(g * h_pad, g * h_pad + hidden)
            src = slice(g * hidden, (g + 1) * hidden)
            w_cat = w_cat.at[l, :in_dim, cols].set(w_ih_t[:, src])
            w_cat = w_cat.at[l, d_in:d_in + hidden, cols].set(w_hh_t[:, src])
            bias = bias.at[l, 0, cols].set(b[src])

    w_out = jnp.zeros((h_pad, v_pad), jnp.float32)
    w_out = w_out.at[:hidden, :vocab].set(jnp.asarray(lin_w, jnp.float32).T)
    b_out = jnp.zeros((1, v_pad), jnp.float32)
    b_out = b_out.at[0, :vocab].set(jnp.asarray(lin_b, jnp.float32))

    return dict(
        embed=embed.astype(jnp.bfloat16),       # (Vp, D)       resident bf16
        w_cat=w_cat.astype(jnp.bfloat16),       # (L, D+Hp, 4Hp) resident bf16
        bias=bias,                              # (L, 1, 4Hp)   f32
        w_out=w_out.astype(jnp.bfloat16),       # (Hp, Vp)      resident bf16
        b_out=b_out,                            # (1, Vp)       f32
        dims=dict(embed_dim=embed_dim, hidden=hidden, vocab=vocab,
                  num_layers=num_layers, h_pad=h_pad, d_in=d_in, v_pad=v_pad),
    )


def decoder_rnn_forward(features, captions, drop_mask, params, *,
                        block_b=None, time_chunk=8, out_dtype=jnp.float32):
    """features (B,E) f32, captions (T,B) int32, drop_mask (T,B,E) -> (T+1,B,V).

    block_b: batch tile. Use multiples of 128 for large B (and B/2 on v7x so
    the "parallel" batch grid axis feeds both TensorCores). Rows belonging to
    batch padding are undefined and sliced off before returning.
    """
    T, B = captions.shape
    d = params["dims"]
    E, H, V, L = d["embed_dim"], d["hidden"], d["vocab"], d["num_layers"]
    h_pad, d_in, v_pad = d["h_pad"], d["d_in"], d["v_pad"]
    T1 = T + 1

    ts = max(1, time_chunk)
    n_t = pl.cdiv(T1, ts)
    t_pad = n_t * ts

    bm = min(_round_up(B, 8), 128) if block_b is None else block_b
    n_b = pl.cdiv(B, bm)
    b_pad = n_b * bm

    # ---- host-side layout plumbing (padding + time shift only, no compute) ---
    feat_p = jnp.zeros((b_pad, d_in), jnp.float32)
    feat_p = feat_p.at[:B, :E].set(features.astype(jnp.float32))

    # Shift by one so row t of cap/mask is the input of timestep t (row 0 is a
    # dummy; timestep 0 uses the image features inside the kernel).
    cap_p = jnp.zeros((t_pad, b_pad, 1), jnp.int32)
    cap_p = cap_p.at[1:T1, :B, 0].set(captions.astype(jnp.int32))
    mask_p = jnp.zeros((t_pad, b_pad, d_in), jnp.bfloat16)
    mask_p = mask_p.at[1:T1, :B, :E].set(drop_mask.astype(jnp.bfloat16))

    grid_spec = pltpu.PrefetchScalarGridSpec(
        num_scalar_prefetch=0,
        grid=(n_b, n_t),
        in_specs=[
            # streamed per (batch-tile, time-chunk)
            pl.BlockSpec((bm, d_in), lambda b, t: (b, 0)),            # features
            pl.BlockSpec((ts, bm, 1), lambda b, t: (t, b, 0)),        # caption ids
            pl.BlockSpec((ts, bm, d_in), lambda b, t: (t, b, 0)),     # dropout mask
            # resident weights (constant block index -> stay in VMEM)
            pl.BlockSpec((v_pad, d_in), lambda b, t: (0, 0)),                 # embed
            pl.BlockSpec((L, d_in + h_pad, 4 * h_pad), lambda b, t: (0, 0, 0)),  # [W_ih;W_hh]
            pl.BlockSpec((L, 1, 4 * h_pad), lambda b, t: (0, 0, 0)),          # bias
            pl.BlockSpec((h_pad, v_pad), lambda b, t: (0, 0)),                # W_out
            pl.BlockSpec((1, v_pad), lambda b, t: (0, 0)),                    # b_out
        ],
        out_specs=pl.BlockSpec((ts, bm, v_pad), lambda b, t: (t, b, 0)),
        scratch_shapes=[
            pltpu.VMEM((ts, bm, d_in), jnp.float32),      # x_t chunk staging
            pltpu.VMEM((bm, d_in + h_pad), jnp.float32),  # [x | h] matmul staging
            pltpu.VMEM((L, bm, h_pad), jnp.float32),      # h state (carried over time)
            pltpu.VMEM((L, bm, h_pad), jnp.float32),      # c state (carried over time)
            pltpu.VMEM((ts, bm, h_pad), jnp.float32),     # top-layer h per chunk step
        ],
    )

    out = pl.pallas_call(
        decoder_chunk_kernel,
        out_shape=jax.ShapeDtypeStruct((t_pad, b_pad, v_pad), out_dtype),
        grid_spec=grid_spec,
        compiler_params=pltpu.CompilerParams(
            dimension_semantics=("parallel", "arbitrary"),
            vmem_limit_bytes=48 * 1024 * 1024),
    )(feat_p, cap_p, mask_p,
      params["embed"], params["w_cat"], params["bias"],
      params["w_out"], params["b_out"])

    return out[:T1, :B, :V]


def decoder_rnn_reference(features, captions, drop_mask, embed_w,
                          w_ih_list, w_hh_list, b_ih_list, b_hh_list,
                          lin_w, lin_b):
    """Pure-JAX f32 reference mirroring the PyTorch DecoderRNN.forward."""
    T, B = captions.shape
    L = len(w_ih_list)
    H = w_hh_list[0].shape[1]

    emb = embed_w[captions] * drop_mask                     # dropout(embed(captions))
    x_seq = jnp.concatenate([features[None], emb], axis=0)  # (T+1, B, E)

    h = [jnp.zeros((B, H), jnp.float32) for _ in range(L)]
    c = [jnp.zeros((B, H), jnp.float32) for _ in range(L)]
    outs = []
    for t in range(T + 1):
        x = x_seq[t]
        for l in range(L):
            gates = (x @ w_ih_list[l].T + h[l] @ w_hh_list[l].T
                     + b_ih_list[l] + b_hh_list[l])
            i_g, f_g, g_g, o_g = jnp.split(gates, 4, axis=-1)
            i_g = jax.nn.sigmoid(i_g)
            f_g = jax.nn.sigmoid(f_g)
            g_g = jnp.tanh(g_g)
            o_g = jax.nn.sigmoid(o_g)
            c[l] = f_g * c[l] + i_g * g_g
            h[l] = o_g * jnp.tanh(c[l])
            x = h[l]
        outs.append(x @ lin_w.T + lin_b)
    return jnp.stack(outs, axis=0)


if __name__ == "__main__":
    EMBED, HIDDEN, VOCAB, LAYERS = 32, 32, 128, 2
    SEQ, BATCH = 8, 8

    key = jax.random.PRNGKey(0)
    keys = jax.random.split(key, 6 + 4 * LAYERS)

    features = jax.random.normal(keys[0], (BATCH, EMBED), jnp.float32)
    captions = jax.random.randint(keys[1], (SEQ, BATCH), 0, VOCAB, jnp.int32)
    # deterministic inverted-dropout mask, p = 0.5 (keep -> x * 2, drop -> 0)
    keep = jax.random.bernoulli(keys[2], 0.5, (SEQ, BATCH, EMBED))
    drop_mask = keep.astype(jnp.float32) * 2.0

    embed_w = jax.random.normal(keys[3], (VOCAB, EMBED), jnp.float32) * 0.5
    lin_w = jax.random.normal(keys[4], (VOCAB, HIDDEN), jnp.float32) * 0.1
    lin_b = jax.random.normal(keys[5], (VOCAB,), jnp.float32) * 0.1

    w_ih_list, w_hh_list, b_ih_list, b_hh_list = [], [], [], []
    for l in range(LAYERS):
        in_dim = EMBED if l == 0 else HIDDEN
        k = keys[6 + 4 * l: 6 + 4 * (l + 1)]
        w_ih_list.append(jax.random.normal(k[0], (4 * HIDDEN, in_dim), jnp.float32) * 0.1)
        w_hh_list.append(jax.random.normal(k[1], (4 * HIDDEN, HIDDEN), jnp.float32) * 0.1)
        b_ih_list.append(jax.random.normal(k[2], (4 * HIDDEN,), jnp.float32) * 0.1)
        b_hh_list.append(jax.random.normal(k[3], (4 * HIDDEN,), jnp.float32) * 0.1)

    params = pack_decoder_params(embed_w, w_ih_list, w_hh_list,
                                 b_ih_list, b_hh_list, lin_w, lin_b)

    out = decoder_rnn_forward(features, captions, drop_mask, params,
                              time_chunk=8)
    out = jax.block_until_ready(out)

    ref = decoder_rnn_reference(features, captions, drop_mask, embed_w,
                                w_ih_list, w_hh_list, b_ih_list, b_hh_list,
                                lin_w, lin_b)

    assert out.shape == (SEQ + 1, BATCH, VOCAB), out.shape
    assert out.dtype == jnp.float32
    max_err = float(jnp.max(jnp.abs(out - ref)))
    assert max_err < 7.5e-2, f"max |kernel - reference| = {max_err}"

    print("KERNEL_OK")
</pallas_src>

<mosaic_0001>
module attributes {stable_mosaic.version = 11 : i64} {
  func.func @decoder_chunk_kernel(%arg0: i32, %arg1: i32, %arg2: memref<8x128xf32, #tpu.memory_space<vmem>>, %arg3: memref<8x8x1xi32, #tpu.memory_space<vmem>>, %arg4: memref<8x8x128xbf16, #tpu.memory_space<vmem>>, %arg5: memref<128x128xbf16, #tpu.memory_space<vmem>>, %arg6: memref<2x256x512xbf16, #tpu.memory_space<vmem>>, %arg7: memref<2x1x512xf32, #tpu.memory_space<vmem>>, %arg8: memref<128x128xbf16, #tpu.memory_space<vmem>>, %arg9: memref<1x128xf32, #tpu.memory_space<vmem>>, %arg10: memref<8x8x128xf32, #tpu.memory_space<vmem>>, %arg11: memref<8x8x128xf32, #tpu.memory_space<vmem>>, %arg12: memref<8x256xf32, #tpu.memory_space<vmem>>, %arg13: memref<2x8x128xf32, #tpu.memory_space<vmem>>, %arg14: memref<2x8x128xf32, #tpu.memory_space<vmem>>, %arg15: memref<8x8x128xf32, #tpu.memory_space<vmem>>) attributes {dimension_semantics = [#tpu.dimension_semantics<parallel>, #tpu.dimension_semantics<arbitrary>], iteration_bounds = array<i64: 1, 2>, scalar_prefetch = 0 : i64, scratch_operands = 5 : i64, tpu.core_type = #tpu.core_type<tc>, window_params = [{transform_indices = @transform_0, window_bounds = array<i64: 8, 128>}, {transform_indices = @transform_1, window_bounds = array<i64: 8, 8, 1>}, {transform_indices = @transform_2, window_bounds = array<i64: 8, 8, 128>}, {pipeline_mode = #tpu.pipeline_mode<synchronous>, transform_indices = @transform_3, window_bounds = array<i64: 128, 128>}, {pipeline_mode = #tpu.pipeline_mode<synchronous>, transform_indices = @transform_4, window_bounds = array<i64: 2, 256, 512>}, {pipeline_mode = #tpu.pipeline_mode<synchronous>, transform_indices = @transform_5, window_bounds = array<i64: 2, 1, 512>}, {pipeline_mode = #tpu.pipeline_mode<synchronous>, transform_indices = @transform_6, window_bounds = array<i64: 128, 128>}, {pipeline_mode = #tpu.pipeline_mode<synchronous>, transform_indices = @transform_7, window_bounds = array<i64: 1, 128>}, {transform_indices = @transform_8, window_bounds = array<i64: 8, 8, 128>}]} {
    %c0_i32 = arith.constant 0 : i32
    %0 = arith.cmpi eq, %arg1, %c0_i32 : i32
    %1 = arith.extui %0 : i1 to i32
    %c0_i32_0 = arith.constant 0 : i32
    %2 = arith.cmpi ne, %1, %c0_i32_0 : i32
    scf.if %2 {
      %cst_512 = arith.constant 0.000000e+00 : f32
      %807 = vector.broadcast %cst_512 : f32 to vector<2x8x128xf32>
      %c0_513 = arith.constant 0 : index
      %c0_514 = arith.constant 0 : index
      %c0_515 = arith.constant 0 : index
      %808 = vector.load %arg13[%c0_513, %c0_514, %c0_515] : memref<2x8x128xf32, #tpu.memory_space<vmem>>, vector<2x8x128xf32>
      tpu.vector_store %arg13[%c0_513, %c0_514, %c0_515], %807 {strides = array<i32>} : memref<2x8x128xf32, #tpu.memory_space<vmem>>, vector<2x8x128xf32>,
      %cst_516 = arith.constant 0.000000e+00 : f32
      %809 = vector.broadcast %cst_516 : f32 to vector<2x8x128xf32>
      %c0_517 = arith.constant 0 : index
      %c0_518 = arith.constant 0 : index
      %c0_519 = arith.constant 0 : index
      %810 = vector.load %arg14[%c0_517, %c0_518, %c0_519] : memref<2x8x128xf32, #tpu.memory_space<vmem>>, vector<2x8x128xf32>
      tpu.vector_store %arg14[%c0_517, %c0_518, %c0_519], %809 {strides = array<i32>} : memref<2x8x128xf32, #tpu.memory_space<vmem>>, vector<2x8x128xf32>,
    } else {
    }
    %c0 = arith.constant 0 : index
    %c0_1 = arith.constant 0 : index
    %c0_2 = arith.constant 0 : index
    %3 = vector.load %arg3[%c0, %c0_1, %c0_2] : memref<8x8x1xi32, #tpu.memory_space<vmem>>, vector<8x8x1xi32>
    %4 = tpu.iota {dimensions = array<i32: 2>} : vector<8x8x128xi32>
    %5 = vector.broadcast %3 : vector<8x8x1xi32> to vector<8x8x128xi32>
    %6 = arith.cmpi eq, %4, %5 : vector<8x8x128xi32>
    %7 = arith.extui %6 : vector<8x8x128xi1> to vector<8x8x128xi32>
    %8 = arith.sitofp %7 : vector<8x8x128xi32> to vector<8x8x128xf32>
    %9 = vector.shape_cast %8 : vector<8x8x128xf32> to vector<64x128xf32>
    %10 = arith.truncf %9 : vector<64x128xf32> to vector<64x128xbf16>
    %c0_3 = arith.constant 0 : index
    %c0_4 = arith.constant 0 : index
    %11 = vector.load %arg5[%c0_3, %c0_4] : memref<128x128xbf16, #tpu.memory_space<vmem>>, vector<128x128xbf16>
    %cst = arith.constant dense<0.000000e+00> : vector<64x128xf32>
    %12 = tpu.matmul %10, %11, %cst {dimension_numbers = #tpu.dot_dimension_numbers<[1], [0], [0], [1], [0, 0, 1, 1], [], []>} : vector<64x128xbf16>, vector<128x128xbf16>, vector<64x128xf32> -> vector<64x128xf32>
    %13 = vector.shape_cast %12 : vector<64x128xf32> to vector<8x8x128xf32>
    %c0_5 = arith.constant 0 : index
    %c0_6 = arith.constant 0 : index
    %c0_7 = arith.constant 0 : index
    %14 = vector.load %arg4[%c0_5, %c0_6, %c0_7] : memref<8x8x128xbf16, #tpu.memory_space<vmem>>, vector<8x8x128xbf16>
    %15 = arith.extf %14 : vector<8x8x128xbf16> to vector<8x8x128xf32>
    %16 = arith.mulf %13, %15 : vector<8x8x128xf32>
    %c0_8 = arith.constant 0 : index
    %c0_9 = arith.constant 0 : index
    %c0_10 = arith.constant 0 : index
    %17 = vector.load %arg11[%c0_8, %c0_9, %c0_10] : memref<8x8x128xf32, #tpu.memory_space<vmem>>, vector<8x8x128xf32>
    tpu.vector_store %arg11[%c0_8, %c0_9, %c0_10], %16 {strides = array<i32>} : memref<8x8x128xf32, #tpu.memory_space<vmem>>, vector<8x8x128xf32>,
    %c0_i32_11 = arith.constant 0 : i32
    %18 = arith.cmpi eq, %arg1, %c0_i32_11 : i32
    %19 = arith.extui %18 : i1 to i32
    %c0_i32_12 = arith.constant 0 : i32
    %20 = arith.cmpi ne, %19, %c0_i32_12 : i32
    scf.if %20 {
      %c0_512 = arith.constant 0 : index
      %c0_513 = arith.constant 0 : index
      %807 = vector.load %arg2[%c0_512, %c0_513] : memref<8x128xf32, #tpu.memory_space<vmem>>, vector<8x128xf32>
      %c0_514 = arith.constant 0 : index
      %c0_515 = arith.constant 0 : index
      %c0_516 = arith.constant 0 : index
      %808 = vector.load %arg11[%c0_514, %c0_515, %c0_516] : memref<8x8x128xf32, #tpu.memory_space<vmem>>, vector<1x8x128xf32>
      %809 = vector.shape_cast %808 : vector<1x8x128xf32> to vector<8x128xf32>
      %810 = vector.shape_cast %807 : vector<8x128xf32> to vector<1x8x128xf32>
      tpu.vector_store %arg11[%c0_514, %c0_515, %c0_516], %810 {strides = array<i32>} : memref<8x8x128xf32, #tpu.memory_space<vmem>>, vector<1x8x128xf32>,
    } else {
    }
    %c0_13 = arith.constant 0 : index
    %c0_14 = arith.constant 0 : index
    %c0_15 = arith.constant 0 : index
    %21 = vector.load %arg11[%c0_13, %c0_14, %c0_15] : memref<8x8x128xf32, #tpu.memory_space<vmem>>, vector<1x8x128xf32>
    %22 = vector.shape_cast %21 : vector<1x8x128xf32> to vector<8x128xf32>
    %c0_16 = arith.constant 0 : index
    %c0_17 = arith.constant 0 : index
    %c0_18 = arith.constant 0 : index
    %23 = vector.load %arg13[%c0_16, %c0_17, %c0_18] : memref<2x8x128xf32, #tpu.memory_space<vmem>>, vector<1x8x128xf32>
    %24 = vector.shape_cast %23 : vector<1x8x128xf32> to vector<8x128xf32>
    %c0_19 = arith.constant 0 : index
    %c0_20 = arith.constant 0 : index
    %c0_21 = arith.constant 0 : index
    %25 = vector.load %arg14[%c0_19, %c0_20, %c0_21] : memref<2x8x128xf32, #tpu.memory_space<vmem>>, vector<1x8x128xf32>
    %26 = vector.shape_cast %25 : vector<1x8x128xf32> to vector<8x128xf32>
    %c0_22 = arith.constant 0 : index
    %c0_23 = arith.constant 0 : index
    %27 = vector.load %arg12[%c0_22, %c0_23] : memref<8x256xf32, #tpu.memory_space<vmem>>, vector<8x128xf32>
    tpu.vector_store %arg12[%c0_22, %c0_23], %22 {strides = array<i32>} : memref<8x256xf32, #tpu.memory_space<vmem>>, vector<8x128xf32>,
    %c0_24 = arith.constant 0 : index
    %c128 = arith.constant 128 : index
    %28 = vector.load %arg12[%c0_24, %c128] : memref<8x256xf32, #tpu.memory_space<vmem>>, vector<8x128xf32>
    tpu.vector_store %arg12[%c0_24, %c128], %24 {strides = array<i32>} : memref<8x256xf32, #tpu.memory_space<vmem>>, vector<8x128xf32>,
    %c0_25 = arith.constant 0 : index
    %c0_26 = arith.constant 0 : index
    %29 = vector.load %arg12[%c0_25, %c0_26] : memref<8x256xf32, #tpu.memory_space<vmem>>, vector<8x256xf32>
    %30 = arith.truncf %29 : vector<8x256xf32> to vector<8x256xbf16>
    %c0_27 = arith.constant 0 : index
    %c0_28 = arith.constant 0 : index
    %c0_29 = arith.constant 0 : index
    %31 = vector.load %arg6[%c0_27, %c0_28, %c0_29] : memref<2x256x512xbf16, #tpu.memory_space<vmem>>, vector<1x256x512xbf16>
    %32 = vector.shape_cast %31 : vector<1x256x512xbf16> to vector<256x512xbf16>
    %cst_30 = arith.constant dense<0.000000e+00> : vector<8x512xf32>
    %33 = tpu.matmul %30, %32, %cst_30 {dimension_numbers = #tpu.dot_dimension_numbers<[1], [0], [0], [1], [0, 0, 1, 1], [], []>} : vector<8x256xbf16>, vector<256x512xbf16>, vector<8x512xf32> -> vector<8x512xf32>
    %c0_31 = arith.constant 0 : index
    %c0_32 = arith.constant 0 : index
    %c0_33 = arith.constant 0 : index
    %34 = vector.load %arg7[%c0_31, %c0_32, %c0_33] : memref<2x1x512xf32, #tpu.memory_space<vmem>>, vector<1x1x512xf32>
    %35 = vector.shape_cast %34 : vector<1x1x512xf32> to vector<1x512xf32>
    %36 = vector.broadcast %35 : vector<1x512xf32> to vector<8x512xf32>
    %37 = arith.addf %33, %36 : vector<8x512xf32>
    %38 = vector.extract_strided_slice %37 {offsets = [0, 0], sizes = [8, 128], strides = [1, 1]} : vector<8x512xf32> to vector<8x128xf32>
    %39 = arith.negf %38 : vector<8x128xf32>
    %40 = math.exp %39 : vector<8x128xf32>
    %cst_34 = arith.constant 1.000000e+00 : f32
    %41 = vector.broadcast %cst_34 : f32 to vector<8x128xf32>
    %42 = arith.addf %41, %40 : vector<8x128xf32>
    %43 = arith.divf %41, %42 : vector<8x128xf32>
    %44 = vector.extract_strided_slice %37 {offsets = [0, 128], sizes = [8, 128], strides = [1, 1]} : vector<8x512xf32> to vector<8x128xf32>
    %45 = arith.negf %44 : vector<8x128xf32>
    %46 = math.exp %45 : vector<8x128xf32>
    %cst_35 = arith.constant 1.000000e+00 : f32
    %47 = vector.broadcast %cst_35 : f32 to vector<8x128xf32>
    %48 = arith.addf %47, %46 : vector<8x128xf32>
    %49 = arith.divf %47, %48 : vector<8x128xf32>
    %50 = vector.extract_strided_slice %37 {offsets = [0, 256], sizes = [8, 128], strides = [1, 1]} : vector<8x512xf32> to vector<8x128xf32>
    %51 = math.tanh %50 : vector<8x128xf32>
    %52 = vector.extract_strided_slice %37 {offsets = [0, 384], sizes = [8, 128], strides = [1, 1]} : vector<8x512xf32> to vector<8x128xf32>
    %53 = arith.negf %52 : vector<8x128xf32>
    %54 = math.exp %53 : vector<8x128xf32>
    %cst_36 = arith.constant 1.000000e+00 : f32
    %55 = vector.broadcast %cst_36 : f32 to vector<8x128xf32>
    %56 = arith.addf %55, %54 : vector<8x128xf32>
    %57 = arith.divf %55, %56 : vector<8x128xf32>
    %58 = arith.mulf %49, %26 : vector<8x128xf32>
    %59 = arith.mulf %43, %51 : vector<8x128xf32>
    %60 = arith.addf %58, %59 : vector<8x128xf32>
    %61 = math.tanh %60 : vector<8x128xf32>
    %62 = arith.mulf %57, %61 : vector<8x128xf32>
    %c0_37 = arith.constant 0 : index
    %c0_38 = arith.constant 0 : index
    %c0_39 = arith.constant 0 : index
    %63 = vector.load %arg13[%c0_37, %c0_38, %c0_39] : memref<2x8x128xf32, #tpu.memory_space<vmem>>, vector<1x8x128xf32>
    %64 = vector.shape_cast %63 : vector<1x8x128xf32> to vector<8x128xf32>
    %65 = vector.shape_cast %62 : vector<8x128xf32> to vector<1x8x128xf32>
    tpu.vector_store %arg13[%c0_37, %c0_38, %c0_39], %65 {strides = array<i32>} : memref<2x8x128xf32, #tpu.memory_space<vmem>>, vector<1x8x128xf32>,
    %c0_40 = arith.constant 0 : index
    %c0_41 = arith.constant 0 : index
    %c0_42 = arith.constant 0 : index
    %66 = vector.load %arg14[%c0_40, %c0_41, %c0_42] : memref<2x8x128xf32, #tpu.memory_space<vmem>>, vector<1x8x128xf32>
    %67 = vector.shape_cast %66 : vector<1x8x128xf32> to vector<8x128xf32>
    %68 = vector.shape_cast %60 : vector<8x128xf32> to vector<1x8x128xf32>
    tpu.vector_store %arg14[%c0_40, %c0_41, %c0_42], %68 {strides = array<i32>} : memref<2x8x128xf32, #tpu.memory_space<vmem>>, vector<1x8x128xf32>,
    %c1 = arith.constant 1 : index
    %c0_43 = arith.constant 0 : index
    %c0_44 = arith.constant 0 : index
    %69 = vector.load %arg13[%c1, %c0_43, %c0_44] : memref<2x8x128xf32, #tpu.memory_space<vmem>>, vector<1x8x128xf32>
    %70 = vector.shape_cast %69 : vector<1x8x128xf32> to vector<8x128xf32>
    %c1_45 = arith.constant 1 : index
    %c0_46 = arith.constant 0 : index
    %c0_47 = arith.constant 0 : index
    %71 = vector.load %arg14[%c1_45, %c0_46, %c0_47] : memref<2x8x128xf32, #tpu.memory_space<vmem>>, vector<1x8x128xf32>
    %72 = vector.shape_cast %71 : vector<1x8x128xf32> to vector<8x128xf32>
    %c0_48 = arith.constant 0 : index
    %c0_49 = arith.constant 0 : index
    %73 = vector.load %arg12[%c0_48, %c0_49] : memref<8x256xf32, #tpu.memory_space<vmem>>, vector<8x128xf32>
    tpu.vector_store %arg12[%c0_48, %c0_49], %62 {strides = array<i32>} : memref<8x256xf32, #tpu.memory_space<vmem>>, vector<8x128xf32>,
    %c0_50 = arith.constant 0 : index
    %c128_51 = arith.constant 128 : index
    %74 = vector.load %arg12[%c0_50, %c128_51] : memref<8x256xf32, #tpu.memory_space<vmem>>, vector<8x128xf32>
    tpu.vector_store %arg12[%c0_50, %c128_51], %70 {strides = array<i32>} : memref<8x256xf32, #tpu.memory_space<vmem>>, vector<8x128xf32>,
    %c0_52 = arith.constant 0 : index
    %c0_53 = arith.constant 0 : index
    %75 = vector.load %arg12[%c0_52, %c0_53] : memref<8x256xf32, #tpu.memory_space<vmem>>, vector<8x256xf32>
    %76 = arith.truncf %75 : vector<8x256xf32> to vector<8x256xbf16>
    %c1_54 = arith.constant 1 : index
    %c0_55 = arith.constant 0 : index
    %c0_56 = arith.constant 0 : index
    %77 = vector.load %arg6[%c1_54, %c0_55, %c0_56] : memref<2x256x512xbf16, #tpu.memory_space<vmem>>, vector<1x256x512xbf16>
    %78 = vector.shape_cast %77 : vector<1x256x512xbf16> to vector<256x512xbf16>
    %cst_57 = arith.constant dense<0.000000e+00> : vector<8x512xf32>
    %79 = tpu.matmul %76, %78, %cst_57 {dimension_numbers = #tpu.dot_dimension_numbers<[1], [0], [0], [1], [0, 0, 1, 1], [], []>} : vector<8x256xbf16>, vector<256x512xbf16>, vector<8x512xf32> -> vector<8x512xf32>
    %c1_58 = arith.constant 1 : index
    %c0_59 = arith.constant 0 : index
    %c0_60 = arith.constant 0 : index
    %80 = vector.load %arg7[%c1_58, %c0_59, %c0_60] : memref<2x1x512xf32, #tpu.memory_space<vmem>>, vector<1x1x512xf32>
    %81 = vector.shape_cast %80 : vector<1x1x512xf32> to vector<1x512xf32>
    %82 = vector.broadcast %81 : vector<1x512xf32> to vector<8x512xf32>
    %83 = arith.addf %79, %82 : vector<8x512xf32>
    %84 = vector.extract_strided_slice %83 {offsets = [0, 0], sizes = [8, 128], strides = [1, 1]} : vector<8x512xf32> to vector<8x128xf32>
    %85 = arith.negf %84 : vector<8x128xf32>
    %86 = math.exp %85 : vector<8x128xf32>
    %cst_61 = arith.constant 1.000000e+00 : f32
    %87 = vector.broadcast %cst_61 : f32 to vector<8x128xf32>
    %88 = arith.addf %87, %86 : vector<8x128xf32>
    %89 = arith.divf %87, %88 : vector<8x128xf32>
    %90 = vector.extract_strided_slice %83 {offsets = [0, 128], sizes = [8, 128], strides = [1, 1]} : vector<8x512xf32> to vector<8x128xf32>
    %91 = arith.negf %90 : vector<8x128xf32>
    %92 = math.exp %91 : vector<8x128xf32>
    %cst_62 = arith.constant 1.000000e+00 : f32
    %93 = vector.broadcast %cst_62 : f32 to vector<8x128xf32>
    %94 = arith.addf %93, %92 : vector<8x128xf32>
    %95 = arith.divf %93, %94 : vector<8x128xf32>
    %96 = vector.extract_strided_slice %83 {offsets = [0, 256], sizes = [8, 128], strides = [1, 1]} : vector<8x512xf32> to vector<8x128xf32>
    %97 = math.tanh %96 : vector<8x128xf32>
    %98 = vector.extract_strided_slice %83 {offsets = [0, 384], sizes = [8, 128], strides = [1, 1]} : vector<8x512xf32> to vector<8x128xf32>
    %99 = arith.negf %98 : vector<8x128xf32>
    %100 = math.exp %99 : vector<8x128xf32>
    %cst_63 = arith.constant 1.000000e+00 : f32
    %101 = vector.broadcast %cst_63 : f32 to vector<8x128xf32>
    %102 = arith.addf %101, %100 : vector<8x128xf32>
    %103 = arith.divf %101, %102 : vector<8x128xf32>
    %104 = arith.mulf %95, %72 : vector<8x128xf32>
    %105 = arith.mulf %89, %97 : vector<8x128xf32>
    %106 = arith.addf %104, %105 : vector<8x128xf32>
    %107 = math.tanh %106 : vector<8x128xf32>
    %108 = arith.mulf %103, %107 : vector<8x128xf32>
    %c1_64 = arith.constant 1 : index
    %c0_65 = arith.constant 0 : index
    %c0_66 = arith.constant 0 : index
    %109 = vector.load %arg13[%c1_64, %c0_65, %c0_66] : memref<2x8x128xf32, #tpu.memory_space<vmem>>, vector<1x8x128xf32>
    %110 = vector.shape_cast %109 : vector<1x8x128xf32> to vector<8x128xf32>
    %111 = vector.shape_cast %108 : vector<8x128xf32> to vector<1x8x128xf32>
    tpu.vector_store %arg13[%c1_64, %c0_65, %c0_66], %111 {strides = array<i32>} : memref<2x8x128xf32, #tpu.memory_space<vmem>>, vector<1x8x128xf32>,
    %c1_67 = arith.constant 1 : index
    %c0_68 = arith.constant 0 : index
    %c0_69 = arith.constant 0 : index
    %112 = vector.load %arg14[%c1_67, %c0_68, %c0_69] : memref<2x8x128xf32, #tpu.memory_space<vmem>>, vector<1x8x128xf32>
    %113 = vector.shape_cast %112 : vector<1x8x128xf32> to vector<8x128xf32>
    %114 = vector.shape_cast %106 : vector<8x128xf32> to vector<1x8x128xf32>
    tpu.vector_store %arg14[%c1_67, %c0_68, %c0_69], %114 {strides = array<i32>} : memref<2x8x128xf32, #tpu.memory_space<vmem>>, vector<1x8x128xf32>,
    %c0_70 = arith.constant 0 : index
    %c0_71 = arith.constant 0 : index
    %c0_72 = arith.constant 0 : index
    %115 = vector.load %arg15[%c0_70, %c0_71, %c0_72] : memref<8x8x128xf32, #tpu.memory_space<vmem>>, vector<1x8x128xf32>
    %116 = vector.shape_cast %115 : vector<1x8x128xf32> to vector<8x128xf32>
    %117 = vector.shape_cast %108 : vector<8x128xf32> to vector<1x8x128xf32>
    tpu.vector_store %arg15[%c0_70, %c0_71, %c0_72], %117 {strides = array<i32>} : memref<8x8x128xf32, #tpu.memory_space<vmem>>, vector<1x8x128xf32>,
    %c1_73 = arith.constant 1 : index
    %c0_74 = arith.constant 0 : index
    %c0_75 = arith.constant 0 : index
    %118 = vector.load %arg11[%c1_73, %c0_74, %c0_75] : memref<8x8x128xf32, #tpu.memory_space<vmem>>, vector<1x8x128xf32>
    %119 = vector.shape_cast %118 : vector<1x8x128xf32> to vector<8x128xf32>
    %c0_76 = arith.constant 0 : index
    %c0_77 = arith.constant 0 : index
    %c0_78 = arith.constant 0 : index
    %120 = vector.load %arg13[%c0_76, %c0_77, %c0_78] : memref<2x8x128xf32, #tpu.memory_space<vmem>>, vector<1x8x128xf32>
    %121 = vector.shape_cast %120 : vector<1x8x128xf32> to vector<8x128xf32>
    %c0_79 = arith.constant 0 : index
    %c0_80 = arith.constant 0 : index
    %c0_81 = arith.constant 0 : index
    %122 = vector.load %arg14[%c0_79, %c0_80, %c0_81] : memref<2x8x128xf32, #tpu.memory_space<vmem>>, vector<1x8x128xf32>
    %123 = vector.shape_cast %122 : vector<1x8x128xf32> to vector<8x128xf32>
    %c0_82 = arith.constant 0 : index
    %c0_83 = arith.constant 0 : index
    %124 = vector.load %arg12[%c0_82, %c0_83] : memref<8x256xf32, #tpu.memory_space<vmem>>, vector<8x128xf32>
    tpu.vector_store %arg12[%c0_82, %c0_83], %119 {strides = array<i32>} : memref<8x256xf32, #tpu.memory_space<vmem>>, vector<8x128xf32>,
    %c0_84 = arith.constant 0 : index
    %c128_85 = arith.constant 128 : index
    %125 = vector.load %arg12[%c0_84, %c128_85] : memref<8x256xf32, #tpu.memory_space<vmem>>, vector<8x128xf32>
    tpu.vector_store %arg12[%c0_84, %c128_85], %121 {strides = array<i32>} : memref<8x256xf32, #tpu.memory_space<vmem>>, vector<8x128xf32>,
    %c0_86 = arith.constant 0 : index
    %c0_87 = arith.constant 0 : index
    %126 = vector.load %arg12[%c0_86, %c0_87] : memref<8x256xf32, #tpu.memory_space<vmem>>, vector<8x256xf32>
    %127 = arith.truncf %126 : vector<8x256xf32> to vector<8x256xbf16>
    %c0_88 = arith.constant 0 : index
    %c0_89 = arith.constant 0 : index
    %c0_90 = arith.constant 0 : index
    %128 = vector.load %arg6[%c0_88, %c0_89, %c0_90] : memref<2x256x512xbf16, #tpu.memory_space<vmem>>, vector<1x256x512xbf16>
    %129 = vector.shape_cast %128 : vector<1x256x512xbf16> to vector<256x512xbf16>
    %cst_91 = arith.constant dense<0.000000e+00> : vector<8x512xf32>
    %130 = tpu.matmul %127, %129, %cst_91 {dimension_numbers = #tpu.dot_dimension_numbers<[1], [0], [0], [1], [0, 0, 1, 1], [], []>} : vector<8x256xbf16>, vector<256x512xbf16>, vector<8x512xf32> -> vector<8x512xf32>
    %c0_92 = arith.constant 0 : index
    %c0_93 = arith.constant 0 : index
    %c0_94 = arith.constant 0 : index
    %131 = vector.load %arg7[%c0_92, %c0_93, %c0_94] : memref<2x1x512xf32, #tpu.memory_space<vmem>>, vector<1x1x512xf32>
    %132 = vector.shape_cast %131 : vector<1x1x512xf32> to vector<1x512xf32>
    %133 = vector.broadcast %132 : vector<1x512xf32> to vector<8x512xf32>
    %134 = arith.addf %130, %133 : vector<8x512xf32>
    %135 = vector.extract_strided_slice %134 {offsets = [0, 0], sizes = [8, 128], strides = [1, 1]} : vector<8x512xf32> to vector<8x128xf32>
    %136 = arith.negf %135 : vector<8x128xf32>
    %137 = math.exp %136 : vector<8x128xf32>
    %cst_95 = arith.constant 1.000000e+00 : f32
    %138 = vector.broadcast %cst_95 : f32 to vector<8x128xf32>
    %139 = arith.addf %138, %137 : vector<8x128xf32>
    %140 = arith.divf %138, %139 : vector<8x128xf32>
    %141 = vector.extract_strided_slice %134 {offsets = [0, 128], sizes = [8, 128], strides = [1, 1]} : vector<8x512xf32> to vector<8x128xf32>
    %142 = arith.negf %141 : vector<8x128xf32>
    %143 = math.exp %142 : vector<8x128xf32>
    %cst_96 = arith.constant 1.000000e+00 : f32
    %144 = vector.broadcast %cst_96 : f32 to vector<8x128xf32>
    %145 = arith.addf %144, %143 : vector<8x128xf32>
    %146 = arith.divf %144, %145 : vector<8x128xf32>
    %147 = vector.extract_strided_slice %134 {offsets = [0, 256], sizes = [8, 128], strides = [1, 1]} : vector<8x512xf32> to vector<8x128xf32>
    %148 = math.tanh %147 : vector<8x128xf32>
    %149 = vector.extract_strided_slice %134 {offsets = [0, 384], sizes = [8, 128], strides = [1, 1]} : vector<8x512xf32> to vector<8x128xf32>
    %150 = arith.negf %149 : vector<8x128xf32>
    %151 = math.exp %150 : vector<8x128xf32>
    %cst_97 = arith.constant 1.000000e+00 : f32
    %152 = vector.broadcast %cst_97 : f32 to vector<8x128xf32>
    %153 = arith.addf %152, %151 : vector<8x128xf32>
    %154 = arith.divf %152, %153 : vector<8x128xf32>
    %155 = arith.mulf %146, %123 : vector<8x128xf32>
    %156 = arith.mulf %140, %148 : vector<8x128xf32>
    %157 = arith.addf %155, %156 : vector<8x128xf32>
    %158 = math.tanh %157 : vector<8x128xf32>
    %159 = arith.mulf %154, %158 : vector<8x128xf32>
    %c0_98 = arith.constant 0 : index
    %c0_99 = arith.constant 0 : index
    %c0_100 = arith.constant 0 : index
    %160 = vector.load %arg13[%c0_98, %c0_99, %c0_100] : memref<2x8x128xf32, #tpu.memory_space<vmem>>, vector<1x8x128xf32>
    %161 = vector.shape_cast %160 : vector<1x8x128xf32> to vector<8x128xf32>
    %162 = vector.shape_cast %159 : vector<8x128xf32> to vector<1x8x128xf32>
    tpu.vector_store %arg13[%c0_98, %c0_99, %c0_100], %162 {strides = array<i32>} : memref<2x8x128xf32, #tpu.memory_space<vmem>>, vector<1x8x128xf32>,
    %c0_101 = arith.constant 0 : index
    %c0_102 = arith.constant 0 : index
    %c0_103 = arith.constant 0 : index
    %163 = vector.load %arg14[%c0_101, %c0_102, %c0_103] : memref<2x8x128xf32, #tpu.memory_space<vmem>>, vector<1x8x128xf32>
    %164 = vector.shape_cast %163 : vector<1x8x128xf32> to vector<8x128xf32>
    %165 = vector.shape_cast %157 : vector<8x128xf32> to vector<1x8x128xf32>
    tpu.vector_store %arg14[%c0_101, %c0_102, %c0_103], %165 {strides = array<i32>} : memref<2x8x128xf32, #tpu.memory_space<vmem>>, vector<1x8x128xf32>,
    %c1_104 = arith.constant 1 : index
    %c0_105 = arith.constant 0 : index
    %c0_106 = arith.constant 0 : index
    %166 = vector.load %arg13[%c1_104, %c0_105, %c0_106] : memref<2x8x128xf32, #tpu.memory_space<vmem>>, vector<1x8x128xf32>
    %167 = vector.shape_cast %166 : vector<1x8x128xf32> to vector<8x128xf32>
    %c1_107 = arith.constant 1 : index
    %c0_108 = arith.constant 0 : index
    %c0_109 = arith.constant 0 : index
    %168 = vector.load %arg14[%c1_107, %c0_108, %c0_109] : memref<2x8x128xf32, #tpu.memory_space<vmem>>, vector<1x8x128xf32>
    %169 = vector.shape_cast %168 : vector<1x8x128xf32> to vector<8x128xf32>
    %c0_110 = arith.constant 0 : index
    %c0_111 = arith.constant 0 : index
    %170 = vector.load %arg12[%c0_110, %c0_111] : memref<8x256xf32, #tpu.memory_space<vmem>>, vector<8x128xf32>
    tpu.vector_store %arg12[%c0_110, %c0_111], %159 {strides = array<i32>} : memref<8x256xf32, #tpu.memory_space<vmem>>, vector<8x128xf32>,
    %c0_112 = arith.constant 0 : index
    %c128_113 = arith.constant 128 : index
    %171 = vector.load %arg12[%c0_112, %c128_113] : memref<8x256xf32, #tpu.memory_space<vmem>>, vector<8x128xf32>
    tpu.vector_store %arg12[%c0_112, %c128_113], %167 {strides = array<i32>} : memref<8x256xf32, #tpu.memory_space<vmem>>, vector<8x128xf32>,
    %c0_114 = arith.constant 0 : index
    %c0_115 = arith.constant 0 : index
    %172 = vector.load %arg12[%c0_114, %c0_115] : memref<8x256xf32, #tpu.memory_space<vmem>>, vector<8x256xf32>
    %173 = arith.truncf %172 : vector<8x256xf32> to vector<8x256xbf16>
    %c1_116 = arith.constant 1 : index
    %c0_117 = arith.constant 0 : index
    %c0_118 = arith.constant 0 : index
    %174 = vector.load %arg6[%c1_116, %c0_117, %c0_118] : memref<2x256x512xbf16, #tpu.memory_space<vmem>>, vector<1x256x512xbf16>
    %175 = vector.shape_cast %174 : vector<1x256x512xbf16> to vector<256x512xbf16>
    %cst_119 = arith.constant dense<0.000000e+00> : vector<8x512xf32>
    %176 = tpu.matmul %173, %175, %cst_119 {dimension_numbers = #tpu.dot_dimension_numbers<[1], [0], [0], [1], [0, 0, 1, 1], [], []>} : vector<8x256xbf16>, vector<256x512xbf16>, vector<8x512xf32> -> vector<8x512xf32>
    %c1_120 = arith.constant 1 : index
    %c0_121 = arith.constant 0 : index
    %c0_122 = arith.constant 0 : index
    %177 = vector.load %arg7[%c1_120, %c0_121, %c0_122] : memref<2x1x512xf32, #tpu.memory_space<vmem>>, vector<1x1x512xf32>
    %178 = vector.shape_cast %177 : vector<1x1x512xf32> to vector<1x512xf32>
    %179 = vector.broadcast %178 : vector<1x512xf32> to vector<8x512xf32>
    %180 = arith.addf %176, %179 : vector<8x512xf32>
    %181 = vector.extract_strided_slice %180 {offsets = [0, 0], sizes = [8, 128], strides = [1, 1]} : vector<8x512xf32> to vector<8x128xf32>
    %182 = arith.negf %181 : vector<8x128xf32>
    %183 = math.exp %182 : vector<8x128xf32>
    %cst_123 = arith.constant 1.000000e+00 : f32
    %184 = vector.broadcast %cst_123 : f32 to vector<8x128xf32>
    %185 = arith.addf %184, %183 : vector<8x128xf32>
    %186 = arith.divf %184, %185 : vector<8x128xf32>
    %187 = vector.extract_strided_slice %180 {offsets = [0, 128], sizes = [8, 128], strides = [1, 1]} : vector<8x512xf32> to vector<8x128xf32>
    %188 = arith.negf %187 : vector<8x128xf32>
    %189 = math.exp %188 : vector<8x128xf32>
    %cst_124 = arith.constant 1.000000e+00 : f32
    %190 = vector.broadcast %cst_124 : f32 to vector<8x128xf32>
    %191 = arith.addf %190, %189 : vector<8x128xf32>
    %192 = arith.divf %190, %191 : vector<8x128xf32>
    %193 = vector.extract_strided_slice %180 {offsets = [0, 256], sizes = [8, 128], strides = [1, 1]} : vector<8x512xf32> to vector<8x128xf32>
    %194 = math.tanh %193 : vector<8x128xf32>
    %195 = vector.extract_strided_slice %180 {offsets = [0, 384], sizes = [8, 128], strides = [1, 1]} : vector<8x512xf32> to vector<8x128xf32>
    %196 = arith.negf %195 : vector<8x128xf32>
    %197 = math.exp %196 : vector<8x128xf32>
    %cst_125 = arith.constant 1.000000e+00 : f32
    %198 = vector.broadcast %cst_125 : f32 to vector<8x128xf32>
    %199 = arith.addf %198, %197 : vector<8x128xf32>
    %200 = arith.divf %198, %199 : vector<8x128xf32>
    %201 = arith.mulf %192, %169 : vector<8x128xf32>
    %202 = arith.mulf %186, %194 : vector<8x128xf32>
    %203 = arith.addf %201, %202 : vector<8x128xf32>
    %204 = math.tanh %203 : vector<8x128xf32>
    %205 = arith.mulf %200, %204 : vector<8x128xf32>
    %c1_126 = arith.constant 1 : index
    %c0_127 = arith.constant 0 : index
    %c0_128 = arith.constant 0 : index
    %206 = vector.load %arg13[%c1_126, %c0_127, %c0_128] : memref<2x8x128xf32, #tpu.memory_space<vmem>>, vector<1x8x128xf32>
    %207 = vector.shape_cast %206 : vector<1x8x128xf32> to vector<8x128xf32>
    %208 = vector.shape_cast %205 : vector<8x128xf32> to vector<1x8x128xf32>
    tpu.vector_store %arg13[%c1_126, %c0_127, %c0_128], %208 {strides = array<i32>} : memref<2x8x128xf32, #tpu.memory_space<vmem>>, vector<1x8x128xf32>,
    %c1_129 = arith.constant 1 : index
    %c0_130 = arith.constant 0 : index
    %c0_131 = arith.constant 0 : index
    %209 = vector.load %arg14[%c1_129, %c0_130, %c0_131] : memref<2x8x128xf32, #tpu.memory_space<vmem>>, vector<1x8x128xf32>
    %210 = vector.shape_cast %209 : vector<1x8x128xf32> to vector<8x128xf32>
    %211 = vector.shape_cast %203 : vector<8x128xf32> to vector<1x8x128xf32>
    tpu.vector_store %arg14[%c1_129, %c0_130, %c0_131], %211 {strides = array<i32>} : memref<2x8x128xf32, #tpu.memory_space<vmem>>, vector<1x8x128xf32>,
    %c1_132 = arith.constant 1 : index
    %c0_133 = arith.constant 0 : index
    %c0_134 = arith.constant 0 : index
    %212 = vector.load %arg15[%c1_132, %c0_133, %c0_134] : memref<8x8x128xf32, #tpu.memory_space<vmem>>, vector<1x8x128xf32>
    %213 = vector.shape_cast %212 : vector<1x8x128xf32> to vector<8x128xf32>
    %214 = vector.shape_cast %205 : vector<8x128xf32> to vector<1x8x128xf32>
    tpu.vector_store %arg15[%c1_132, %c0_133, %c0_134], %214 {strides = array<i32>} : memref<8x8x128xf32, #tpu.memory_space<vmem>>, vector<1x8x128xf32>,
    %c2 = arith.constant 2 : index
    %c0_135 = arith.constant 0 : index
    %c0_136 = arith.constant 0 : index
    %215 = vector.load %arg11[%c2, %c0_135, %c0_136] : memref<8x8x128xf32, #tpu.memory_space<vmem>>, vector<1x8x128xf32>
    %216 = vector.shape_cast %215 : vector<1x8x128xf32> to vector<8x128xf32>
    %c0_137 = arith.constant 0 : index
    %c0_138 = arith.constant 0 : index
    %c0_139 = arith.constant 0 : index
    %217 = vector.load %arg13[%c0_137, %c0_138, %c0_139] : memref<2x8x128xf32, #tpu.memory_space<vmem>>, vector<1x8x128xf32>
    %218 = vector.shape_cast %217 : vector<1x8x128xf32> to vector<8x128xf32>
    %c0_140 = arith.constant 0 : index
    %c0_141 = arith.constant 0 : index
    %c0_142 = arith.constant 0 : index
    %219 = vector.load %arg14[%c0_140, %c0_141, %c0_142] : memref<2x8x128xf32, #tpu.memory_space<vmem>>, vector<1x8x128xf32>
    %220 = vector.shape_cast %219 : vector<1x8x128xf32> to vector<8x128xf32>
    %c0_143 = arith.constant 0 : index
    %c0_144 = arith.constant 0 : index
    %221 = vector.load %arg12[%c0_143, %c0_144] : memref<8x256xf32, #tpu.memory_space<vmem>>, vector<8x128xf32>
    tpu.vector_store %arg12[%c0_143, %c0_144], %216 {strides = array<i32>} : memref<8x256xf32, #tpu.memory_space<vmem>>, vector<8x128xf32>,
    %c0_145 = arith.constant 0 : index
    %c128_146 = arith.constant 128 : index
    %222 = vector.load %arg12[%c0_145, %c128_146] : memref<8x256xf32, #tpu.memory_space<vmem>>, vector<8x128xf32>
    tpu.vector_store %arg12[%c0_145, %c128_146], %218 {strides = array<i32>} : memref<8x256xf32, #tpu.memory_space<vmem>>, vector<8x128xf32>,
    %c0_147 = arith.constant 0 : index
    %c0_148 = arith.constant 0 : index
    %223 = vector.load %arg12[%c0_147, %c0_148] : memref<8x256xf32, #tpu.memory_space<vmem>>, vector<8x256xf32>
    %224 = arith.truncf %223 : vector<8x256xf32> to vector<8x256xbf16>
    %c0_149 = arith.constant 0 : index
    %c0_150 = arith.constant 0 : index
    %c0_151 = arith.constant 0 : index
    %225 = vector.load %arg6[%c0_149, %c0_150, %c0_151] : memref<2x256x512xbf16, #tpu.memory_space<vmem>>, vector<1x256x512xbf16>
    %226 = vector.shape_cast %225 : vector<1x256x512xbf16> to vector<256x512xbf16>
    %cst_152 = arith.constant dense<0.000000e+00> : vector<8x512xf32>
    %227 = tpu.matmul %224, %226, %cst_152 {dimension_numbers = #tpu.dot_dimension_numbers<[1], [0], [0], [1], [0, 0, 1, 1], [], []>} : vector<8x256xbf16>, vector<256x512xbf16>, vector<8x512xf32> -> vector<8x512xf32>
    %c0_153 = arith.constant 0 : index
    %c0_154 = arith.constant 0 : index
    %c0_155 = arith.constant 0 : index
    %228 = vector.load %arg7[%c0_153, %c0_154, %c0_155] : memref<2x1x512xf32, #tpu.memory_space<vmem>>, vector<1x1x512xf32>
    %229 = vector.shape_cast %228 : vector<1x1x512xf32> to vector<1x512xf32>
    %230 = vector.broadcast %229 : vector<1x512xf32> to vector<8x512xf32>
    %231 = arith.addf %227, %230 : vector<8x512xf32>
    %232 = vector.extract_strided_slice %231 {offsets = [0, 0], sizes = [8, 128], strides = [1, 1]} : vector<8x512xf32> to vector<8x128xf32>
    %233 = arith.negf %232 : vector<8x128xf32>
    %234 = math.exp %233 : vector<8x128xf32>
    %cst_156 = arith.constant 1.000000e+00 : f32
    %235 = vector.broadcast %cst_156 : f32 to vector<8x128xf32>
    %236 = arith.addf %235, %234 : vector<8x128xf32>
    %237 = arith.divf %235, %236 : vector<8x128xf32>
    %238 = vector.extract_strided_slice %231 {offsets = [0, 128], sizes = [8, 128], strides = [1, 1]} : vector<8x512xf32> to vector<8x128xf32>
    %239 = arith.negf %238 : vector<8x128xf32>
    %240 = math.exp %239 : vector<8x128xf32>
    %cst_157 = arith.constant 1.000000e+00 : f32
    %241 = vector.broadcast %cst_157 : f32 to vector<8x128xf32>
    %242 = arith.addf %241, %240 : vector<8x128xf32>
    %243 = arith.divf %241, %242 : vector<8x128xf32>
    %244 = vector.extract_strided_slice %231 {offsets = [0, 256], sizes = [8, 128], strides = [1, 1]} : vector<8x512xf32> to vector<8x128xf32>
    %245 = math.tanh %244 : vector<8x128xf32>
    %246 = vector.extract_strided_slice %231 {offsets = [0, 384], sizes = [8, 128], strides = [1, 1]} : vector<8x512xf32> to vector<8x128xf32>
    %247 = arith.negf %246 : vector<8x128xf32>
    %248 = math.exp %247 : vector<8x128xf32>
    %cst_158 = arith.constant 1.000000e+00 : f32
    %249 = vector.broadcast %cst_158 : f32 to vector<8x128xf32>
    %250 = arith.addf %249, %248 : vector<8x128xf32>
    %251 = arith.divf %249, %250 : vector<8x128xf32>
    %252 = arith.mulf %243, %220 : vector<8x128xf32>
    %253 = arith.mulf %237, %245 : vector<8x128xf32>
    %254 = arith.addf %252, %253 : vector<8x128xf32>
    %255 = math.tanh %254 : vector<8x128xf32>
    %256 = arith.mulf %251, %255 : vector<8x128xf32>
    %c0_159 = arith.constant 0 : index
    %c0_160 = arith.constant 0 : index
    %c0_161 = arith.constant 0 : index
    %257 = vector.load %arg13[%c0_159, %c0_160, %c0_161] : memref<2x8x128xf32, #tpu.memory_space<vmem>>, vector<1x8x128xf32>
    %258 = vector.shape_cast %257 : vector<1x8x128xf32> to vector<8x128xf32>
    %259 = vector.shape_cast %256 : vector<8x128xf32> to vector<1x8x128xf32>
    tpu.vector_store %arg13[%c0_159, %c0_160, %c0_161], %259 {strides = array<i32>} : memref<2x8x128xf32, #tpu.memory_space<vmem>>, vector<1x8x128xf32>,
    %c0_162 = arith.constant 0 : index
    %c0_163 = arith.constant 0 : index
    %c0_164 = arith.constant 0 : index
    %260 = vector.load %arg14[%c0_162, %c0_163, %c0_164] : memref<2x8x128xf32, #tpu.memory_space<vmem>>, vector<1x8x128xf32>
    %261 = vector.shape_cast %260 : vector<1x8x128xf32> to vector<8x128xf32>
    %262 = vector.shape_cast %254 : vector<8x128xf32> to vector<1x8x128xf32>
    tpu.vector_store %arg14[%c0_162, %c0_163, %c0_164], %262 {strides = array<i32>} : memref<2x8x128xf32, #tpu.memory_space<vmem>>, vector<1x8x128xf32>,
    %c1_165 = arith.constant 1 : index
    %c0_166 = arith.constant 0 : index
    %c0_167 = arith.constant 0 : index
    %263 = vector.load %arg13[%c1_165, %c0_166, %c0_167] : memref<2x8x128xf32, #tpu.memory_space<vmem>>, vector<1x8x128xf32>
    %264 = vector.shape_cast %263 : vector<1x8x128xf32> to vector<8x128xf32>
    %c1_168 = arith.constant 1 : index
    %c0_169 = arith.constant 0 : index
    %c0_170 = arith.constant 0 : index
    %265 = vector.load %arg14[%c1_168, %c0_169, %c0_170] : memref<2x8x128xf32, #tpu.memory_space<vmem>>, vector<1x8x128xf32>
    %266 = vector.shape_cast %265 : vector<1x8x128xf32> to vector<8x128xf32>
    %c0_171 = arith.constant 0 : index
    %c0_172 = arith.constant 0 : index
    %267 = vector.load %arg12[%c0_171, %c0_172] : memref<8x256xf32, #tpu.memory_space<vmem>>, vector<8x128xf32>
    tpu.vector_store %arg12[%c0_171, %c0_172], %256 {strides = array<i32>} : memref<8x256xf32, #tpu.memory_space<vmem>>, vector<8x128xf32>,
    %c0_173 = arith.constant 0 : index
    %c128_174 = arith.constant 128 : index
    %268 = vector.load %arg12[%c0_173, %c128_174] : memref<8x256xf32, #tpu.memory_space<vmem>>, vector<8x128xf32>
    tpu.vector_store %arg12[%c0_173, %c128_174], %264 {strides = array<i32>} : memref<8x256xf32, #tpu.memory_space<vmem>>, vector<8x128xf32>,
    %c0_175 = arith.constant 0 : index
    %c0_176 = arith.constant 0 : index
    %269 = vector.load %arg12[%c0_175, %c0_176] : memref<8x256xf32, #tpu.memory_space<vmem>>, vector<8x256xf32>
    %270 = arith.truncf %269 : vector<8x256xf32> to vector<8x256xbf16>
    %c1_177 = arith.constant 1 : index
    %c0_178 = arith.constant 0 : index
    %c0_179 = arith.constant 0 : index
    %271 = vector.load %arg6[%c1_177, %c0_178, %c0_179] : memref<2x256x512xbf16, #tpu.memory_space<vmem>>, vector<1x256x512xbf16>
    %272 = vector.shape_cast %271 : vector<1x256x512xbf16> to vector<256x512xbf16>
    %cst_180 = arith.constant dense<0.000000e+00> : vector<8x512xf32>
    %273 = tpu.matmul %270, %272, %cst_180 {dimension_numbers = #tpu.dot_dimension_numbers<[1], [0], [0], [1], [0, 0, 1, 1], [], []>} : vector<8x256xbf16>, vector<256x512xbf16>, vector<8x512xf32> -> vector<8x512xf32>
    %c1_181 = arith.constant 1 : index
    %c0_182 = arith.constant 0 : index
    %c0_183 = arith.constant 0 : index
    %274 = vector.load %arg7[%c1_181, %c0_182, %c0_183] : memref<2x1x512xf32, #tpu.memory_space<vmem>>, vector<1x1x512xf32>
    %275 = vector.shape_cast %274 : vector<1x1x512xf32> to vector<1x512xf32>
    %276 = vector.broadcast %275 : vector<1x512xf32> to vector<8x512xf32>
    %277 = arith.addf %273, %276 : vector<8x512xf32>
    %278 = vector.extract_strided_slice %277 {offsets = [0, 0], sizes = [8, 128], strides = [1, 1]} : vector<8x512xf32> to vector<8x128xf32>
    %279 = arith.negf %278 : vector<8x128xf32>
    %280 = math.exp %279 : vector<8x128xf32>
    %cst_184 = arith.constant 1.000000e+00 : f32
    %281 = vector.broadcast %cst_184 : f32 to vector<8x128xf32>
    %282 = arith.addf %281, %280 : vector<8x128xf32>
    %283 = arith.divf %281, %282 : vector<8x128xf32>
    %284 = vector.extract_strided_slice %277 {offsets = [0, 128], sizes = [8, 128], strides = [1, 1]} : vector<8x512xf32> to vector<8x128xf32>
    %285 = arith.negf %284 : vector<8x128xf32>
    %286 = math.exp %285 : vector<8x128xf32>
    %cst_185 = arith.constant 1.000000e+00 : f32
    %287 = vector.broadcast %cst_185 : f32 to vector<8x128xf32>
    %288 = arith.addf %287, %286 : vector<8x128xf32>
    %289 = arith.divf %287, %288 : vector<8x128xf32>
    %290 = vector.extract_strided_slice %277 {offsets = [0, 256], sizes = [8, 128], strides = [1, 1]} : vector<8x512xf32> to vector<8x128xf32>
    %291 = math.tanh %290 : vector<8x128xf32>
    %292 = vector.extract_strided_slice %277 {offsets = [0, 384], sizes = [8, 128], strides = [1, 1]} : vector<8x512xf32> to vector<8x128xf32>
    %293 = arith.negf %292 : vector<8x128xf32>
    %294 = math.exp %293 : vector<8x128xf32>
    %cst_186 = arith.constant 1.000000e+00 : f32
    %295 = vector.broadcast %cst_186 : f32 to vector<8x128xf32>
    %296 = arith.addf %295, %294 : vector<8x128xf32>
    %297 = arith.divf %295, %296 : vector<8x128xf32>
    %298 = arith.mulf %289, %266 : vector<8x128xf32>
    %299 = arith.mulf %283, %291 : vector<8x128xf32>
    %300 = arith.addf %298, %299 : vector<8x128xf32>
    %301 = math.tanh %300 : vector<8x128xf32>
    %302 = arith.mulf %297, %301 : vector<8x128xf32>
    %c1_187 = arith.constant 1 : index
    %c0_188 = arith.constant 0 : index
    %c0_189 = arith.constant 0 : index
    %303 = vector.load %arg13[%c1_187, %c0_188, %c0_189] : memref<2x8x128xf32, #tpu.memory_space<vmem>>, vector<1x8x128xf32>
    %304 = vector.shape_cast %303 : vector<1x8x128xf32> to vector<8x128xf32>
    %305 = vector.shape_cast %302 : vector<8x128xf32> to vector<1x8x128xf32>
    tpu.vector_store %arg13[%c1_187, %c0_188, %c0_189], %305 {strides = array<i32>} : memref<2x8x128xf32, #tpu.memory_space<vmem>>, vector<1x8x128xf32>,
    %c1_190 = arith.constant 1 : index
    %c0_191 = arith.constant 0 : index
    %c0_192 = arith.constant 0 : index
    %306 = vector.load %arg14[%c1_190, %c0_191, %c0_192] : memref<2x8x128xf32, #tpu.memory_space<vmem>>, vector<1x8x128xf32>
    %307 = vector.shape_cast %306 : vector<1x8x128xf32> to vector<8x128xf32>
    %308 = vector.shape_cast %300 : vector<8x128xf32> to vector<1x8x128xf32>
    tpu.vector_store %arg14[%c1_190, %c0_191, %c0_192], %308 {strides = array<i32>} : memref<2x8x128xf32, #tpu.memory_space<vmem>>, vector<1x8x128xf32>,
    %c2_193 = arith.constant 2 : index
    %c0_194 = arith.constant 0 : index
    %c0_195 = arith.constant 0 : index
    %309 = vector.load %arg15[%c2_193, %c0_194, %c0_195] : memref<8x8x128xf32, #tpu.memory_space<vmem>>, vector<1x8x128xf32>
    %310 = vector.shape_cast %309 : vector<1x8x128xf32> to vector<8x128xf32>
    %311 = vector.shape_cast %302 : vector<8x128xf32> to vector<1x8x128xf32>
    tpu.vector_store %arg15[%c2_193, %c0_194, %c0_195], %311 {strides = array<i32>} : memref<8x8x128xf32, #tpu.memory_space<vmem>>, vector<1x8x128xf32>,
    %c3 = arith.constant 3 : index
    %c0_196 = arith.constant 0 : index
    %c0_197 = arith.constant 0 : index
    %312 = vector.load %arg11[%c3, %c0_196, %c0_197] : memref<8x8x128xf32, #tpu.memory_space<vmem>>, vector<1x8x128xf32>
    %313 = vector.shape_cast %312 : vector<1x8x128xf32> to vector<8x128xf32>
    %c0_198 = arith.constant 0 : index
    %c0_199 = arith.constant 0 : index
    %c0_200 = arith.constant 0 : index
    %314 = vector.load %arg13[%c0_198, %c0_199, %c0_200] : memref<2x8x128xf32, #tpu.memory_space<vmem>>, vector<1x8x128xf32>
    %315 = vector.shape_cast %314 : vector<1x8x128xf32> to vector<8x128xf32>
    %c0_201 = arith.constant 0 : index
    %c0_202 = arith.constant 0 : index
    %c0_203 = arith.constant 0 : index
    %316 = vector.load %arg14[%c0_201, %c0_202, %c0_203] : memref<2x8x128xf32, #tpu.memory_space<vmem>>, vector<1x8x128xf32>
    %317 = vector.shape_cast %316 : vector<1x8x128xf32> to vector<8x128xf32>
    %c0_204 = arith.constant 0 : index
    %c0_205 = arith.constant 0 : index
    %318 = vector.load %arg12[%c0_204, %c0_205] : memref<8x256xf32, #tpu.memory_space<vmem>>, vector<8x128xf32>
    tpu.vector_store %arg12[%c0_204, %c0_205], %313 {strides = array<i32>} : memref<8x256xf32, #tpu.memory_space<vmem>>, vector<8x128xf32>,
    %c0_206 = arith.constant 0 : index
    %c128_207 = arith.constant 128 : index
    %319 = vector.load %arg12[%c0_206, %c128_207] : memref<8x256xf32, #tpu.memory_space<vmem>>, vector<8x128xf32>
    tpu.vector_store %arg12[%c0_206, %c128_207], %315 {strides = array<i32>} : memref<8x256xf32, #tpu.memory_space<vmem>>, vector<8x128xf32>,
    %c0_208 = arith.constant 0 : index
    %c0_209 = arith.constant 0 : index
    %320 = vector.load %arg12[%c0_208, %c0_209] : memref<8x256xf32, #tpu.memory_space<vmem>>, vector<8x256xf32>
    %321 = arith.truncf %320 : vector<8x256xf32> to vector<8x256xbf16>
    %c0_210 = arith.constant 0 : index
    %c0_211 = arith.constant 0 : index
    %c0_212 = arith.constant 0 : index
    %322 = vector.load %arg6[%c0_210, %c0_211, %c0_212] : memref<2x256x512xbf16, #tpu.memory_space<vmem>>, vector<1x256x512xbf16>
    %323 = vector.shape_cast %322 : vector<1x256x512xbf16> to vector<256x512xbf16>
    %cst_213 = arith.constant dense<0.000000e+00> : vector<8x512xf32>
    %324 = tpu.matmul %321, %323, %cst_213 {dimension_numbers = #tpu.dot_dimension_numbers<[1], [0], [0], [1], [0, 0, 1, 1], [], []>} : vector<8x256xbf16>, vector<256x512xbf16>, vector<8x512xf32> -> vector<8x512xf32>
    %c0_214 = arith.constant 0 : index
    %c0_215 = arith.constant 0 : index
    %c0_216 = arith.constant 0 : index
    %325 = vector.load %arg7[%c0_214, %c0_215, %c0_216] : memref<2x1x512xf32, #tpu.memory_space<vmem>>, vector<1x1x512xf32>
    %326 = vector.shape_cast %325 : vector<1x1x512xf32> to vector<1x512xf32>
    %327 = vector.broadcast %326 : vector<1x512xf32> to vector<8x512xf32>
    %328 = arith.addf %324, %327 : vector<8x512xf32>
    %329 = vector.extract_strided_slice %328 {offsets = [0, 0], sizes = [8, 128], strides = [1, 1]} : vector<8x512xf32> to vector<8x128xf32>
    %330 = arith.negf %329 : vector<8x128xf32>
    %331 = math.exp %330 : vector<8x128xf32>
    %cst_217 = arith.constant 1.000000e+00 : f32
    %332 = vector.broadcast %cst_217 : f32 to vector<8x128xf32>
    %333 = arith.addf %332, %331 : vector<8x128xf32>
    %334 = arith.divf %332, %333 : vector<8x128xf32>
    %335 = vector.extract_strided_slice %328 {offsets = [0, 128], sizes = [8, 128], strides = [1, 1]} : vector<8x512xf32> to vector<8x128xf32>
    %336 = arith.negf %335 : vector<8x128xf32>
    %337 = math.exp %336 : vector<8x128xf32>
    %cst_218 = arith.constant 1.000000e+00 : f32
    %338 = vector.broadcast %cst_218 : f32 to vector<8x128xf32>
    %339 = arith.addf %338, %337 : vector<8x128xf32>
    %340 = arith.divf %338, %339 : vector<8x128xf32>
    %341 = vector.extract_strided_slice %328 {offsets = [0, 256], sizes = [8, 128], strides = [1, 1]} : vector<8x512xf32> to vector<8x128xf32>
    %342 = math.tanh %341 : vector<8x128xf32>
    %343 = vector.extract_strided_slice %328 {offsets = [0, 384], sizes = [8, 128], strides = [1, 1]} : vector<8x512xf32> to vector<8x128xf32>
    %344 = arith.negf %343 : vector<8x128xf32>
    %345 = math.exp %344 : vector<8x128xf32>
    %cst_219 = arith.constant 1.000000e+00 : f32
    %346 = vector.broadcast %cst_219 : f32 to vector<8x128xf32>
    %347 = arith.addf %346, %345 : vector<8x128xf32>
    %348 = arith.divf %346, %347 : vector<8x128xf32>
    %349 = arith.mulf %340, %317 : vector<8x128xf32>
    %350 = arith.mulf %334, %342 : vector<8x128xf32>
    %351 = arith.addf %349, %350 : vector<8x128xf32>
    %352 = math.tanh %351 : vector<8x128xf32>
    %353 = arith.mulf %348, %352 : vector<8x128xf32>
    %c0_220 = arith.constant 0 : index
    %c0_221 = arith.constant 0 : index
    %c0_222 = arith.constant 0 : index
    %354 = vector.load %arg13[%c0_220, %c0_221, %c0_222] : memref<2x8x128xf32, #tpu.memory_space<vmem>>, vector<1x8x128xf32>
    %355 = vector.shape_cast %354 : vector<1x8x128xf32> to vector<8x128xf32>
    %356 = vector.shape_cast %353 : vector<8x128xf32> to vector<1x8x128xf32>
    tpu.vector_store %arg13[%c0_220, %c0_221, %c0_222], %356 {strides = array<i32>} : memref<2x8x128xf32, #tpu.memory_space<vmem>>, vector<1x8x128xf32>,
    %c0_223 = arith.constant 0 : index
    %c0_224 = arith.constant 0 : index
    %c0_225 = arith.constant 0 : index
    %357 = vector.load %arg14[%c0_223, %c0_224, %c0_225] : memref<2x8x128xf32, #tpu.memory_space<vmem>>, vector<1x8x128xf32>
    %358 = vector.shape_cast %357 : vector<1x8x128xf32> to vector<8x128xf32>
    %359 = vector.shape_cast %351 : vector<8x128xf32> to vector<1x8x128xf32>
    tpu.vector_store %arg14[%c0_223, %c0_224, %c0_225], %359 {strides = array<i32>} : memref<2x8x128xf32, #tpu.memory_space<vmem>>, vector<1x8x128xf32>,
    %c1_226 = arith.constant 1 : index
    %c0_227 = arith.constant 0 : index
    %c0_228 = arith.constant 0 : index
    %360 = vector.load %arg13[%c1_226, %c0_227, %c0_228] : memref<2x8x128xf32, #tpu.memory_space<vmem>>, vector<1x8x128xf32>
    %361 = vector.shape_cast %360 : vector<1x8x128xf32> to vector<8x128xf32>
    %c1_229 = arith.constant 1 : index
    %c0_230 = arith.constant 0 : index
    %c0_231 = arith.constant 0 : index
    %362 = vector.load %arg14[%c1_229, %c0_230, %c0_231] : memref<2x8x128xf32, #tpu.memory_space<vmem>>, vector<1x8x128xf32>
    %363 = vector.shape_cast %362 : vector<1x8x128xf32> to vector<8x128xf32>
    %c0_232 = arith.constant 0 : index
    %c0_233 = arith.constant 0 : index
    %364 = vector.load %arg12[%c0_232, %c0_233] : memref<8x256xf32, #tpu.memory_space<vmem>>, vector<8x128xf32>
    tpu.vector_store %arg12[%c0_232, %c0_233], %353 {strides = array<i32>} : memref<8x256xf32, #tpu.memory_space<vmem>>, vector<8x128xf32>,
    %c0_234 = arith.constant 0 : index
    %c128_235 = arith.constant 128 : index
    %365 = vector.load %arg12[%c0_234, %c128_235] : memref<8x256xf32, #tpu.memory_space<vmem>>, vector<8x128xf32>
    tpu.vector_store %arg12[%c0_234, %c128_235], %361 {strides = array<i32>} : memref<8x256xf32, #tpu.memory_space<vmem>>, vector<8x128xf32>,
    %c0_236 = arith.constant 0 : index
    %c0_237 = arith.constant 0 : index
    %366 = vector.load %arg12[%c0_236, %c0_237] : memref<8x256xf32, #tpu.memory_space<vmem>>, vector<8x256xf32>
    %367 = arith.truncf %366 : vector<8x256xf32> to vector<8x256xbf16>
    %c1_238 = arith.constant 1 : index
    %c0_239 = arith.constant 0 : index
    %c0_240 = arith.constant 0 : index
    %368 = vector.load %arg6[%c1_238, %c0_239, %c0_240] : memref<2x256x512xbf16, #tpu.memory_space<vmem>>, vector<1x256x512xbf16>
    %369 = vector.shape_cast %368 : vector<1x256x512xbf16> to vector<256x512xbf16>
    %cst_241 = arith.constant dense<0.000000e+00> : vector<8x512xf32>
    %370 = tpu.matmul %367, %369, %cst_241 {dimension_numbers = #tpu.dot_dimension_numbers<[1], [0], [0], [1], [0, 0, 1, 1], [], []>} : vector<8x256xbf16>, vector<256x512xbf16>, vector<8x512xf32> -> vector<8x512xf32>
    %c1_242 = arith.constant 1 : index
    %c0_243 = arith.constant 0 : index
    %c0_244 = arith.constant 0 : index
    %371 = vector.load %arg7[%c1_242, %c0_243, %c0_244] : memref<2x1x512xf32, #tpu.memory_space<vmem>>, vector<1x1x512xf32>
    %372 = vector.shape_cast %371 : vector<1x1x512xf32> to vector<1x512xf32>
    %373 = vector.broadcast %372 : vector<1x512xf32> to vector<8x512xf32>
    %374 = arith.addf %370, %373 : vector<8x512xf32>
    %375 = vector.extract_strided_slice %374 {offsets = [0, 0], sizes = [8, 128], strides = [1, 1]} : vector<8x512xf32> to vector<8x128xf32>
    %376 = arith.negf %375 : vector<8x128xf32>
    %377 = math.exp %376 : vector<8x128xf32>
    %cst_245 = arith.constant 1.000000e+00 : f32
    %378 = vector.broadcast %cst_245 : f32 to vector<8x128xf32>
    %379 = arith.addf %378, %377 : vector<8x128xf32>
    %380 = arith.divf %378, %379 : vector<8x128xf32>
    %381 = vector.extract_strided_slice %374 {offsets = [0, 128], sizes = [8, 128], strides = [1, 1]} : vector<8x512xf32> to vector<8x128xf32>
    %382 = arith.negf %381 : vector<8x128xf32>
    %383 = math.exp %382 : vector<8x128xf32>
    %cst_246 = arith.constant 1.000000e+00 : f32
    %384 = vector.broadcast %cst_246 : f32 to vector<8x128xf32>
    %385 = arith.addf %384, %383 : vector<8x128xf32>
    %386 = arith.divf %384, %385 : vector<8x128xf32>
    %387 = vector.extract_strided_slice %374 {offsets = [0, 256], sizes = [8, 128], strides = [1, 1]} : vector<8x512xf32> to vector<8x128xf32>
    %388 = math.tanh %387 : vector<8x128xf32>
    %389 = vector.extract_strided_slice %374 {offsets = [0, 384], sizes = [8, 128], strides = [1, 1]} : vector<8x512xf32> to vector<8x128xf32>
    %390 = arith.negf %389 : vector<8x128xf32>
    %391 = math.exp %390 : vector<8x128xf32>
    %cst_247 = arith.constant 1.000000e+00 : f32
    %392 = vector.broadcast %cst_247 : f32 to vector<8x128xf32>
    %393 = arith.addf %392, %391 : vector<8x128xf32>
    %394 = arith.divf %392, %393 : vector<8x128xf32>
    %395 = arith.mulf %386, %363 : vector<8x128xf32>
    %396 = arith.mulf %380, %388 : vector<8x128xf32>
    %397 = arith.addf %395, %396 : vector<8x128xf32>
    %398 = math.tanh %397 : vector<8x128xf32>
    %399 = arith.mulf %394, %398 : vector<8x128xf32>
    %c1_248 = arith.constant 1 : index
    %c0_249 = arith.constant 0 : index
    %c0_250 = arith.constant 0 : index
    %400 = vector.load %arg13[%c1_248, %c0_249, %c0_250] : memref<2x8x128xf32, #tpu.memory_space<vmem>>, vector<1x8x128xf32>
    %401 = vector.shape_cast %400 : vector<1x8x128xf32> to vector<8x128xf32>
    %402 = vector.shape_cast %399 : vector<8x128xf32> to vector<1x8x128xf32>
    tpu.vector_store %arg13[%c1_248, %c0_249, %c0_250], %402 {strides = array<i32>} : memref<2x8x128xf32, #tpu.memory_space<vmem>>, vector<1x8x128xf32>,
    %c1_251 = arith.constant 1 : index
    %c0_252 = arith.constant 0 : index
    %c0_253 = arith.constant 0 : index
    %403 = vector.load %arg14[%c1_251, %c0_252, %c0_253] : memref<2x8x128xf32, #tpu.memory_space<vmem>>, vector<1x8x128xf32>
    %404 = vector.shape_cast %403 : vector<1x8x128xf32> to vector<8x128xf32>
    %405 = vector.shape_cast %397 : vector<8x128xf32> to vector<1x8x128xf32>
    tpu.vector_store %arg14[%c1_251, %c0_252, %c0_253], %405 {strides = array<i32>} : memref<2x8x128xf32, #tpu.memory_space<vmem>>, vector<1x8x128xf32>,
    %c3_254 = arith.constant 3 : index
    %c0_255 = arith.constant 0 : index
    %c0_256 = arith.constant 0 : index
    %406 = vector.load %arg15[%c3_254, %c0_255, %c0_256] : memref<8x8x128xf32, #tpu.memory_space<vmem>>, vector<1x8x128xf32>
    %407 = vector.shape_cast %406 : vector<1x8x128xf32> to vector<8x128xf32>
    %408 = vector.shape_cast %399 : vector<8x128xf32> to vector<1x8x128xf32>
    tpu.vector_store %arg15[%c3_254, %c0_255, %c0_256], %408 {strides = array<i32>} : memref<8x8x128xf32, #tpu.memory_space<vmem>>, vector<1x8x128xf32>,
    %c4 = arith.constant 4 : index
    %c0_257 = arith.constant 0 : index
    %c0_258 = arith.constant 0 : index
    %409 = vector.load %arg11[%c4, %c0_257, %c0_258] : memref<8x8x128xf32, #tpu.memory_space<vmem>>, vector<1x8x128xf32>
    %410 = vector.shape_cast %409 : vector<1x8x128xf32> to vector<8x128xf32>
    %c0_259 = arith.constant 0 : index
    %c0_260 = arith.constant 0 : index
    %c0_261 = arith.constant 0 : index
    %411 = vector.load %arg13[%c0_259, %c0_260, %c0_261] : memref<2x8x128xf32, #tpu.memory_space<vmem>>, vector<1x8x128xf32>
    %412 = vector.shape_cast %411 : vector<1x8x128xf32> to vector<8x128xf32>
    %c0_262 = arith.constant 0 : index
    %c0_263 = arith.constant 0 : index
    %c0_264 = arith.constant 0 : index
    %413 = vector.load %arg14[%c0_262, %c0_263, %c0_264] : memref<2x8x128xf32, #tpu.memory_space<vmem>>, vector<1x8x128xf32>
    %414 = vector.shape_cast %413 : vector<1x8x128xf32> to vector<8x128xf32>
    %c0_265 = arith.constant 0 : index
    %c0_266 = arith.constant 0 : index
    %415 = vector.load %arg12[%c0_265, %c0_266] : memref<8x256xf32, #tpu.memory_space<vmem>>, vector<8x128xf32>
    tpu.vector_store %arg12[%c0_265, %c0_266], %410 {strides = array<i32>} : memref<8x256xf32, #tpu.memory_space<vmem>>, vector<8x128xf32>,
    %c0_267 = arith.constant 0 : index
    %c128_268 = arith.constant 128 : index
    %416 = vector.load %arg12[%c0_267, %c128_268] : memref<8x256xf32, #tpu.memory_space<vmem>>, vector<8x128xf32>
    tpu.vector_store %arg12[%c0_267, %c128_268], %412 {strides = array<i32>} : memref<8x256xf32, #tpu.memory_space<vmem>>, vector<8x128xf32>,
    %c0_269 = arith.constant 0 : index
    %c0_270 = arith.constant 0 : index
    %417 = vector.load %arg12[%c0_269, %c0_270] : memref<8x256xf32, #tpu.memory_space<vmem>>, vector<8x256xf32>
    %418 = arith.truncf %417 : vector<8x256xf32> to vector<8x256xbf16>
    %c0_271 = arith.constant 0 : index
    %c0_272 = arith.constant 0 : index
    %c0_273 = arith.constant 0 : index
    %419 = vector.load %arg6[%c0_271, %c0_272, %c0_273] : memref<2x256x512xbf16, #tpu.memory_space<vmem>>, vector<1x256x512xbf16>
    %420 = vector.shape_cast %419 : vector<1x256x512xbf16> to vector<256x512xbf16>
    %cst_274 = arith.constant dense<0.000000e+00> : vector<8x512xf32>
    %421 = tpu.matmul %418, %420, %cst_274 {dimension_numbers = #tpu.dot_dimension_numbers<[1], [0], [0], [1], [0, 0, 1, 1], [], []>} : vector<8x256xbf16>, vector<256x512xbf16>, vector<8x512xf32> -> vector<8x512xf32>
    %c0_275 = arith.constant 0 : index
    %c0_276 = arith.constant 0 : index
    %c0_277 = arith.constant 0 : index
    %422 = vector.load %arg7[%c0_275, %c0_276, %c0_277] : memref<2x1x512xf32, #tpu.memory_space<vmem>>, vector<1x1x512xf32>
    %423 = vector.shape_cast %422 : vector<1x1x512xf32> to vector<1x512xf32>
    %424 = vector.broadcast %423 : vector<1x512xf32> to vector<8x512xf32>
    %425 = arith.addf %421, %424 : vector<8x512xf32>
    %426 = vector.extract_strided_slice %425 {offsets = [0, 0], sizes = [8, 128], strides = [1, 1]} : vector<8x512xf32> to vector<8x128xf32>
    %427 = arith.negf %426 : vector<8x128xf32>
    %428 = math.exp %427 : vector<8x128xf32>
    %cst_278 = arith.constant 1.000000e+00 : f32
    %429 = vector.broadcast %cst_278 : f32 to vector<8x128xf32>
    %430 = arith.addf %429, %428 : vector<8x128xf32>
    %431 = arith.divf %429, %430 : vector<8x128xf32>
    %432 = vector.extract_strided_slice %425 {offsets = [0, 128], sizes = [8, 128], strides = [1, 1]} : vector<8x512xf32> to vector<8x128xf32>
    %433 = arith.negf %432 : vector<8x128xf32>
    %434 = math.exp %433 : vector<8x128xf32>
    %cst_279 = arith.constant 1.000000e+00 : f32
    %435 = vector.broadcast %cst_279 : f32 to vector<8x128xf32>
    %436 = arith.addf %435, %434 : vector<8x128xf32>
    %437 = arith.divf %435, %436 : vector<8x128xf32>
    %438 = vector.extract_strided_slice %425 {offsets = [0, 256], sizes = [8, 128], strides = [1, 1]} : vector<8x512xf32> to vector<8x128xf32>
    %439 = math.tanh %438 : vector<8x128xf32>
    %440 = vector.extract_strided_slice %425 {offsets = [0, 384], sizes = [8, 128], strides = [1, 1]} : vector<8x512xf32> to vector<8x128xf32>
    %441 = arith.negf %440 : vector<8x128xf32>
    %442 = math.exp %441 : vector<8x128xf32>
    %cst_280 = arith.constant 1.000000e+00 : f32
    %443 = vector.broadcast %cst_280 : f32 to vector<8x128xf32>
    %444 = arith.addf %443, %442 : vector<8x128xf32>
    %445 = arith.divf %443, %444 : vector<8x128xf32>
    %446 = arith.mulf %437, %414 : vector<8x128xf32>
    %447 = arith.mulf %431, %439 : vector<8x128xf32>
    %448 = arith.addf %446, %447 : vector<8x128xf32>
    %449 = math.tanh %448 : vector<8x128xf32>
    %450 = arith.mulf %445, %449 : vector<8x128xf32>
    %c0_281 = arith.constant 0 : index
    %c0_282 = arith.constant 0 : index
    %c0_283 = arith.constant 0 : index
    %451 = vector.load %arg13[%c0_281, %c0_282, %c0_283] : memref<2x8x128xf32, #tpu.memory_space<vmem>>, vector<1x8x128xf32>
    %452 = vector.shape_cast %451 : vector<1x8x128xf32> to vector<8x128xf32>
    %453 = vector.shape_cast %450 : vector<8x128xf32> to vector<1x8x128xf32>
    tpu.vector_store %arg13[%c0_281, %c0_282, %c0_283], %453 {strides = array<i32>} : memref<2x8x128xf32, #tpu.memory_space<vmem>>, vector<1x8x128xf32>,
    %c0_284 = arith.constant 0 : index
    %c0_285 = arith.constant 0 : index
    %c0_286 = arith.constant 0 : index
    %454 = vector.load %arg14[%c0_284, %c0_285, %c0_286] : memref<2x8x128xf32, #tpu.memory_space<vmem>>, vector<1x8x128xf32>
    %455 = vector.shape_cast %454 : vector<1x8x128xf32> to vector<8x128xf32>
    %456 = vector.shape_cast %448 : vector<8x128xf32> to vector<1x8x128xf32>
    tpu.vector_store %arg14[%c0_284, %c0_285, %c0_286], %456 {strides = array<i32>} : memref<2x8x128xf32, #tpu.memory_space<vmem>>, vector<1x8x128xf32>,
    %c1_287 = arith.constant 1 : index
    %c0_288 = arith.constant 0 : index
    %c0_289 = arith.constant 0 : index
    %457 = vector.load %arg13[%c1_287, %c0_288, %c0_289] : memref<2x8x128xf32, #tpu.memory_space<vmem>>, vector<1x8x128xf32>
    %458 = vector.shape_cast %457 : vector<1x8x128xf32> to vector<8x128xf32>
    %c1_290 = arith.constant 1 : index
    %c0_291 = arith.constant 0 : index
    %c0_292 = arith.constant 0 : index
    %459 = vector.load %arg14[%c1_290, %c0_291, %c0_292] : memref<2x8x128xf32, #tpu.memory_space<vmem>>, vector<1x8x128xf32>
    %460 = vector.shape_cast %459 : vector<1x8x128xf32> to vector<8x128xf32>
    %c0_293 = arith.constant 0 : index
    %c0_294 = arith.constant 0 : index
    %461 = vector.load %arg12[%c0_293, %c0_294] : memref<8x256xf32, #tpu.memory_space<vmem>>, vector<8x128xf32>
    tpu.vector_store %arg12[%c0_293, %c0_294], %450 {strides = array<i32>} : memref<8x256xf32, #tpu.memory_space<vmem>>, vector<8x128xf32>,
    %c0_295 = arith.constant 0 : index
    %c128_296 = arith.constant 128 : index
    %462 = vector.load %arg12[%c0_295, %c128_296] : memref<8x256xf32, #tpu.memory_space<vmem>>, vector<8x128xf32>
    tpu.vector_store %arg12[%c0_295, %c128_296], %458 {strides = array<i32>} : memref<8x256xf32, #tpu.memory_space<vmem>>, vector<8x128xf32>,
    %c0_297 = arith.constant 0 : index
    %c0_298 = arith.constant 0 : index
    %463 = vector.load %arg12[%c0_297, %c0_298] : memref<8x256xf32, #tpu.memory_space<vmem>>, vector<8x256xf32>
    %464 = arith.truncf %463 : vector<8x256xf32> to vector<8x256xbf16>
    %c1_299 = arith.constant 1 : index
    %c0_300 = arith.constant 0 : index
    %c0_301 = arith.constant 0 : index
    %465 = vector.load %arg6[%c1_299, %c0_300, %c0_301] : memref<2x256x512xbf16, #tpu.memory_space<vmem>>, vector<1x256x512xbf16>
    %466 = vector.shape_cast %465 : vector<1x256x512xbf16> to vector<256x512xbf16>
    %cst_302 = arith.constant dense<0.000000e+00> : vector<8x512xf32>
    %467 = tpu.matmul %464, %466, %cst_302 {dimension_numbers = #tpu.dot_dimension_numbers<[1], [0], [0], [1], [0, 0, 1, 1], [], []>} : vector<8x256xbf16>, vector<256x512xbf16>, vector<8x512xf32> -> vector<8x512xf32>
    %c1_303 = arith.constant 1 : index
    %c0_304 = arith.constant 0 : index
    %c0_305 = arith.constant 0 : index
    %468 = vector.load %arg7[%c1_303, %c0_304, %c0_305] : memref<2x1x512xf32, #tpu.memory_space<vmem>>, vector<1x1x512xf32>
    %469 = vector.shape_cast %468 : vector<1x1x512xf32> to vector<1x512xf32>
    %470 = vector.broadcast %469 : vector<1x512xf32> to vector<8x512xf32>
    %471 = arith.addf %467, %470 : vector<8x512xf32>
    %472 = vector.extract_strided_slice %471 {offsets = [0, 0], sizes = [8, 128], strides = [1, 1]} : vector<8x512xf32> to vector<8x128xf32>
    %473 = arith.negf %472 : vector<8x128xf32>
    %474 = math.exp %473 : vector<8x128xf32>
    %cst_306 = arith.constant 1.000000e+00 : f32
    %475 = vector.broadcast %cst_306 : f32 to vector<8x128xf32>
    %476 = arith.addf %475, %474 : vector<8x128xf32>
    %477 = arith.divf %475, %476 : vector<8x128xf32>
    %478 = vector.extract_strided_slice %471 {offsets = [0, 128], sizes = [8, 128], strides = [1, 1]} : vector<8x512xf32> to vector<8x128xf32>
    %479 = arith.negf %478 : vector<8x128xf32>
    %480 = math.exp %479 : vector<8x128xf32>
    %cst_307 = arith.constant 1.000000e+00 : f32
    %481 = vector.broadcast %cst_307 : f32 to vector<8x128xf32>
    %482 = arith.addf %481, %480 : vector<8x128xf32>
    %483 = arith.divf %481, %482 : vector<8x128xf32>
    %484 = vector.extract_strided_slice %471 {offsets = [0, 256], sizes = [8, 128], strides = [1, 1]} : vector<8x512xf32> to vector<8x128xf32>
    %485 = math.tanh %484 : vector<8x128xf32>
    %486 = vector.extract_strided_slice %471 {offsets = [0, 384], sizes = [8, 128], strides = [1, 1]} : vector<8x512xf32> to vector<8x128xf32>
    %487 = arith.negf %486 : vector<8x128xf32>
    %488 = math.exp %487 : vector<8x128xf32>
    %cst_308 = arith.constant 1.000000e+00 : f32
    %489 = vector.broadcast %cst_308 : f32 to vector<8x128xf32>
    %490 = arith.addf %489, %488 : vector<8x128xf32>
    %491 = arith.divf %489, %490 : vector<8x128xf32>
    %492 = arith.mulf %483, %460 : vector<8x128xf32>
    %493 = arith.mulf %477, %485 : vector<8x128xf32>
    %494 = arith.addf %492, %493 : vector<8x128xf32>
    %495 = math.tanh %494 : vector<8x128xf32>
    %496 = arith.mulf %491, %495 : vector<8x128xf32>
    %c1_309 = arith.constant 1 : index
    %c0_310 = arith.constant 0 : index
    %c0_311 = arith.constant 0 : index
    %497 = vector.load %arg13[%c1_309, %c0_310, %c0_311] : memref<2x8x128xf32, #tpu.memory_space<vmem>>, vector<1x8x128xf32>
    %498 = vector.shape_cast %497 : vector<1x8x128xf32> to vector<8x128xf32>
    %499 = vector.shape_cast %496 : vector<8x128xf32> to vector<1x8x128xf32>
    tpu.vector_store %arg13[%c1_309, %c0_310, %c0_311], %499 {strides = array<i32>} : memref<2x8x128xf32, #tpu.memory_space<vmem>>, vector<1x8x128xf32>,
    %c1_312 = arith.constant 1 : index
    %c0_313 = arith.constant 0 : index
    %c0_314 = arith.constant 0 : index
    %500 = vector.load %arg14[%c1_312, %c0_313, %c0_314] : memref<2x8x128xf32, #tpu.memory_space<vmem>>, vector<1x8x128xf32>
    %501 = vector.shape_cast %500 : vector<1x8x128xf32> to vector<8x128xf32>
    %502 = vector.shape_cast %494 : vector<8x128xf32> to vector<1x8x128xf32>
    tpu.vector_store %arg14[%c1_312, %c0_313, %c0_314], %502 {strides = array<i32>} : memref<2x8x128xf32, #tpu.memory_space<vmem>>, vector<1x8x128xf32>,
    %c4_315 = arith.constant 4 : index
    %c0_316 = arith.constant 0 : index
    %c0_317 = arith.constant 0 : index
    %503 = vector.load %arg15[%c4_315, %c0_316, %c0_317] : memref<8x8x128xf32, #tpu.memory_space<vmem>>, vector<1x8x128xf32>
    %504 = vector.shape_cast %503 : vector<1x8x128xf32> to vector<8x128xf32>
    %505 = vector.shape_cast %496 : vector<8x128xf32> to vector<1x8x128xf32>
    tpu.vector_store %arg15[%c4_315, %c0_316, %c0_317], %505 {strides = array<i32>} : memref<8x8x128xf32, #tpu.memory_space<vmem>>, vector<1x8x128xf32>,
    %c5 = arith.constant 5 : index
    %c0_318 = arith.constant 0 : index
    %c0_319 = arith.constant 0 : index
    %506 = vector.load %arg11[%c5, %c0_318, %c0_319] : memref<8x8x128xf32, #tpu.memory_space<vmem>>, vector<1x8x128xf32>
    %507 = vector.shape_cast %506 : vector<1x8x128xf32> to vector<8x128xf32>
    %c0_320 = arith.constant 0 : index
    %c0_321 = arith.constant 0 : index
    %c0_322 = arith.constant 0 : index
    %508 = vector.load %arg13[%c0_320, %c0_321, %c0_322] : memref<2x8x128xf32, #tpu.memory_space<vmem>>, vector<1x8x128xf32>
    %509 = vector.shape_cast %508 : vector<1x8x128xf32> to vector<8x128xf32>
    %c0_323 = arith.constant 0 : index
    %c0_324 = arith.constant 0 : index
    %c0_325 = arith.constant 0 : index
    %510 = vector.load %arg14[%c0_323, %c0_324, %c0_325] : memref<2x8x128xf32, #tpu.memory_space<vmem>>, vector<1x8x128xf32>
    %511 = vector.shape_cast %510 : vector<1x8x128xf32> to vector<8x128xf32>
    %c0_326 = arith.constant 0 : index
    %c0_327 = arith.constant 0 : index
    %512 = vector.load %arg12[%c0_326, %c0_327] : memref<8x256xf32, #tpu.memory_space<vmem>>, vector<8x128xf32>
    tpu.vector_store %arg12[%c0_326, %c0_327], %507 {strides = array<i32>} : memref<8x256xf32, #tpu.memory_space<vmem>>, vector<8x128xf32>,
    %c0_328 = arith.constant 0 : index
    %c128_329 = arith.constant 128 : index
    %513 = vector.load %arg12[%c0_328, %c128_329] : memref<8x256xf32, #tpu.memory_space<vmem>>, vector<8x128xf32>
    tpu.vector_store %arg12[%c0_328, %c128_329], %509 {strides = array<i32>} : memref<8x256xf32, #tpu.memory_space<vmem>>, vector<8x128xf32>,
    %c0_330 = arith.constant 0 : index
    %c0_331 = arith.constant 0 : index
    %514 = vector.load %arg12[%c0_330, %c0_331] : memref<8x256xf32, #tpu.memory_space<vmem>>, vector<8x256xf32>
    %515 = arith.truncf %514 : vector<8x256xf32> to vector<8x256xbf16>
    %c0_332 = arith.constant 0 : index
    %c0_333 = arith.constant 0 : index
    %c0_334 = arith.constant 0 : index
    %516 = vector.load %arg6[%c0_332, %c0_333, %c0_334] : memref<2x256x512xbf16, #tpu.memory_space<vmem>>, vector<1x256x512xbf16>
    %517 = vector.shape_cast %516 : vector<1x256x512xbf16> to vector<256x512xbf16>
    %cst_335 = arith.constant dense<0.000000e+00> : vector<8x512xf32>
    %518 = tpu.matmul %515, %517, %cst_335 {dimension_numbers = #tpu.dot_dimension_numbers<[1], [0], [0], [1], [0, 0, 1, 1], [], []>} : vector<8x256xbf16>, vector<256x512xbf16>, vector<8x512xf32> -> vector<8x512xf32>
    %c0_336 = arith.constant 0 : index
    %c0_337 = arith.constant 0 : index
    %c0_338 = arith.constant 0 : index
    %519 = vector.load %arg7[%c0_336, %c0_337, %c0_338] : memref<2x1x512xf32, #tpu.memory_space<vmem>>, vector<1x1x512xf32>
    %520 = vector.shape_cast %519 : vector<1x1x512xf32> to vector<1x512xf32>
    %521 = vector.broadcast %520 : vector<1x512xf32> to vector<8x512xf32>
    %522 = arith.addf %518, %521 : vector<8x512xf32>
    %523 = vector.extract_strided_slice %522 {offsets = [0, 0], sizes = [8, 128], strides = [1, 1]} : vector<8x512xf32> to vector<8x128xf32>
    %524 = arith.negf %523 : vector<8x128xf32>
    %525 = math.exp %524 : vector<8x128xf32>
    %cst_339 = arith.constant 1.000000e+00 : f32
    %526 = vector.broadcast %cst_339 : f32 to vector<8x128xf32>
    %527 = arith.addf %526, %525 : vector<8x128xf32>
    %528 = arith.divf %526, %527 : vector<8x128xf32>
    %529 = vector.extract_strided_slice %522 {offsets = [0, 128], sizes = [8, 128], strides = [1, 1]} : vector<8x512xf32> to vector<8x128xf32>
    %530 = arith.negf %529 : vector<8x128xf32>
    %531 = math.exp %530 : vector<8x128xf32>
    %cst_340 = arith.constant 1.000000e+00 : f32
    %532 = vector.broadcast %cst_340 : f32 to vector<8x128xf32>
    %533 = arith.addf %532, %531 : vector<8x128xf32>
    %534 = arith.divf %532, %533 : vector<8x128xf32>
    %535 = vector.extract_strided_slice %522 {offsets = [0, 256], sizes = [8, 128], strides = [1, 1]} : vector<8x512xf32> to vector<8x128xf32>
    %536 = math.tanh %535 : vector<8x128xf32>
    %537 = vector.extract_strided_slice %522 {offsets = [0, 384], sizes = [8, 128], strides = [1, 1]} : vector<8x512xf32> to vector<8x128xf32>
    %538 = arith.negf %537 : vector<8x128xf32>
    %539 = math.exp %538 : vector<8x128xf32>
    %cst_341 = arith.constant 1.000000e+00 : f32
    %540 = vector.broadcast %cst_341 : f32 to vector<8x128xf32>
    %541 = arith.addf %540, %539 : vector<8x128xf32>
    %542 = arith.divf %540, %541 : vector<8x128xf32>
    %543 = arith.mulf %534, %511 : vector<8x128xf32>
    %544 = arith.mulf %528, %536 : vector<8x128xf32>
    %545 = arith.addf %543, %544 : vector<8x128xf32>
    %546 = math.tanh %545 : vector<8x128xf32>
    %547 = arith.mulf %542, %546 : vector<8x128xf32>
    %c0_342 = arith.constant 0 : index
    %c0_343 = arith.constant 0 : index
    %c0_344 = arith.constant 0 : index
    %548 = vector.load %arg13[%c0_342, %c0_343, %c0_344] : memref<2x8x128xf32, #tpu.memory_space<vmem>>, vector<1x8x128xf32>
    %549 = vector.shape_cast %548 : vector<1x8x128xf32> to vector<8x128xf32>
    %550 = vector.shape_cast %547 : vector<8x128xf32> to vector<1x8x128xf32>
    tpu.vector_store %arg13[%c0_342, %c0_343, %c0_344], %550 {strides = array<i32>} : memref<2x8x128xf32, #tpu.memory_space<vmem>>, vector<1x8x128xf32>,
    %c0_345 = arith.constant 0 : index
    %c0_346 = arith.constant 0 : index
    %c0_347 = arith.constant 0 : index
    %551 = vector.load %arg14[%c0_345, %c0_346, %c0_347] : memref<2x8x128xf32, #tpu.memory_space<vmem>>, vector<1x8x128xf32>
    %552 = vector.shape_cast %551 : vector<1x8x128xf32> to vector<8x128xf32>
    %553 = vector.shape_cast %545 : vector<8x128xf32> to vector<1x8x128xf32>
    tpu.vector_store %arg14[%c0_345, %c0_346, %c0_347], %553 {strides = array<i32>} : memref<2x8x128xf32, #tpu.memory_space<vmem>>, vector<1x8x128xf32>,
    %c1_348 = arith.constant 1 : index
    %c0_349 = arith.constant 0 : index
    %c0_350 = arith.constant 0 : index
    %554 = vector.load %arg13[%c1_348, %c0_349, %c0_350] : memref<2x8x128xf32, #tpu.memory_space<vmem>>, vector<1x8x128xf32>
    %555 = vector.shape_cast %554 : vector<1x8x128xf32> to vector<8x128xf32>
    %c1_351 = arith.constant 1 : index
    %c0_352 = arith.constant 0 : index
    %c0_353 = arith.constant 0 : index
    %556 = vector.load %arg14[%c1_351, %c0_352, %c0_353] : memref<2x8x128xf32, #tpu.memory_space<vmem>>, vector<1x8x128xf32>
    %557 = vector.shape_cast %556 : vector<1x8x128xf32> to vector<8x128xf32>
    %c0_354 = arith.constant 0 : index
    %c0_355 = arith.constant 0 : index
    %558 = vector.load %arg12[%c0_354, %c0_355] : memref<8x256xf32, #tpu.memory_space<vmem>>, vector<8x128xf32>
    tpu.vector_store %arg12[%c0_354, %c0_355], %547 {strides = array<i32>} : memref<8x256xf32, #tpu.memory_space<vmem>>, vector<8x128xf32>,
    %c0_356 = arith.constant 0 : index
    %c128_357 = arith.constant 128 : index
    %559 = vector.load %arg12[%c0_356, %c128_357] : memref<8x256xf32, #tpu.memory_space<vmem>>, vector<8x128xf32>
    tpu.vector_store %arg12[%c0_356, %c128_357], %555 {strides = array<i32>} : memref<8x256xf32, #tpu.memory_space<vmem>>, vector<8x128xf32>,
    %c0_358 = arith.constant 0 : index
    %c0_359 = arith.constant 0 : index
    %560 = vector.load %arg12[%c0_358, %c0_359] : memref<8x256xf32, #tpu.memory_space<vmem>>, vector<8x256xf32>
    %561 = arith.truncf %560 : vector<8x256xf32> to vector<8x256xbf16>
    %c1_360 = arith.constant 1 : index
    %c0_361 = arith.constant 0 : index
    %c0_362 = arith.constant 0 : index
    %562 = vector.load %arg6[%c1_360, %c0_361, %c0_362] : memref<2x256x512xbf16, #tpu.memory_space<vmem>>, vector<1x256x512xbf16>
    %563 = vector.shape_cast %562 : vector<1x256x512xbf16> to vector<256x512xbf16>
    %cst_363 = arith.constant dense<0.000000e+00> : vector<8x512xf32>
    %564 = tpu.matmul %561, %563, %cst_363 {dimension_numbers = #tpu.dot_dimension_numbers<[1], [0], [0], [1], [0, 0, 1, 1], [], []>} : vector<8x256xbf16>, vector<256x512xbf16>, vector<8x512xf32> -> vector<8x512xf32>
    %c1_364 = arith.constant 1 : index
    %c0_365 = arith.constant 0 : index
    %c0_366 = arith.constant 0 : index
    %565 = vector.load %arg7[%c1_364, %c0_365, %c0_366] : memref<2x1x512xf32, #tpu.memory_space<vmem>>, vector<1x1x512xf32>
    %566 = vector.shape_cast %565 : vector<1x1x512xf32> to vector<1x512xf32>
    %567 = vector.broadcast %566 : vector<1x512xf32> to vector<8x512xf32>
    %568 = arith.addf %564, %567 : vector<8x512xf32>
    %569 = vector.extract_strided_slice %568 {offsets = [0, 0], sizes = [8, 128], strides = [1, 1]} : vector<8x512xf32> to vector<8x128xf32>
    %570 = arith.negf %569 : vector<8x128xf32>
    %571 = math.exp %570 : vector<8x128xf32>
    %cst_367 = arith.constant 1.000000e+00 : f32
    %572 = vector.broadcast %cst_367 : f32 to vector<8x128xf32>
    %573 = arith.addf %572, %571 : vector<8x128xf32>
    %574 = arith.divf %572, %573 : vector<8x128xf32>
    %575 = vector.extract_strided_slice %568 {offsets = [0, 128], sizes = [8, 128], strides = [1, 1]} : vector<8x512xf32> to vector<8x128xf32>
    %576 = arith.negf %575 : vector<8x128xf32>
    %577 = math.exp %576 : vector<8x128xf32>
    %cst_368 = arith.constant 1.000000e+00 : f32
    %578 = vector.broadcast %cst_368 : f32 to vector<8x128xf32>
    %579 = arith.addf %578, %577 : vector<8x128xf32>
    %580 = arith.divf %578, %579 : vector<8x128xf32>
    %581 = vector.extract_strided_slice %568 {offsets = [0, 256], sizes = [8, 128], strides = [1, 1]} : vector<8x512xf32> to vector<8x128xf32>
    %582 = math.tanh %581 : vector<8x128xf32>
    %583 = vector.extract_strided_slice %568 {offsets = [0, 384], sizes = [8, 128], strides = [1, 1]} : vector<8x512xf32> to vector<8x128xf32>
    %584 = arith.negf %583 : vector<8x128xf32>
    %585 = math.exp %584 : vector<8x128xf32>
    %cst_369 = arith.constant 1.000000e+00 : f32
    %586 = vector.broadcast %cst_369 : f32 to vector<8x128xf32>
    %587 = arith.addf %586, %585 : vector<8x128xf32>
    %588 = arith.divf %586, %587 : vector<8x128xf32>
    %589 = arith.mulf %580, %557 : vector<8x128xf32>
    %590 = arith.mulf %574, %582 : vector<8x128xf32>
    %591 = arith.addf %589, %590 : vector<8x128xf32>
    %592 = math.tanh %591 : vector<8x128xf32>
    %593 = arith.mulf %588, %592 : vector<8x128xf32>
    %c1_370 = arith.constant 1 : index
    %c0_371 = arith.constant 0 : index
    %c0_372 = arith.constant 0 : index
    %594 = vector.load %arg13[%c1_370, %c0_371, %c0_372] : memref<2x8x128xf32, #tpu.memory_space<vmem>>, vector<1x8x128xf32>
    %595 = vector.shape_cast %594 : vector<1x8x128xf32> to vector<8x128xf32>
    %596 = vector.shape_cast %593 : vector<8x128xf32> to vector<1x8x128xf32>
    tpu.vector_store %arg13[%c1_370, %c0_371, %c0_372], %596 {strides = array<i32>} : memref<2x8x128xf32, #tpu.memory_space<vmem>>, vector<1x8x128xf32>,
    %c1_373 = arith.constant 1 : index
    %c0_374 = arith.constant 0 : index
    %c0_375 = arith.constant 0 : index
    %597 = vector.load %arg14[%c1_373, %c0_374, %c0_375] : memref<2x8x128xf32, #tpu.memory_space<vmem>>, vector<1x8x128xf32>
    %598 = vector.shape_cast %597 : vector<1x8x128xf32> to vector<8x128xf32>
    %599 = vector.shape_cast %591 : vector<8x128xf32> to vector<1x8x128xf32>
    tpu.vector_store %arg14[%c1_373, %c0_374, %c0_375], %599 {strides = array<i32>} : memref<2x8x128xf32, #tpu.memory_space<vmem>>, vector<1x8x128xf32>,
    %c5_376 = arith.constant 5 : index
    %c0_377 = arith.constant 0 : index
    %c0_378 = arith.constant 0 : index
    %600 = vector.load %arg15[%c5_376, %c0_377, %c0_378] : memref<8x8x128xf32, #tpu.memory_space<vmem>>, vector<1x8x128xf32>
    %601 = vector.shape_cast %600 : vector<1x8x128xf32> to vector<8x128xf32>
    %602 = vector.shape_cast %593 : vector<8x128xf32> to vector<1x8x128xf32>
    tpu.vector_store %arg15[%c5_376, %c0_377, %c0_378], %602 {strides = array<i32>} : memref<8x8x128xf32, #tpu.memory_space<vmem>>, vector<1x8x128xf32>,
    %c6 = arith.constant 6 : index
    %c0_379 = arith.constant 0 : index
    %c0_380 = arith.constant 0 : index
    %603 = vector.load %arg11[%c6, %c0_379, %c0_380] : memref<8x8x128xf32, #tpu.memory_space<vmem>>, vector<1x8x128xf32>
    %604 = vector.shape_cast %603 : vector<1x8x128xf32> to vector<8x128xf32>
    %c0_381 = arith.constant 0 : index
    %c0_382 = arith.constant 0 : index
    %c0_383 = arith.constant 0 : index
    %605 = vector.load %arg13[%c0_381, %c0_382, %c0_383] : memref<2x8x128xf32, #tpu.memory_space<vmem>>, vector<1x8x128xf32>
    %606 = vector.shape_cast %605 : vector<1x8x128xf32> to vector<8x128xf32>
    %c0_384 = arith.constant 0 : index
    %c0_385 = arith.constant 0 : index
    %c0_386 = arith.constant 0 : index
    %607 = vector.load %arg14[%c0_384, %c0_385, %c0_386] : memref<2x8x128xf32, #tpu.memory_space<vmem>>, vector<1x8x128xf32>
    %608 = vector.shape_cast %607 : vector<1x8x128xf32> to vector<8x128xf32>
    %c0_387 = arith.constant 0 : index
    %c0_388 = arith.constant 0 : index
    %609 = vector.load %arg12[%c0_387, %c0_388] : memref<8x256xf32, #tpu.memory_space<vmem>>, vector<8x128xf32>
    tpu.vector_store %arg12[%c0_387, %c0_388], %604 {strides = array<i32>} : memref<8x256xf32, #tpu.memory_space<vmem>>, vector<8x128xf32>,
    %c0_389 = arith.constant 0 : index
    %c128_390 = arith.constant 128 : index
    %610 = vector.load %arg12[%c0_389, %c128_390] : memref<8x256xf32, #tpu.memory_space<vmem>>, vector<8x128xf32>
    tpu.vector_store %arg12[%c0_389, %c128_390], %606 {strides = array<i32>} : memref<8x256xf32, #tpu.memory_space<vmem>>, vector<8x128xf32>,
    %c0_391 = arith.constant 0 : index
    %c0_392 = arith.constant 0 : index
    %611 = vector.load %arg12[%c0_391, %c0_392] : memref<8x256xf32, #tpu.memory_space<vmem>>, vector<8x256xf32>
    %612 = arith.truncf %611 : vector<8x256xf32> to vector<8x256xbf16>
    %c0_393 = arith.constant 0 : index
    %c0_394 = arith.constant 0 : index
    %c0_395 = arith.constant 0 : index
    %613 = vector.load %arg6[%c0_393, %c0_394, %c0_395] : memref<2x256x512xbf16, #tpu.memory_space<vmem>>, vector<1x256x512xbf16>
    %614 = vector.shape_cast %613 : vector<1x256x512xbf16> to vector<256x512xbf16>
    %cst_396 = arith.constant dense<0.000000e+00> : vector<8x512xf32>
    %615 = tpu.matmul %612, %614, %cst_396 {dimension_numbers = #tpu.dot_dimension_numbers<[1], [0], [0], [1], [0, 0, 1, 1], [], []>} : vector<8x256xbf16>, vector<256x512xbf16>, vector<8x512xf32> -> vector<8x512xf32>
    %c0_397 = arith.constant 0 : index
    %c0_398 = arith.constant 0 : index
    %c0_399 = arith.constant 0 : index
    %616 = vector.load %arg7[%c0_397, %c0_398, %c0_399] : memref<2x1x512xf32, #tpu.memory_space<vmem>>, vector<1x1x512xf32>
    %617 = vector.shape_cast %616 : vector<1x1x512xf32> to vector<1x512xf32>
    %618 = vector.broadcast %617 : vector<1x512xf32> to vector<8x512xf32>
    %619 = arith.addf %615, %618 : vector<8x512xf32>
    %620 = vector.extract_strided_slice %619 {offsets = [0, 0], sizes = [8, 128], strides = [1, 1]} : vector<8x512xf32> to vector<8x128xf32>
    %621 = arith.negf %620 : vector<8x128xf32>
    %622 = math.exp %621 : vector<8x128xf32>
    %cst_400 = arith.constant 1.000000e+00 : f32
    %623 = vector.broadcast %cst_400 : f32 to vector<8x128xf32>
    %624 = arith.addf %623, %622 : vector<8x128xf32>
    %625 = arith.divf %623, %624 : vector<8x128xf32>
    %626 = vector.extract_strided_slice %619 {offsets = [0, 128], sizes = [8, 128], strides = [1, 1]} : vector<8x512xf32> to vector<8x128xf32>
    %627 = arith.negf %626 : vector<8x128xf32>
    %628 = math.exp %627 : vector<8x128xf32>
    %cst_401 = arith.constant 1.000000e+00 : f32
    %629 = vector.broadcast %cst_401 : f32 to vector<8x128xf32>
    %630 = arith.addf %629, %628 : vector<8x128xf32>
    %631 = arith.divf %629, %630 : vector<8x128xf32>
    %632 = vector.extract_strided_slice %619 {offsets = [0, 256], sizes = [8, 128], strides = [1, 1]} : vector<8x512xf32> to vector<8x128xf32>
    %633 = math.tanh %632 : vector<8x128xf32>
    %634 = vector.extract_strided_slice %619 {offsets = [0, 384], sizes = [8, 128], strides = [1, 1]} : vector<8x512xf32> to vector<8x128xf32>
    %635 = arith.negf %634 : vector<8x128xf32>
    %636 = math.exp %635 : vector<8x128xf32>
    %cst_402 = arith.constant 1.000000e+00 : f32
    %637 = vector.broadcast %cst_402 : f32 to vector<8x128xf32>
    %638 = arith.addf %637, %636 : vector<8x128xf32>
    %639 = arith.divf %637, %638 : vector<8x128xf32>
    %640 = arith.mulf %631, %608 : vector<8x128xf32>
    %641 = arith.mulf %625, %633 : vector<8x128xf32>
    %642 = arith.addf %640, %641 : vector<8x128xf32>
    %643 = math.tanh %642 : vector<8x128xf32>
    %644 = arith.mulf %639, %643 : vector<8x128xf32>
    %c0_403 = arith.constant 0 : index
    %c0_404 = arith.constant 0 : index
    %c0_405 = arith.constant 0 : index
    %645 = vector.load %arg13[%c0_403, %c0_404, %c0_405] : memref<2x8x128xf32, #tpu.memory_space<vmem>>, vector<1x8x128xf32>
    %646 = vector.shape_cast %645 : vector<1x8x128xf32> to vector<8x128xf32>
    %647 = vector.shape_cast %644 : vector<8x128xf32> to vector<1x8x128xf32>
    tpu.vector_store %arg13[%c0_403, %c0_404, %c0_405], %647 {strides = array<i32>} : memref<2x8x128xf32, #tpu.memory_space<vmem>>, vector<1x8x128xf32>,
    %c0_406 = arith.constant 0 : index
    %c0_407 = arith.constant 0 : index
    %c0_408 = arith.constant 0 : index
    %648 = vector.load %arg14[%c0_406, %c0_407, %c0_408] : memref<2x8x128xf32, #tpu.memory_space<vmem>>, vector<1x8x128xf32>
    %649 = vector.shape_cast %648 : vector<1x8x128xf32> to vector<8x128xf32>
    %650 = vector.shape_cast %642 : vector<8x128xf32> to vector<1x8x128xf32>
    tpu.vector_store %arg14[%c0_406, %c0_407, %c0_408], %650 {strides = array<i32>} : memref<2x8x128xf32, #tpu.memory_space<vmem>>, vector<1x8x128xf32>,
    %c1_409 = arith.constant 1 : index
    %c0_410 = arith.constant 0 : index
    %c0_411 = arith.constant 0 : index
    %651 = vector.load %arg13[%c1_409, %c0_410, %c0_411] : memref<2x8x128xf32, #tpu.memory_space<vmem>>, vector<1x8x128xf32>
    %652 = vector.shape_cast %651 : vector<1x8x128xf32> to vector<8x128xf32>
    %c1_412 = arith.constant 1 : index
    %c0_413 = arith.constant 0 : index
    %c0_414 = arith.constant 0 : index
    %653 = vector.load %arg14[%c1_412, %c0_413, %c0_414] : memref<2x8x128xf32, #tpu.memory_space<vmem>>, vector<1x8x128xf32>
    %654 = vector.shape_cast %653 : vector<1x8x128xf32> to vector<8x128xf32>
    %c0_415 = arith.constant 0 : index
    %c0_416 = arith.constant 0 : index
    %655 = vector.load %arg12[%c0_415, %c0_416] : memref<8x256xf32, #tpu.memory_space<vmem>>, vector<8x128xf32>
    tpu.vector_store %arg12[%c0_415, %c0_416], %644 {strides = array<i32>} : memref<8x256xf32, #tpu.memory_space<vmem>>, vector<8x128xf32>,
    %c0_417 = arith.constant 0 : index
    %c128_418 = arith.constant 128 : index
    %656 = vector.load %arg12[%c0_417, %c128_418] : memref<8x256xf32, #tpu.memory_space<vmem>>, vector<8x128xf32>
    tpu.vector_store %arg12[%c0_417, %c128_418], %652 {strides = array<i32>} : memref<8x256xf32, #tpu.memory_space<vmem>>, vector<8x128xf32>,
    %c0_419 = arith.constant 0 : index
    %c0_420 = arith.constant 0 : index
    %657 = vector.load %arg12[%c0_419, %c0_420] : memref<8x256xf32, #tpu.memory_space<vmem>>, vector<8x256xf32>
    %658 = arith.truncf %657 : vector<8x256xf32> to vector<8x256xbf16>
    %c1_421 = arith.constant 1 : index
    %c0_422 = arith.constant 0 : index
    %c0_423 = arith.constant 0 : index
    %659 = vector.load %arg6[%c1_421, %c0_422, %c0_423] : memref<2x256x512xbf16, #tpu.memory_space<vmem>>, vector<1x256x512xbf16>
    %660 = vector.shape_cast %659 : vector<1x256x512xbf16> to vector<256x512xbf16>
    %cst_424 = arith.constant dense<0.000000e+00> : vector<8x512xf32>
    %661 = tpu.matmul %658, %660, %cst_424 {dimension_numbers = #tpu.dot_dimension_numbers<[1], [0], [0], [1], [0, 0, 1, 1], [], []>} : vector<8x256xbf16>, vector<256x512xbf16>, vector<8x512xf32> -> vector<8x512xf32>
    %c1_425 = arith.constant 1 : index
    %c0_426 = arith.constant 0 : index
    %c0_427 = arith.constant 0 : index
    %662 = vector.load %arg7[%c1_425, %c0_426, %c0_427] : memref<2x1x512xf32, #tpu.memory_space<vmem>>, vector<1x1x512xf32>
    %663 = vector.shape_cast %662 : vector<1x1x512xf32> to vector<1x512xf32>
    %664 = vector.broadcast %663 : vector<1x512xf32> to vector<8x512xf32>
    %665 = arith.addf %661, %664 : vector<8x512xf32>
    %666 = vector.extract_strided_slice %665 {offsets = [0, 0], sizes = [8, 128], strides = [1, 1]} : vector<8x512xf32> to vector<8x128xf32>
    %667 = arith.negf %666 : vector<8x128xf32>
    %668 = math.exp %667 : vector<8x128xf32>
    %cst_428 = arith.constant 1.000000e+00 : f32
    %669 = vector.broadcast %cst_428 : f32 to vector<8x128xf32>
    %670 = arith.addf %669, %668 : vector<8x128xf32>
    %671 = arith.divf %669, %670 : vector<8x128xf32>
    %672 = vector.extract_strided_slice %665 {offsets = [0, 128], sizes = [8, 128], strides = [1, 1]} : vector<8x512xf32> to vector<8x128xf32>
    %673 = arith.negf %672 : vector<8x128xf32>
    %674 = math.exp %673 : vector<8x128xf32>
    %cst_429 = arith.constant 1.000000e+00 : f32
    %675 = vector.broadcast %cst_429 : f32 to vector<8x128xf32>
    %676 = arith.addf %675, %674 : vector<8x128xf32>
    %677 = arith.divf %675, %676 : vector<8x128xf32>
    %678 = vector.extract_strided_slice %665 {offsets = [0, 256], sizes = [8, 128], strides = [1, 1]} : vector<8x512xf32> to vector<8x128xf32>
    %679 = math.tanh %678 : vector<8x128xf32>
    %680 = vector.extract_strided_slice %665 {offsets = [0, 384], sizes = [8, 128], strides = [1, 1]} : vector<8x512xf32> to vector<8x128xf32>
    %681 = arith.negf %680 : vector<8x128xf32>
    %682 = math.exp %681 : vector<8x128xf32>
    %cst_430 = arith.constant 1.000000e+00 : f32
    %683 = vector.broadcast %cst_430 : f32 to vector<8x128xf32>
    %684 = arith.addf %683, %682 : vector<8x128xf32>
    %685 = arith.divf %683, %684 : vector<8x128xf32>
    %686 = arith.mulf %677, %654 : vector<8x128xf32>
    %687 = arith.mulf %671, %679 : vector<8x128xf32>
    %688 = arith.addf %686, %687 : vector<8x128xf32>
    %689 = math.tanh %688 : vector<8x128xf32>
    %690 = arith.mulf %685, %689 : vector<8x128xf32>
    %c1_431 = arith.constant 1 : index
    %c0_432 = arith.constant 0 : index
    %c0_433 = arith.constant 0 : index
    %691 = vector.load %arg13[%c1_431, %c0_432, %c0_433] : memref<2x8x128xf32, #tpu.memory_space<vmem>>, vector<1x8x128xf32>
    %692 = vector.shape_cast %691 : vector<1x8x128xf32> to vector<8x128xf32>
    %693 = vector.shape_cast %690 : vector<8x128xf32> to vector<1x8x128xf32>
    tpu.vector_store %arg13[%c1_431, %c0_432, %c0_433], %693 {strides = array<i32>} : memref<2x8x128xf32, #tpu.memory_space<vmem>>, vector<1x8x128xf32>,
    %c1_434 = arith.constant 1 : index
    %c0_435 = arith.constant 0 : index
    %c0_436 = arith.constant 0 : index
    %694 = vector.load %arg14[%c1_434, %c0_435, %c0_436] : memref<2x8x128xf32, #tpu.memory_space<vmem>>, vector<1x8x128xf32>
    %695 = vector.shape_cast %694 : vector<1x8x128xf32> to vector<8x128xf32>
    %696 = vector.shape_cast %688 : vector<8x128xf32> to vector<1x8x128xf32>
    tpu.vector_store %arg14[%c1_434, %c0_435, %c0_436], %696 {strides = array<i32>} : memref<2x8x128xf32, #tpu.memory_space<vmem>>, vector<1x8x128xf32>,
    %c6_437 = arith.constant 6 : index
    %c0_438 = arith.constant 0 : index
    %c0_439 = arith.constant 0 : index
    %697 = vector.load %arg15[%c6_437, %c0_438, %c0_439] : memref<8x8x128xf32, #tpu.memory_space<vmem>>, vector<1x8x128xf32>
    %698 = vector.shape_cast %697 : vector<1x8x128xf32> to vector<8x128xf32>
    %699 = vector.shape_cast %690 : vector<8x128xf32> to vector<1x8x128xf32>
    tpu.vector_store %arg15[%c6_437, %c0_438, %c0_439], %699 {strides = array<i32>} : memref<8x8x128xf32, #tpu.memory_space<vmem>>, vector<1x8x128xf32>,
    %c7 = arith.constant 7 : index
    %c0_440 = arith.constant 0 : index
    %c0_441 = arith.constant 0 : index
    %700 = vector.load %arg11[%c7, %c0_440, %c0_441] : memref<8x8x128xf32, #tpu.memory_space<vmem>>, vector<1x8x128xf32>
    %701 = vector.shape_cast %700 : vector<1x8x128xf32> to vector<8x128xf32>
    %c0_442 = arith.constant 0 : index
    %c0_443 = arith.constant 0 : index
    %c0_444 = arith.constant 0 : index
    %702 = vector.load %arg13[%c0_442, %c0_443, %c0_444] : memref<2x8x128xf32, #tpu.memory_space<vmem>>, vector<1x8x128xf32>
    %703 = vector.shape_cast %702 : vector<1x8x128xf32> to vector<8x128xf32>
    %c0_445 = arith.constant 0 : index
    %c0_446 = arith.constant 0 : index
    %c0_447 = arith.constant 0 : index
    %704 = vector.load %arg14[%c0_445, %c0_446, %c0_447] : memref<2x8x128xf32, #tpu.memory_space<vmem>>, vector<1x8x128xf32>
    %705 = vector.shape_cast %704 : vector<1x8x128xf32> to vector<8x128xf32>
    %c0_448 = arith.constant 0 : index
    %c0_449 = arith.constant 0 : index
    %706 = vector.load %arg12[%c0_448, %c0_449] : memref<8x256xf32, #tpu.memory_space<vmem>>, vector<8x128xf32>
    tpu.vector_store %arg12[%c0_448, %c0_449], %701 {strides = array<i32>} : memref<8x256xf32, #tpu.memory_space<vmem>>, vector<8x128xf32>,
    %c0_450 = arith.constant 0 : index
    %c128_451 = arith.constant 128 : index
    %707 = vector.load %arg12[%c0_450, %c128_451] : memref<8x256xf32, #tpu.memory_space<vmem>>, vector<8x128xf32>
    tpu.vector_store %arg12[%c0_450, %c128_451], %703 {strides = array<i32>} : memref<8x256xf32, #tpu.memory_space<vmem>>, vector<8x128xf32>,
    %c0_452 = arith.constant 0 : index
    %c0_453 = arith.constant 0 : index
    %708 = vector.load %arg12[%c0_452, %c0_453] : memref<8x256xf32, #tpu.memory_space<vmem>>, vector<8x256xf32>
    %709 = arith.truncf %708 : vector<8x256xf32> to vector<8x256xbf16>
    %c0_454 = arith.constant 0 : index
    %c0_455 = arith.constant 0 : index
    %c0_456 = arith.constant 0 : index
    %710 = vector.load %arg6[%c0_454, %c0_455, %c0_456] : memref<2x256x512xbf16, #tpu.memory_space<vmem>>, vector<1x256x512xbf16>
    %711 = vector.shape_cast %710 : vector<1x256x512xbf16> to vector<256x512xbf16>
    %cst_457 = arith.constant dense<0.000000e+00> : vector<8x512xf32>
    %712 = tpu.matmul %709, %711, %cst_457 {dimension_numbers = #tpu.dot_dimension_numbers<[1], [0], [0], [1], [0, 0, 1, 1], [], []>} : vector<8x256xbf16>, vector<256x512xbf16>, vector<8x512xf32> -> vector<8x512xf32>
    %c0_458 = arith.constant 0 : index
    %c0_459 = arith.constant 0 : index
    %c0_460 = arith.constant 0 : index
    %713 = vector.load %arg7[%c0_458, %c0_459, %c0_460] : memref<2x1x512xf32, #tpu.memory_space<vmem>>, vector<1x1x512xf32>
    %714 = vector.shape_cast %713 : vector<1x1x512xf32> to vector<1x512xf32>
    %715 = vector.broadcast %714 : vector<1x512xf32> to vector<8x512xf32>
    %716 = arith.addf %712, %715 : vector<8x512xf32>
    %717 = vector.extract_strided_slice %716 {offsets = [0, 0], sizes = [8, 128], strides = [1, 1]} : vector<8x512xf32> to vector<8x128xf32>
    %718 = arith.negf %717 : vector<8x128xf32>
    %719 = math.exp %718 : vector<8x128xf32>
    %cst_461 = arith.constant 1.000000e+00 : f32
    %720 = vector.broadcast %cst_461 : f32 to vector<8x128xf32>
    %721 = arith.addf %720, %719 : vector<8x128xf32>
    %722 = arith.divf %720, %721 : vector<8x128xf32>
    %723 = vector.extract_strided_slice %716 {offsets = [0, 128], sizes = [8, 128], strides = [1, 1]} : vector<8x512xf32> to vector<8x128xf32>
    %724 = arith.negf %723 : vector<8x128xf32>
    %725 = math.exp %724 : vector<8x128xf32>
    %cst_462 = arith.constant 1.000000e+00 : f32
    %726 = vector.broadcast %cst_462 : f32 to vector<8x128xf32>
    %727 = arith.addf %726, %725 : vector<8x128xf32>
    %728 = arith.divf %726, %727 : vector<8x128xf32>
    %729 = vector.extract_strided_slice %716 {offsets = [0, 256], sizes = [8, 128], strides = [1, 1]} : vector<8x512xf32> to vector<8x128xf32>
    %730 = math.tanh %729 : vector<8x128xf32>
    %731 = vector.extract_strided_slice %716 {offsets = [0, 384], sizes = [8, 128], strides = [1, 1]} : vector<8x512xf32> to vector<8x128xf32>
    %732 = arith.negf %731 : vector<8x128xf32>
    %733 = math.exp %732 : vector<8x128xf32>
    %cst_463 = arith.constant 1.000000e+00 : f32
    %734 = vector.broadcast %cst_463 : f32 to vector<8x128xf32>
    %735 = arith.addf %734, %733 : vector<8x128xf32>
    %736 = arith.divf %734, %735 : vector<8x128xf32>
    %737 = arith.mulf %728, %705 : vector<8x128xf32>
    %738 = arith.mulf %722, %730 : vector<8x128xf32>
    %739 = arith.addf %737, %738 : vector<8x128xf32>
    %740 = math.tanh %739 : vector<8x128xf32>
    %741 = arith.mulf %736, %740 : vector<8x128xf32>
    %c0_464 = arith.constant 0 : index
    %c0_465 = arith.constant 0 : index
    %c0_466 = arith.constant 0 : index
    %742 = vector.load %arg13[%c0_464, %c0_465, %c0_466] : memref<2x8x128xf32, #tpu.memory_space<vmem>>, vector<1x8x128xf32>
    %743 = vector.shape_cast %742 : vector<1x8x128xf32> to vector<8x128xf32>
    %744 = vector.shape_cast %741 : vector<8x128xf32> to vector<1x8x128xf32>
    tpu.vector_store %arg13[%c0_464, %c0_465, %c0_466], %744 {strides = array<i32>} : memref<2x8x128xf32, #tpu.memory_space<vmem>>, vector<1x8x128xf32>,
    %c0_467 = arith.constant 0 : index
    %c0_468 = arith.constant 0 : index
    %c0_469 = arith.constant 0 : index
    %745 = vector.load %arg14[%c0_467, %c0_468, %c0_469] : memref<2x8x128xf32, #tpu.memory_space<vmem>>, vector<1x8x128xf32>
    %746 = vector.shape_cast %745 : vector<1x8x128xf32> to vector<8x128xf32>
    %747 = vector.shape_cast %739 : vector<8x128xf32> to vector<1x8x128xf32>
    tpu.vector_store %arg14[%c0_467, %c0_468, %c0_469], %747 {strides = array<i32>} : memref<2x8x128xf32, #tpu.memory_space<vmem>>, vector<1x8x128xf32>,
    %c1_470 = arith.constant 1 : index
    %c0_471 = arith.constant 0 : index
    %c0_472 = arith.constant 0 : index
    %748 = vector.load %arg13[%c1_470, %c0_471, %c0_472] : memref<2x8x128xf32, #tpu.memory_space<vmem>>, vector<1x8x128xf32>
    %749 = vector.shape_cast %748 : vector<1x8x128xf32> to vector<8x128xf32>
    %c1_473 = arith.constant 1 : index
    %c0_474 = arith.constant 0 : index
    %c0_475 = arith.constant 0 : index
    %750 = vector.load %arg14[%c1_473, %c0_474, %c0_475] : memref<2x8x128xf32, #tpu.memory_space<vmem>>, vector<1x8x128xf32>
    %751 = vector.shape_cast %750 : vector<1x8x128xf32> to vector<8x128xf32>
    %c0_476 = arith.constant 0 : index
    %c0_477 = arith.constant 0 : index
    %752 = vector.load %arg12[%c0_476, %c0_477] : memref<8x256xf32, #tpu.memory_space<vmem>>, vector<8x128xf32>
    tpu.vector_store %arg12[%c0_476, %c0_477], %741 {strides = array<i32>} : memref<8x256xf32, #tpu.memory_space<vmem>>, vector<8x128xf32>,
    %c0_478 = arith.constant 0 : index
    %c128_479 = arith.constant 128 : index
    %753 = vector.load %arg12[%c0_478, %c128_479] : memref<8x256xf32, #tpu.memory_space<vmem>>, vector<8x128xf32>
    tpu.vector_store %arg12[%c0_478, %c128_479], %749 {strides = array<i32>} : memref<8x256xf32, #tpu.memory_space<vmem>>, vector<8x128xf32>,
    %c0_480 = arith.constant 0 : index
    %c0_481 = arith.constant 0 : index
    %754 = vector.load %arg12[%c0_480, %c0_481] : memref<8x256xf32, #tpu.memory_space<vmem>>, vector<8x256xf32>
    %755 = arith.truncf %754 : vector<8x256xf32> to vector<8x256xbf16>
    %c1_482 = arith.constant 1 : index
    %c0_483 = arith.constant 0 : index
    %c0_484 = arith.constant 0 : index
    %756 = vector.load %arg6[%c1_482, %c0_483, %c0_484] : memref<2x256x512xbf16, #tpu.memory_space<vmem>>, vector<1x256x512xbf16>
    %757 = vector.shape_cast %756 : vector<1x256x512xbf16> to vector<256x512xbf16>
    %cst_485 = arith.constant dense<0.000000e+00> : vector<8x512xf32>
    %758 = tpu.matmul %755, %757, %cst_485 {dimension_numbers = #tpu.dot_dimension_numbers<[1], [0], [0], [1], [0, 0, 1, 1], [], []>} : vector<8x256xbf16>, vector<256x512xbf16>, vector<8x512xf32> -> vector<8x512xf32>
    %c1_486 = arith.constant 1 : index
    %c0_487 = arith.constant 0 : index
    %c0_488 = arith.constant 0 : index
    %759 = vector.load %arg7[%c1_486, %c0_487, %c0_488] : memref<2x1x512xf32, #tpu.memory_space<vmem>>, vector<1x1x512xf32>
    %760 = vector.shape_cast %759 : vector<1x1x512xf32> to vector<1x512xf32>
    %761 = vector.broadcast %760 : vector<1x512xf32> to vector<8x512xf32>
    %762 = arith.addf %758, %761 : vector<8x512xf32>
    %763 = vector.extract_strided_slice %762 {offsets = [0, 0], sizes = [8, 128], strides = [1, 1]} : vector<8x512xf32> to vector<8x128xf32>
    %764 = arith.negf %763 : vector<8x128xf32>
    %765 = math.exp %764 : vector<8x128xf32>
    %cst_489 = arith.constant 1.000000e+00 : f32
    %766 = vector.broadcast %cst_489 : f32 to vector<8x128xf32>
    %767 = arith.addf %766, %765 : vector<8x128xf32>
    %768 = arith.divf %766, %767 : vector<8x128xf32>
    %769 = vector.extract_strided_slice %762 {offsets = [0, 128], sizes = [8, 128], strides = [1, 1]} : vector<8x512xf32> to vector<8x128xf32>
    %770 = arith.negf %769 : vector<8x128xf32>
    %771 = math.exp %770 : vector<8x128xf32>
    %cst_490 = arith.constant 1.000000e+00 : f32
    %772 = vector.broadcast %cst_490 : f32 to vector<8x128xf32>
    %773 = arith.addf %772, %771 : vector<8x128xf32>
    %774 = arith.divf %772, %773 : vector<8x128xf32>
    %775 = vector.extract_strided_slice %762 {offsets = [0, 256], sizes = [8, 128], strides = [1, 1]} : vector<8x512xf32> to vector<8x128xf32>
    %776 = math.tanh %775 : vector<8x128xf32>
    %777 = vector.extract_strided_slice %762 {offsets = [0, 384], sizes = [8, 128], strides = [1, 1]} : vector<8x512xf32> to vector<8x128xf32>
    %778 = arith.negf %777 : vector<8x128xf32>
    %779 = math.exp %778 : vector<8x128xf32>
    %cst_491 = arith.constant 1.000000e+00 : f32
    %780 = vector.broadcast %cst_491 : f32 to vector<8x128xf32>
    %781 = arith.addf %780, %779 : vector<8x128xf32>
    %782 = arith.divf %780, %781 : vector<8x128xf32>
    %783 = arith.mulf %774, %751 : vector<8x128xf32>
    %784 = arith.mulf %768, %776 : vector<8x128xf32>
    %785 = arith.addf %783, %784 : vector<8x128xf32>
    %786 = math.tanh %785 : vector<8x128xf32>
    %787 = arith.mulf %782, %786 : vector<8x128xf32>
    %c1_492 = arith.constant 1 : index
    %c0_493 = arith.constant 0 : index
    %c0_494 = arith.constant 0 : index
    %788 = vector.load %arg13[%c1_492, %c0_493, %c0_494] : memref<2x8x128xf32, #tpu.memory_space<vmem>>, vector<1x8x128xf32>
    %789 = vector.shape_cast %788 : vector<1x8x128xf32> to vector<8x128xf32>
    %790 = vector.shape_cast %787 : vector<8x128xf32> to vector<1x8x128xf32>
    tpu.vector_store %arg13[%c1_492, %c0_493, %c0_494], %790 {strides = array<i32>} : memref<2x8x128xf32, #tpu.memory_space<vmem>>, vector<1x8x128xf32>,
    %c1_495 = arith.constant 1 : index
    %c0_496 = arith.constant 0 : index
    %c0_497 = arith.constant 0 : index
    %791 = vector.load %arg14[%c1_495, %c0_496, %c0_497] : memref<2x8x128xf32, #tpu.memory_space<vmem>>, vector<1x8x128xf32>
    %792 = vector.shape_cast %791 : vector<1x8x128xf32> to vector<8x128xf32>
    %793 = vector.shape_cast %785 : vector<8x128xf32> to vector<1x8x128xf32>
    tpu.vector_store %arg14[%c1_495, %c0_496, %c0_497], %793 {strides = array<i32>} : memref<2x8x128xf32, #tpu.memory_space<vmem>>, vector<1x8x128xf32>,
    %c7_498 = arith.constant 7 : index
    %c0_499 = arith.constant 0 : index
    %c0_500 = arith.constant 0 : index
    %794 = vector.load %arg15[%c7_498, %c0_499, %c0_500] : memref<8x8x128xf32, #tpu.memory_space<vmem>>, vector<1x8x128xf32>
    %795 = vector.shape_cast %794 : vector<1x8x128xf32> to vector<8x128xf32>
    %796 = vector.shape_cast %787 : vector<8x128xf32> to vector<1x8x128xf32>
    tpu.vector_store %arg15[%c7_498, %c0_499, %c0_500], %796 {strides = array<i32>} : memref<8x8x128xf32, #tpu.memory_space<vmem>>, vector<1x8x128xf32>,
    %c0_501 = arith.constant 0 : index
    %c0_502 = arith.constant 0 : index
    %c0_503 = arith.constant 0 : index
    %797 = vector.load %arg15[%c0_501, %c0_502, %c0_503] : memref<8x8x128xf32, #tpu.memory_space<vmem>>, vector<8x8x128xf32>
    %798 = vector.shape_cast %797 : vector<8x8x128xf32> to vector<64x128xf32>
    %799 = arith.truncf %798 : vector<64x128xf32> to vector<64x128xbf16>
    %c0_504 = arith.constant 0 : index
    %c0_505 = arith.constant 0 : index
    %800 = vector.load %arg8[%c0_504, %c0_505] : memref<128x128xbf16, #tpu.memory_space<vmem>>, vector<128x128xbf16>
    %cst_506 = arith.constant dense<0.000000e+00> : vector<64x128xf32>
    %801 = tpu.matmul %799, %800, %cst_506 {dimension_numbers = #tpu.dot_dimension_numbers<[1], [0], [0], [1], [0, 0, 1, 1], [], []>} : vector<64x128xbf16>, vector<128x128xbf16>, vector<64x128xf32> -> vector<64x128xf32>
    %c0_507 = arith.constant 0 : index
    %c0_508 = arith.constant 0 : index
    %802 = vector.load %arg9[%c0_507, %c0_508] : memref<1x128xf32, #tpu.memory_space<vmem>>, vector<1x128xf32>
    %803 = vector.broadcast %802 : vector<1x128xf32> to vector<64x128xf32>
    %804 = arith.addf %801, %803 : vector<64x128xf32>
    %805 = vector.shape_cast %804 : vector<64x128xf32> to vector<8x8x128xf32>
    %c0_509 = arith.constant 0 : index
    %c0_510 = arith.constant 0 : index
    %c0_511 = arith.constant 0 : index
    %806 = vector.load %arg10[%c0_509, %c0_510, %c0_511] : memref<8x8x128xf32, #tpu.memory_space<vmem>>, vector<8x8x128xf32>
    tpu.vector_store %arg10[%c0_509, %c0_510, %c0_511], %805 {strides = array<i32>} : memref<8x8x128xf32, #tpu.memory_space<vmem>>, vector<8x8x128xf32>,
    return
  }
  func.func @transform_0(%arg0: i32, %arg1: i32) -> (i32, i32) {
    %c0_i32 = arith.constant 0 : i32
    %c0_i32_0 = arith.constant 0 : i32
    return %arg0, %c0_i32 : i32, i32
  }
  func.func @transform_1(%arg0: i32, %arg1: i32) -> (i32, i32, i32) {
    %c0_i32 = arith.constant 0 : i32
    %c0_i32_0 = arith.constant 0 : i32
    return %arg1, %arg0, %c0_i32 : i32, i32, i32
  }
  func.func @transform_2(%arg0: i32, %arg1: i32) -> (i32, i32, i32) {
    %c0_i32 = arith.constant 0 : i32
    %c0_i32_0 = arith.constant 0 : i32
    return %arg1, %arg0, %c0_i32 : i32, i32, i32
  }
  func.func @transform_3(%arg0: i32, %arg1: i32) -> (i32, i32) {
    %c0_i32 = arith.constant 0 : i32
    %c0_i32_0 = arith.constant 0 : i32
    %c0_i32_1 = arith.constant 0 : i32
    return %c0_i32, %c0_i32_0 : i32, i32
  }
  func.func @transform_4(%arg0: i32, %arg1: i32) -> (i32, i32, i32) {
    %c0_i32 = arith.constant 0 : i32
    %c0_i32_0 = arith.constant 0 : i32
    %c0_i32_1 = arith.constant 0 : i32
    %c0_i32_2 = arith.constant 0 : i32
    return %c0_i32, %c0_i32_0, %c0_i32_1 : i32, i32, i32
  }
  func.func @transform_5(%arg0: i32, %arg1: i32) -> (i32, i32, i32) {
    %c0_i32 = arith.constant 0 : i32
    %c0_i32_0 = arith.constant 0 : i32
    %c0_i32_1 = arith.constant 0 : i32
    %c0_i32_2 = arith.constant 0 : i32
    return %c0_i32, %c0_i32_0, %c0_i32_1 : i32, i32, i32
  }
  func.func @transform_6(%arg0: i32, %arg1: i32) -> (i32, i32) {
    %c0_i32 = arith.constant 0 : i32
    %c0_i32_0 = arith.constant 0 : i32
    %c0_i32_1 = arith.constant 0 : i32
    return %c0_i32, %c0_i32_0 : i32, i32
  }
  func.func @transform_7(%arg0: i32, %arg1: i32) -> (i32, i32) {
    %c0_i32 = arith.constant 0 : i32
    %c0_i32_0 = arith.constant 0 : i32
    %c0_i32_1 = arith.constant 0 : i32
    return %c0_i32, %c0_i32_0 : i32, i32
  }
  func.func @transform_8(%arg0: i32, %arg1: i32) -> (i32, i32, i32) {
    %c0_i32 = arith.constant 0 : i32
    %c0_i32_0 = arith.constant 0 : i32
    return %arg1, %arg0, %c0_i32 : i32, i32, i32
  }
}

</mosaic_0001>

<llo_original>
// kernel: tpu_custom_call.1
$region0: #{tpu_custom_call.1}
  #allocation0 [shape = 'u32[]', space=smem, size = 0x4, offset = 0x4, fixed_abs, tag = 'smem constant byte address 0x4 - core index']
  #allocation1 [shape = 'u32[144,128]{1,0:T(1,128)}', space=vmem, size = 0x12000, scoped, tag = 'internal scratch']
  #allocation2 [shape = 'f32[8,8,128]{2,1,0:T(8,128)}', space=vmem, size = 0x8000, scoped, tag = 'scratch operand']
  #allocation3 [shape = 'f32[8,256]{1,0:T(8,128)}', space=vmem, size = 0x2000, scoped, tag = 'scratch operand']
  #allocation4 [shape = 'f32[2,8,128]{2,1,0:T(8,128)}', space=vmem, size = 0x2000, scoped, tag = 'scratch operand']
  #allocation5 [shape = 'f32[2,8,128]{2,1,0:T(8,128)}', space=vmem, size = 0x2000, scoped, tag = 'scratch operand']
  #allocation6 [shape = 'f32[8,8,128]{2,1,0:T(8,128)}', space=vmem, size = 0x8000, scoped, tag = 'scratch operand']
  %s0 = inlined_call_operand.vmem [shape: f32[8,128], index: 0, kind: input, shape index: {}]
  %s1 = inlined_call_operand.vmem [shape: s32[16,8,1], index: 1, kind: input, shape index: {}]
  %s2 = inlined_call_operand.vmem [shape: bf16[16,8,128], index: 2, kind: input, shape index: {}]
  %s3 = inlined_call_operand.vmem [shape: bf16[128,128], index: 3, kind: input, shape index: {}]
  %s4 = inlined_call_operand.hbm [shape: bf16[2,256,512], index: 4, kind: input, shape index: {}]
  %s5 = inlined_call_operand.vmem [shape: f32[2,1,512], index: 5, kind: input, shape index: {}]
  %s6 = inlined_call_operand.hbm [shape: bf16[128,128], index: 6, kind: input, shape index: {}]
  %s7 = inlined_call_operand.vmem [shape: f32[1,128], index: 7, kind: input, shape index: {}]
  %s8 = inlined_call_operand.hbm [shape: f32[16,8,128], index: 8, kind: output, shape index: {}]
  %s9 = sld [smem:[#allocation0]]
  $region81: #{tpu_custom_call.1} parent=0
    _
  %s11 = ssub.s32 1, %s9
  %s12 = scalar_select 0, %s11, %s9
  $region1: #{tpu_custom_call.1} parent=0
    #allocation7 [shape = 'u8[524288]{0}', space=vmem, size = 0x80000, scoped, tag = 'input window, operand 4, single buffered']
    #allocation8 [shape = 's32[2]{0}', space=sflag, size = 0x8, scoped, tag = 'scoped memory for tpu_custom_call.1']
    #allocation9 [shape = 's32[2]{0}', space=sflag, size = 0x8, scoped, tag = 'scoped memory for tpu_custom_call.1']
    #allocation10 [shape = 'u8[32768]{0}', space=vmem, size = 0x8000, scoped, tag = 'input window, operand 6, single buffered']
    #allocation11 [shape = 's32[1]{0}', space=sflag, size = 0x4, scoped, tag = 'scoped memory for tpu_custom_call.1']
    #allocation12 [shape = 'u8[65536]{0}', space=vmem, size = 0x10000, scoped, tag = 'output window, operand 0']
    %13 = vsyncpa [#allocation8], 0
    %14 = vsyncpa [#allocation11], 0
    %15 = vsyncpa [#allocation9], 0
    %s16 = scalar_lea.sflag [#allocation9], 1
    %17 = vsyncpa %s16, 0
    loop: start=0, step=1, limit=4
    $region2: #{tpu_custom_call.1} parent=1 // loop_pre_header
      _
    $region3: #{tpu_custom_call.1} parent=1 // loop_header
      %s19 = sphi 0, %s23
      %p20 = scmp.ge.s32.totalorder %s19, 4
      %s26 = sphi 0, %s38
      %s27 = sphi 0, %s34
      %s28 = sphi 0, %s26
      %s29 = sphi 0, %s27
      %s30 = sphi 0, %s28
      %s31 = sphi 0, %s29
      %s41 = sphi 0, %s43
      %s44 = sphi 0, %s41
      %s45 = sphi 0, %s44
      %s61 = sphi 0, %s45
      %s69 = sphi 0, %s71
      %s72 = sphi 0, %s69
      %s73 = sphi 0, %s72
      %s89 = sphi 0, %s73
      %s97 = sphi 0, %s99
      %s100 = sphi 0, %s97
      %s101 = sphi 0, %s100
      %s117 = sphi 0, %s101
      %s121 = sphi 0, %s121
      %s123 = sphi 0, %s121
      %s124 = sphi 0, %s123
      %s138 = sphi 0, %s124
      %s142 = sphi 0, %s142
      %s144 = sphi 0, %s142
      %s145 = sphi 0, %s144
      %s159 = sphi 0, %s145
      %s163 = sphi 0, %s163
      %s165 = sphi 0, %s163
      %s166 = sphi 0, %s165
      %s180 = sphi 0, %s166
      %s184 = sphi 0, %s184
      %s186 = sphi 0, %s184
      %s187 = sphi 0, %s186
      %s201 = sphi 0, %s187
      %s205 = sphi 0, %s205
      %s207 = sphi 0, %s205
      %s208 = sphi 0, %s207
      %s222 = sphi 0, %s208
      %s230 = sphi 0, %s232
      %s233 = sphi 0, %s230
      %s234 = sphi 0, %s233
      %s250 = sphi 0, %s234
    $region4: #{tpu_custom_call.1} parent=1 // loop_header_branch
      %22 = sbr.rel (%p20) target = $region8
    $region5: #{tpu_custom_call.1} parent=1 // loop_body
      %s24 = ssub.s32 %s19, 1
      %s25 = ssub.s32 %s19, 2
      %s32 = sadd.s32 1, %s27
      %p33 = scmp.ge.s32.totalorder %s32, 2
      %s34 = scalar_select %p33, 0, %s32
      %s35 = sadd.s32 1, %s26
      %s36 = scalar_select %p33, %s35, %s26
      %p37 = scmp.ge.s32.totalorder %s36, 1
      %s38 = scalar_select %p37, 0, %s36
      %s39 = ssub.s32 %s26, %s38
      %p40 = scmp.eq.s32.totalorder %s39, 0
      %s42 = sadd.s32 %s41, 1
      %s43 = scalar_select %p40, %s41, %s42
      %p46 = pneg %p40
      %p47 = scmp.eq.s32.totalorder %s19, 1
      %p48 = por %p46, %p47
      %p49 = scmp.ne.s32.totalorder %s41, %s44
      %p50 = scmp.eq.s32.totalorder %s19, 0
      %p51 = por %p49, %p50
      %p52 = scmp.ne.s32.totalorder %s41, %s44
      %p53 = scmp.eq.s32.totalorder %s24, 1
      %p54 = por %p52, %p53
      %p55 = scmp.ne.s32.totalorder %s44, %s45
      %p56 = scmp.eq.s32.totalorder %s24, 0
      %p57 = por %p55, %p56
      %p58 = scmp.ne.s32.totalorder %s44, %s45
      %p59 = scmp.eq.s32.totalorder %s25, 1
      %p60 = por %p58, %p59
      %p62 = scmp.ne.s32.totalorder %s45, %s61
      %p63 = scmp.eq.s32.totalorder %s25, 0
      %p64 = por %p62, %p63
      %s65 = ssub.s32 %s27, %s34
      %s66 = ssub.s32 %s26, %s38
      %s67 = sor.u32 %s65, %s66
      %p68 = scmp.eq.s32.totalorder %s67, 0
      %s70 = sadd.s32 %s69, 1
      %s71 = scalar_select %p68, %s69, %s70
      %p74 = pneg %p68
      %p75 = scmp.eq.s32.totalorder %s19, 1
      %p76 = por %p74, %p75
      %p77 = scmp.ne.s32.totalorder %s69, %s72
      %p78 = scmp.eq.s32.totalorder %s19, 0
      %p79 = por %p77, %p78
      %p80 = scmp.ne.s32.totalorder %s69, %s72
      %p81 = scmp.eq.s32.totalorder %s24, 1
      %p82 = por %p80, %p81
      %p83 = scmp.ne.s32.totalorder %s72, %s73
      %p84 = scmp.eq.s32.totalorder %s24, 0
      %p85 = por %p83, %p84
      %p86 = scmp.ne.s32.totalorder %s72, %s73
      %p87 = scmp.eq.s32.totalorder %s25, 1
      %p88 = por %p86, %p87
      %p90 = scmp.ne.s32.totalorder %s73, %s89
      %p91 = scmp.eq.s32.totalorder %s25, 0
      %p92 = por %p90, %p91
      %s93 = ssub.s32 %s27, %s34
      %s94 = ssub.s32 %s26, %s38
      %s95 = sor.u32 %s93, %s94
      %p96 = scmp.eq.s32.totalorder %s95, 0
      %s98 = sadd.s32 %s97, 1
      %s99 = scalar_select %p96, %s97, %s98
      %p102 = pneg %p96
      %p103 = scmp.eq.s32.totalorder %s19, 1
      %p104 = por %p102, %p103
      %p105 = scmp.ne.s32.totalorder %s97, %s100
      %p106 = scmp.eq.s32.totalorder %s19, 0
      %p107 = por %p105, %p106
      %p108 = scmp.ne.s32.totalorder %s97, %s100
      %p109 = scmp.eq.s32.totalorder %s24, 1
      %p110 = por %p108, %p109
      %p111 = scmp.ne.s32.totalorder %s100, %s101
      %p112 = scmp.eq.s32.totalorder %s24, 0
      %p113 = por %p111, %p112
      %p114 = scmp.ne.s32.totalorder %s100, %s101
      %p115 = scmp.eq.s32.totalorder %s25, 1
      %p116 = por %p114, %p115
      %p118 = scmp.ne.s32.totalorder %s101, %s117
      %p119 = scmp.eq.s32.totalorder %s25, 0
      %p120 = por %p118, %p119
      %s122 = sadd.s32 %s121, 1
      %p125 = scmp.eq.s32.totalorder %s19, 1
      %p126 = scmp.ne.s32.totalorder %s121, %s123
      %p127 = scmp.eq.s32.totalorder %s19, 0
      %p128 = por %p126, %p127
      %p129 = scmp.ne.s32.totalorder %s121, %s123
      %p130 = scmp.eq.s32.totalorder %s24, 1
      %p131 = por %p129, %p130
      %p132 = scmp.ne.s32.totalorder %s123, %s124
      %p133 = scmp.eq.s32.totalorder %s24, 0
      %p134 = por %p132, %p133
      %p135 = scmp.ne.s32.totalorder %s123, %s124
      %p136 = scmp.eq.s32.totalorder %s25, 1
      %p137 = por %p135, %p136
      %p139 = scmp.ne.s32.totalorder %s124, %s138
      %p140 = scmp.eq.s32.totalorder %s25, 0
      %p141 = por %p139, %p140
      %s143 = sadd.s32 %s142, 1
      %p146 = scmp.eq.s32.totalorder %s19, 1
      %p147 = scmp.ne.s32.totalorder %s142, %s144
      %p148 = scmp.eq.s32.totalorder %s19, 0
      %p149 = por %p147, %p148
      %p150 = scmp.ne.s32.totalorder %s142, %s144
      %p151 = scmp.eq.s32.totalorder %s24, 1
      %p152 = por %p150, %p151
      %p153 = scmp.ne.s32.totalorder %s144, %s145
      %p154 = scmp.eq.s32.totalorder %s24, 0
      %p155 = por %p153, %p154
      %p156 = scmp.ne.s32.totalorder %s144, %s145
      %p157 = scmp.eq.s32.totalorder %s25, 1
      %p158 = por %p156, %p157
      %p160 = scmp.ne.s32.totalorder %s145, %s159
      %p161 = scmp.eq.s32.totalorder %s25, 0
      %p162 = por %p160, %p161
      %s164 = sadd.s32 %s163, 1
      %p167 = scmp.eq.s32.totalorder %s19, 1
      %p168 = scmp.ne.s32.totalorder %s163, %s165
      %p169 = scmp.eq.s32.totalorder %s19, 0
      %p170 = por %p168, %p169
      %p171 = scmp.ne.s32.totalorder %s163, %s165
      %p172 = scmp.eq.s32.totalorder %s24, 1
      %p173 = por %p171, %p172
      %p174 = scmp.ne.s32.totalorder %s165, %s166
      %p175 = scmp.eq.s32.totalorder %s24, 0
      %p176 = por %p174, %p175
      %p177 = scmp.ne.s32.totalorder %s165, %s166
      %p178 = scmp.eq.s32.totalorder %s25, 1
      %p179 = por %p177, %p178
      %p181 = scmp.ne.s32.totalorder %s166, %s180
      %p182 = scmp.eq.s32.totalorder %s25, 0
      %p183 = por %p181, %p182
      %s185 = sadd.s32 %s184, 1
      %p188 = scmp.eq.s32.totalorder %s19, 1
      %p189 = scmp.ne.s32.totalorder %s184, %s186
      %p190 = scmp.eq.s32.totalorder %s19, 0
      %p191 = por %p189, %p190
      %p192 = scmp.ne.s32.totalorder %s184, %s186
      %p193 = scmp.eq.s32.totalorder %s24, 1
      %p194 = por %p192, %p193
      %p195 = scmp.ne.s32.totalorder %s186, %s187
      %p196 = scmp.eq.s32.totalorder %s24, 0
      %p197 = por %p195, %p196
      %p198 = scmp.ne.s32.totalorder %s186, %s187
      %p199 = scmp.eq.s32.totalorder %s25, 1
      %p200 = por %p198, %p199
      %p202 = scmp.ne.s32.totalorder %s187, %s201
      %p203 = scmp.eq.s32.totalorder %s25, 0
      %p204 = por %p202, %p203
      %s206 = sadd.s32 %s205, 1
      %p209 = scmp.eq.s32.totalorder %s19, 1
      %p210 = scmp.ne.s32.totalorder %s205, %s207
      %p211 = scmp.eq.s32.totalorder %s19, 0
      %p212 = por %p210, %p211
      %p213 = scmp.ne.s32.totalorder %s205, %s207
      %p214 = scmp.eq.s32.totalorder %s24, 1
      %p215 = por %p213, %p214
      %p216 = scmp.ne.s32.totalorder %s207, %s208
      %p217 = scmp.eq.s32.totalorder %s24, 0
      %p218 = por %p216, %p217
      %p219 = scmp.ne.s32.totalorder %s207, %s208
      %p220 = scmp.eq.s32.totalorder %s25, 1
      %p221 = por %p219, %p220
      %p223 = scmp.ne.s32.totalorder %s208, %s222
      %p224 = scmp.eq.s32.totalorder %s25, 0
      %p225 = por %p223, %p224
      %s226 = ssub.s32 %s27, %s34
      %s227 = ssub.s32 %s26, %s38
      %s228 = sor.u32 %s226, %s227
      %p229 = scmp.eq.s32.totalorder %s228, 0
      %s231 = sadd.s32 %s230, 1
      %s232 = scalar_select %p229, %s230, %s231
      %p235 = pneg %p229
      %p236 = scmp.eq.s32.totalorder %s19, 1
      %p237 = por %p235, %p236
      %p238 = scmp.ne.s32.totalorder %s230, %s233
      %p239 = scmp.eq.s32.totalorder %s19, 0
      %p240 = por %p238, %p239
      %p241 = scmp.ne.s32.totalorder %s230, %s233
      %p242 = scmp.eq.s32.totalorder %s24, 1
      %p243 = por %p241, %p242
      %p244 = scmp.ne.s32.totalorder %s233, %s234
      %p245 = scmp.eq.s32.totalorder %s24, 0
      %p246 = por %p244, %p245
      %p247 = scmp.ne.s32.totalorder %s233, %s234
      %p248 = scmp.eq.s32.totalorder %s25, 1
      %p249 = por %p247, %p248
      %p251 = scmp.ne.s32.totalorder %s234, %s250
      %p252 = scmp.eq.s32.totalorder %s25, 0
      %p253 = por %p251, %p252
      %p254 = scmp.le.s32.totalorder 1, %s19
      %p255 = scmp.lt.s32.totalorder %s19, 3
      %p256 = pnand %p254, %p255
      %p257 = pneg %p256
      // Predicated region
      $region9: #{tpu_custom_call.1} parent=5 // pred_check
        _
      $region10: #{tpu_custom_call.1} parent=5 // pred_check_branch
        %259 = sbr.rel (%p256) target = $region12
      $region11: #{tpu_custom_call.1} parent=5 // pred_region
        %s260 = ssub.s32 %s19, 1
        // Predicated region
        $region13: #{tpu_custom_call.1} parent=11 // pred_check
          %p261 = pneg %p57
        $region14: #{tpu_custom_call.1} parent=11 // pred_check_branch
          %263 = sbr.rel (%p261) target = $region16
        $region15: #{tpu_custom_call.1} parent=11 // pred_region
          %p264 = scmp.lt.s32.totalorder %s28, 0
          %s265 = scalar_select %p264, %s28, 0
          %s266 = smul.addr %s265, 8
          %s267 = scalar_lea.vmem %s0, %s266
        $region16: #{tpu_custom_call.1} parent=11 // pred_fallthru
          _
        // Predicated region
        $region17: #{tpu_custom_call.1} parent=11 // pred_check
          %p268 = pneg %p134
        $region18: #{tpu_custom_call.1} parent=11 // pred_check_branch
          %270 = sbr.rel (%p268) target = $region20
        $region19: #{tpu_custom_call.1} parent=11 // pred_region
          _
        $region20: #{tpu_custom_call.1} parent=11 // pred_fallthru
          _
        // Predicated region
        $region21: #{tpu_custom_call.1} parent=11 // pred_check
          %p271 = pneg %p155
        $region22: #{tpu_custom_call.1} parent=11 // pred_check_branch
          %273 = sbr.rel (%p271) target = $region24
        $region23: #{tpu_custom_call.1} parent=11 // pred_region
          %s275 = ssub.s32 16384, 16384
          %276 = vsyncadd [#allocation8], %s275
          %s277 = sshll.u32 [#allocation7], 4
          %s278 = int_to_ptr.vmem [resolvable:$true] %s277
          %283 = dma.hbm_to_vmem [thread:$0]  %s4, 16384, %s278, [#allocation8], 256, 256, 16
        $region24: #{tpu_custom_call.1} parent=11 // pred_fallthru
          _
        // Predicated region
        $region25: #{tpu_custom_call.1} parent=11 // pred_check
          %p284 = pneg %p176
        $region26: #{tpu_custom_call.1} parent=11 // pred_check_branch
          %286 = sbr.rel (%p284) target = $region28
        $region27: #{tpu_custom_call.1} parent=11 // pred_region
          _
        $region28: #{tpu_custom_call.1} parent=11 // pred_fallthru
          _
        // Predicated region
        $region29: #{tpu_custom_call.1} parent=11 // pred_check
          %p287 = pneg %p197
        $region30: #{tpu_custom_call.1} parent=11 // pred_check_branch
          %289 = sbr.rel (%p287) target = $region32
        $region31: #{tpu_custom_call.1} parent=11 // pred_region
          %s291 = ssub.s32 1024, 1024
          %292 = vsyncadd [#allocation11], %s291
          %s293 = sshll.u32 [#allocation10], 4
          %s294 = int_to_ptr.vmem [resolvable:$true] %s293
          %299 = dma.hbm_to_vmem [thread:$0]  %s6, 1024, %s294, [#allocation11], 64, 64, 4
        $region32: #{tpu_custom_call.1} parent=11 // pred_fallthru
          _
        // Predicated region
        $region33: #{tpu_custom_call.1} parent=11 // pred_check
          %p300 = pneg %p218
        $region34: #{tpu_custom_call.1} parent=11 // pred_check_branch
          %302 = sbr.rel (%p300) target = $region36
        $region35: #{tpu_custom_call.1} parent=11 // pred_region
          _
        $region36: #{tpu_custom_call.1} parent=11 // pred_fallthru
          _
      $region12: #{tpu_custom_call.1} parent=5 // pred_fallthru
        _
      %p303 = scmp.lt.s32.totalorder %s19, 2
      // Predicated region
      $region37: #{tpu_custom_call.1} parent=5 // pred_check
        %p304 = pneg %p303
      $region38: #{tpu_custom_call.1} parent=5 // pred_check_branch
        %306 = sbr.rel (%p304) target = $region40
      $region39: #{tpu_custom_call.1} parent=5 // pred_region
        // Predicated region
        $region41: #{tpu_custom_call.1} parent=39 // pred_check
          %p307 = pneg %p79
        $region42: #{tpu_custom_call.1} parent=39 // pred_check_branch
          %309 = sbr.rel (%p307) target = $region44
        $region43: #{tpu_custom_call.1} parent=39 // pred_region
          %s310 = smul.u32 8, %s27
          %p311 = scmp.lt.s32.totalorder %s310, 15
          %s312 = scalar_select %p311, %s310, 15
          %p313 = scmp.lt.s32.totalorder %s26, 0
          %s314 = scalar_select %p313, %s26, 0
          %s315 = sadd.s32 %s314, %s312
          %s316 = smul.addr %s315, 8
          %s317 = scalar_lea.vmem %s1, %s316
          %s318 = smul.u32 8, %s27
        $region44: #{tpu_custom_call.1} parent=39 // pred_fallthru
          _
        // Predicated region
        $region45: #{tpu_custom_call.1} parent=39 // pred_check
          %p319 = pneg %p107
        $region46: #{tpu_custom_call.1} parent=39 // pred_check_branch
          %321 = sbr.rel (%p319) target = $region48
        $region47: #{tpu_custom_call.1} parent=39 // pred_region
          %s322 = smul.u32 8, %s27
          %p323 = scmp.lt.s32.totalorder %s322, 15
          %s324 = scalar_select %p323, %s322, 15
          %p325 = scmp.lt.s32.totalorder %s26, 0
          %s326 = scalar_select %p325, %s26, 0
          %s327 = sadd.s32 %s326, %s324
          %s328 = smul.addr %s327, 4
          %s329 = scalar_lea.vmem %s2, %s328
          %s330 = smul.u32 8, %s27
        $region48: #{tpu_custom_call.1} parent=39 // pred_fallthru
          _
      $region40: #{tpu_custom_call.1} parent=5 // pred_fallthru
        _
      %p331 = scmp.le.s32.totalorder 1, %s19
      %p332 = scmp.lt.s32.totalorder %s19, 3
      %p333 = pnand %p331, %p332
      %p334 = pneg %p333
      // Predicated region
      $region49: #{tpu_custom_call.1} parent=5 // pred_check
        _
      $region50: #{tpu_custom_call.1} parent=5 // pred_check_branch
        %336 = sbr.rel (%p333) target = $region52
      $region51: #{tpu_custom_call.1} parent=5 // pred_region
        %s337 = ssub.s32 %s19, 1
        // Predicated region
        $region53: #{tpu_custom_call.1} parent=51 // pred_check
          %p338 = pneg %p155
        $region54: #{tpu_custom_call.1} parent=51 // pred_check_branch
          %340 = sbr.rel (%p338) target = $region56
        $region55: #{tpu_custom_call.1} parent=51 // pred_region
          %341 = dma.done [#allocation8], 16384
        $region56: #{tpu_custom_call.1} parent=51 // pred_fallthru
          _
        // Predicated region
        $region57: #{tpu_custom_call.1} parent=51 // pred_check
          %p342 = pneg %p197
        $region58: #{tpu_custom_call.1} parent=51 // pred_check_branch
          %344 = sbr.rel (%p342) target = $region60
        $region59: #{tpu_custom_call.1} parent=51 // pred_region
          %345 = dma.done [#allocation11], 1024
        $region60: #{tpu_custom_call.1} parent=51 // pred_fallthru
          _
        %p346 = scmp.lt.s32.totalorder %s28, 0
        %s347 = scalar_select %p346, %s28, 0
        %s348 = smul.addr %s347, 8
        %s349 = scalar_lea.vmem %s0, %s348
        %p350 = pneg %p57
        %p351 = pneg %p54
        %s352 = smul.u32 8, %s29
        %p353 = scmp.lt.s32.totalorder %s352, 15
        %s354 = scalar_select %p353, %s352, 15
        %p355 = scmp.lt.s32.totalorder %s28, 0
        %s356 = scalar_select %p355, %s28, 0
        %s357 = sadd.s32 %s356, %s354
        %s358 = smul.addr %s357, 8
        %s359 = scalar_lea.vmem %s1, %s358
        %p360 = pneg %p85
        %p361 = pneg %p82
        %s362 = smul.u32 8, %s29
        %p363 = scmp.lt.s32.totalorder %s362, 15
        %s364 = scalar_select %p363, %s362, 15
        %p365 = scmp.lt.s32.totalorder %s28, 0
        %s366 = scalar_select %p365, %s28, 0
        %s367 = sadd.s32 %s366, %s364
        %s368 = smul.addr %s367, 4
        %s369 = scalar_lea.vmem %s2, %s368
        %p370 = pneg %p113
        %p371 = pneg %p110
        %p372 = pneg %p134
        %p373 = pneg %p131
        %p374 = pneg %p155
        %p375 = pneg %p152
        %p376 = pneg %p176
        %p377 = pneg %p173
        %p378 = pneg %p197
        %p379 = pneg %p194
        %p380 = pneg %p218
        %p381 = pneg %p215
        %p382 = pneg %p246
        %p383 = pneg %p243
        %s384 = sand.u32 %s233, 1
        %s385 = scalar_lea.sflag [#allocation9], %s384
        %s386 = sand.u32 %s233, 1
        %s387 = smul.addr %s386, 64
        %s388 = scalar_lea.vmem [#allocation12], %s387
        %p389 = scmp.lt.s32.totalorder %s28, 0
        %s390 = scalar_select %p389, %s28, 0
        %s391 = smul.addr %s390, 8
        %s392 = scalar_lea.vmem %s0, %s391
        %s393 = smul.u32 8, %s29
        %p394 = scmp.lt.s32.totalorder %s393, 15
        %s395 = scalar_select %p394, %s393, 15
        %p396 = scmp.lt.s32.totalorder %s28, 0
        %s397 = scalar_select %p396, %s28, 0
        %s398 = sadd.s32 %s397, %s395
        %s399 = smul.addr %s398, 8
        %s400 = scalar_lea.vmem %s1, %s399
        %s401 = smul.u32 8, %s29
        %s402 = smul.u32 8, %s29
        %p403 = scmp.lt.s32.totalorder %s402, 15
        %s404 = scalar_select %p403, %s402, 15
        %p405 = scmp.lt.s32.totalorder %s28, 0
        %s406 = scalar_select %p405, %s28, 0
        %s407 = sadd.s32 %s406, %s404
        %s408 = smul.addr %s407, 4
        %s409 = scalar_lea.vmem %s2, %s408
        %s410 = smul.u32 8, %s29
        %s411 = smul.u32 8, %s29
        %p413 = scmp.eq.s32.totalorder %s29, 0
        // Predicated region
        $region61: #{tpu_custom_call.1} parent=51 // pred_check
          %p414 = pneg %p413
        $region62: #{tpu_custom_call.1} parent=51 // pred_check_branch
          %416 = sbr.rel (%p414) target = $region64
        $region63: #{tpu_custom_call.1} parent=51 // pred_region
          %417 = vst [vmem:[#allocation4] sm:$0xff] 0.0
          %418 = vst [vmem:[#allocation4 + $0x8] sm:$0xff] 0.0
          %419 = vst [vmem:[#allocation5] sm:$0xff] 0.0
          %420 = vst [vmem:[#allocation5 + $0x8] sm:$0xff] 0.0
        $region64: #{tpu_custom_call.1} parent=51 // pred_fallthru
          _
        %v421 = vld [vmem:[%s400] sm:$0xff]
        %v422 = vld [vmem:[%s400 + $0x8] sm:$0xff]
        %v423 = vld [vmem:[%s400 + $0x10] sm:$0xff]
        %v424 = vld [vmem:[%s400 + $0x18] sm:$0xff]
        %v425 = vld [vmem:[%s400 + $0x20] sm:$0xff]
        %v426 = vld [vmem:[%s400 + $0x28] sm:$0xff]
        %v427 = vld [vmem:[%s400 + $0x30] sm:$0xff]
        %v428 = vld [vmem:[%s400 + $0x38] sm:$0xff]
        %v429 = vlaneseq
        %v430 = vand.u32 %v429, 127
        %431 = vset.pattern.permute.xlu0 0
        %432 = vperm.xlu0 %431, %v421
        %v433 = vpop.permute.xlu0 %432
        %434 = vset.pattern.permute.xlu0 0
        %435 = vperm.xlu0 %434, %v422
        %v436 = vpop.permute.xlu0 %435
        %437 = vset.pattern.permute.xlu0 0
        %438 = vperm.xlu0 %437, %v423
        %v439 = vpop.permute.xlu0 %438
        %440 = vset.pattern.permute.xlu0 0
        %441 = vperm.xlu0 %440, %v424
        %v442 = vpop.permute.xlu0 %441
        %443 = vset.pattern.permute.xlu0 0
        %444 = vperm.xlu0 %443, %v425
        %v445 = vpop.permute.xlu0 %444
        %446 = vset.pattern.permute.xlu0 0
        %447 = vperm.xlu0 %446, %v426
        %v448 = vpop.permute.xlu0 %447
        %449 = vset.pattern.permute.xlu0 0
        %450 = vperm.xlu0 %449, %v427
        %v451 = vpop.permute.xlu0 %450
        %452 = vset.pattern.permute.xlu0 0
        %453 = vperm.xlu0 %452, %v428
        %v454 = vpop.permute.xlu0 %453
        %vm455 = vcmp.eq.s32.totalorder %v430, %v433
        %vm456 = vcmp.eq.s32.totalorder %v430, %v436
        %vm457 = vcmp.eq.s32.totalorder %v430, %v439
        %vm458 = vcmp.eq.s32.totalorder %v430, %v442
        %vm459 = vcmp.eq.s32.totalorder %v430, %v445
        %vm460 = vcmp.eq.s32.totalorder %v430, %v448
        %vm461 = vcmp.eq.s32.totalorder %v430, %v451
        %vm462 = vcmp.eq.s32.totalorder %v430, %v454
        %v463 = vsel %vm455, 1, 0
        %v464 = vsel %vm456, 1, 0
        %v465 = vsel %vm457, 1, 0
        %v466 = vsel %vm458, 1, 0
        %v467 = vsel %vm459, 1, 0
        %v468 = vsel %vm460, 1, 0
        %v469 = vsel %vm461, 1, 0
        %v470 = vsel %vm462, 1, 0
        %v471 = vcvt.s32.f32 %v463
        %v472 = vcvt.s32.f32 %v464
        %v473 = vcvt.s32.f32 %v465
        %v474 = vcvt.s32.f32 %v466
        %v475 = vcvt.s32.f32 %v467
        %v476 = vcvt.s32.f32 %v468
        %v477 = vcvt.s32.f32 %v469
        %v478 = vcvt.s32.f32 %v470
        %v479 = vpack.c.bf16 %v472, %v471
        %v480 = vpack.c.bf16 %v474, %v473
        %v481 = vpack.c.bf16 %v476, %v475
        %v482 = vpack.c.bf16 %v478, %v477
        %v483 = vld [vmem:[%s3] sm:$0xf]
        %v484 = vld [vmem:[%s3 + $0x4] sm:$0xf]
        %v485 = vld [vmem:[%s3 + $0x8] sm:$0xf]
        %v486 = vld [vmem:[%s3 + $0xc] sm:$0xf]
        %v487 = vld [vmem:[%s3 + $0x10] sm:$0xf]
        %v488 = vld [vmem:[%s3 + $0x14] sm:$0xf]
        %v489 = vld [vmem:[%s3 + $0x18] sm:$0xf]
        %v490 = vld [vmem:[%s3 + $0x1c] sm:$0xf]
        %v491 = vld [vmem:[%s3 + $0x20] sm:$0xf]
        %v492 = vld [vmem:[%s3 + $0x24] sm:$0xf]
        %v493 = vld [vmem:[%s3 + $0x28] sm:$0xf]
        %v494 = vld [vmem:[%s3 + $0x2c] sm:$0xf]
        %v495 = vld [vmem:[%s3 + $0x30] sm:$0xf]
        %v496 = vld [vmem:[%s3 + $0x34] sm:$0xf]
        %v497 = vld [vmem:[%s3 + $0x38] sm:$0xf]
        %v498 = vld [vmem:[%s3 + $0x3c] sm:$0xf]
        %v515 = vunpack.c.l.b16 %v483
        %v516 = vunpack.c.l.b16 %v484
        %v517 = vunpack.c.l.b16 %v485
        %v518 = vunpack.c.l.b16 %v486
        %v519 = vunpack.c.l.b16 %v487
        %v520 = vunpack.c.l.b16 %v488
        %v521 = vunpack.c.l.b16 %v489
        %v522 = vunpack.c.l.b16 %v490
        %v523 = vunpack.c.l.b16 %v491
        %v524 = vunpack.c.l.b16 %v492
        %v525 = vunpack.c.l.b16 %v493
        %v526 = vunpack.c.l.b16 %v494
        %v527 = vunpack.c.l.b16 %v495
        %v528 = vunpack.c.l.b16 %v496
        %v529 = vunpack.c.l.b16 %v497
        %v530 = vunpack.c.l.b16 %v498
        %v531 = vpack.c.b16 %v516, %v515
        %v532 = vpack.c.b16 %v518, %v517
        %v533 = vpack.c.b16 %v520, %v519
        %v534 = vpack.c.b16 %v522, %v521
        %v535 = vpack.c.b16 %v524, %v523
        %v536 = vpack.c.b16 %v526, %v525
        %v537 = vpack.c.b16 %v528, %v527
        %v538 = vpack.c.b16 %v530, %v529
        %547 = vmatprep.subr.bf16.mxu0 0
        %548 = vmatpush1.bf16.msra.mxu0 %v531
        %549 = vmatprep.subr.bf16.mxu0 0
        %550 = vmatpush1.bf16.msra.mxu0 %v532
        %551 = vmatprep.subr.bf16.mxu0 0
        %552 = vmatpush1.bf16.msra.mxu0 %v533
        %553 = vmatprep.subr.bf16.mxu0 0
        %554 = vmatpush1.bf16.msra.mxu0 %v534
        %555 = vmatprep.subr.bf16.mxu0 0
        %556 = vmatpush1.bf16.msra.mxu0 %v535
        %557 = vmatprep.subr.bf16.mxu0 0
        %558 = vmatpush1.bf16.msra.mxu0 %v536
        %559 = vmatprep.subr.bf16.mxu0 0
        %560 = vmatpush1.bf16.msra.mxu0 %v537
        %561 = vmatprep.subr.bf16.mxu0 0
        %562 = vmatpush1.bf16.msra.mxu0 %v538
        %563 = vmatprep.subr.bf16.mxu0 0
        %564 = vmatpush1.bf16.msra.mxu0 0
        %565 = vmatprep.subr.bf16.mxu0 0
        %566 = vmatpush1.bf16.msra.mxu0 0
        %567 = vmatprep.subr.bf16.mxu0 0
        %568 = vmatpush1.bf16.msra.mxu0 0
        %569 = vmatprep.subr.bf16.mxu0 0
        %570 = vmatpush1.bf16.msra.mxu0 0
        %571 = vmatprep.subr.bf16.mxu0 0
        %572 = vmatpush1.bf16.msra.mxu0 0
        %573 = vmatprep.subr.bf16.mxu0 0
        %574 = vmatpush1.bf16.msra.mxu0 0
        %575 = vmatprep.subr.bf16.mxu0 0
        %576 = vmatpush1.bf16.msra.mxu0 0
        %577 = vmatprep.subr.bf16.mxu0 0
        %578 = vmatpush1.bf16.msra.mxu0 0
        %579 = vmatprep.mubr.bf16.mxu0 0
        %580 = vmatmul.mubr.bf16.gmra.mrb[0].mxu0 %v479
        %v581 = vpop.f32.mrb[0].mxu0
        %v582 = vadd.f32 0.0, %v581
        %v583 = vpop.f32.mrb[0].mxu0
        %v584 = vpop.f32.mrb[0].mxu0
        %v585 = vadd.f32 0.0, %v584
        %v586 = vpop.f32.mrb[0].mxu0
        %587 = vmatprep.mubr.bf16.mxu0 0
        %588 = vmatmul.mubr.bf16.gmra.mrb[0].mxu0 %v480
        %v589 = vpop.f32.mrb[0].mxu0
        %v590 = vadd.f32 0.0, %v589
        %v591 = vpop.f32.mrb[0].mxu0
        %v592 = vpop.f32.mrb[0].mxu0
        %v593 = vadd.f32 0.0, %v592
        %v594 = vpop.f32.mrb[0].mxu0
        %595 = vmatprep.mubr.bf16.mxu0 0
        %596 = vmatmul.mubr.bf16.gmra.mrb[0].mxu0 %v481
        %v597 = vpop.f32.mrb[0].mxu0
        %v598 = vadd.f32 0.0, %v597
        %v599 = vpop.f32.mrb[0].mxu0
        %v600 = vpop.f32.mrb[0].mxu0
        %v601 = vadd.f32 0.0, %v600
        %v602 = vpop.f32.mrb[0].mxu0
        %603 = vmatprep.mubr.bf16.mxu0 0
        %604 = vmatmul.mubr.bf16.gmra.mrb[0].mxu0 %v482
        %v605 = vpop.f32.mrb[0].mxu0
        %v606 = vadd.f32 0.0, %v605
        %v607 = vpop.f32.mrb[0].mxu0
        %v608 = vpop.f32.mrb[0].mxu0
        %v609 = vadd.f32 0.0, %v608
        %v610 = vpop.f32.mrb[0].mxu0
        %611 = vdwg.mxu0
        %v612 = vld [vmem:[%s409] sm:$0xf]
        %v613 = vld [vmem:[%s409 + $0x4] sm:$0xf]
        %v614 = vld [vmem:[%s409 + $0x8] sm:$0xf]
        %v615 = vld [vmem:[%s409 + $0xc] sm:$0xf]
        %v616 = vld [vmem:[%s409 + $0x10] sm:$0xf]
        %v617 = vld [vmem:[%s409 + $0x14] sm:$0xf]
        %v618 = vld [vmem:[%s409 + $0x18] sm:$0xf]
        %v619 = vld [vmem:[%s409 + $0x1c] sm:$0xf]
        %v620 = vunpack.c.l.bf16 %v612
        %v621 = vunpack.c.l.bf16 %v613
        %v622 = vunpack.c.l.bf16 %v614
        %v623 = vunpack.c.l.bf16 %v615
        %v624 = vunpack.c.l.bf16 %v616
        %v625 = vunpack.c.l.bf16 %v617
        %v626 = vunpack.c.l.bf16 %v618
        %v627 = vunpack.c.l.bf16 %v619
        %v628 = vmul.f32 %v582, %v620
        %v629 = vmul.f32 %v585, %v621
        %v630 = vmul.f32 %v590, %v622
        %v631 = vmul.f32 %v593, %v623
        %v632 = vmul.f32 %v598, %v624
        %v633 = vmul.f32 %v601, %v625
        %v634 = vmul.f32 %v606, %v626
        %v635 = vmul.f32 %v609, %v627
        %636 = vst [vmem:[#allocation2] sm:$0xff] %v628
        %637 = vst [vmem:[#allocation2 + $0x8] sm:$0xff] %v629
        %638 = vst [vmem:[#allocation2 + $0x10] sm:$0xff] %v630
        %639 = vst [vmem:[#allocation2 + $0x18] sm:$0xff] %v631
        %640 = vst [vmem:[#allocation2 + $0x20] sm:$0xff] %v632
        %641 = vst [vmem:[#allocation2 + $0x28] sm:$0xff] %v633
        %642 = vst [vmem:[#allocation2 + $0x30] sm:$0xff] %v634
        %643 = vst [vmem:[#allocation2 + $0x38] sm:$0xff] %v635
        // Predicated region
        $region65: #{tpu_custom_call.1} parent=51 // pred_check
          %p644 = pneg %p413
        $region66: #{tpu_custom_call.1} parent=51 // pred_check_branch
          %646 = sbr.rel (%p644) target = $region68
        $region67: #{tpu_custom_call.1} parent=51 // pred_region
          %v647 = vld [vmem:[%s392] sm:$0xff]
          %648 = vst [vmem:[#allocation2] sm:$0xff] %v647
        $region68: #{tpu_custom_call.1} parent=51 // pred_fallthru
          _
        %v649 = vld [vmem:[#allocation2] sm:$0xff]
        %v650 = vld [vmem:[#allocation4] sm:$0xff]
        %v651 = vld [vmem:[#allocation5] sm:$0xff]
        %652 = vst [vmem:[#allocation3] sm:$0xff] %v649
        %653 = vst [vmem:[#allocation3 + $0x8] sm:$0xff] %v650
        %v654 = vld [vmem:[#allocation3] sm:$0xff]
        %v655 = vld [vmem:[#allocation3 + $0x8] sm:$0xff]
        %v656 = vpack.c.bf16 %v654, %v654
        %v657 = vpack.c.bf16 %v655, %v655
        %v658 = vld [vmem:[#allocation7] sm:$0xff]
        %v659 = vld [vmem:[#allocation7 + $0x8] sm:$0xff]
        %v660 = vld [vmem:[#allocation7 + $0x10] sm:$0xff]
        %v661 = vld [vmem:[#allocation7 + $0x18] sm:$0xff]
        %v662 = vld [vmem:[#allocation7 + $0x20] sm:$0xff]
        %v663 = vld [vmem:[#allocation7 + $0x28] sm:$0xff]
        %v664 = vld [vmem:[#allocation7 + $0x30] sm:$0xff]
        %v665 = vld [vmem:[#allocation7 + $0x38] sm:$0xff]
        %v666 = vld [vmem:[#allocation7 + $0x40] sm:$0xff]
        %v667 = vld [vmem:[#allocation7 + $0x48] sm:$0xff]
        %v668 = vld [vmem:[#allocation7 + $0x50] sm:$0xff]
        %v669 = vld [vmem:[#allocation7 + $0x58] sm:$0xff]
        %v670 = vld [vmem:[#allocation7 + $0x60] sm:$0xff]
        %v671 = vld [vmem:[#allocation7 + $0x68] sm:$0xff]
        %v672 = vld [vmem:[#allocation7 + $0x70] sm:$0xff]
        %v673 = vld [vmem:[#allocation7 + $0x78] sm:$0xff]
        %v674 = vld [vmem:[#allocation7 + $0x80] sm:$0xff]
        %v675 = vld [vmem:[#allocation7 + $0x88] sm:$0xff]
        %v676 = vld [vmem:[#allocation7 + $0x90] sm:$0xff]
        %v677 = vld [vmem:[#allocation7 + $0x98] sm:$0xff]
        %v678 = vld [vmem:[#allocation7 + $0xa0] sm:$0xff]
        %v679 = vld [vmem:[#allocation7 + $0xa8] sm:$0xff]
        %v680 = vld [vmem:[#allocation7 + $0xb0] sm:$0xff]
        %v681 = vld [vmem:[#allocation7 + $0xb8] sm:$0xff]
        %v682 = vld [vmem:[#allocation7 + $0xc0] sm:$0xff]
        %v683 = vld [vmem:[#allocation7 + $0xc8] sm:$0xff]
        %v684 = vld [vmem:[#allocation7 + $0xd0] sm:$0xff]
        %v685 = vld [vmem:[#allocation7 + $0xd8] sm:$0xff]
        %v686 = vld [vmem:[#allocation7 + $0xe0] sm:$0xff]
        %v687 = vld [vmem:[#allocation7 + $0xe8] sm:$0xff]
        %v688 = vld [vmem:[#allocation7 + $0xf0] sm:$0xff]
        %v689 = vld [vmem:[#allocation7 + $0xf8] sm:$0xff]
        %v690 = vld [vmem:[#allocation7 + $0x100] sm:$0xff]
        %v691 = vld [vmem:[#allocation7 + $0x108] sm:$0xff]
        %v692 = vld [vmem:[#allocation7 + $0x110] sm:$0xff]
        %v693 = vld [vmem:[#allocation7 + $0x118] sm:$0xff]
        %v694 = vld [vmem:[#allocation7 + $0x120] sm:$0xff]
        %v695 = vld [vmem:[#allocation7 + $0x128] sm:$0xff]
        %v696 = vld [vmem:[#allocation7 + $0x130] sm:$0xff]
        %v697 = vld [vmem:[#allocation7 + $0x138] sm:$0xff]
        %v698 = vld [vmem:[#allocation7 + $0x140] sm:$0xff]
        %v699 = vld [vmem:[#allocation7 + $0x148] sm:$0xff]
        %v700 = vld [vmem:[#allocation7 + $0x150] sm:$0xff]
        %v701 = vld [vmem:[#allocation7 + $0x158] sm:$0xff]
        %v702 = vld [vmem:[#allocation7 + $0x160] sm:$0xff]
        %v703 = vld [vmem:[#allocation7 + $0x168] sm:$0xff]
        %v704 = vld [vmem:[#allocation7 + $0x170] sm:$0xff]
        %v705 = vld [vmem:[#allocation7 + $0x178] sm:$0xff]
        %v706 = vld [vmem:[#allocation7 + $0x180] sm:$0xff]
        %v707 = vld [vmem:[#allocation7 + $0x188] sm:$0xff]
        %v708 = vld [vmem:[#allocation7 + $0x190] sm:$0xff]
        %v709 = vld [vmem:[#allocation7 + $0x198] sm:$0xff]
        %v710 = vld [vmem:[#allocation7 + $0x1a0] sm:$0xff]
        %v711 = vld [vmem:[#allocation7 + $0x1a8] sm:$0xff]
        %v712 = vld [vmem:[#allocation7 + $0x1b0] sm:$0xff]
        %v713 = vld [vmem:[#allocation7 + $0x1b8] sm:$0xff]
        %v714 = vld [vmem:[#allocation7 + $0x1c0] sm:$0xff]
        %v715 = vld [vmem:[#allocation7 + $0x1c8] sm:$0xff]
        %v716 = vld [vmem:[#allocation7 + $0x1d0] sm:$0xff]
        %v717 = vld [vmem:[#allocation7 + $0x1d8] sm:$0xff]
        %v718 = vld [vmem:[#allocation7 + $0x1e0] sm:$0xff]
        %v719 = vld [vmem:[#allocation7 + $0x1e8] sm:$0xff]
        %v720 = vld [vmem:[#allocation7 + $0x1f0] sm:$0xff]
        %v721 = vld [vmem:[#allocation7 + $0x1f8] sm:$0xff]
        %v722 = vld [vmem:[%s5] sm:$0xf]
        %v724 = vlaneseq
        %v725 = vshrl.u32 %v724, 7
        %v726 = vsub.s32 0, %v725
        %v727 = vrot.slane %v722, %v726
        %v728 = vlaneseq
        %v729 = vshrl.u32 %v728, 7
        %v730 = vsub.s32 1, %v729
        %v731 = vrot.slane %v722, %v730
        %v732 = vlaneseq
        %v733 = vshrl.u32 %v732, 7
        %v734 = vsub.s32 2, %v733
        %v735 = vrot.slane %v722, %v734
        %v736 = vlaneseq
        %v737 = vshrl.u32 %v736, 7
        %v738 = vsub.s32 3, %v737
        %v739 = vrot.slane %v722, %v738
        %v808 = vunpack.c.l.b16 %v658
        %v809 = vunpack.c.h.b16 %v658
        %v810 = vunpack.c.l.b16 %v659
        %v811 = vunpack.c.h.b16 %v659
        %v812 = vunpack.c.l.b16 %v660
        %v813 = vunpack.c.h.b16 %v660
        %v814 = vunpack.c.l.b16 %v661
        %v815 = vunpack.c.h.b16 %v661
        %v816 = vunpack.c.l.b16 %v662
        %v817 = vunpack.c.h.b16 %v662
        %v818 = vunpack.c.l.b16 %v663
        %v819 = vunpack.c.h.b16 %v663
        %v820 = vunpack.c.l.b16 %v664
        %v821 = vunpack.c.h.b16 %v664
        %v822 = vunpack.c.l.b16 %v665
        %v823 = vunpack.c.h.b16 %v665
        %v824 = vunpack.c.l.b16 %v666
        %v825 = vunpack.c.h.b16 %v666
        %v826 = vunpack.c.l.b16 %v667
        %v827 = vunpack.c.h.b16 %v667
        %v828 = vunpack.c.l.b16 %v668
        %v829 = vunpack.c.h.b16 %v668
        %v830 = vunpack.c.l.b16 %v669
        %v831 = vunpack.c.h.b16 %v669
        %v832 = vunpack.c.l.b16 %v670
        %v833 = vunpack.c.h.b16 %v670
        %v834 = vunpack.c.l.b16 %v671
        %v835 = vunpack.c.h.b16 %v671
        %v836 = vunpack.c.l.b16 %v672
        %v837 = vunpack.c.h.b16 %v672
        %v838 = vunpack.c.l.b16 %v673
        %v839 = vunpack.c.h.b16 %v673
        %v840 = vunpack.c.l.b16 %v674
        %v841 = vunpack.c.h.b16 %v674
        %v842 = vunpack.c.l.b16 %v675
        %v843 = vunpack.c.h.b16 %v675
        %v844 = vunpack.c.l.b16 %v676
        %v845 = vunpack.c.h.b16 %v676
        %v846 = vunpack.c.l.b16 %v677
        %v847 = vunpack.c.h.b16 %v677
        %v848 = vunpack.c.l.b16 %v678
        %v849 = vunpack.c.h.b16 %v678
        %v850 = vunpack.c.l.b16 %v679
        %v851 = vunpack.c.h.b16 %v679
        %v852 = vunpack.c.l.b16 %v680
        %v853 = vunpack.c.h.b16 %v680
        %v854 = vunpack.c.l.b16 %v681
        %v855 = vunpack.c.h.b16 %v681
        %v856 = vunpack.c.l.b16 %v682
        %v857 = vunpack.c.h.b16 %v682
        %v858 = vunpack.c.l.b16 %v683
        %v859 = vunpack.c.h.b16 %v683
        %v860 = vunpack.c.l.b16 %v684
        %v861 = vunpack.c.h.b16 %v684
        %v862 = vunpack.c.l.b16 %v685
        %v863 = vunpack.c.h.b16 %v685
        %v864 = vunpack.c.l.b16 %v686
        %v865 = vunpack.c.h.b16 %v686
        %v866 = vunpack.c.l.b16 %v687
        %v867 = vunpack.c.h.b16 %v687
        %v868 = vunpack.c.l.b16 %v688
        %v869 = vunpack.c.h.b16 %v688
        %v870 = vunpack.c.l.b16 %v689
        %v871 = vunpack.c.h.b16 %v689
        %v872 = vunpack.c.l.b16 %v690
        %v873 = vunpack.c.h.b16 %v690
        %v874 = vunpack.c.l.b16 %v691
        %v875 = vunpack.c.h.b16 %v691
        %v876 = vunpack.c.l.b16 %v692
        %v877 = vunpack.c.h.b16 %v692
        %v878 = vunpack.c.l.b16 %v693
        %v879 = vunpack.c.h.b16 %v693
        %v880 = vunpack.c.l.b16 %v694
        %v881 = vunpack.c.h.b16 %v694
        %v882 = vunpack.c.l.b16 %v695
        %v883 = vunpack.c.h.b16 %v695
        %v884 = vunpack.c.l.b16 %v696
        %v885 = vunpack.c.h.b16 %v696
        %v886 = vunpack.c.l.b16 %v697
        %v887 = vunpack.c.h.b16 %v697
        %v888 = vunpack.c.l.b16 %v698
        %v889 = vunpack.c.h.b16 %v698
        %v890 = vunpack.c.l.b16 %v699
        %v891 = vunpack.c.h.b16 %v699
        %v892 = vunpack.c.l.b16 %v700
        %v893 = vunpack.c.h.b16 %v700
        %v894 = vunpack.c.l.b16 %v701
        %v895 = vunpack.c.h.b16 %v701
        %v896 = vunpack.c.l.b16 %v702
        %v897 = vunpack.c.h.b16 %v702
        %v898 = vunpack.c.l.b16 %v703
        %v899 = vunpack.c.h.b16 %v703
        %v900 = vunpack.c.l.b16 %v704
        %v901 = vunpack.c.h.b16 %v704
        %v902 = vunpack.c.l.b16 %v705
        %v903 = vunpack.c.h.b16 %v705
        %v904 = vunpack.c.l.b16 %v706
        %v905 = vunpack.c.h.b16 %v706
        %v906 = vunpack.c.l.b16 %v707
        %v907 = vunpack.c.h.b16 %v707
        %v908 = vunpack.c.l.b16 %v708
        %v909 = vunpack.c.h.b16 %v708
        %v910 = vunpack.c.l.b16 %v709
        %v911 = vunpack.c.h.b16 %v709
        %v912 = vunpack.c.l.b16 %v710
        %v913 = vunpack.c.h.b16 %v710
        %v914 = vunpack.c.l.b16 %v711
        %v915 = vunpack.c.h.b16 %v711
        %v916 = vunpack.c.l.b16 %v712
        %v917 = vunpack.c.h.b16 %v712
        %v918 = vunpack.c.l.b16 %v713
        %v919 = vunpack.c.h.b16 %v713
        %v920 = vunpack.c.l.b16 %v714
        %v921 = vunpack.c.h.b16 %v714
        %v922 = vunpack.c.l.b16 %v715
        %v923 = vunpack.c.h.b16 %v715
        %v924 = vunpack.c.l.b16 %v716
        %v925 = vunpack.c.h.b16 %v716
        %v926 = vunpack.c.l.b16 %v717
        %v927 = vunpack.c.h.b16 %v717
        %v928 = vunpack.c.l.b16 %v718
        %v929 = vunpack.c.h.b16 %v718
        %v930 = vunpack.c.l.b16 %v719
        %v931 = vunpack.c.h.b16 %v719
        %v932 = vunpack.c.l.b16 %v720
        %v933 = vunpack.c.h.b16 %v720
        %v934 = vunpack.c.l.b16 %v721
        %v935 = vunpack.c.h.b16 %v721
        %v936 = vpack.c.b16 %v812, %v808
        %v937 = vpack.c.b16 %v813, %v809
        %v938 = vpack.c.b16 %v814, %v810
        %v939 = vpack.c.b16 %v815, %v811
        %v940 = vpack.c.b16 %v820, %v816
        %v941 = vpack.c.b16 %v821, %v817
        %v942 = vpack.c.b16 %v822, %v818
        %v943 = vpack.c.b16 %v823, %v819
        %v944 = vpack.c.b16 %v828, %v824
        %v945 = vpack.c.b16 %v829, %v825
        %v946 = vpack.c.b16 %v830, %v826
        %v947 = vpack.c.b16 %v831, %v827
        %v948 = vpack.c.b16 %v836, %v832
        %v949 = vpack.c.b16 %v837, %v833
        %v950 = vpack.c.b16 %v838, %v834
        %v951 = vpack.c.b16 %v839, %v835
        %v952 = vpack.c.b16 %v844, %v840
        %v953 = vpack.c.b16 %v845, %v841
        %v954 = vpack.c.b16 %v846, %v842
        %v955 = vpack.c.b16 %v847, %v843
        %v956 = vpack.c.b16 %v852, %v848
        %v957 = vpack.c.b16 %v853, %v849
        %v958 = vpack.c.b16 %v854, %v850
        %v959 = vpack.c.b16 %v855, %v851
        %v960 = vpack.c.b16 %v860, %v856
        %v961 = vpack.c.b16 %v861, %v857
        %v962 = vpack.c.b16 %v862, %v858
        %v963 = vpack.c.b16 %v863, %v859
        %v964 = vpack.c.b16 %v868, %v864
        %v965 = vpack.c.b16 %v869, %v865
        %v966 = vpack.c.b16 %v870, %v866
        %v967 = vpack.c.b16 %v871, %v867
        %v968 = vpack.c.b16 %v876, %v872
        %v969 = vpack.c.b16 %v877, %v873
        %v970 = vpack.c.b16 %v878, %v874
        %v971 = vpack.c.b16 %v879, %v875
        %v972 = vpack.c.b16 %v884, %v880
        %v973 = vpack.c.b16 %v885, %v881
        %v974 = vpack.c.b16 %v886, %v882
        %v975 = vpack.c.b16 %v887, %v883
        %v976 = vpack.c.b16 %v892, %v888
        %v977 = vpack.c.b16 %v893, %v889
        %v978 = vpack.c.b16 %v894, %v890
        %v979 = vpack.c.b16 %v895, %v891
        %v980 = vpack.c.b16 %v900, %v896
        %v981 = vpack.c.b16 %v901, %v897
        %v982 = vpack.c.b16 %v902, %v898
        %v983 = vpack.c.b16 %v903, %v899
        %v984 = vpack.c.b16 %v908, %v904
        %v985 = vpack.c.b16 %v909, %v905
        %v986 = vpack.c.b16 %v910, %v906
        %v987 = vpack.c.b16 %v911, %v907
        %v988 = vpack.c.b16 %v916, %v912
        %v989 = vpack.c.b16 %v917, %v913
        %v990 = vpack.c.b16 %v918, %v914
        %v991 = vpack.c.b16 %v919, %v915
        %v992 = vpack.c.b16 %v924, %v920
        %v993 = vpack.c.b16 %v925, %v921
        %v994 = vpack.c.b16 %v926, %v922
        %v995 = vpack.c.b16 %v927, %v923
        %v996 = vpack.c.b16 %v932, %v928
        %v997 = vpack.c.b16 %v933, %v929
        %v998 = vpack.c.b16 %v934, %v930
        %v999 = vpack.c.b16 %v935, %v931
        %1064 = vmatprep.subr.bf16.mxu0 %v937
        %1065 = vmatpush1.bf16.msra.mxu0 %v936
        %1066 = vmatprep.subr.bf16.mxu0 %v941
        %1067 = vmatpush1.bf16.msra.mxu0 %v940
        %1068 = vmatprep.subr.bf16.mxu0 %v945
        %1069 = vmatpush1.bf16.msra.mxu0 %v944
        %1070 = vmatprep.subr.bf16.mxu0 %v949
        %1071 = vmatpush1.bf16.msra.mxu0 %v948
        %1072 = vmatprep.subr.bf16.mxu0 %v953
        %1073 = vmatpush1.bf16.msra.mxu0 %v952
        %1074 = vmatprep.subr.bf16.mxu0 %v957
        %1075 = vmatpush1.bf16.msra.mxu0 %v956
        %1076 = vmatprep.subr.bf16.mxu0 %v961
        %1077 = vmatpush1.bf16.msra.mxu0 %v960
        %1078 = vmatprep.subr.bf16.mxu0 %v965
        %1079 = vmatpush1.bf16.msra.mxu0 %v964
        %1080 = vmatprep.subr.bf16.mxu0 %v969
        %1081 = vmatpush1.bf16.msra.mxu0 %v968
        %1082 = vmatprep.subr.bf16.mxu0 %v973
        %1083 = vmatpush1.bf16.msra.mxu0 %v972
        %1084 = vmatprep.subr.bf16.mxu0 %v977
        %1085 = vmatpush1.bf16.msra.mxu0 %v976
        %1086 = vmatprep.subr.bf16.mxu0 %v981
        %1087 = vmatpush1.bf16.msra.mxu0 %v980
        %1088 = vmatprep.subr.bf16.mxu0 %v985
        %1089 = vmatpush1.bf16.msra.mxu0 %v984
        %1090 = vmatprep.subr.bf16.mxu0 %v989
        %1091 = vmatpush1.bf16.msra.mxu0 %v988
        %1092 = vmatprep.subr.bf16.mxu0 %v993
        %1093 = vmatpush1.bf16.msra.mxu0 %v992
        %1094 = vmatprep.subr.bf16.mxu0 %v997
        %1095 = vmatpush1.bf16.msra.mxu0 %v996
        %1096 = vmatprep.mubr.bf16.mxu0 %v657
        %1097 = vmatmul.mubr.bf16.gmra.mrb[0].mxu0 %v656
        %v1098 = vpop.f32.mrb[0].mxu0
        %v1099 = vadd.f32 %v727, %v1098
        %v1100 = vpop.f32.mrb[0].mxu0
        %v1101 = vadd.f32 %v731, %v1100
        %v1102 = vpop.f32.mrb[0].mxu0
        %v1103 = vpop.f32.mrb[0].mxu0
        %1104 = vdwg.mxu0
        %1105 = vmatprep.subr.bf16.mxu0 %v939
        %1106 = vmatpush1.bf16.msra.mxu0 %v938
        %1107 = vmatprep.subr.bf16.mxu0 %v943
        %1108 = vmatpush1.bf16.msra.mxu0 %v942
        %1109 = vmatprep.subr.bf16.mxu0 %v947
        %1110 = vmatpush1.bf16.msra.mxu0 %v946
        %1111 = vmatprep.subr.bf16.mxu0 %v951
        %1112 = vmatpush1.bf16.msra.mxu0 %v950
        %1113 = vmatprep.subr.bf16.mxu0 %v955
        %1114 = vmatpush1.bf16.msra.mxu0 %v954
        %1115 = vmatprep.subr.bf16.mxu0 %v959
        %1116 = vmatpush1.bf16.msra.mxu0 %v958
        %1117 = vmatprep.subr.bf16.mxu0 %v963
        %1118 = vmatpush1.bf16.msra.mxu0 %v962
        %1119 = vmatprep.subr.bf16.mxu0 %v967
        %1120 = vmatpush1.bf16.msra.mxu0 %v966
        %1121 = vmatprep.subr.bf16.mxu0 %v971
        %1122 = vmatpush1.bf16.msra.mxu0 %v970
        %1123 = vmatprep.subr.bf16.mxu0 %v975
        %1124 = vmatpush1.bf16.msra.mxu0 %v974
        %1125 = vmatprep.subr.bf16.mxu0 %v979
        %1126 = vmatpush1.bf16.msra.mxu0 %v978
        %1127 = vmatprep.subr.bf16.mxu0 %v983
        %1128 = vmatpush1.bf16.msra.mxu0 %v982
        %1129 = vmatprep.subr.bf16.mxu0 %v987
        %1130 = vmatpush1.bf16.msra.mxu0 %v986
        %1131 = vmatprep.subr.bf16.mxu0 %v991
        %1132 = vmatpush1.bf16.msra.mxu0 %v990
        %1133 = vmatprep.subr.bf16.mxu0 %v995
        %1134 = vmatpush1.bf16.msra.mxu0 %v994
        %1135 = vmatprep.subr.bf16.mxu0 %v999
        %1136 = vmatpush1.bf16.msra.mxu0 %v998
        %1137 = vmatprep.mubr.bf16.mxu0 %v657
        %1138 = vmatmul.mubr.bf16.gmra.mrb[0].mxu0 %v656
        %v1139 = vpop.f32.mrb[0].mxu0
        %v1140 = vadd.f32 %v735, %v1139
        %v1141 = vpop.f32.mrb[0].mxu0
        %v1142 = vadd.f32 %v739, %v1141
        %v1143 = vpop.f32.mrb[0].mxu0
        %v1144 = vpop.f32.mrb[0].mxu0
        %1145 = vdwg.mxu0
        %v1146 = vxor.u32 %v1099, 2147483648
        %v1147 = vmul.f32 %v1146, 1.442695
        %v1148 = vpow.pop %v1147
        %v1149 = vadd.f32 %v1148, 1.0
        %v1150 = vrcp.pop %v1149
        %v1151 = vmul.f32 1.0, %v1150
        %v1152 = vxor.u32 %v1101, 2147483648
        %v1153 = vmul.f32 %v1152, 1.442695
        %v1154 = vpow.pop %v1153
        %v1155 = vadd.f32 %v1154, 1.0
        %v1156 = vrcp.pop %v1155
        %v1157 = vmul.f32 1.0, %v1156
        %v1158 = vtanh.pop %v1140
        %v1159 = vxor.u32 %v1142, 2147483648
        %v1160 = vmul.f32 %v1159, 1.442695
        %v1161 = vpow.pop %v1160
        %v1162 = vadd.f32 %v1161, 1.0
        %v1163 = vrcp.pop %v1162
        %v1164 = vmul.f32 1.0, %v1163
        %v1165 = vmul.f32 %v1157, %v651
        %v1166 = vmul.f32 %v1151, %v1158
        %v1167 = vadd.f32 %v1165, %v1166
        %v1168 = vtanh.pop %v1167
        %v1169 = vmul.f32 %v1164, %v1168
        %1170 = vst [vmem:[#allocation4] sm:$0xff] %v1169
        %1171 = vst [vmem:[#allocation5] sm:$0xff] %v1167
        %s1172 = scalar_lea.vmem [#allocation4], 8
        %v1173 = vld [vmem:[%s1172] sm:$0xff]
        %s1174 = scalar_lea.vmem [#allocation5], 8
        %v1175 = vld [vmem:[%s1174] sm:$0xff]
        %1176 = vst [vmem:[#allocation3] sm:$0xff] %v1169
        %1177 = vst [vmem:[#allocation3 + $0x8] sm:$0xff] %v1173
        %v1178 = vld [vmem:[#allocation3] sm:$0xff]
        %v1179 = vld [vmem:[#allocation3 + $0x8] sm:$0xff]
        %v1180 = vpack.c.bf16 %v1178, %v1178
        %v1181 = vpack.c.bf16 %v1179, %v1179
        %s1182 = scalar_lea.vmem [#allocation7], 512
        %v1183 = vld [vmem:[%s1182] sm:$0xff]
        %v1184 = vld [vmem:[%s1182 + $0x8] sm:$0xff]
        %v1185 = vld [vmem:[%s1182 + $0x10] sm:$0xff]
        %v1186 = vld [vmem:[%s1182 + $0x18] sm:$0xff]
        %v1187 = vld [vmem:[%s1182 + $0x20] sm:$0xff]
        %v1188 = vld [vmem:[%s1182 + $0x28] sm:$0xff]
        %v1189 = vld [vmem:[%s1182 + $0x30] sm:$0xff]
        %v1190 = vld [vmem:[%s1182 + $0x38] sm:$0xff]
        %v1191 = vld [vmem:[%s1182 + $0x40] sm:$0xff]
        %v1192 = vld [vmem:[%s1182 + $0x48] sm:$0xff]
        %v1193 = vld [vmem:[%s1182 + $0x50] sm:$0xff]
        %v1194 = vld [vmem:[%s1182 + $0x58] sm:$0xff]
        %v1195 = vld [vmem:[%s1182 + $0x60] sm:$0xff]
        %v1196 = vld [vmem:[%s1182 + $0x68] sm:$0xff]
        %v1197 = vld [vmem:[%s1182 + $0x70] sm:$0xff]
        %v1198 = vld [vmem:[%s1182 + $0x78] sm:$0xff]
        %v1199 = vld [vmem:[%s1182 + $0x80] sm:$0xff]
        %v1200 = vld [vmem:[%s1182 + $0x88] sm:$0xff]
        %v1201 = vld [vmem:[%s1182 + $0x90] sm:$0xff]
        %v1202 = vld [vmem:[%s1182 + $0x98] sm:$0xff]
        %v1203 = vld [vmem:[%s1182 + $0xa0] sm:$0xff]
        %v1204 = vld [vmem:[%s1182 + $0xa8] sm:$0xff]
        %v1205 = vld [vmem:[%s1182 + $0xb0] sm:$0xff]
        %v1206 = vld [vmem:[%s1182 + $0xb8] sm:$0xff]
        %v1207 = vld [vmem:[%s1182 + $0xc0] sm:$0xff]
        %v1208 = vld [vmem:[%s1182 + $0xc8] sm:$0xff]
        %v1209 = vld [vmem:[%s1182 + $0xd0] sm:$0xff]
        %v1210 = vld [vmem:[%s1182 + $0xd8] sm:$0xff]
        %v1211 = vld [vmem:[%s1182 + $0xe0] sm:$0xff]
        %v1212 = vld [vmem:[%s1182 + $0xe8] sm:$0xff]
        %v1213 = vld [vmem:[%s1182 + $0xf0] sm:$0xff]
        %v1214 = vld [vmem:[%s1182 + $0xf8] sm:$0xff]
        %v1215 = vld [vmem:[%s1182 + $0x100] sm:$0xff]
        %v1216 = vld [vmem:[%s1182 + $0x108] sm:$0xff]
        %v1217 = vld [vmem:[%s1182 + $0x110] sm:$0xff]
        %v1218 = vld [vmem:[%s1182 + $0x118] sm:$0xff]
        %v1219 = vld [vmem:[%s1182 + $0x120] sm:$0xff]
        %v1220 = vld [vmem:[%s1182 + $0x128] sm:$0xff]
        %v1221 = vld [vmem:[%s1182 + $0x130] sm:$0xff]
        %v1222 = vld [vmem:[%s1182 + $0x138] sm:$0xff]
        %v1223 = vld [vmem:[%s1182 + $0x140] sm:$0xff]
        %v1224 = vld [vmem:[%s1182 + $0x148] sm:$0xff]
        %v1225 = vld [vmem:[%s1182 + $0x150] sm:$0xff]
        %v1226 = vld [vmem:[%s1182 + $0x158] sm:$0xff]
        %v1227 = vld [vmem:[%s1182 + $0x160] sm:$0xff]
        %v1228 = vld [vmem:[%s1182 + $0x168] sm:$0xff]
        %v1229 = vld [vmem:[%s1182 + $0x170] sm:$0xff]
        %v1230 = vld [vmem:[%s1182 + $0x178] sm:$0xff]
        %v1231 = vld [vmem:[%s1182 + $0x180] sm:$0xff]
        %v1232 = vld [vmem:[%s1182 + $0x188] sm:$0xff]
        %v1233 = vld [vmem:[%s1182 + $0x190] sm:$0xff]
        %v1234 = vld [vmem:[%s1182 + $0x198] sm:$0xff]
        %v1235 = vld [vmem:[%s1182 + $0x1a0] sm:$0xff]
        %v1236 = vld [vmem:[%s1182 + $0x1a8] sm:$0xff]
        %v1237 = vld [vmem:[%s1182 + $0x1b0] sm:$0xff]
        %v1238 = vld [vmem:[%s1182 + $0x1b8] sm:$0xff]
        %v1239 = vld [vmem:[%s1182 + $0x1c0] sm:$0xff]
        %v1240 = vld [vmem:[%s1182 + $0x1c8] sm:$0xff]
        %v1241 = vld [vmem:[%s1182 + $0x1d0] sm:$0xff]
        %v1242 = vld [vmem:[%s1182 + $0x1d8] sm:$0xff]
        %v1243 = vld [vmem:[%s1182 + $0x1e0] sm:$0xff]
        %v1244 = vld [vmem:[%s1182 + $0x1e8] sm:$0xff]
        %v1245 = vld [vmem:[%s1182 + $0x1f0] sm:$0xff]
        %v1246 = vld [vmem:[%s1182 + $0x1f8] sm:$0xff]
        %s1247 = scalar_lea.vmem %s5, 4
        %v1248 = vld [vmem:[%s1247] sm:$0xf]
        %v1250 = vlaneseq
        %v1251 = vshrl.u32 %v1250, 7
        %v1252 = vsub.s32 0, %v1251
        %v1253 = vrot.slane %v1248, %v1252
        %v1254 = vlaneseq
        %v1255 = vshrl.u32 %v1254, 7
        %v1256 = vsub.s32 1, %v1255
        %v1257 = vrot.slane %v1248, %v1256
        %v1258 = vlaneseq
        %v1259 = vshrl.u32 %v1258, 7
        %v1260 = vsub.s32 2, %v1259
        %v1261 = vrot.slane %v1248, %v1260
        %v1262 = vlaneseq
        %v1263 = vshrl.u32 %v1262, 7
        %v1264 = vsub.s32 3, %v1263
        %v1265 = vrot.slane %v1248, %v1264
        %v1334 = vunpack.c.l.b16 %v1183
        %v1335 = vunpack.c.h.b16 %v1183
        %v1336 = vunpack.c.l.b16 %v1184
        %v1337 = vunpack.c.h.b16 %v1184
        %v1338 = vunpack.c.l.b16 %v1185
        %v1339 = vunpack.c.h.b16 %v1185
        %v1340 = vunpack.c.l.b16 %v1186
        %v1341 = vunpack.c.h.b16 %v1186
        %v1342 = vunpack.c.l.b16 %v1187
        %v1343 = vunpack.c.h.b16 %v1187
        %v1344 = vunpack.c.l.b16 %v1188
        %v1345 = vunpack.c.h.b16 %v1188
        %v1346 = vunpack.c.l.b16 %v1189
        %v1347 = vunpack.c.h.b16 %v1189
        %v1348 = vunpack.c.l.b16 %v1190
        %v1349 = vunpack.c.h.b16 %v1190
        %v1350 = vunpack.c.l.b16 %v1191
        %v1351 = vunpack.c.h.b16 %v1191
        %v1352 = vunpack.c.l.b16 %v1192
        %v1353 = vunpack.c.h.b16 %v1192
        %v1354 = vunpack.c.l.b16 %v1193
        %v1355 = vunpack.c.h.b16 %v1193
        %v1356 = vunpack.c.l.b16 %v1194
        %v1357 = vunpack.c.h.b16 %v1194
        %v1358 = vunpack.c.l.b16 %v1195
        %v1359 = vunpack.c.h.b16 %v1195
        %v1360 = vunpack.c.l.b16 %v1196
        %v1361 = vunpack.c.h.b16 %v1196
        %v1362 = vunpack.c.l.b16 %v1197
        %v1363 = vunpack.c.h.b16 %v1197
        %v1364 = vunpack.c.l.b16 %v1198
        %v1365 = vunpack.c.h.b16 %v1198
        %v1366 = vunpack.c.l.b16 %v1199
        %v1367 = vunpack.c.h.b16 %v1199
        %v1368 = vunpack.c.l.b16 %v1200
        %v1369 = vunpack.c.h.b16 %v1200
        %v1370 = vunpack.c.l.b16 %v1201
        %v1371 = vunpack.c.h.b16 %v1201
        %v1372 = vunpack.c.l.b16 %v1202
        %v1373 = vunpack.c.h.b16 %v1202
        %v1374 = vunpack.c.l.b16 %v1203
        %v1375 = vunpack.c.h.b16 %v1203
        %v1376 = vunpack.c.l.b16 %v1204
        %v1377 = vunpack.c.h.b16 %v1204
        %v1378 = vunpack.c.l.b16 %v1205
        %v1379 = vunpack.c.h.b16 %v1205
        %v1380 = vunpack.c.l.b16 %v1206
        %v1381 = vunpack.c.h.b16 %v1206
        %v1382 = vunpack.c.l.b16 %v1207
        %v1383 = vunpack.c.h.b16 %v1207
        %v1384 = vunpack.c.l.b16 %v1208
        %v1385 = vunpack.c.h.b16 %v1208
        %v1386 = vunpack.c.l.b16 %v1209
        %v1387 = vunpack.c.h.b16 %v1209
        %v1388 = vunpack.c.l.b16 %v1210
        %v1389 = vunpack.c.h.b16 %v1210
        %v1390 = vunpack.c.l.b16 %v1211
        %v1391 = vunpack.c.h.b16 %v1211
        %v1392 = vunpack.c.l.b16 %v1212
        %v1393 = vunpack.c.h.b16 %v1212
        %v1394 = vunpack.c.l.b16 %v1213
        %v1395 = vunpack.c.h.b16 %v1213
        %v1396 = vunpack.c.l.b16 %v1214
        %v1397 = vunpack.c.h.b16 %v1214
        %v1398 = vunpack.c.l.b16 %v1215
        %v1399 = vunpack.c.h.b16 %v1215
        %v1400 = vunpack.c.l.b16 %v1216
        %v1401 = vunpack.c.h.b16 %v1216
        %v1402 = vunpack.c.l.b16 %v1217
        %v1403 = vunpack.c.h.b16 %v1217
        %v1404 = vunpack.c.l.b16 %v1218
        %v1405 = vunpack.c.h.b16 %v1218
        %v1406 = vunpack.c.l.b16 %v1219
        %v1407 = vunpack.c.h.b16 %v1219
        %v1408 = vunpack.c.l.b16 %v1220
        %v1409 = vunpack.c.h.b16 %v1220
        %v1410 = vunpack.c.l.b16 %v1221
        %v1411 = vunpack.c.h.b16 %v1221
        %v1412 = vunpack.c.l.b16 %v1222
        %v1413 = vunpack.c.h.b16 %v1222
        %v1414 = vunpack.c.l.b16 %v1223
        %v1415 = vunpack.c.h.b16 %v1223
        %v1416 = vunpack.c.l.b16 %v1224
        %v1417 = vunpack.c.h.b16 %v1224
        %v1418 = vunpack.c.l.b16 %v1225
        %v1419 = vunpack.c.h.b16 %v1225
        %v1420 = vunpack.c.l.b16 %v1226
        %v1421 = vunpack.c.h.b16 %v1226
        %v1422 = vunpack.c.l.b16 %v1227
        %v1423 = vunpack.c.h.b16 %v1227
        %v1424 = vunpack.c.l.b16 %v1228
        %v1425 = vunpack.c.h.b16 %v1228
        %v1426 = vunpack.c.l.b16 %v1229
        %v1427 = vunpack.c.h.b16 %v1229
        %v1428 = vunpack.c.l.b16 %v1230
        %v1429 = vunpack.c.h.b16 %v1230
        %v1430 = vunpack.c.l.b16 %v1231
        %v1431 = vunpack.c.h.b16 %v1231
        %v1432 = vunpack.c.l.b16 %v1232
        %v1433 = vunpack.c.h.b16 %v1232
        %v1434 = vunpack.c.l.b16 %v1233
        %v1435 = vunpack.c.h.b16 %v1233
        %v1436 = vunpack.c.l.b16 %v1234
        %v1437 = vunpack.c.h.b16 %v1234
        %v1438 = vunpack.c.l.b16 %v1235
        %v1439 = vunpack.c.h.b16 %v1235
        %v1440 = vunpack.c.l.b16 %v1236
        %v1441 = vunpack.c.h.b16 %v1236
        %v1442 = vunpack.c.l.b16 %v1237
        %v1443 = vunpack.c.h.b16 %v1237
        %v1444 = vunpack.c.l.b16 %v1238
        %v1445 = vunpack.c.h.b16 %v1238
        %v1446 = vunpack.c.l.b16 %v1239
        %v1447 = vunpack.c.h.b16 %v1239
        %v1448 = vunpack.c.l.b16 %v1240
        %v1449 = vunpack.c.h.b16 %v1240
        %v1450 = vunpack.c.l.b16 %v1241
        %v1451 = vunpack.c.h.b16 %v1241
        %v1452 = vunpack.c.l.b16 %v1242
        %v1453 = vunpack.c.h.b16 %v1242
        %v1454 = vunpack.c.l.b16 %v1243
        %v1455 = vunpack.c.h.b16 %v1243
        %v1456 = vunpack.c.l.b16 %v1244
        %v1457 = vunpack.c.h.b16 %v1244
        %v1458 = vunpack.c.l.b16 %v1245
        %v1459 = vunpack.c.h.b16 %v1245
        %v1460 = vunpack.c.l.b16 %v1246
        %v1461 = vunpack.c.h.b16 %v1246
        %v1462 = vpack.c.b16 %v1338, %v1334
        %v1463 = vpack.c.b16 %v1339, %v1335
        %v1464 = vpack.c.b16 %v1340, %v1336
        %v1465 = vpack.c.b16 %v1341, %v1337
        %v1466 = vpack.c.b16 %v1346, %v1342
        %v1467 = vpack.c.b16 %v1347, %v1343
        %v1468 = vpack.c.b16 %v1348, %v1344
        %v1469 = vpack.c.b16 %v1349, %v1345
        %v1470 = vpack.c.b16 %v1354, %v1350
        %v1471 = vpack.c.b16 %v1355, %v1351
        %v1472 = vpack.c.b16 %v1356, %v1352
        %v1473 = vpack.c.b16 %v1357, %v1353
        %v1474 = vpack.c.b16 %v1362, %v1358
        %v1475 = vpack.c.b16 %v1363, %v1359
        %v1476 = vpack.c.b16 %v1364, %v1360
        %v1477 = vpack.c.b16 %v1365, %v1361
        %v1478 = vpack.c.b16 %v1370, %v1366
        %v1479 = vpack.c.b16 %v1371, %v1367
        %v1480 = vpack.c.b16 %v1372, %v1368
        %v1481 = vpack.c.b16 %v1373, %v1369
        %v1482 = vpack.c.b16 %v1378, %v1374
        %v1483 = vpack.c.b16 %v1379, %v1375
        %v1484 = vpack.c.b16 %v1380, %v1376
        %v1485 = vpack.c.b16 %v1381, %v1377
        %v1486 = vpack.c.b16 %v1386, %v1382
        %v1487 = vpack.c.b16 %v1387, %v1383
        %v1488 = vpack.c.b16 %v1388, %v1384
        %v1489 = vpack.c.b16 %v1389, %v1385
        %v1490 = vpack.c.b16 %v1394, %v1390
        %v1491 = vpack.c.b16 %v1395, %v1391
        %v1492 = vpack.c.b16 %v1396, %v1392
        %v1493 = vpack.c.b16 %v1397, %v1393
        %v1494 = vpack.c.b16 %v1402, %v1398
        %v1495 = vpack.c.b16 %v1403, %v1399
        %v1496 = vpack.c.b16 %v1404, %v1400
        %v1497 = vpack.c.b16 %v1405, %v1401
        %v1498 = vpack.c.b16 %v1410, %v1406
        %v1499 = vpack.c.b16 %v1411, %v1407
        %v1500 = vpack.c.b16 %v1412, %v1408
        %v1501 = vpack.c.b16 %v1413, %v1409
        %v1502 = vpack.c.b16 %v1418, %v1414
        %v1503 = vpack.c.b16 %v1419, %v1415
        %v1504 = vpack.c.b16 %v1420, %v1416
        %v1505 = vpack.c.b16 %v1421, %v1417
        %v1506 = vpack.c.b16 %v1426, %v1422
        %v1507 = vpack.c.b16 %v1427, %v1423
        %v1508 = vpack.c.b16 %v1428, %v1424
        %v1509 = vpack.c.b16 %v1429, %v1425
        %v1510 = vpack.c.b16 %v1434, %v1430
        %v1511 = vpack.c.b16 %v1435, %v1431
        %v1512 = vpack.c.b16 %v1436, %v1432
        %v1513 = vpack.c.b16 %v1437, %v1433
        %v1514 = vpack.c.b16 %v1442, %v1438
        %v1515 = vpack.c.b16 %v1443, %v1439
        %v1516 = vpack.c.b16 %v1444, %v1440
        %v1517 = vpack.c.b16 %v1445, %v1441
        %v1518 = vpack.c.b16 %v1450, %v1446
        %v1519 = vpack.c.b16 %v1451, %v1447
        %v1520 = vpack.c.b16 %v1452, %v1448
        %v1521 = vpack.c.b16 %v1453, %v1449
        %v1522 = vpack.c.b16 %v1458, %v1454
        %v1523 = vpack.c.b16 %v1459, %v1455
        %v1524 = vpack.c.b16 %v1460, %v1456
        %v1525 = vpack.c.b16 %v1461, %v1457
        %1590 = vmatprep.subr.bf16.mxu0 %v1463
        %1591 = vmatpush1.bf16.msra.mxu0 %v1462
        %1592 = vmatprep.subr.bf16.mxu0 %v1467
        %1593 = vmatpush1.bf16.msra.mxu0 %v1466
        %1594 = vmatprep.subr.bf16.mxu0 %v1471
        %1595 = vmatpush1.bf16.msra.mxu0 %v1470
        %1596 = vmatprep.subr.bf16.mxu0 %v1475
        %1597 = vmatpush1.bf16.msra.mxu0 %v1474
        %1598 = vmatprep.subr.bf16.mxu0 %v1479
        %1599 = vmatpush1.bf16.msra.mxu0 %v1478
        %1600 = vmatprep.subr.bf16.mxu0 %v1483
        %1601 = vmatpush1.bf16.msra.mxu0 %v1482
        %1602 = vmatprep.subr.bf16.mxu0 %v1487
        %1603 = vmatpush1.bf16.msra.mxu0 %v1486
        %1604 = vmatprep.subr.bf16.mxu0 %v1491
        %1605 = vmatpush1.bf16.msra.mxu0 %v1490
        %1606 = vmatprep.subr.bf16.mxu0 %v1495
        %1607 = vmatpush1.bf16.msra.mxu0 %v1494
        %1608 = vmatprep.subr.bf16.mxu0 %v1499
        %1609 = vmatpush1.bf16.msra.mxu0 %v1498
        %1610 = vmatprep.subr.bf16.mxu0 %v1503
        %1611 = vmatpush1.bf16.msra.mxu0 %v1502
        %1612 = vmatprep.subr.bf16.mxu0 %v1507
        %1613 = vmatpush1.bf16.msra.mxu0 %v1506
        %1614 = vmatprep.subr.bf16.mxu0 %v1511
        %1615 = vmatpush1.bf16.msra.mxu0 %v1510
        %1616 = vmatprep.subr.bf16.mxu0 %v1515
        %1617 = vmatpush1.bf16.msra.mxu0 %v1514
        %1618 = vmatprep.subr.bf16.mxu0 %v1519
        %1619 = vmatpush1.bf16.msra.mxu0 %v1518
        %1620 = vmatprep.subr.bf16.mxu0 %v1523
        %1621 = vmatpush1.bf16.msra.mxu0 %v1522
        %1622 = vmatprep.mubr.bf16.mxu0 %v1181
        %1623 = vmatmul.mubr.bf16.gmra.mrb[0].mxu0 %v1180
        %v1624 = vpop.f32.mrb[0].mxu0
        %v1625 = vadd.f32 %v1253, %v1624
        %v1626 = vpop.f32.mrb[0].mxu0
        %v1627 = vadd.f32 %v1257, %v1626
        %v1628 = vpop.f32.mrb[0].mxu0
        %v1629 = vpop.f32.mrb[0].mxu0
        %1630 = vdwg.mxu0
        %1631 = vmatprep.subr.bf16.mxu0 %v1465
        %1632 = vmatpush1.bf16.msra.mxu0 %v1464
        %1633 = vmatprep.subr.bf16.mxu0 %v1469
        %1634 = vmatpush1.bf16.msra.mxu0 %v1468
        %1635 = vmatprep.subr.bf16.mxu0 %v1473
        %1636 = vmatpush1.bf16.msra.mxu0 %v1472
        %1637 = vmatprep.subr.bf16.mxu0 %v1477
        %1638 = vmatpush1.bf16.msra.mxu0 %v1476
        %1639 = vmatprep.subr.bf16.mxu0 %v1481
        %1640 = vmatpush1.bf16.msra.mxu0 %v1480
        %1641 = vmatprep.subr.bf16.mxu0 %v1485
        %1642 = vmatpush1.bf16.msra.mxu0 %v1484
        %1643 = vmatprep.subr.bf16.mxu0 %v1489
        %1644 = vmatpush1.bf16.msra.mxu0 %v1488
        %1645 = vmatprep.subr.bf16.mxu0 %v1493
        %1646 = vmatpush1.bf16.msra.mxu0 %v1492
        %1647 = vmatprep.subr.bf16.mxu0 %v1497
        %1648 = vmatpush1.bf16.msra.mxu0 %v1496
        %1649 = vmatprep.subr.bf16.mxu0 %v1501
        %1650 = vmatpush1.bf16.msra.mxu0 %v1500
        %1651 = vmatprep.subr.bf16.mxu0 %v1505
        %1652 = vmatpush1.bf16.msra.mxu0 %v1504
        %1653 = vmatprep.subr.bf16.mxu0 %v1509
        %1654 = vmatpush1.bf16.msra.mxu0 %v1508
        %1655 = vmatprep.subr.bf16.mxu0 %v1513
        %1656 = vmatpush1.bf16.msra.mxu0 %v1512
        %1657 = vmatprep.subr.bf16.mxu0 %v1517
        %1658 = vmatpush1.bf16.msra.mxu0 %v1516
        %1659 = vmatprep.subr.bf16.mxu0 %v1521
        %1660 = vmatpush1.bf16.msra.mxu0 %v1520
        %1661 = vmatprep.subr.bf16.mxu0 %v1525
        %1662 = vmatpush1.bf16.msra.mxu0 %v1524
        %1663 = vmatprep.mubr.bf16.mxu0 %v1181
        %1664 = vmatmul.mubr.bf16.gmra.mrb[0].mxu0 %v1180
        %v1665 = vpop.f32.mrb[0].mxu0
        %v1666 = vadd.f32 %v1261, %v1665
        %v1667 = vpop.f32.mrb[0].mxu0
        %v1668 = vadd.f32 %v1265, %v1667
        %v1669 = vpop.f32.mrb[0].mxu0
        %v1670 = vpop.f32.mrb[0].mxu0
        %1671 = vdwg.mxu0
        %v1672 = vxor.u32 %v1625, 2147483648
        %v1673 = vmul.f32 %v1672, 1.442695
        %v1674 = vpow.pop %v1673
        %v1675 = vadd.f32 %v1674, 1.0
        %v1676 = vrcp.pop %v1675
        %v1677 = vmul.f32 1.0, %v1676
        %v1678 = vxor.u32 %v1627, 2147483648
        %v1679 = vmul.f32 %v1678, 1.442695
        %v1680 = vpow.pop %v1679
        %v1681 = vadd.f32 %v1680, 1.0
        %v1682 = vrcp.pop %v1681
        %v1683 = vmul.f32 1.0, %v1682
        %v1684 = vtanh.pop %v1666
        %v1685 = vxor.u32 %v1668, 2147483648
        %v1686 = vmul.f32 %v1685, 1.442695
        %v1687 = vpow.pop %v1686
        %v1688 = vadd.f32 %v1687, 1.0
        %v1689 = vrcp.pop %v1688
        %v1690 = vmul.f32 1.0, %v1689
        %v1691 = vmul.f32 %v1683, %v1175
        %v1692 = vmul.f32 %v1677, %v1684
        %v1693 = vadd.f32 %v1691, %v1692
        %v1694 = vtanh.pop %v1693
        %v1695 = vmul.f32 %v1690, %v1694
        %1696 = vst [vmem:[%s1172] sm:$0xff] %v1695
        %1697 = vst [vmem:[%s1174] sm:$0xff] %v1693
        %1698 = vst [vmem:[#allocation6] sm:$0xff] %v1695
        %s1699 = scalar_lea.vmem [#allocation2], 8
        %v1700 = vld [vmem:[%s1699] sm:$0xff]
        %v1701 = vld [vmem:[#allocation4] sm:$0xff]
        %v1702 = vld [vmem:[#allocation5] sm:$0xff]
        %1703 = vst [vmem:[#allocation3] sm:$0xff] %v1700
        %1704 = vst [vmem:[#allocation3 + $0x8] sm:$0xff] %v1701
        %v1705 = vld [vmem:[#allocation3] sm:$0xff]
        %v1706 = vld [vmem:[#allocation3 + $0x8] sm:$0xff]
        %v1707 = vpack.c.bf16 %v1705, %v1705
        %v1708 = vpack.c.bf16 %v1706, %v1706
        %v1709 = vld [vmem:[#allocation7] sm:$0xff]
        %v1710 = vld [vmem:[#allocation7 + $0x8] sm:$0xff]
        %v1711 = vld [vmem:[#allocation7 + $0x10] sm:$0xff]
        %v1712 = vld [vmem:[#allocation7 + $0x18] sm:$0xff]
        %v1713 = vld [vmem:[#allocation7 + $0x20] sm:$0xff]
        %v1714 = vld [vmem:[#allocation7 + $0x28] sm:$0xff]
        %v1715 = vld [vmem:[#allocation7 + $0x30] sm:$0xff]
        %v1716 = vld [vmem:[#allocation7 + $0x38] sm:$0xff]
        %v1717 = vld [vmem:[#allocation7 + $0x40] sm:$0xff]
        %v1718 = vld [vmem:[#allocation7 + $0x48] sm:$0xff]
        %v1719 = vld [vmem:[#allocation7 + $0x50] sm:$0xff]
        %v1720 = vld [vmem:[#allocation7 + $0x58] sm:$0xff]
        %v1721 = vld [vmem:[#allocation7 + $0x60] sm:$0xff]
        %v1722 = vld [vmem:[#allocation7 + $0x68] sm:$0xff]
        %v1723 = vld [vmem:[#allocation7 + $0x70] sm:$0xff]
        %v1724 = vld [vmem:[#allocation7 + $0x78] sm:$0xff]
        %v1725 = vld [vmem:[#allocation7 + $0x80] sm:$0xff]
        %v1726 = vld [vmem:[#allocation7 + $0x88] sm:$0xff]
        %v1727 = vld [vmem:[#allocation7 + $0x90] sm:$0xff]
        %v1728 = vld [vmem:[#allocation7 + $0x98] sm:$0xff]
        %v1729 = vld [vmem:[#allocation7 + $0xa0] sm:$0xff]
        %v1730 = vld [vmem:[#allocation7 + $0xa8] sm:$0xff]
        %v1731 = vld [vmem:[#allocation7 + $0xb0] sm:$0xff]
        %v1732 = vld [vmem:[#allocation7 + $0xb8] sm:$0xff]
        %v1733 = vld [vmem:[#allocation7 + $0xc0] sm:$0xff]
        %v1734 = vld [vmem:[#allocation7 + $0xc8] sm:$0xff]
        %v1735 = vld [vmem:[#allocation7 + $0xd0] sm:$0xff]
        %v1736 = vld [vmem:[#allocation7 + $0xd8] sm:$0xff]
        %v1737 = vld [vmem:[#allocation7 + $0xe0] sm:$0xff]
        %v1738 = vld [vmem:[#allocation7 + $0xe8] sm:$0xff]
        %v1739 = vld [vmem:[#allocation7 + $0xf0] sm:$0xff]
        %v1740 = vld [vmem:[#allocation7 + $0xf8] sm:$0xff]
        %v1741 = vld [vmem:[#allocation7 + $0x100] sm:$0xff]
        %v1742 = vld [vmem:[#allocation7 + $0x108] sm:$0xff]
        %v1743 = vld [vmem:[#allocation7 + $0x110] sm:$0xff]
        %v1744 = vld [vmem:[#allocation7 + $0x118] sm:$0xff]
        %v1745 = vld [vmem:[#allocation7 + $0x120] sm:$0xff]
        %v1746 = vld [vmem:[#allocation7 + $0x128] sm:$0xff]
        %v1747 = vld [vmem:[#allocation7 + $0x130] sm:$0xff]
        %v1748 = vld [vmem:[#allocation7 + $0x138] sm:$0xff]
        %v1749 = vld [vmem:[#allocation7 + $0x140] sm:$0xff]
        %v1750 = vld [vmem:[#allocation7 + $0x148] sm:$0xff]
        %v1751 = vld [vmem:[#allocation7 + $0x150] sm:$0xff]
        %v1752 = vld [vmem:[#allocation7 + $0x158] sm:$0xff]
        %v1753 = vld [vmem:[#allocation7 + $0x160] sm:$0xff]
        %v1754 = vld [vmem:[#allocation7 + $0x168] sm:$0xff]
        %v1755 = vld [vmem:[#allocation7 + $0x170] sm:$0xff]
        %v1756 = vld [vmem:[#allocation7 + $0x178] sm:$0xff]
        %v1757 = vld [vmem:[#allocation7 + $0x180] sm:$0xff]
        %v1758 = vld [vmem:[#allocation7 + $0x188] sm:$0xff]
        %v1759 = vld [vmem:[#allocation7 + $0x190] sm:$0xff]
        %v1760 = vld [vmem:[#allocation7 + $0x198] sm:$0xff]
        %v1761 = vld [vmem:[#allocation7 + $0x1a0] sm:$0xff]
        %v1762 = vld [vmem:[#allocation7 + $0x1a8] sm:$0xff]
        %v1763 = vld [vmem:[#allocation7 + $0x1b0] sm:$0xff]
        %v1764 = vld [vmem:[#allocation7 + $0x1b8] sm:$0xff]
        %v1765 = vld [vmem:[#allocation7 + $0x1c0] sm:$0xff]
        %v1766 = vld [vmem:[#allocation7 + $0x1c8] sm:$0xff]
        %v1767 = vld [vmem:[#allocation7 + $0x1d0] sm:$0xff]
        %v1768 = vld [vmem:[#allocation7 + $0x1d8] sm:$0xff]
        %v1769 = vld [vmem:[#allocation7 + $0x1e0] sm:$0xff]
        %v1770 = vld [vmem:[#allocation7 + $0x1e8] sm:$0xff]
        %v1771 = vld [vmem:[#allocation7 + $0x1f0] sm:$0xff]
        %v1772 = vld [vmem:[#allocation7 + $0x1f8] sm:$0xff]
        %v1773 = vld [vmem:[%s5] sm:$0xf]
        %v1775 = vlaneseq
        %v1776 = vshrl.u32 %v1775, 7
        %v1777 = vsub.s32 0, %v1776
        %v1778 = vrot.slane %v1773, %v1777
        %v1779 = vlaneseq
        %v1780 = vshrl.u32 %v1779, 7
        %v1781 = vsub.s32 1, %v1780
        %v1782 = vrot.slane %v1773, %v1781
        %v1783 = vlaneseq
        %v1784 = vshrl.u32 %v1783, 7
        %v1785 = vsub.s32 2, %v1784
        %v1786 = vrot.slane %v1773, %v1785
        %v1787 = vlaneseq
        %v1788 = vshrl.u32 %v1787, 7
        %v1789 = vsub.s32 3, %v1788
        %v1790 = vrot.slane %v1773, %v1789
        %v1859 = vunpack.c.l.b16 %v1709
        %v1860 = vunpack.c.h.b16 %v1709
        %v1861 = vunpack.c.l.b16 %v1710
        %v1862 = vunpack.c.h.b16 %v1710
        %v1863 = vunpack.c.l.b16 %v1711
        %v1864 = vunpack.c.h.b16 %v1711
        %v1865 = vunpack.c.l.b16 %v1712
        %v1866 = vunpack.c.h.b16 %v1712
        %v1867 = vunpack.c.l.b16 %v1713
        %v1868 = vunpack.c.h.b16 %v1713
        %v1869 = vunpack.c.l.b16 %v1714
        %v1870 = vunpack.c.h.b16 %v1714
        %v1871 = vunpack.c.l.b16 %v1715
        %v1872 = vunpack.c.h.b16 %v1715
        %v1873 = vunpack.c.l.b16 %v1716
        %v1874 = vunpack.c.h.b16 %v1716
        %v1875 = vunpack.c.l.b16 %v1717
        %v1876 = vunpack.c.h.b16 %v1717
        %v1877 = vunpack.c.l.b16 %v1718
        %v1878 = vunpack.c.h.b16 %v1718
        %v1879 = vunpack.c.l.b16 %v1719
        %v1880 = vunpack.c.h.b16 %v1719
        %v1881 = vunpack.c.l.b16 %v1720
        %v1882 = vunpack.c.h.b16 %v1720
        %v1883 = vunpack.c.l.b16 %v1721
        %v1884 = vunpack.c.h.b16 %v1721
        %v1885 = vunpack.c.l.b16 %v1722
        %v1886 = vunpack.c.h.b16 %v1722
        %v1887 = vunpack.c.l.b16 %v1723
        %v1888 = vunpack.c.h.b16 %v1723
        %v1889 = vunpack.c.l.b16 %v1724
        %v1890 = vunpack.c.h.b16 %v1724
        %v1891 = vunpack.c.l.b16 %v1725
        %v1892 = vunpack.c.h.b16 %v1725
        %v1893 = vunpack.c.l.b16 %v1726
        %v1894 = vunpack.c.h.b16 %v1726
        %v1895 = vunpack.c.l.b16 %v1727
        %v1896 = vunpack.c.h.b16 %v1727
        %v1897 = vunpack.c.l.b16 %v1728
        %v1898 = vunpack.c.h.b16 %v1728
        %v1899 = vunpack.c.l.b16 %v1729
        %v1900 = vunpack.c.h.b16 %v1729
        %v1901 = vunpack.c.l.b16 %v1730
        %v1902 = vunpack.c.h.b16 %v1730
        %v1903 = vunpack.c.l.b16 %v1731
        %v1904 = vunpack.c.h.b16 %v1731
        %v1905 = vunpack.c.l.b16 %v1732
        %v1906 = vunpack.c.h.b16 %v1732
        %v1907 = vunpack.c.l.b16 %v1733
        %v1908 = vunpack.c.h.b16 %v1733
        %v1909 = vunpack.c.l.b16 %v1734
        %v1910 = vunpack.c.h.b16 %v1734
        %v1911 = vunpack.c.l.b16 %v1735
        %v1912 = vunpack.c.h.b16 %v1735
        %v1913 = vunpack.c.l.b16 %v1736
        %v1914 = vunpack.c.h.b16 %v1736
        %v1915 = vunpack.c.l.b16 %v1737
        %v1916 = vunpack.c.h.b16 %v1737
        %v1917 = vunpack.c.l.b16 %v1738
        %v1918 = vunpack.c.h.b16 %v1738
        %v1919 = vunpack.c.l.b16 %v1739
        %v1920 = vunpack.c.h.b16 %v1739
        %v1921 = vunpack.c.l.b16 %v1740
        %v1922 = vunpack.c.h.b16 %v1740
        %v1923 = vunpack.c.l.b16 %v1741
        %v1924 = vunpack.c.h.b16 %v1741
        %v1925 = vunpack.c.l.b16 %v1742
        %v1926 = vunpack.c.h.b16 %v1742
        %v1927 = vunpack.c.l.b16 %v1743
        %v1928 = vunpack.c.h.b16 %v1743
        %v1929 = vunpack.c.l.b16 %v1744
        %v1930 = vunpack.c.h.b16 %v1744
        %v1931 = vunpack.c.l.b16 %v1745
        %v1932 = vunpack.c.h.b16 %v1745
        %v1933 = vunpack.c.l.b16 %v1746
        %v1934 = vunpack.c.h.b16 %v1746
        %v1935 = vunpack.c.l.b16 %v1747
        %v1936 = vunpack.c.h.b16 %v1747
        %v1937 = vunpack.c.l.b16 %v1748
        %v1938 = vunpack.c.h.b16 %v1748
        %v1939 = vunpack.c.l.b16 %v1749
        %v1940 = vunpack.c.h.b16 %v1749
        %v1941 = vunpack.c.l.b16 %v1750
        %v1942 = vunpack.c.h.b16 %v1750
        %v1943 = vunpack.c.l.b16 %v1751
        %v1944 = vunpack.c.h.b16 %v1751
        %v1945 = vunpack.c.l.b16 %v1752
        %v1946 = vunpack.c.h.b16 %v1752
        %v1947 = vunpack.c.l.b16 %v1753
        %v1948 = vunpack.c.h.b16 %v1753
        %v1949 = vunpack.c.l.b16 %v1754
        %v1950 = vunpack.c.h.b16 %v1754
        %v1951 = vunpack.c.l.b16 %v1755
        %v1952 = vunpack.c.h.b16 %v1755
        %v1953 = vunpack.c.l.b16 %v1756
        %v1954 = vunpack.c.h.b16 %v1756
        %v1955 = vunpack.c.l.b16 %v1757
        %v1956 = vunpack.c.h.b16 %v1757
        %v1957 = vunpack.c.l.b16 %v1758
        %v1958 = vunpack.c.h.b16 %v1758
        %v1959 = vunpack.c.l.b16 %v1759
        %v1960 = vunpack.c.h.b16 %v1759
        %v1961 = vunpack.c.l.b16 %v1760
        %v1962 = vunpack.c.h.b16 %v1760
        %v1963 = vunpack.c.l.b16 %v1761
        %v1964 = vunpack.c.h.b16 %v1761
        %v1965 = vunpack.c.l.b16 %v1762
        %v1966 = vunpack.c.h.b16 %v1762
        %v1967 = vunpack.c.l.b16 %v1763
        %v1968 = vunpack.c.h.b16 %v1763
        %v1969 = vunpack.c.l.b16 %v1764
        %v1970 = vunpack.c.h.b16 %v1764
        %v1971 = vunpack.c.l.b16 %v1765
        %v1972 = vunpack.c.h.b16 %v1765
        %v1973 = vunpack.c.l.b16 %v1766
        %v1974 = vunpack.c.h.b16 %v1766
        %v1975 = vunpack.c.l.b16 %v1767
        %v1976 = vunpack.c.h.b16 %v1767
        %v1977 = vunpack.c.l.b16 %v1768
        %v1978 = vunpack.c.h.b16 %v1768
        %v1979 = vunpack.c.l.b16 %v1769
        %v1980 = vunpack.c.h.b16 %v1769
        %v1981 = vunpack.c.l.b16 %v1770
        %v1982 = vunpack.c.h.b16 %v1770
        %v1983 = vunpack.c.l.b16 %v1771
        %v1984 = vunpack.c.h.b16 %v1771
        %v1985 = vunpack.c.l.b16 %v1772
        %v1986 = vunpack.c.h.b16 %v1772
        %v1987 = vpack.c.b16 %v1863, %v1859
        %v1988 = vpack.c.b16 %v1864, %v1860
        %v1989 = vpack.c.b16 %v1865, %v1861
        %v1990 = vpack.c.b16 %v1866, %v1862
        %v1991 = vpack.c.b16 %v1871, %v1867
        %v1992 = vpack.c.b16 %v1872, %v1868
        %v1993 = vpack.c.b16 %v1873, %v1869
        %v1994 = vpack.c.b16 %v1874, %v1870
        %v1995 = vpack.c.b16 %v1879, %v1875
        %v1996 = vpack.c.b16 %v1880, %v1876
        %v1997 = vpack.c.b16 %v1881, %v1877
        %v1998 = vpack.c.b16 %v1882, %v1878
        %v1999 = vpack.c.b16 %v1887, %v1883
        %v2000 = vpack.c.b16 %v1888, %v1884
        %v2001 = vpack.c.b16 %v1889, %v1885
        %v2002 = vpack.c.b16 %v1890, %v1886
        %v2003 = vpack.c.b16 %v1895, %v1891
        %v2004 = vpack.c.b16 %v1896, %v1892
        %v2005 = vpack.c.b16 %v1897, %v1893
        %v2006 = vpack.c.b16 %v1898, %v1894
        %v2007 = vpack.c.b16 %v1903, %v1899
        %v2008 = vpack.c.b16 %v1904, %v1900
        %v2009 = vpack.c.b16 %v1905, %v1901
        %v2010 = vpack.c.b16 %v1906, %v1902
        %v2011 = vpack.c.b16 %v1911, %v1907
        %v2012 = vpack.c.b16 %v1912, %v1908
        %v2013 = vpack.c.b16 %v1913, %v1909
        %v2014 = vpack.c.b16 %v1914, %v1910
        %v2015 = vpack.c.b16 %v1919, %v1915
        %v2016 = vpack.c.b16 %v1920, %v1916
        %v2017 = vpack.c.b16 %v1921, %v1917
        %v2018 = vpack.c.b16 %v1922, %v1918
        %v2019 = vpack.c.b16 %v1927, %v1923
        %v2020 = vpack.c.b16 %v1928, %v1924
        %v2021 = vpack.c.b16 %v1929, %v1925
        %v2022 = vpack.c.b16 %v1930, %v1926
        %v2023 = vpack.c.b16 %v1935, %v1931
        %v2024 = vpack.c.b16 %v1936, %v1932
        %v2025 = vpack.c.b16 %v1937, %v1933
        %v2026 = vpack.c.b16 %v1938, %v1934
        %v2027 = vpack.c.b16 %v1943, %v1939
        %v2028 = vpack.c.b16 %v1944, %v1940
        %v2029 = vpack.c.b16 %v1945, %v1941
        %v2030 = vpack.c.b16 %v1946, %v1942
        %v2031 = vpack.c.b16 %v1951, %v1947
        %v2032 = vpack.c.b16 %v1952, %v1948
        %v2033 = vpack.c.b16 %v1953, %v1949
        %v2034 = vpack.c.b16 %v1954, %v1950
        %v2035 = vpack.c.b16 %v1959, %v1955
        %v2036 = vpack.c.b16 %v1960, %v1956
        %v2037 = vpack.c.b16 %v1961, %v1957
        %v2038 = vpack.c.b16 %v1962, %v1958
        %v2039 = vpack.c.b16 %v1967, %v1963
        %v2040 = vpack.c.b16 %v1968, %v1964
        %v2041 = vpack.c.b16 %v1969, %v1965
        %v2042 = vpack.c.b16 %v1970, %v1966
        %v2043 = vpack.c.b16 %v1975, %v1971
        %v2044 = vpack.c.b16 %v1976, %v1972
        %v2045 = vpack.c.b16 %v1977, %v1973
        %v2046 = vpack.c.b16 %v1978, %v1974
        %v2047 = vpack.c.b16 %v1983, %v1979
        %v2048 = vpack.c.b16 %v1984, %v1980
        %v2049 = vpack.c.b16 %v1985, %v1981
        %v2050 = vpack.c.b16 %v1986, %v1982
        %2115 = vmatprep.subr.bf16.mxu0 %v1988
        %2116 = vmatpush1.bf16.msra.mxu0 %v1987
        %2117 = vmatprep.subr.bf16.mxu0 %v1992
        %2118 = vmatpush1.bf16.msra.mxu0 %v1991
        %2119 = vmatprep.subr.bf16.mxu0 %v1996
        %2120 = vmatpush1.bf16.msra.mxu0 %v1995
        %2121 = vmatprep.subr.bf16.mxu0 %v2000
        %2122 = vmatpush1.bf16.msra.mxu0 %v1999
        %2123 = vmatprep.subr.bf16.mxu0 %v2004
        %2124 = vmatpush1.bf16.msra.mxu0 %v2003
        %2125 = vmatprep.subr.bf16.mxu0 %v2008
        %2126 = vmatpush1.bf16.msra.mxu0 %v2007
        %2127 = vmatprep.subr.bf16.mxu0 %v2012
        %2128 = vmatpush1.bf16.msra.mxu0 %v2011
        %2129 = vmatprep.subr.bf16.mxu0 %v2016
        %2130 = vmatpush1.bf16.msra.mxu0 %v2015
        %2131 = vmatprep.subr.bf16.mxu0 %v2020
        %2132 = vmatpush1.bf16.msra.mxu0 %v2019
        %2133 = vmatprep.subr.bf16.mxu0 %v2024
        %2134 = vmatpush1.bf16.msra.mxu0 %v2023
        %2135 = vmatprep.subr.bf16.mxu0 %v2028
        %2136 = vmatpush1.bf16.msra.mxu0 %v2027
        %2137 = vmatprep.subr.bf16.mxu0 %v2032
        %2138 = vmatpush1.bf16.msra.mxu0 %v2031
        %2139 = vmatprep.subr.bf16.mxu0 %v2036
        %2140 = vmatpush1.bf16.msra.mxu0 %v2035
        %2141 = vmatprep.subr.bf16.mxu0 %v2040
        %2142 = vmatpush1.bf16.msra.mxu0 %v2039
        %2143 = vmatprep.subr.bf16.mxu0 %v2044
        %2144 = vmatpush1.bf16.msra.mxu0 %v2043
        %2145 = vmatprep.subr.bf16.mxu0 %v2048
        %2146 = vmatpush1.bf16.msra.mxu0 %v2047
        %2147 = vmatprep.mubr.bf16.mxu0 %v1708
        %2148 = vmatmul.mubr.bf16.gmra.mrb[0].mxu0 %v1707
        %v2149 = vpop.f32.mrb[0].mxu0
        %v2150 = vadd.f32 %v1778, %v2149
        %v2151 = vpop.f32.mrb[0].mxu0
        %v2152 = vadd.f32 %v1782, %v2151
        %v2153 = vpop.f32.mrb[0].mxu0
        %v2154 = vpop.f32.mrb[0].mxu0
        %2155 = vdwg.mxu0
        %2156 = vmatprep.subr.bf16.mxu0 %v1990
        %2157 = vmatpush1.bf16.msra.mxu0 %v1989
        %2158 = vmatprep.subr.bf16.mxu0 %v1994
        %2159 = vmatpush1.bf16.msra.mxu0 %v1993
        %2160 = vmatprep.subr.bf16.mxu0 %v1998
        %2161 = vmatpush1.bf16.msra.mxu0 %v1997
        %2162 = vmatprep.subr.bf16.mxu0 %v2002
        %2163 = vmatpush1.bf16.msra.mxu0 %v2001
        %2164 = vmatprep.subr.bf16.mxu0 %v2006
        %2165 = vmatpush1.bf16.msra.mxu0 %v2005
        %2166 = vmatprep.subr.bf16.mxu0 %v2010
        %2167 = vmatpush1.bf16.msra.mxu0 %v2009
        %2168 = vmatprep.subr.bf16.mxu0 %v2014
        %2169 = vmatpush1.bf16.msra.mxu0 %v2013
        %2170 = vmatprep.subr.bf16.mxu0 %v2018
        %2171 = vmatpush1.bf16.msra.mxu0 %v2017
        %2172 = vmatprep.subr.bf16.mxu0 %v2022
        %2173 = vmatpush1.bf16.msra.mxu0 %v2021
        %2174 = vmatprep.subr.bf16.mxu0 %v2026
        %2175 = vmatpush1.bf16.msra.mxu0 %v2025
        %2176 = vmatprep.subr.bf16.mxu0 %v2030
        %2177 = vmatpush1.bf16.msra.mxu0 %v2029
        %2178 = vmatprep.subr.bf16.mxu0 %v2034
        %2179 = vmatpush1.bf16.msra.mxu0 %v2033
        %2180 = vmatprep.subr.bf16.mxu0 %v2038
        %2181 = vmatpush1.bf16.msra.mxu0 %v2037
        %2182 = vmatprep.subr.bf16.mxu0 %v2042
        %2183 = vmatpush1.bf16.msra.mxu0 %v2041
        %2184 = vmatprep.subr.bf16.mxu0 %v2046
        %2185 = vmatpush1.bf16.msra.mxu0 %v2045
        %2186 = vmatprep.subr.bf16.mxu0 %v2050
        %2187 = vmatpush1.bf16.msra.mxu0 %v2049
        %2188 = vmatprep.mubr.bf16.mxu0 %v1708
        %2189 = vmatmul.mubr.bf16.gmra.mrb[0].mxu0 %v1707
        %v2190 = vpop.f32.mrb[0].mxu0
        %v2191 = vadd.f32 %v1786, %v2190
        %v2192 = vpop.f32.mrb[0].mxu0
        %v2193 = vadd.f32 %v1790, %v2192
        %v2194 = vpop.f32.mrb[0].mxu0
        %v2195 = vpop.f32.mrb[0].mxu0
        %2196 = vdwg.mxu0
        %v2197 = vxor.u32 %v2150, 2147483648
        %v2198 = vmul.f32 %v2197, 1.442695
        %v2199 = vpow.pop %v2198
        %v2200 = vadd.f32 %v2199, 1.0
        %v2201 = vrcp.pop %v2200
        %v2202 = vmul.f32 1.0, %v2201
        %v2203 = vxor.u32 %v2152, 2147483648
        %v2204 = vmul.f32 %v2203, 1.442695
        %v2205 = vpow.pop %v2204
        %v2206 = vadd.f32 %v2205, 1.0
        %v2207 = vrcp.pop %v2206
        %v2208 = vmul.f32 1.0, %v2207
        %v2209 = vtanh.pop %v2191
        %v2210 = vxor.u32 %v2193, 2147483648
        %v2211 = vmul.f32 %v2210, 1.442695
        %v2212 = vpow.pop %v2211
        %v2213 = vadd.f32 %v2212, 1.0
        %v2214 = vrcp.pop %v2213
        %v2215 = vmul.f32 1.0, %v2214
        %v2216 = vmul.f32 %v2208, %v1702
        %v2217 = vmul.f32 %v2202, %v2209
        %v2218 = vadd.f32 %v2216, %v2217
        %v2219 = vtanh.pop %v2218
        %v2220 = vmul.f32 %v2215, %v2219
        %2221 = vst [vmem:[#allocation4] sm:$0xff] %v2220
        %2222 = vst [vmem:[#allocation5] sm:$0xff] %v2218
        %v2223 = vld [vmem:[%s1172] sm:$0xff]
        %v2224 = vld [vmem:[%s1174] sm:$0xff]
        %2225 = vst [vmem:[#allocation3] sm:$0xff] %v2220
        %2226 = vst [vmem:[#allocation3 + $0x8] sm:$0xff] %v2223
        %v2227 = vld [vmem:[#allocation3] sm:$0xff]
        %v2228 = vld [vmem:[#allocation3 + $0x8] sm:$0xff]
        %v2229 = vpack.c.bf16 %v2227, %v2227
        %v2230 = vpack.c.bf16 %v2228, %v2228
        %v2231 = vld [vmem:[%s1182] sm:$0xff]
        %v2232 = vld [vmem:[%s1182 + $0x8] sm:$0xff]
        %v2233 = vld [vmem:[%s1182 + $0x10] sm:$0xff]
        %v2234 = vld [vmem:[%s1182 + $0x18] sm:$0xff]
        %v2235 = vld [vmem:[%s1182 + $0x20] sm:$0xff]
        %v2236 = vld [vmem:[%s1182 + $0x28] sm:$0xff]
        %v2237 = vld [vmem:[%s1182 + $0x30] sm:$0xff]
        %v2238 = vld [vmem:[%s1182 + $0x38] sm:$0xff]
        %v2239 = vld [vmem:[%s1182 + $0x40] sm:$0xff]
        %v2240 = vld [vmem:[%s1182 + $0x48] sm:$0xff]
        %v2241 = vld [vmem:[%s1182 + $0x50] sm:$0xff]
        %v2242 = vld [vmem:[%s1182 + $0x58] sm:$0xff]
        %v2243 = vld [vmem:[%s1182 + $0x60] sm:$0xff]
        %v2244 = vld [vmem:[%s1182 + $0x68] sm:$0xff]
        %v2245 = vld [vmem:[%s1182 + $0x70] sm:$0xff]
        %v2246 = vld [vmem:[%s1182 + $0x78] sm:$0xff]
        %v2247 = vld [vmem:[%s1182 + $0x80] sm:$0xff]
        %v2248 = vld [vmem:[%s1182 + $0x88] sm:$0xff]
        %v2249 = vld [vmem:[%s1182 + $0x90] sm:$0xff]
        %v2250 = vld [vmem:[%s1182 + $0x98] sm:$0xff]
        %v2251 = vld [vmem:[%s1182 + $0xa0] sm:$0xff]
        %v2252 = vld [vmem:[%s1182 + $0xa8] sm:$0xff]
        %v2253 = vld [vmem:[%s1182 + $0xb0] sm:$0xff]
        %v2254 = vld [vmem:[%s1182 + $0xb8] sm:$0xff]
        %v2255 = vld [vmem:[%s1182 + $0xc0] sm:$0xff]
        %v2256 = vld [vmem:[%s1182 + $0xc8] sm:$0xff]
        %v2257 = vld [vmem:[%s1182 + $0xd0] sm:$0xff]
        %v2258 = vld [vmem:[%s1182 + $0xd8] sm:$0xff]
        %v2259 = vld [vmem:[%s1182 + $0xe0] sm:$0xff]
        %v2260 = vld [vmem:[%s1182 + $0xe8] sm:$0xff]
        %v2261 = vld [vmem:[%s1182 + $0xf0] sm:$0xff]
        %v2262 = vld [vmem:[%s1182 + $0xf8] sm:$0xff]
        %v2263 = vld [vmem:[%s1182 + $0x100] sm:$0xff]
        %v2264 = vld [vmem:[%s1182 + $0x108] sm:$0xff]
        %v2265 = vld [vmem:[%s1182 + $0x110] sm:$0xff]
        %v2266 = vld [vmem:[%s1182 + $0x118] sm:$0xff]
        %v2267 = vld [vmem:[%s1182 + $0x120] sm:$0xff]
        %v2268 = vld [vmem:[%s1182 + $0x128] sm:$0xff]
        %v2269 = vld [vmem:[%s1182 + $0x130] sm:$0xff]
        %v2270 = vld [vmem:[%s1182 + $0x138] sm:$0xff]
        %v2271 = vld [vmem:[%s1182 + $0x140] sm:$0xff]
        %v2272 = vld [vmem:[%s1182 + $0x148] sm:$0xff]
        %v2273 = vld [vmem:[%s1182 + $0x150] sm:$0xff]
        %v2274 = vld [vmem:[%s1182 + $0x158] sm:$0xff]
        %v2275 = vld [vmem:[%s1182 + $0x160] sm:$0xff]
        %v2276 = vld [vmem:[%s1182 + $0x168] sm:$0xff]
        %v2277 = vld [vmem:[%s1182 + $0x170] sm:$0xff]
        %v2278 = vld [vmem:[%s1182 + $0x178] sm:$0xff]
        %v2279 = vld [vmem:[%s1182 + $0x180] sm:$0xff]
        %v2280 = vld [vmem:[%s1182 + $0x188] sm:$0xff]
        %v2281 = vld [vmem:[%s1182 + $0x190] sm:$0xff]
        %v2282 = vld [vmem:[%s1182 + $0x198] sm:$0xff]
        %v2283 = vld [vmem:[%s1182 + $0x1a0] sm:$0xff]
        %v2284 = vld [vmem:[%s1182 + $0x1a8] sm:$0xff]
        %v2285 = vld [vmem:[%s1182 + $0x1b0] sm:$0xff]
        %v2286 = vld [vmem:[%s1182 + $0x1b8] sm:$0xff]
        %v2287 = vld [vmem:[%s1182 + $0x1c0] sm:$0xff]
        %v2288 = vld [vmem:[%s1182 + $0x1c8] sm:$0xff]
        %v2289 = vld [vmem:[%s1182 + $0x1d0] sm:$0xff]
        %v2290 = vld [vmem:[%s1182 + $0x1d8] sm:$0xff]
        %v2291 = vld [vmem:[%s1182 + $0x1e0] sm:$0xff]
        %v2292 = vld [vmem:[%s1182 + $0x1e8] sm:$0xff]
        %v2293 = vld [vmem:[%s1182 + $0x1f0] sm:$0xff]
        %v2294 = vld [vmem:[%s1182 + $0x1f8] sm:$0xff]
        %v2295 = vld [vmem:[%s1247] sm:$0xf]
        %v2297 = vlaneseq
        %v2298 = vshrl.u32 %v2297, 7
        %v2299 = vsub.s32 0, %v2298
        %v2300 = vrot.slane %v2295, %v2299
        %v2301 = vlaneseq
        %v2302 = vshrl.u32 %v2301, 7
        %v2303 = vsub.s32 1, %v2302
        %v2304 = vrot.slane %v2295, %v2303
        %v2305 = vlaneseq
        %v2306 = vshrl.u32 %v2305, 7
        %v2307 = vsub.s32 2, %v2306
        %v2308 = vrot.slane %v2295, %v2307
        %v2309 = vlaneseq
        %v2310 = vshrl.u32 %v2309, 7
        %v2311 = vsub.s32 3, %v2310
        %v2312 = vrot.slane %v2295, %v2311
        %v2381 = vunpack.c.l.b16 %v2231
        %v2382 = vunpack.c.h.b16 %v2231
        %v2383 = vunpack.c.l.b16 %v2232
        %v2384 = vunpack.c.h.b16 %v2232
        %v2385 = vunpack.c.l.b16 %v2233
        %v2386 = vunpack.c.h.b16 %v2233
        %v2387 = vunpack.c.l.b16 %v2234
        %v2388 = vunpack.c.h.b16 %v2234
        %v2389 = vunpack.c.l.b16 %v2235
        %v2390 = vunpack.c.h.b16 %v2235
        %v2391 = vunpack.c.l.b16 %v2236
        %v2392 = vunpack.c.h.b16 %v2236
        %v2393 = vunpack.c.l.b16 %v2237
        %v2394 = vunpack.c.h.b16 %v2237
        %v2395 = vunpack.c.l.b16 %v2238
        %v2396 = vunpack.c.h.b16 %v2238
        %v2397 = vunpack.c.l.b16 %v2239
        %v2398 = vunpack.c.h.b16 %v2239
        %v2399 = vunpack.c.l.b16 %v2240
        %v2400 = vunpack.c.h.b16 %v2240
        %v2401 = vunpack.c.l.b16 %v2241
        %v2402 = vunpack.c.h.b16 %v2241
        %v2403 = vunpack.c.l.b16 %v2242
        %v2404 = vunpack.c.h.b16 %v2242
        %v2405 = vunpack.c.l.b16 %v2243
        %v2406 = vunpack.c.h.b16 %v2243
        %v2407 = vunpack.c.l.b16 %v2244
        %v2408 = vunpack.c.h.b16 %v2244
        %v2409 = vunpack.c.l.b16 %v2245
        %v2410 = vunpack.c.h.b16 %v2245
        %v2411 = vunpack.c.l.b16 %v2246
        %v2412 = vunpack.c.h.b16 %v2246
        %v2413 = vunpack.c.l.b16 %v2247
        %v2414 = vunpack.c.h.b16 %v2247
        %v2415 = vunpack.c.l.b16 %v2248
        %v2416 = vunpack.c.h.b16 %v2248
        %v2417 = vunpack.c.l.b16 %v2249
        %v2418 = vunpack.c.h.b16 %v2249
        %v2419 = vunpack.c.l.b16 %v2250
        %v2420 = vunpack.c.h.b16 %v2250
        %v2421 = vunpack.c.l.b16 %v2251
        %v2422 = vunpack.c.h.b16 %v2251
        %v2423 = vunpack.c.l.b16 %v2252
        %v2424 = vunpack.c.h.b16 %v2252
        %v2425 = vunpack.c.l.b16 %v2253
        %v2426 = vunpack.c.h.b16 %v2253
        %v2427 = vunpack.c.l.b16 %v2254
        %v2428 = vunpack.c.h.b16 %v2254
        %v2429 = vunpack.c.l.b16 %v2255
        %v2430 = vunpack.c.h.b16 %v2255
        %v2431 = vunpack.c.l.b16 %v2256
        %v2432 = vunpack.c.h.b16 %v2256
        %v2433 = vunpack.c.l.b16 %v2257
        %v2434 = vunpack.c.h.b16 %v2257
        %v2435 = vunpack.c.l.b16 %v2258
        %v2436 = vunpack.c.h.b16 %v2258
        %v2437 = vunpack.c.l.b16 %v2259
        %v2438 = vunpack.c.h.b16 %v2259
        %v2439 = vunpack.c.l.b16 %v2260
        %v2440 = vunpack.c.h.b16 %v2260
        %v2441 = vunpack.c.l.b16 %v2261
        %v2442 = vunpack.c.h.b16 %v2261
        %v2443 = vunpack.c.l.b16 %v2262
        %v2444 = vunpack.c.h.b16 %v2262
        %v2445 = vunpack.c.l.b16 %v2263
        %v2446 = vunpack.c.h.b16 %v2263
        %v2447 = vunpack.c.l.b16 %v2264
        %v2448 = vunpack.c.h.b16 %v2264
        %v2449 = vunpack.c.l.b16 %v2265
        %v2450 = vunpack.c.h.b16 %v2265
        %v2451 = vunpack.c.l.b16 %v2266
        %v2452 = vunpack.c.h.b16 %v2266
        %v2453 = vunpack.c.l.b16 %v2267
        %v2454 = vunpack.c.h.b16 %v2267
        %v2455 = vunpack.c.l.b16 %v2268
        %v2456 = vunpack.c.h.b16 %v2268
        %v2457 = vunpack.c.l.b16 %v2269
        %v2458 = vunpack.c.h.b16 %v2269
        %v2459 = vunpack.c.l.b16 %v2270
        %v2460 = vunpack.c.h.b16 %v2270
        %v2461 = vunpack.c.l.b16 %v2271
        %v2462 = vunpack.c.h.b16 %v2271
        %v2463 = vunpack.c.l.b16 %v2272
        %v2464 = vunpack.c.h.b16 %v2272
        %v2465 = vunpack.c.l.b16 %v2273
        %v2466 = vunpack.c.h.b16 %v2273
        %v2467 = vunpack.c.l.b16 %v2274
        %v2468 = vunpack.c.h.b16 %v2274
        %v2469 = vunpack.c.l.b16 %v2275
        %v2470 = vunpack.c.h.b16 %v2275
        %v2471 = vunpack.c.l.b16 %v2276
        %v2472 = vunpack.c.h.b16 %v2276
        %v2473 = vunpack.c.l.b16 %v2277
        %v2474 = vunpack.c.h.b16 %v2277
        %v2475 = vunpack.c.l.b16 %v2278
        %v2476 = vunpack.c.h.b16 %v2278
        %v2477 = vunpack.c.l.b16 %v2279
        %v2478 = vunpack.c.h.b16 %v2279
        %v2479 = vunpack.c.l.b16 %v2280
        %v2480 = vunpack.c.h.b16 %v2280
        %v2481 = vunpack.c.l.b16 %v2281
        %v2482 = vunpack.c.h.b16 %v2281
        %v2483 = vunpack.c.l.b16 %v2282
        %v2484 = vunpack.c.h.b16 %v2282
        %v2485 = vunpack.c.l.b16 %v2283
        %v2486 = vunpack.c.h.b16 %v2283
        %v2487 = vunpack.c.l.b16 %v2284
        %v2488 = vunpack.c.h.b16 %v2284
        %v2489 = vunpack.c.l.b16 %v2285
        %v2490 = vunpack.c.h.b16 %v2285
        %v2491 = vunpack.c.l.b16 %v2286
        %v2492 = vunpack.c.h.b16 %v2286
        %v2493 = vunpack.c.l.b16 %v2287
        %v2494 = vunpack.c.h.b16 %v2287
        %v2495 = vunpack.c.l.b16 %v2288
        %v2496 = vunpack.c.h.b16 %v2288
        %v2497 = vunpack.c.l.b16 %v2289
        %v2498 = vunpack.c.h.b16 %v2289
        %v2499 = vunpack.c.l.b16 %v2290
        %v2500 = vunpack.c.h.b16 %v2290
        %v2501 = vunpack.c.l.b16 %v2291
        %v2502 = vunpack.c.h.b16 %v2291
        %v2503 = vunpack.c.l.b16 %v2292
        %v2504 = vunpack.c.h.b16 %v2292
        %v2505 = vunpack.c.l.b16 %v2293
        %v2506 = vunpack.c.h.b16 %v2293
        %v2507 = vunpack.c.l.b16 %v2294
        %v2508 = vunpack.c.h.b16 %v2294
        %v2509 = vpack.c.b16 %v2385, %v2381
        %v2510 = vpack.c.b16 %v2386, %v2382
        %v2511 = vpack.c.b16 %v2387, %v2383
        %v2512 = vpack.c.b16 %v2388, %v2384
        %v2513 = vpack.c.b16 %v2393, %v2389
        %v2514 = vpack.c.b16 %v2394, %v2390
        %v2515 = vpack.c.b16 %v2395, %v2391
        %v2516 = vpack.c.b16 %v2396, %v2392
        %v2517 = vpack.c.b16 %v2401, %v2397
        %v2518 = vpack.c.b16 %v2402, %v2398
        %v2519 = vpack.c.b16 %v2403, %v2399
        %v2520 = vpack.c.b16 %v2404, %v2400
        %v2521 = vpack.c.b16 %v2409, %v2405
        %v2522 = vpack.c.b16 %v2410, %v2406
        %v2523 = vpack.c.b16 %v2411, %v2407
        %v2524 = vpack.c.b16 %v2412, %v2408
        %v2525 = vpack.c.b16 %v2417, %v2413
        %v2526 = vpack.c.b16 %v2418, %v2414
        %v2527 = vpack.c.b16 %v2419, %v2415
        %v2528 = vpack.c.b16 %v2420, %v2416
        %v2529 = vpack.c.b16 %v2425, %v2421
        %v2530 = vpack.c.b16 %v2426, %v2422
        %v2531 = vpack.c.b16 %v2427, %v2423
        %v2532 = vpack.c.b16 %v2428, %v2424
        %v2533 = vpack.c.b16 %v2433, %v2429
        %v2534 = vpack.c.b16 %v2434, %v2430
        %v2535 = vpack.c.b16 %v2435, %v2431
        %v2536 = vpack.c.b16 %v2436, %v2432
        %v2537 = vpack.c.b16 %v2441, %v2437
        %v2538 = vpack.c.b16 %v2442, %v2438
        %v2539 = vpack.c.b16 %v2443, %v2439
        %v2540 = vpack.c.b16 %v2444, %v2440
        %v2541 = vpack.c.b16 %v2449, %v2445
        %v2542 = vpack.c.b16 %v2450, %v2446
        %v2543 = vpack.c.b16 %v2451, %v2447
        %v2544 = vpack.c.b16 %v2452, %v2448
        %v2545 = vpack.c.b16 %v2457, %v2453
        %v2546 = vpack.c.b16 %v2458, %v2454
        %v2547 = vpack.c.b16 %v2459, %v2455
        %v2548 = vpack.c.b16 %v2460, %v2456
        %v2549 = vpack.c.b16 %v2465, %v2461
        %v2550 = vpack.c.b16 %v2466, %v2462
        %v2551 = vpack.c.b16 %v2467, %v2463
        %v2552 = vpack.c.b16 %v2468, %v2464
        %v2553 = vpack.c.b16 %v2473, %v2469
        %v2554 = vpack.c.b16 %v2474, %v2470
        %v2555 = vpack.c.b16 %v2475, %v2471
        %v2556 = vpack.c.b16 %v2476, %v2472
        %v2557 = vpack.c.b16 %v2481, %v2477
        %v2558 = vpack.c.b16 %v2482, %v2478
        %v2559 = vpack.c.b16 %v2483, %v2479
        %v2560 = vpack.c.b16 %v2484, %v2480
        %v2561 = vpack.c.b16 %v2489, %v2485
        %v2562 = vpack.c.b16 %v2490, %v2486
        %v2563 = vpack.c.b16 %v2491, %v2487
        %v2564 = vpack.c.b16 %v2492, %v2488
        %v2565 = vpack.c.b16 %v2497, %v2493
        %v2566 = vpack.c.b16 %v2498, %v2494
        %v2567 = vpack.c.b16 %v2499, %v2495
        %v2568 = vpack.c.b16 %v2500, %v2496
        %v2569 = vpack.c.b16 %v2505, %v2501
        %v2570 = vpack.c.b16 %v2506, %v2502
        %v2571 = vpack.c.b16 %v2507, %v2503
        %v2572 = vpack.c.b16 %v2508, %v2504
        %2637 = vmatprep.subr.bf16.mxu0 %v2510
        %2638 = vmatpush1.bf16.msra.mxu0 %v2509
        %2639 = vmatprep.subr.bf16.mxu0 %v2514
        %2640 = vmatpush1.bf16.msra.mxu0 %v2513
        %2641 = vmatprep.subr.bf16.mxu0 %v2518
        %2642 = vmatpush1.bf16.msra.mxu0 %v2517
        %2643 = vmatprep.subr.bf16.mxu0 %v2522
        %2644 = vmatpush1.bf16.msra.mxu0 %v2521
        %2645 = vmatprep.subr.bf16.mxu0 %v2526
        %2646 = vmatpush1.bf16.msra.mxu0 %v2525
        %2647 = vmatprep.subr.bf16.mxu0 %v2530
        %2648 = vmatpush1.bf16.msra.mxu0 %v2529
        %2649 = vmatprep.subr.bf16.mxu0 %v2534
        %2650 = vmatpush1.bf16.msra.mxu0 %v2533
        %2651 = vmatprep.subr.bf16.mxu0 %v2538
        %2652 = vmatpush1.bf16.msra.mxu0 %v2537
        %2653 = vmatprep.subr.bf16.mxu0 %v2542
        %2654 = vmatpush1.bf16.msra.mxu0 %v2541
        %2655 = vmatprep.subr.bf16.mxu0 %v2546
        %2656 = vmatpush1.bf16.msra.mxu0 %v2545
        %2657 = vmatprep.subr.bf16.mxu0 %v2550
        %2658 = vmatpush1.bf16.msra.mxu0 %v2549
        %2659 = vmatprep.subr.bf16.mxu0 %v2554
        %2660 = vmatpush1.bf16.msra.mxu0 %v2553
        %2661 = vmatprep.subr.bf16.mxu0 %v2558
        %2662 = vmatpush1.bf16.msra.mxu0 %v2557
        %2663 = vmatprep.subr.bf16.mxu0 %v2562
        %2664 = vmatpush1.bf16.msra.mxu0 %v2561
        %2665 = vmatprep.subr.bf16.mxu0 %v2566
        %2666 = vmatpush1.bf16.msra.mxu0 %v2565
        %2667 = vmatprep.subr.bf16.mxu0 %v2570
        %2668 = vmatpush1.bf16.msra.mxu0 %v2569
        %2669 = vmatprep.mubr.bf16.mxu0 %v2230
        %2670 = vmatmul.mubr.bf16.gmra.mrb[0].mxu0 %v2229
        %v2671 = vpop.f32.mrb[0].mxu0
        %v2672 = vadd.f32 %v2300, %v2671
        %v2673 = vpop.f32.mrb[0].mxu0
        %v2674 = vadd.f32 %v2304, %v2673
        %v2675 = vpop.f32.mrb[0].mxu0
        %v2676 = vpop.f32.mrb[0].mxu0
        %2677 = vdwg.mxu0
        %2678 = vmatprep.subr.bf16.mxu0 %v2512
        %2679 = vmatpush1.bf16.msra.mxu0 %v2511
        %2680 = vmatprep.subr.bf16.mxu0 %v2516
        %2681 = vmatpush1.bf16.msra.mxu0 %v2515
        %2682 = vmatprep.subr.bf16.mxu0 %v2520
        %2683 = vmatpush1.bf16.msra.mxu0 %v2519
        %2684 = vmatprep.subr.bf16.mxu0 %v2524
        %2685 = vmatpush1.bf16.msra.mxu0 %v2523
        %2686 = vmatprep.subr.bf16.mxu0 %v2528
        %2687 = vmatpush1.bf16.msra.mxu0 %v2527
        %2688 = vmatprep.subr.bf16.mxu0 %v2532
        %2689 = vmatpush1.bf16.msra.mxu0 %v2531
        %2690 = vmatprep.subr.bf16.mxu0 %v2536
        %2691 = vmatpush1.bf16.msra.mxu0 %v2535
        %2692 = vmatprep.subr.bf16.mxu0 %v2540
        %2693 = vmatpush1.bf16.msra.mxu0 %v2539
        %2694 = vmatprep.subr.bf16.mxu0 %v2544
        %2695 = vmatpush1.bf16.msra.mxu0 %v2543
        %2696 = vmatprep.subr.bf16.mxu0 %v2548
        %2697 = vmatpush1.bf16.msra.mxu0 %v2547
        %2698 = vmatprep.subr.bf16.mxu0 %v2552
        %2699 = vmatpush1.bf16.msra.mxu0 %v2551
        %2700 = vmatprep.subr.bf16.mxu0 %v2556
        %2701 = vmatpush1.bf16.msra.mxu0 %v2555
        %2702 = vmatprep.subr.bf16.mxu0 %v2560
        %2703 = vmatpush1.bf16.msra.mxu0 %v2559
        %2704 = vmatprep.subr.bf16.mxu0 %v2564
        %2705 = vmatpush1.bf16.msra.mxu0 %v2563
        %2706 = vmatprep.subr.bf16.mxu0 %v2568
        %2707 = vmatpush1.bf16.msra.mxu0 %v2567
        %2708 = vmatprep.subr.bf16.mxu0 %v2572
        %2709 = vmatpush1.bf16.msra.mxu0 %v2571
        %2710 = vmatprep.mubr.bf16.mxu0 %v2230
        %2711 = vmatmul.mubr.bf16.gmra.mrb[0].mxu0 %v2229
        %v2712 = vpop.f32.mrb[0].mxu0
        %v2713 = vadd.f32 %v2308, %v2712
        %v2714 = vpop.f32.mrb[0].mxu0
        %v2715 = vadd.f32 %v2312, %v2714
        %v2716 = vpop.f32.mrb[0].mxu0
        %v2717 = vpop.f32.mrb[0].mxu0
        %2718 = vdwg.mxu0
        %v2719 = vxor.u32 %v2672, 2147483648
        %v2720 = vmul.f32 %v2719, 1.442695
        %v2721 = vpow.pop %v2720
        %v2722 = vadd.f32 %v2721, 1.0
        %v2723 = vrcp.pop %v2722
        %v2724 = vmul.f32 1.0, %v2723
        %v2725 = vxor.u32 %v2674, 2147483648
        %v2726 = vmul.f32 %v2725, 1.442695
        %v2727 = vpow.pop %v2726
        %v2728 = vadd.f32 %v2727, 1.0
        %v2729 = vrcp.pop %v2728
        %v2730 = vmul.f32 1.0, %v2729
        %v2731 = vtanh.pop %v2713
        %v2732 = vxor.u32 %v2715, 2147483648
        %v2733 = vmul.f32 %v2732, 1.442695
        %v2734 = vpow.pop %v2733
        %v2735 = vadd.f32 %v2734, 1.0
        %v2736 = vrcp.pop %v2735
        %v2737 = vmul.f32 1.0, %v2736
        %v2738 = vmul.f32 %v2730, %v2224
        %v2739 = vmul.f32 %v2724, %v2731
        %v2740 = vadd.f32 %v2738, %v2739
        %v2741 = vtanh.pop %v2740
        %v2742 = vmul.f32 %v2737, %v2741
        %2743 = vst [vmem:[%s1172] sm:$0xff] %v2742
        %2744 = vst [vmem:[%s1174] sm:$0xff] %v2740
        %s2745 = scalar_lea.vmem [#allocation6], 8
        %2746 = vst [vmem:[%s2745] sm:$0xff] %v2742
        %s2747 = scalar_lea.vmem [#allocation2], 16
        %v2748 = vld [vmem:[%s2747] sm:$0xff]
        %v2749 = vld [vmem:[#allocation4] sm:$0xff]
        %v2750 = vld [vmem:[#allocation5] sm:$0xff]
        %2751 = vst [vmem:[#allocation3] sm:$0xff] %v2748
        %2752 = vst [vmem:[#allocation3 + $0x8] sm:$0xff] %v2749
        %v2753 = vld [vmem:[#allocation3] sm:$0xff]
        %v2754 = vld [vmem:[#allocation3 + $0x8] sm:$0xff]
        %v2755 = vpack.c.bf16 %v2753, %v2753
        %v2756 = vpack.c.bf16 %v2754, %v2754
        %v2757 = vld [vmem:[#allocation7] sm:$0xff]
        %v2758 = vld [vmem:[#allocation7 + $0x8] sm:$0xff]
        %v2759 = vld [vmem:[#allocation7 + $0x10] sm:$0xff]
        %v2760 = vld [vmem:[#allocation7 + $0x18] sm:$0xff]
        %v2761 = vld [vmem:[#allocation7 + $0x20] sm:$0xff]
        %v2762 = vld [vmem:[#allocation7 + $0x28] sm:$0xff]
        %v2763 = vld [vmem:[#allocation7 + $0x30] sm:$0xff]
        %v2764 = vld [vmem:[#allocation7 + $0x38] sm:$0xff]
        %v2765 = vld [vmem:[#allocation7 + $0x40] sm:$0xff]
        %v2766 = vld [vmem:[#allocation7 + $0x48] sm:$0xff]
        %v2767 = vld [vmem:[#allocation7 + $0x50] sm:$0xff]
        %v2768 = vld [vmem:[#allocation7 + $0x58] sm:$0xff]
        %v2769 = vld [vmem:[#allocation7 + $0x60] sm:$0xff]
        %v2770 = vld [vmem:[#allocation7 + $0x68] sm:$0xff]
        %v2771 = vld [vmem:[#allocation7 + $0x70] sm:$0xff]
        %v2772 = vld [vmem:[#allocation7 + $0x78] sm:$0xff]
        %v2773 = vld [vmem:[#allocation7 + $0x80] sm:$0xff]
        %v2774 = vld [vmem:[#allocation7 + $0x88] sm:$0xff]
        %v2775 = vld [vmem:[#allocation7 + $0x90] sm:$0xff]
        %v2776 = vld [vmem:[#allocation7 + $0x98] sm:$0xff]
        %v2777 = vld [vmem:[#allocation7 + $0xa0] sm:$0xff]
        %v2778 = vld [vmem:[#allocation7 + $0xa8] sm:$0xff]
        %v2779 = vld [vmem:[#allocation7 + $0xb0] sm:$0xff]
        %v2780 = vld [vmem:[#allocation7 + $0xb8] sm:$0xff]
        %v2781 = vld [vmem:[#allocation7 + $0xc0] sm:$0xff]
        %v2782 = vld [vmem:[#allocation7 + $0xc8] sm:$0xff]
        %v2783 = vld [vmem:[#allocation7 + $0xd0] sm:$0xff]
        %v2784 = vld [vmem:[#allocation7 + $0xd8] sm:$0xff]
        %v2785 = vld [vmem:[#allocation7 + $0xe0] sm:$0xff]
        %v2786 = vld [vmem:[#allocation7 + $0xe8] sm:$0xff]
        %v2787 = vld [vmem:[#allocation7 + $0xf0] sm:$0xff]
        %v2788 = vld [vmem:[#allocation7 + $0xf8] sm:$0xff]
        %v2789 = vld [vmem:[#allocation7 + $0x100] sm:$0xff]
        %v2790 = vld [vmem:[#allocation7 + $0x108] sm:$0xff]
        %v2791 = vld [vmem:[#allocation7 + $0x110] sm:$0xff]
        %v2792 = vld [vmem:[#allocation7 + $0x118] sm:$0xff]
        %v2793 = vld [vmem:[#allocation7 + $0x120] sm:$0xff]
        %v2794 = vld [vmem:[#allocation7 + $0x128] sm:$0xff]
        %v2795 = vld [vmem:[#allocation7 + $0x130] sm:$0xff]
        %v2796 = vld [vmem:[#allocation7 + $0x138] sm:$0xff]
        %v2797 = vld [vmem:[#allocation7 + $0x140] sm:$0xff]
        %v2798 = vld [vmem:[#allocation7 + $0x148] sm:$0xff]
        %v2799 = vld [vmem:[#allocation7 + $0x150] sm:$0xff]
        %v2800 = vld [vmem:[#allocation7 + $0x158] sm:$0xff]
        %v2801 = vld [vmem:[#allocation7 + $0x160] sm:$0xff]
        %v2802 = vld [vmem:[#allocation7 + $0x168] sm:$0xff]
        %v2803 = vld [vmem:[#allocation7 + $0x170] sm:$0xff]
        %v2804 = vld [vmem:[#allocation7 + $0x178] sm:$0xff]
        %v2805 = vld [vmem:[#allocation7 + $0x180] sm:$0xff]
        %v2806 = vld [vmem:[#allocation7 + $0x188] sm:$0xff]
        %v2807 = vld [vmem:[#allocation7 + $0x190] sm:$0xff]
        %v2808 = vld [vmem:[#allocation7 + $0x198] sm:$0xff]
        %v2809 = vld [vmem:[#allocation7 + $0x1a0] sm:$0xff]
        %v2810 = vld [vmem:[#allocation7 + $0x1a8] sm:$0xff]
        %v2811 = vld [vmem:[#allocation7 + $0x1b0] sm:$0xff]
        %v2812 = vld [vmem:[#allocation7 + $0x1b8] sm:$0xff]
        %v2813 = vld [vmem:[#allocation7 + $0x1c0] sm:$0xff]
        %v2814 = vld [vmem:[#allocation7 + $0x1c8] sm:$0xff]
        %v2815 = vld [vmem:[#allocation7 + $0x1d0] sm:$0xff]
        %v2816 = vld [vmem:[#allocation7 + $0x1d8] sm:$0xff]
        %v2817 = vld [vmem:[#allocation7 + $0x1e0] sm:$0xff]
        %v2818 = vld [vmem:[#allocation7 + $0x1e8] sm:$0xff]
        %v2819 = vld [vmem:[#allocation7 + $0x1f0] sm:$0xff]
        %v2820 = vld [vmem:[#allocation7 + $0x1f8] sm:$0xff]
        %v2821 = vld [vmem:[%s5] sm:$0xf]
        %v2823 = vlaneseq
        %v2824 = vshrl.u32 %v2823, 7
        %v2825 = vsub.s32 0, %v2824
        %v2826 = vrot.slane %v2821, %v2825
        %v2827 = vlaneseq
        %v2828 = vshrl.u32 %v2827, 7
        %v2829 = vsub.s32 1, %v2828
        %v2830 = vrot.slane %v2821, %v2829
        %v2831 = vlaneseq
        %v2832 = vshrl.u32 %v2831, 7
        %v2833 = vsub.s32 2, %v2832
        %v2834 = vrot.slane %v2821, %v2833
        %v2835 = vlaneseq
        %v2836 = vshrl.u32 %v2835, 7
        %v2837 = vsub.s32 3, %v2836
        %v2838 = vrot.slane %v2821, %v2837
        %v2907 = vunpack.c.l.b16 %v2757
        %v2908 = vunpack.c.h.b16 %v2757
        %v2909 = vunpack.c.l.b16 %v2758
        %v2910 = vunpack.c.h.b16 %v2758
        %v2911 = vunpack.c.l.b16 %v2759
        %v2912 = vunpack.c.h.b16 %v2759
        %v2913 = vunpack.c.l.b16 %v2760
        %v2914 = vunpack.c.h.b16 %v2760
        %v2915 = vunpack.c.l.b16 %v2761
        %v2916 = vunpack.c.h.b16 %v2761
        %v2917 = vunpack.c.l.b16 %v2762
        %v2918 = vunpack.c.h.b16 %v2762
        %v2919 = vunpack.c.l.b16 %v2763
        %v2920 = vunpack.c.h.b16 %v2763
        %v2921 = vunpack.c.l.b16 %v2764
        %v2922 = vunpack.c.h.b16 %v2764
        %v2923 = vunpack.c.l.b16 %v2765
        %v2924 = vunpack.c.h.b16 %v2765
        %v2925 = vunpack.c.l.b16 %v2766
        %v2926 = vunpack.c.h.b16 %v2766
        %v2927 = vunpack.c.l.b16 %v2767
        %v2928 = vunpack.c.h.b16 %v2767
        %v2929 = vunpack.c.l.b16 %v2768
        %v2930 = vunpack.c.h.b16 %v2768
        %v2931 = vunpack.c.l.b16 %v2769
        %v2932 = vunpack.c.h.b16 %v2769
        %v2933 = vunpack.c.l.b16 %v2770
        %v2934 = vunpack.c.h.b16 %v2770
        %v2935 = vunpack.c.l.b16 %v2771
        %v2936 = vunpack.c.h.b16 %v2771
        %v2937 = vunpack.c.l.b16 %v2772
        %v2938 = vunpack.c.h.b16 %v2772
        %v2939 = vunpack.c.l.b16 %v2773
        %v2940 = vunpack.c.h.b16 %v2773
        %v2941 = vunpack.c.l.b16 %v2774
        %v2942 = vunpack.c.h.b16 %v2774
        %v2943 = vunpack.c.l.b16 %v2775
        %v2944 = vunpack.c.h.b16 %v2775
        %v2945 = vunpack.c.l.b16 %v2776
        %v2946 = vunpack.c.h.b16 %v2776
        %v2947 = vunpack.c.l.b16 %v2777
        %v2948 = vunpack.c.h.b16 %v2777
        %v2949 = vunpack.c.l.b16 %v2778
        %v2950 = vunpack.c.h.b16 %v2778
        %v2951 = vunpack.c.l.b16 %v2779
        %v2952 = vunpack.c.h.b16 %v2779
        %v2953 = vunpack.c.l.b16 %v2780
        %v2954 = vunpack.c.h.b16 %v2780
        %v2955 = vunpack.c.l.b16 %v2781
        %v2956 = vunpack.c.h.b16 %v2781
        %v2957 = vunpack.c.l.b16 %v2782
        %v2958 = vunpack.c.h.b16 %v2782
        %v2959 = vunpack.c.l.b16 %v2783
        %v2960 = vunpack.c.h.b16 %v2783
        %v2961 = vunpack.c.l.b16 %v2784
        %v2962 = vunpack.c.h.b16 %v2784
        %v2963 = vunpack.c.l.b16 %v2785
        %v2964 = vunpack.c.h.b16 %v2785
        %v2965 = vunpack.c.l.b16 %v2786
        %v2966 = vunpack.c.h.b16 %v2786
        %v2967 = vunpack.c.l.b16 %v2787
        %v2968 = vunpack.c.h.b16 %v2787
        %v2969 = vunpack.c.l.b16 %v2788
        %v2970 = vunpack.c.h.b16 %v2788
        %v2971 = vunpack.c.l.b16 %v2789
        %v2972 = vunpack.c.h.b16 %v2789
        %v2973 = vunpack.c.l.b16 %v2790
        %v2974 = vunpack.c.h.b16 %v2790
        %v2975 = vunpack.c.l.b16 %v2791
        %v2976 = vunpack.c.h.b16 %v2791
        %v2977 = vunpack.c.l.b16 %v2792
        %v2978 = vunpack.c.h.b16 %v2792
        %v2979 = vunpack.c.l.b16 %v2793
        %v2980 = vunpack.c.h.b16 %v2793
        %v2981 = vunpack.c.l.b16 %v2794
        %v2982 = vunpack.c.h.b16 %v2794
        %v2983 = vunpack.c.l.b16 %v2795
        %v2984 = vunpack.c.h.b16 %v2795
        %v2985 = vunpack.c.l.b16 %v2796
        %v2986 = vunpack.c.h.b16 %v2796
        %v2987 = vunpack.c.l.b16 %v2797
        %v2988 = vunpack.c.h.b16 %v2797
        %v2989 = vunpack.c.l.b16 %v2798
        %v2990 = vunpack.c.h.b16 %v2798
        %v2991 = vunpack.c.l.b16 %v2799
        %v2992 = vunpack.c.h.b16 %v2799
        %v2993 = vunpack.c.l.b16 %v2800
        %v2994 = vunpack.c.h.b16 %v2800
        %v2995 = vunpack.c.l.b16 %v2801
        %v2996 = vunpack.c.h.b16 %v2801
        %v2997 = vunpack.c.l.b16 %v2802
        %v2998 = vunpack.c.h.b16 %v2802
        %v2999 = vunpack.c.l.b16 %v2803
        %v3000 = vunpack.c.h.b16 %v2803
        %v3001 = vunpack.c.l.b16 %v2804
        %v3002 = vunpack.c.h.b16 %v2804
        %v3003 = vunpack.c.l.b16 %v2805
        %v3004 = vunpack.c.h.b16 %v2805
        %v3005 = vunpack.c.l.b16 %v2806
        %v3006 = vunpack.c.h.b16 %v2806
        %v3007 = vunpack.c.l.b16 %v2807
        %v3008 = vunpack.c.h.b16 %v2807
        %v3009 = vunpack.c.l.b16 %v2808
        %v3010 = vunpack.c.h.b16 %v2808
        %v3011 = vunpack.c.l.b16 %v2809
        %v3012 = vunpack.c.h.b16 %v2809
        %v3013 = vunpack.c.l.b16 %v2810
        %v3014 = vunpack.c.h.b16 %v2810
        %v3015 = vunpack.c.l.b16 %v2811
        %v3016 = vunpack.c.h.b16 %v2811
        %v3017 = vunpack.c.l.b16 %v2812
        %v3018 = vunpack.c.h.b16 %v2812
        %v3019 = vunpack.c.l.b16 %v2813
        %v3020 = vunpack.c.h.b16 %v2813
        %v3021 = vunpack.c.l.b16 %v2814
        %v3022 = vunpack.c.h.b16 %v2814
        %v3023 = vunpack.c.l.b16 %v2815
        %v3024 = vunpack.c.h.b16 %v2815
        %v3025 = vunpack.c.l.b16 %v2816
        %v3026 = vunpack.c.h.b16 %v2816
        %v3027 = vunpack.c.l.b16 %v2817
        %v3028 = vunpack.c.h.b16 %v2817
        %v3029 = vunpack.c.l.b16 %v2818
        %v3030 = vunpack.c.h.b16 %v2818
        %v3031 = vunpack.c.l.b16 %v2819
        %v3032 = vunpack.c.h.b16 %v2819
        %v3033 = vunpack.c.l.b16 %v2820
        %v3034 = vunpack.c.h.b16 %v2820
        %v3035 = vpack.c.b16 %v2911, %v2907
        %v3036 = vpack.c.b16 %v2912, %v2908
        %v3037 = vpack.c.b16 %v2913, %v2909
        %v3038 = vpack.c.b16 %v2914, %v2910
        %v3039 = vpack.c.b16 %v2919, %v2915
        %v3040 = vpack.c.b16 %v2920, %v2916
        %v3041 = vpack.c.b16 %v2921, %v2917
        %v3042 = vpack.c.b16 %v2922, %v2918
        %v3043 = vpack.c.b16 %v2927, %v2923
        %v3044 = vpack.c.b16 %v2928, %v2924
        %v3045 = vpack.c.b16 %v2929, %v2925
        %v3046 = vpack.c.b16 %v2930, %v2926
        %v3047 = vpack.c.b16 %v2935, %v2931
        %v3048 = vpack.c.b16 %v2936, %v2932
        %v3049 = vpack.c.b16 %v2937, %v2933
        %v3050 = vpack.c.b16 %v2938, %v2934
        %v3051 = vpack.c.b16 %v2943, %v2939
        %v3052 = vpack.c.b16 %v2944, %v2940
        %v3053 = vpack.c.b16 %v2945, %v2941
        %v3054 = vpack.c.b16 %v2946, %v2942
        %v3055 = vpack.c.b16 %v2951, %v2947
        %v3056 = vpack.c.b16 %v2952, %v2948
        %v3057 = vpack.c.b16 %v2953, %v2949
        %v3058 = vpack.c.b16 %v2954, %v2950
        %v3059 = vpack.c.b16 %v2959, %v2955
        %v3060 = vpack.c.b16 %v2960, %v2956
        %v3061 = vpack.c.b16 %v2961, %v2957
        %v3062 = vpack.c.b16 %v2962, %v2958
        %v3063 = vpack.c.b16 %v2967, %v2963
        %v3064 = vpack.c.b16 %v2968, %v2964
        %v3065 = vpack.c.b16 %v2969, %v2965
        %v3066 = vpack.c.b16 %v2970, %v2966
        %v3067 = vpack.c.b16 %v2975, %v2971
        %v3068 = vpack.c.b16 %v2976, %v2972
        %v3069 = vpack.c.b16 %v2977, %v2973
        %v3070 = vpack.c.b16 %v2978, %v2974
        %v3071 = vpack.c.b16 %v2983, %v2979
        %v3072 = vpack.c.b16 %v2984, %v2980
        %v3073 = vpack.c.b16 %v2985, %v2981
        %v3074 = vpack.c.b16 %v2986, %v2982
        %v3075 = vpack.c.b16 %v2991, %v2987
        %v3076 = vpack.c.b16 %v2992, %v2988
        %v3077 = vpack.c.b16 %v2993, %v2989
        %v3078 = vpack.c.b16 %v2994, %v2990
        %v3079 = vpack.c.b16 %v2999, %v2995
        %v3080 = vpack.c.b16 %v3000, %v2996
        %v3081 = vpack.c.b16 %v3001, %v2997
        %v3082 = vpack.c.b16 %v3002, %v2998
        %v3083 = vpack.c.b16 %v3007, %v3003
        %v3084 = vpack.c.b16 %v3008, %v3004
        %v3085 = vpack.c.b16 %v3009, %v3005
        %v3086 = vpack.c.b16 %v3010, %v3006
        %v3087 = vpack.c.b16 %v3015, %v3011
        %v3088 = vpack.c.b16 %v3016, %v3012
        %v3089 = vpack.c.b16 %v3017, %v3013
        %v3090 = vpack.c.b16 %v3018, %v3014
        %v3091 = vpack.c.b16 %v3023, %v3019
        %v3092 = vpack.c.b16 %v3024, %v3020
        %v3093 = vpack.c.b16 %v3025, %v3021
        %v3094 = vpack.c.b16 %v3026, %v3022
        %v3095 = vpack.c.b16 %v3031, %v3027
        %v3096 = vpack.c.b16 %v3032, %v3028
        %v3097 = vpack.c.b16 %v3033, %v3029
        %v3098 = vpack.c.b16 %v3034, %v3030
        %3163 = vmatprep.subr.bf16.mxu0 %v3036
        %3164 = vmatpush1.bf16.msra.mxu0 %v3035
        %3165 = vmatprep.subr.bf16.mxu0 %v3040
        %3166 = vmatpush1.bf16.msra.mxu0 %v3039
        %3167 = vmatprep.subr.bf16.mxu0 %v3044
        %3168 = vmatpush1.bf16.msra.mxu0 %v3043
        %3169 = vmatprep.subr.bf16.mxu0 %v3048
        %3170 = vmatpush1.bf16.msra.mxu0 %v3047
        %3171 = vmatprep.subr.bf16.mxu0 %v3052
        %3172 = vmatpush1.bf16.msra.mxu0 %v3051
        %3173 = vmatprep.subr.bf16.mxu0 %v3056
        %3174 = vmatpush1.bf16.msra.mxu0 %v3055
        %3175 = vmatprep.subr.bf16.mxu0 %v3060
        %3176 = vmatpush1.bf16.msra.mxu0 %v3059
        %3177 = vmatprep.subr.bf16.mxu0 %v3064
        %3178 = vmatpush1.bf16.msra.mxu0 %v3063
        %3179 = vmatprep.subr.bf16.mxu0 %v3068
        %3180 = vmatpush1.bf16.msra.mxu0 %v3067
        %3181 = vmatprep.subr.bf16.mxu0 %v3072
        %3182 = vmatpush1.bf16.msra.mxu0 %v3071
        %3183 = vmatprep.subr.bf16.mxu0 %v3076
        %3184 = vmatpush1.bf16.msra.mxu0 %v3075
        %3185 = vmatprep.subr.bf16.mxu0 %v3080
        %3186 = vmatpush1.bf16.msra.mxu0 %v3079
        %3187 = vmatprep.subr.bf16.mxu0 %v3084
        %3188 = vmatpush1.bf16.msra.mxu0 %v3083
        %3189 = vmatprep.subr.bf16.mxu0 %v3088
        %3190 = vmatpush1.bf16.msra.mxu0 %v3087
        %3191 = vmatprep.subr.bf16.mxu0 %v3092
        %3192 = vmatpush1.bf16.msra.mxu0 %v3091
        %3193 = vmatprep.subr.bf16.mxu0 %v3096
        %3194 = vmatpush1.bf16.msra.mxu0 %v3095
        %3195 = vmatprep.mubr.bf16.mxu0 %v2756
        %3196 = vmatmul.mubr.bf16.gmra.mrb[0].mxu0 %v2755
        %v3197 = vpop.f32.mrb[0].mxu0
        %v3198 = vadd.f32 %v2826, %v3197
        %v3199 = vpop.f32.mrb[0].mxu0
        %v3200 = vadd.f32 %v2830, %v3199
        %v3201 = vpop.f32.mrb[0].mxu0
        %v3202 = vpop.f32.mrb[0].mxu0
        %3203 = vdwg.mxu0
        %3204 = vmatprep.subr.bf16.mxu0 %v3038
        %3205 = vmatpush1.bf16.msra.mxu0 %v3037
        %3206 = vmatprep.subr.bf16.mxu0 %v3042
        %3207 = vmatpush1.bf16.msra.mxu0 %v3041
        %3208 = vmatprep.subr.bf16.mxu0 %v3046
        %3209 = vmatpush1.bf16.msra.mxu0 %v3045
        %3210 = vmatprep.subr.bf16.mxu0 %v3050
        %3211 = vmatpush1.bf16.msra.mxu0 %v3049
        %3212 = vmatprep.subr.bf16.mxu0 %v3054
        %3213 = vmatpush1.bf16.msra.mxu0 %v3053
        %3214 = vmatprep.subr.bf16.mxu0 %v3058
        %3215 = vmatpush1.bf16.msra.mxu0 %v3057
        %3216 = vmatprep.subr.bf16.mxu0 %v3062
        %3217 = vmatpush1.bf16.msra.mxu0 %v3061
        %3218 = vmatprep.subr.bf16.mxu0 %v3066
        %3219 = vmatpush1.bf16.msra.mxu0 %v3065
        %3220 = vmatprep.subr.bf16.mxu0 %v3070
        %3221 = vmatpush1.bf16.msra.mxu0 %v3069
        %3222 = vmatprep.subr.bf16.mxu0 %v3074
        %3223 = vmatpush1.bf16.msra.mxu0 %v3073
        %3224 = vmatprep.subr.bf16.mxu0 %v3078
        %3225 = vmatpush1.bf16.msra.mxu0 %v3077
        %3226 = vmatprep.subr.bf16.mxu0 %v3082
        %3227 = vmatpush1.bf16.msra.mxu0 %v3081
        %3228 = vmatprep.subr.bf16.mxu0 %v3086
        %3229 = vmatpush1.bf16.msra.mxu0 %v3085
        %3230 = vmatprep.subr.bf16.mxu0 %v3090
        %3231 = vmatpush1.bf16.msra.mxu0 %v3089
        %3232 = vmatprep.subr.bf16.mxu0 %v3094
        %3233 = vmatpush1.bf16.msra.mxu0 %v3093
        %3234 = vmatprep.subr.bf16.mxu0 %v3098
        %3235 = vmatpush1.bf16.msra.mxu0 %v3097
        %3236 = vmatprep.mubr.bf16.mxu0 %v2756
        %3237 = vmatmul.mubr.bf16.gmra.mrb[0].mxu0 %v2755
        %v3238 = vpop.f32.mrb[0].mxu0
        %v3239 = vadd.f32 %v2834, %v3238
        %v3240 = vpop.f32.mrb[0].mxu0
        %v3241 = vadd.f32 %v2838, %v3240
        %v3242 = vpop.f32.mrb[0].mxu0
        %v3243 = vpop.f32.mrb[0].mxu0
        %3244 = vdwg.mxu0
        %v3245 = vxor.u32 %v3198, 2147483648
        %v3246 = vmul.f32 %v3245, 1.442695
        %v3247 = vpow.pop %v3246
        %v3248 = vadd.f32 %v3247, 1.0
        %v3249 = vrcp.pop %v3248
        %v3250 = vmul.f32 1.0, %v3249
        %v3251 = vxor.u32 %v3200, 2147483648
        %v3252 = vmul.f32 %v3251, 1.442695
        %v3253 = vpow.pop %v3252
        %v3254 = vadd.f32 %v3253, 1.0
        %v3255 = vrcp.pop %v3254
        %v3256 = vmul.f32 1.0, %v3255
        %v3257 = vtanh.pop %v3239
        %v3258 = vxor.u32 %v3241, 2147483648
        %v3259 = vmul.f32 %v3258, 1.442695
        %v3260 = vpow.pop %v3259
        %v3261 = vadd.f32 %v3260, 1.0
        %v3262 = vrcp.pop %v3261
        %v3263 = vmul.f32 1.0, %v3262
        %v3264 = vmul.f32 %v3256, %v2750
        %v3265 = vmul.f32 %v3250, %v3257
        %v3266 = vadd.f32 %v3264, %v3265
        %v3267 = vtanh.pop %v3266
        %v3268 = vmul.f32 %v3263, %v3267
        %3269 = vst [vmem:[#allocation4] sm:$0xff] %v3268
        %3270 = vst [vmem:[#allocation5] sm:$0xff] %v3266
        %v3271 = vld [vmem:[%s1172] sm:$0xff]
        %v3272 = vld [vmem:[%s1174] sm:$0xff]
        %3273 = vst [vmem:[#allocation3] sm:$0xff] %v3268
        %3274 = vst [vmem:[#allocation3 + $0x8] sm:$0xff] %v3271
        %v3275 = vld [vmem:[#allocation3] sm:$0xff]
        %v3276 = vld [vmem:[#allocation3 + $0x8] sm:$0xff]
        %v3277 = vpack.c.bf16 %v3275, %v3275
        %v3278 = vpack.c.bf16 %v3276, %v3276
        %v3279 = vld [vmem:[%s1182] sm:$0xff]
        %v3280 = vld [vmem:[%s1182 + $0x8] sm:$0xff]
        %v3281 = vld [vmem:[%s1182 + $0x10] sm:$0xff]
        %v3282 = vld [vmem:[%s1182 + $0x18] sm:$0xff]
        %v3283 = vld [vmem:[%s1182 + $0x20] sm:$0xff]
        %v3284 = vld [vmem:[%s1182 + $0x28] sm:$0xff]
        %v3285 = vld [vmem:[%s1182 + $0x30] sm:$0xff]
        %v3286 = vld [vmem:[%s1182 + $0x38] sm:$0xff]
        %v3287 = vld [vmem:[%s1182 + $0x40] sm:$0xff]
        %v3288 = vld [vmem:[%s1182 + $0x48] sm:$0xff]
        %v3289 = vld [vmem:[%s1182 + $0x50] sm:$0xff]
        %v3290 = vld [vmem:[%s1182 + $0x58] sm:$0xff]
        %v3291 = vld [vmem:[%s1182 + $0x60] sm:$0xff]
        %v3292 = vld [vmem:[%s1182 + $0x68] sm:$0xff]
        %v3293 = vld [vmem:[%s1182 + $0x70] sm:$0xff]
        %v3294 = vld [vmem:[%s1182 + $0x78] sm:$0xff]
        %v3295 = vld [vmem:[%s1182 + $0x80] sm:$0xff]
        %v3296 = vld [vmem:[%s1182 + $0x88] sm:$0xff]
        %v3297 = vld [vmem:[%s1182 + $0x90] sm:$0xff]
        %v3298 = vld [vmem:[%s1182 + $0x98] sm:$0xff]
        %v3299 = vld [vmem:[%s1182 + $0xa0] sm:$0xff]
        %v3300 = vld [vmem:[%s1182 + $0xa8] sm:$0xff]
        %v3301 = vld [vmem:[%s1182 + $0xb0] sm:$0xff]
        %v3302 = vld [vmem:[%s1182 + $0xb8] sm:$0xff]
        %v3303 = vld [vmem:[%s1182 + $0xc0] sm:$0xff]
        %v3304 = vld [vmem:[%s1182 + $0xc8] sm:$0xff]
        %v3305 = vld [vmem:[%s1182 + $0xd0] sm:$0xff]
        %v3306 = vld [vmem:[%s1182 + $0xd8] sm:$0xff]
        %v3307 = vld [vmem:[%s1182 + $0xe0] sm:$0xff]
        %v3308 = vld [vmem:[%s1182 + $0xe8] sm:$0xff]
        %v3309 = vld [vmem:[%s1182 + $0xf0] sm:$0xff]
        %v3310 = vld [vmem:[%s1182 + $0xf8] sm:$0xff]
        %v3311 = vld [vmem:[%s1182 + $0x100] sm:$0xff]
        %v3312 = vld [vmem:[%s1182 + $0x108] sm:$0xff]
        %v3313 = vld [vmem:[%s1182 + $0x110] sm:$0xff]
        %v3314 = vld [vmem:[%s1182 + $0x118] sm:$0xff]
        %v3315 = vld [vmem:[%s1182 + $0x120] sm:$0xff]
        %v3316 = vld [vmem:[%s1182 + $0x128] sm:$0xff]
        %v3317 = vld [vmem:[%s1182 + $0x130] sm:$0xff]
        %v3318 = vld [vmem:[%s1182 + $0x138] sm:$0xff]
        %v3319 = vld [vmem:[%s1182 + $0x140] sm:$0xff]
        %v3320 = vld [vmem:[%s1182 + $0x148] sm:$0xff]
        %v3321 = vld [vmem:[%s1182 + $0x150] sm:$0xff]
        %v3322 = vld [vmem:[%s1182 + $0x158] sm:$0xff]
        %v3323 = vld [vmem:[%s1182 + $0x160] sm:$0xff]
        %v3324 = vld [vmem:[%s1182 + $0x168] sm:$0xff]
        %v3325 = vld [vmem:[%s1182 + $0x170] sm:$0xff]
        %v3326 = vld [vmem:[%s1182 + $0x178] sm:$0xff]
        %v3327 = vld [vmem:[%s1182 + $0x180] sm:$0xff]
        %v3328 = vld [vmem:[%s1182 + $0x188] sm:$0xff]
        %v3329 = vld [vmem:[%s1182 + $0x190] sm:$0xff]
        %v3330 = vld [vmem:[%s1182 + $0x198] sm:$0xff]
        %v3331 = vld [vmem:[%s1182 + $0x1a0] sm:$0xff]
        %v3332 = vld [vmem:[%s1182 + $0x1a8] sm:$0xff]
        %v3333 = vld [vmem:[%s1182 + $0x1b0] sm:$0xff]
        %v3334 = vld [vmem:[%s1182 + $0x1b8] sm:$0xff]
        %v3335 = vld [vmem:[%s1182 + $0x1c0] sm:$0xff]
        %v3336 = vld [vmem:[%s1182 + $0x1c8] sm:$0xff]
        %v3337 = vld [vmem:[%s1182 + $0x1d0] sm:$0xff]
        %v3338 = vld [vmem:[%s1182 + $0x1d8] sm:$0xff]
        %v3339 = vld [vmem:[%s1182 + $0x1e0] sm:$0xff]
        %v3340 = vld [vmem:[%s1182 + $0x1e8] sm:$0xff]
        %v3341 = vld [vmem:[%s1182 + $0x1f0] sm:$0xff]
        %v3342 = vld [vmem:[%s1182 + $0x1f8] sm:$0xff]
        %v3343 = vld [vmem:[%s1247] sm:$0xf]
        %v3345 = vlaneseq
        %v3346 = vshrl.u32 %v3345, 7
        %v3347 = vsub.s32 0, %v3346
        %v3348 = vrot.slane %v3343, %v3347
        %v3349 = vlaneseq
        %v3350 = vshrl.u32 %v3349, 7
        %v3351 = vsub.s32 1, %v3350
        %v3352 = vrot.slane %v3343, %v3351
        %v3353 = vlaneseq
        %v3354 = vshrl.u32 %v3353, 7
        %v3355 = vsub.s32 2, %v3354
        %v3356 = vrot.slane %v3343, %v3355
        %v3357 = vlaneseq
        %v3358 = vshrl.u32 %v3357, 7
        %v3359 = vsub.s32 3, %v3358
        %v3360 = vrot.slane %v3343, %v3359
        %v3429 = vunpack.c.l.b16 %v3279
        %v3430 = vunpack.c.h.b16 %v3279
        %v3431 = vunpack.c.l.b16 %v3280
        %v3432 = vunpack.c.h.b16 %v3280
        %v3433 = vunpack.c.l.b16 %v3281
        %v3434 = vunpack.c.h.b16 %v3281
        %v3435 = vunpack.c.l.b16 %v3282
        %v3436 = vunpack.c.h.b16 %v3282
        %v3437 = vunpack.c.l.b16 %v3283
        %v3438 = vunpack.c.h.b16 %v3283
        %v3439 = vunpack.c.l.b16 %v3284
        %v3440 = vunpack.c.h.b16 %v3284
        %v3441 = vunpack.c.l.b16 %v3285
        %v3442 = vunpack.c.h.b16 %v3285
        %v3443 = vunpack.c.l.b16 %v3286
        %v3444 = vunpack.c.h.b16 %v3286
        %v3445 = vunpack.c.l.b16 %v3287
        %v3446 = vunpack.c.h.b16 %v3287
        %v3447 = vunpack.c.l.b16 %v3288
        %v3448 = vunpack.c.h.b16 %v3288
        %v3449 = vunpack.c.l.b16 %v3289
        %v3450 = vunpack.c.h.b16 %v3289
        %v3451 = vunpack.c.l.b16 %v3290
        %v3452 = vunpack.c.h.b16 %v3290
        %v3453 = vunpack.c.l.b16 %v3291
        %v3454 = vunpack.c.h.b16 %v3291
        %v3455 = vunpack.c.l.b16 %v3292
        %v3456 = vunpack.c.h.b16 %v3292
        %v3457 = vunpack.c.l.b16 %v3293
        %v3458 = vunpack.c.h.b16 %v3293
        %v3459 = vunpack.c.l.b16 %v3294
        %v3460 = vunpack.c.h.b16 %v3294
        %v3461 = vunpack.c.l.b16 %v3295
        %v3462 = vunpack.c.h.b16 %v3295
        %v3463 = vunpack.c.l.b16 %v3296
        %v3464 = vunpack.c.h.b16 %v3296
        %v3465 = vunpack.c.l.b16 %v3297
        %v3466 = vunpack.c.h.b16 %v3297
        %v3467 = vunpack.c.l.b16 %v3298
        %v3468 = vunpack.c.h.b16 %v3298
        %v3469 = vunpack.c.l.b16 %v3299
        %v3470 = vunpack.c.h.b16 %v3299
        %v3471 = vunpack.c.l.b16 %v3300
        %v3472 = vunpack.c.h.b16 %v3300
        %v3473 = vunpack.c.l.b16 %v3301
        %v3474 = vunpack.c.h.b16 %v3301
        %v3475 = vunpack.c.l.b16 %v3302
        %v3476 = vunpack.c.h.b16 %v3302
        %v3477 = vunpack.c.l.b16 %v3303
        %v3478 = vunpack.c.h.b16 %v3303
        %v3479 = vunpack.c.l.b16 %v3304
        %v3480 = vunpack.c.h.b16 %v3304
        %v3481 = vunpack.c.l.b16 %v3305
        %v3482 = vunpack.c.h.b16 %v3305
        %v3483 = vunpack.c.l.b16 %v3306
        %v3484 = vunpack.c.h.b16 %v3306
        %v3485 = vunpack.c.l.b16 %v3307
        %v3486 = vunpack.c.h.b16 %v3307
        %v3487 = vunpack.c.l.b16 %v3308
        %v3488 = vunpack.c.h.b16 %v3308
        %v3489 = vunpack.c.l.b16 %v3309
        %v3490 = vunpack.c.h.b16 %v3309
        %v3491 = vunpack.c.l.b16 %v3310
        %v3492 = vunpack.c.h.b16 %v3310
        %v3493 = vunpack.c.l.b16 %v3311
        %v3494 = vunpack.c.h.b16 %v3311
        %v3495 = vunpack.c.l.b16 %v3312
        %v3496 = vunpack.c.h.b16 %v3312
        %v3497 = vunpack.c.l.b16 %v3313
        %v3498 = vunpack.c.h.b16 %v3313
        %v3499 = vunpack.c.l.b16 %v3314
        %v3500 = vunpack.c.h.b16 %v3314
        %v3501 = vunpack.c.l.b16 %v3315
        %v3502 = vunpack.c.h.b16 %v3315
        %v3503 = vunpack.c.l.b16 %v3316
        %v3504 = vunpack.c.h.b16 %v3316
        %v3505 = vunpack.c.l.b16 %v3317
        %v3506 = vunpack.c.h.b16 %v3317
        %v3507 = vunpack.c.l.b16 %v3318
        %v3508 = vunpack.c.h.b16 %v3318
        %v3509 = vunpack.c.l.b16 %v3319
        %v3510 = vunpack.c.h.b16 %v3319
        %v3511 = vunpack.c.l.b16 %v3320
        %v3512 = vunpack.c.h.b16 %v3320
        %v3513 = vunpack.c.l.b16 %v3321
        %v3514 = vunpack.c.h.b16 %v3321
        %v3515 = vunpack.c.l.b16 %v3322
        %v3516 = vunpack.c.h.b16 %v3322
        %v3517 = vunpack.c.l.b16 %v3323
        %v3518 = vunpack.c.h.b16 %v3323
        %v3519 = vunpack.c.l.b16 %v3324
        %v3520 = vunpack.c.h.b16 %v3324
        %v3521 = vunpack.c.l.b16 %v3325
        %v3522 = vunpack.c.h.b16 %v3325
        %v3523 = vunpack.c.l.b16 %v3326
        %v3524 = vunpack.c.h.b16 %v3326
        %v3525 = vunpack.c.l.b16 %v3327
        %v3526 = vunpack.c.h.b16 %v3327
        %v3527 = vunpack.c.l.b16 %v3328
        %v3528 = vunpack.c.h.b16 %v3328
        %v3529 = vunpack.c.l.b16 %v3329
        %v3530 = vunpack.c.h.b16 %v3329
        %v3531 = vunpack.c.l.b16 %v3330
        %v3532 = vunpack.c.h.b16 %v3330
        %v3533 = vunpack.c.l.b16 %v3331
        %v3534 = vunpack.c.h.b16 %v3331
        %v3535 = vunpack.c.l.b16 %v3332
        %v3536 = vunpack.c.h.b16 %v3332
        %v3537 = vunpack.c.l.b16 %v3333
        %v3538 = vunpack.c.h.b16 %v3333
        %v3539 = vunpack.c.l.b16 %v3334
        %v3540 = vunpack.c.h.b16 %v3334
        %v3541 = vunpack.c.l.b16 %v3335
        %v3542 = vunpack.c.h.b16 %v3335
        %v3543 = vunpack.c.l.b16 %v3336
        %v3544 = vunpack.c.h.b16 %v3336
        %v3545 = vunpack.c.l.b16 %v3337
        %v3546 = vunpack.c.h.b16 %v3337
        %v3547 = vunpack.c.l.b16 %v3338
        %v3548 = vunpack.c.h.b16 %v3338
        %v3549 = vunpack.c.l.b16 %v3339
        %v3550 = vunpack.c.h.b16 %v3339
        %v3551 = vunpack.c.l.b16 %v3340
        %v3552 = vunpack.c.h.b16 %v3340
        %v3553 = vunpack.c.l.b16 %v3341
        %v3554 = vunpack.c.h.b16 %v3341
        %v3555 = vunpack.c.l.b16 %v3342
        %v3556 = vunpack.c.h.b16 %v3342
        %v3557 = vpack.c.b16 %v3433, %v3429
        %v3558 = vpack.c.b16 %v3434, %v3430
        %v3559 = vpack.c.b16 %v3435, %v3431
        %v3560 = vpack.c.b16 %v3436, %v3432
        %v3561 = vpack.c.b16 %v3441, %v3437
        %v3562 = vpack.c.b16 %v3442, %v3438
        %v3563 = vpack.c.b16 %v3443, %v3439
        %v3564 = vpack.c.b16 %v3444, %v3440
        %v3565 = vpack.c.b16 %v3449, %v3445
        %v3566 = vpack.c.b16 %v3450, %v3446
        %v3567 = vpack.c.b16 %v3451, %v3447
        %v3568 = vpack.c.b16 %v3452, %v3448
        %v3569 = vpack.c.b16 %v3457, %v3453
        %v3570 = vpack.c.b16 %v3458, %v3454
        %v3571 = vpack.c.b16 %v3459, %v3455
        %v3572 = vpack.c.b16 %v3460, %v3456
        %v3573 = vpack.c.b16 %v3465, %v3461
        %v3574 = vpack.c.b16 %v3466, %v3462
        %v3575 = vpack.c.b16 %v3467, %v3463
        %v3576 = vpack.c.b16 %v3468, %v3464
        %v3577 = vpack.c.b16 %v3473, %v3469
        %v3578 = vpack.c.b16 %v3474, %v3470
        %v3579 = vpack.c.b16 %v3475, %v3471
        %v3580 = vpack.c.b16 %v3476, %v3472
        %v3581 = vpack.c.b16 %v3481, %v3477
        %v3582 = vpack.c.b16 %v3482, %v3478
        %v3583 = vpack.c.b16 %v3483, %v3479
        %v3584 = vpack.c.b16 %v3484, %v3480
        %v3585 = vpack.c.b16 %v3489, %v3485
        %v3586 = vpack.c.b16 %v3490, %v3486
        %v3587 = vpack.c.b16 %v3491, %v3487
        %v3588 = vpack.c.b16 %v3492, %v3488
        %v3589 = vpack.c.b16 %v3497, %v3493
        %v3590 = vpack.c.b16 %v3498, %v3494
        %v3591 = vpack.c.b16 %v3499, %v3495
        %v3592 = vpack.c.b16 %v3500, %v3496
        %v3593 = vpack.c.b16 %v3505, %v3501
        %v3594 = vpack.c.b16 %v3506, %v3502
        %v3595 = vpack.c.b16 %v3507, %v3503
        %v3596 = vpack.c.b16 %v3508, %v3504
        %v3597 = vpack.c.b16 %v3513, %v3509
        %v3598 = vpack.c.b16 %v3514, %v3510
        %v3599 = vpack.c.b16 %v3515, %v3511
        %v3600 = vpack.c.b16 %v3516, %v3512
        %v3601 = vpack.c.b16 %v3521, %v3517
        %v3602 = vpack.c.b16 %v3522, %v3518
        %v3603 = vpack.c.b16 %v3523, %v3519
        %v3604 = vpack.c.b16 %v3524, %v3520
        %v3605 = vpack.c.b16 %v3529, %v3525
        %v3606 = vpack.c.b16 %v3530, %v3526
        %v3607 = vpack.c.b16 %v3531, %v3527
        %v3608 = vpack.c.b16 %v3532, %v3528
        %v3609 = vpack.c.b16 %v3537, %v3533
        %v3610 = vpack.c.b16 %v3538, %v3534
        %v3611 = vpack.c.b16 %v3539, %v3535
        %v3612 = vpack.c.b16 %v3540, %v3536
        %v3613 = vpack.c.b16 %v3545, %v3541
        %v3614 = vpack.c.b16 %v3546, %v3542
        %v3615 = vpack.c.b16 %v3547, %v3543
        %v3616 = vpack.c.b16 %v3548, %v3544
        %v3617 = vpack.c.b16 %v3553, %v3549
        %v3618 = vpack.c.b16 %v3554, %v3550
        %v3619 = vpack.c.b16 %v3555, %v3551
        %v3620 = vpack.c.b16 %v3556, %v3552
        %3685 = vmatprep.subr.bf16.mxu0 %v3558
        %3686 = vmatpush1.bf16.msra.mxu0 %v3557
        %3687 = vmatprep.subr.bf16.mxu0 %v3562
        %3688 = vmatpush1.bf16.msra.mxu0 %v3561
        %3689 = vmatprep.subr.bf16.mxu0 %v3566
        %3690 = vmatpush1.bf16.msra.mxu0 %v3565
        %3691 = vmatprep.subr.bf16.mxu0 %v3570
        %3692 = vmatpush1.bf16.msra.mxu0 %v3569
        %3693 = vmatprep.subr.bf16.mxu0 %v3574
        %3694 = vmatpush1.bf16.msra.mxu0 %v3573
        %3695 = vmatprep.subr.bf16.mxu0 %v3578
        %3696 = vmatpush1.bf16.msra.mxu0 %v3577
        %3697 = vmatprep.subr.bf16.mxu0 %v3582
        %3698 = vmatpush1.bf16.msra.mxu0 %v3581
        %3699 = vmatprep.subr.bf16.mxu0 %v3586
        %3700 = vmatpush1.bf16.msra.mxu0 %v3585
        %3701 = vmatprep.subr.bf16.mxu0 %v3590
        %3702 = vmatpush1.bf16.msra.mxu0 %v3589
        %3703 = vmatprep.subr.bf16.mxu0 %v3594
        %3704 = vmatpush1.bf16.msra.mxu0 %v3593
        %3705 = vmatprep.subr.bf16.mxu0 %v3598
        %3706 = vmatpush1.bf16.msra.mxu0 %v3597
        %3707 = vmatprep.subr.bf16.mxu0 %v3602
        %3708 = vmatpush1.bf16.msra.mxu0 %v3601
        %3709 = vmatprep.subr.bf16.mxu0 %v3606
        %3710 = vmatpush1.bf16.msra.mxu0 %v3605
        %3711 = vmatprep.subr.bf16.mxu0 %v3610
        %3712 = vmatpush1.bf16.msra.mxu0 %v3609
        %3713 = vmatprep.subr.bf16.mxu0 %v3614
        %3714 = vmatpush1.bf16.msra.mxu0 %v3613
        %3715 = vmatprep.subr.bf16.mxu0 %v3618
        %3716 = vmatpush1.bf16.msra.mxu0 %v3617
        %3717 = vmatprep.mubr.bf16.mxu0 %v3278
        %3718 = vmatmul.mubr.bf16.gmra.mrb[0].mxu0 %v3277
        %v3719 = vpop.f32.mrb[0].mxu0
        %v3720 = vadd.f32 %v3348, %v3719
        %v3721 = vpop.f32.mrb[0].mxu0
        %v3722 = vadd.f32 %v3352, %v3721
        %v3723 = vpop.f32.mrb[0].mxu0
        %v3724 = vpop.f32.mrb[0].mxu0
        %3725 = vdwg.mxu0
        %3726 = vmatprep.subr.bf16.mxu0 %v3560
        %3727 = vmatpush1.bf16.msra.mxu0 %v3559
        %3728 = vmatprep.subr.bf16.mxu0 %v3564
        %3729 = vmatpush1.bf16.msra.mxu0 %v3563
        %3730 = vmatprep.subr.bf16.mxu0 %v3568
        %3731 = vmatpush1.bf16.msra.mxu0 %v3567
        %3732 = vmatprep.subr.bf16.mxu0 %v3572
        %3733 = vmatpush1.bf16.msra.mxu0 %v3571
        %3734 = vmatprep.subr.bf16.mxu0 %v3576
        %3735 = vmatpush1.bf16.msra.mxu0 %v3575
        %3736 = vmatprep.subr.bf16.mxu0 %v3580
        %3737 = vmatpush1.bf16.msra.mxu0 %v3579
        %3738 = vmatprep.subr.bf16.mxu0 %v3584
        %3739 = vmatpush1.bf16.msra.mxu0 %v3583
        %3740 = vmatprep.subr.bf16.mxu0 %v3588
        %3741 = vmatpush1.bf16.msra.mxu0 %v3587
        %3742 = vmatprep.subr.bf16.mxu0 %v3592
        %3743 = vmatpush1.bf16.msra.mxu0 %v3591
        %3744 = vmatprep.subr.bf16.mxu0 %v3596
        %3745 = vmatpush1.bf16.msra.mxu0 %v3595
        %3746 = vmatprep.subr.bf16.mxu0 %v3600
        %3747 = vmatpush1.bf16.msra.mxu0 %v3599
        %3748 = vmatprep.subr.bf16.mxu0 %v3604
        %3749 = vmatpush1.bf16.msra.mxu0 %v3603
        %3750 = vmatprep.subr.bf16.mxu0 %v3608
        %3751 = vmatpush1.bf16.msra.mxu0 %v3607
        %3752 = vmatprep.subr.bf16.mxu0 %v3612
        %3753 = vmatpush1.bf16.msra.mxu0 %v3611
        %3754 = vmatprep.subr.bf16.mxu0 %v3616
        %3755 = vmatpush1.bf16.msra.mxu0 %v3615
        %3756 = vmatprep.subr.bf16.mxu0 %v3620
        %3757 = vmatpush1.bf16.msra.mxu0 %v3619
        %3758 = vmatprep.mubr.bf16.mxu0 %v3278
        %3759 = vmatmul.mubr.bf16.gmra.mrb[0].mxu0 %v3277
        %v3760 = vpop.f32.mrb[0].mxu0
        %v3761 = vadd.f32 %v3356, %v3760
        %v3762 = vpop.f32.mrb[0].mxu0
        %v3763 = vadd.f32 %v3360, %v3762
        %v3764 = vpop.f32.mrb[0].mxu0
        %v3765 = vpop.f32.mrb[0].mxu0
        %3766 = vdwg.mxu0
        %v3767 = vxor.u32 %v3720, 2147483648
        %v3768 = vmul.f32 %v3767, 1.442695
        %v3769 = vpow.pop %v3768
        %v3770 = vadd.f32 %v3769, 1.0
        %v3771 = vrcp.pop %v3770
        %v3772 = vmul.f32 1.0, %v3771
        %v3773 = vxor.u32 %v3722, 2147483648
        %v3774 = vmul.f32 %v3773, 1.442695
        %v3775 = vpow.pop %v3774
        %v3776 = vadd.f32 %v3775, 1.0
        %v3777 = vrcp.pop %v3776
        %v3778 = vmul.f32 1.0, %v3777
        %v3779 = vtanh.pop %v3761
        %v3780 = vxor.u32 %v3763, 2147483648
        %v3781 = vmul.f32 %v3780, 1.442695
        %v3782 = vpow.pop %v3781
        %v3783 = vadd.f32 %v3782, 1.0
        %v3784 = vrcp.pop %v3783
        %v3785 = vmul.f32 1.0, %v3784
        %v3786 = vmul.f32 %v3778, %v3272
        %v3787 = vmul.f32 %v3772, %v3779
        %v3788 = vadd.f32 %v3786, %v3787
        %v3789 = vtanh.pop %v3788
        %v3790 = vmul.f32 %v3785, %v3789
        %3791 = vst [vmem:[%s1172] sm:$0xff] %v3790
        %3792 = vst [vmem:[%s1174] sm:$0xff] %v3788
        %s3793 = scalar_lea.vmem [#allocation6], 16
        %3794 = vst [vmem:[%s3793] sm:$0xff] %v3790
        %s3795 = scalar_lea.vmem [#allocation2], 24
        %v3796 = vld [vmem:[%s3795] sm:$0xff]
        %v3797 = vld [vmem:[#allocation4] sm:$0xff]
        %v3798 = vld [vmem:[#allocation5] sm:$0xff]
        %3799 = vst [vmem:[#allocation3] sm:$0xff] %v3796
        %3800 = vst [vmem:[#allocation3 + $0x8] sm:$0xff] %v3797
        %v3801 = vld [vmem:[#allocation3] sm:$0xff]
        %v3802 = vld [vmem:[#allocation3 + $0x8] sm:$0xff]
        %v3803 = vpack.c.bf16 %v3801, %v3801
        %v3804 = vpack.c.bf16 %v3802, %v3802
        %v3805 = vld [vmem:[#allocation7] sm:$0xff]
        %v3806 = vld [vmem:[#allocation7 + $0x8] sm:$0xff]
        %v3807 = vld [vmem:[#allocation7 + $0x10] sm:$0xff]
        %v3808 = vld [vmem:[#allocation7 + $0x18] sm:$0xff]
        %v3809 = vld [vmem:[#allocation7 + $0x20] sm:$0xff]
        %v3810 = vld [vmem:[#allocation7 + $0x28] sm:$0xff]
        %v3811 = vld [vmem:[#allocation7 + $0x30] sm:$0xff]
        %v3812 = vld [vmem:[#allocation7 + $0x38] sm:$0xff]
        %v3813 = vld [vmem:[#allocation7 + $0x40] sm:$0xff]
        %v3814 = vld [vmem:[#allocation7 + $0x48] sm:$0xff]
        %v3815 = vld [vmem:[#allocation7 + $0x50] sm:$0xff]
        %v3816 = vld [vmem:[#allocation7 + $0x58] sm:$0xff]
        %v3817 = vld [vmem:[#allocation7 + $0x60] sm:$0xff]
        %v3818 = vld [vmem:[#allocation7 + $0x68] sm:$0xff]
        %v3819 = vld [vmem:[#allocation7 + $0x70] sm:$0xff]
        %v3820 = vld [vmem:[#allocation7 + $0x78] sm:$0xff]
        %v3821 = vld [vmem:[#allocation7 + $0x80] sm:$0xff]
        %v3822 = vld [vmem:[#allocation7 + $0x88] sm:$0xff]
        %v3823 = vld [vmem:[#allocation7 + $0x90] sm:$0xff]
        %v3824 = vld [vmem:[#allocation7 + $0x98] sm:$0xff]
        %v3825 = vld [vmem:[#allocation7 + $0xa0] sm:$0xff]
        %v3826 = vld [vmem:[#allocation7 + $0xa8] sm:$0xff]
        %v3827 = vld [vmem:[#allocation7 + $0xb0] sm:$0xff]
        %v3828 = vld [vmem:[#allocation7 + $0xb8] sm:$0xff]
        %v3829 = vld [vmem:[#allocation7 + $0xc0] sm:$0xff]
        %v3830 = vld [vmem:[#allocation7 + $0xc8] sm:$0xff]
        %v3831 = vld [vmem:[#allocation7 + $0xd0] sm:$0xff]
        %v3832 = vld [vmem:[#allocation7 + $0xd8] sm:$0xff]
        %v3833 = vld [vmem:[#allocation7 + $0xe0] sm:$0xff]
        %v3834 = vld [vmem:[#allocation7 + $0xe8] sm:$0xff]
        %v3835 = vld [vmem:[#allocation7 + $0xf0] sm:$0xff]
        %v3836 = vld [vmem:[#allocation7 + $0xf8] sm:$0xff]
        %v3837 = vld [vmem:[#allocation7 + $0x100] sm:$0xff]
        %v3838 = vld [vmem:[#allocation7 + $0x108] sm:$0xff]
        %v3839 = vld [vmem:[#allocation7 + $0x110] sm:$0xff]
        %v3840 = vld [vmem:[#allocation7 + $0x118] sm:$0xff]
        %v3841 = vld [vmem:[#allocation7 + $0x120] sm:$0xff]
        %v3842 = vld [vmem:[#allocation7 + $0x128] sm:$0xff]
        %v3843 = vld [vmem:[#allocation7 + $0x130] sm:$0xff]
        %v3844 = vld [vmem:[#allocation7 + $0x138] sm:$0xff]
        %v3845 = vld [vmem:[#allocation7 + $0x140] sm:$0xff]
        %v3846 = vld [vmem:[#allocation7 + $0x148] sm:$0xff]
        %v3847 = vld [vmem:[#allocation7 + $0x150] sm:$0xff]
        %v3848 = vld [vmem:[#allocation7 + $0x158] sm:$0xff]
        %v3849 = vld [vmem:[#allocation7 + $0x160] sm:$0xff]
        %v3850 = vld [vmem:[#allocation7 + $0x168] sm:$0xff]
        %v3851 = vld [vmem:[#allocation7 + $0x170] sm:$0xff]
        %v3852 = vld [vmem:[#allocation7 + $0x178] sm:$0xff]
        %v3853 = vld [vmem:[#allocation7 + $0x180] sm:$0xff]
        %v3854 = vld [vmem:[#allocation7 + $0x188] sm:$0xff]
        %v3855 = vld [vmem:[#allocation7 + $0x190] sm:$0xff]
        %v3856 = vld [vmem:[#allocation7 + $0x198] sm:$0xff]
        %v3857 = vld [vmem:[#allocation7 + $0x1a0] sm:$0xff]
        %v3858 = vld [vmem:[#allocation7 + $0x1a8] sm:$0xff]
        %v3859 = vld [vmem:[#allocation7 + $0x1b0] sm:$0xff]
        %v3860 = vld [vmem:[#allocation7 + $0x1b8] sm:$0xff]
        %v3861 = vld [vmem:[#allocation7 + $0x1c0] sm:$0xff]
        %v3862 = vld [vmem:[#allocation7 + $0x1c8] sm:$0xff]
        %v3863 = vld [vmem:[#allocation7 + $0x1d0] sm:$0xff]
        %v3864 = vld [vmem:[#allocation7 + $0x1d8] sm:$0xff]
        %v3865 = vld [vmem:[#allocation7 + $0x1e0] sm:$0xff]
        %v3866 = vld [vmem:[#allocation7 + $0x1e8] sm:$0xff]
        %v3867 = vld [vmem:[#allocation7 + $0x1f0] sm:$0xff]
        %v3868 = vld [vmem:[#allocation7 + $0x1f8] sm:$0xff]
        %v3869 = vld [vmem:[%s5] sm:$0xf]
        %v3871 = vlaneseq
        %v3872 = vshrl.u32 %v3871, 7
        %v3873 = vsub.s32 0, %v3872
        %v3874 = vrot.slane %v3869, %v3873
        %v3875 = vlaneseq
        %v3876 = vshrl.u32 %v3875, 7
        %v3877 = vsub.s32 1, %v3876
        %v3878 = vrot.slane %v3869, %v3877
        %v3879 = vlaneseq
        %v3880 = vshrl.u32 %v3879, 7
        %v3881 = vsub.s32 2, %v3880
        %v3882 = vrot.slane %v3869, %v3881
        %v3883 = vlaneseq
        %v3884 = vshrl.u32 %v3883, 7
        %v3885 = vsub.s32 3, %v3884
        %v3886 = vrot.slane %v3869, %v3885
        %v3955 = vunpack.c.l.b16 %v3805
        %v3956 = vunpack.c.h.b16 %v3805
        %v3957 = vunpack.c.l.b16 %v3806
        %v3958 = vunpack.c.h.b16 %v3806
        %v3959 = vunpack.c.l.b16 %v3807
        %v3960 = vunpack.c.h.b16 %v3807
        %v3961 = vunpack.c.l.b16 %v3808
        %v3962 = vunpack.c.h.b16 %v3808
        %v3963 = vunpack.c.l.b16 %v3809
        %v3964 = vunpack.c.h.b16 %v3809
        %v3965 = vunpack.c.l.b16 %v3810
        %v3966 = vunpack.c.h.b16 %v3810
        %v3967 = vunpack.c.l.b16 %v3811
        %v3968 = vunpack.c.h.b16 %v3811
        %v3969 = vunpack.c.l.b16 %v3812
        %v3970 = vunpack.c.h.b16 %v3812
        %v3971 = vunpack.c.l.b16 %v3813
        %v3972 = vunpack.c.h.b16 %v3813
        %v3973 = vunpack.c.l.b16 %v3814
        %v3974 = vunpack.c.h.b16 %v3814
        %v3975 = vunpack.c.l.b16 %v3815
        %v3976 = vunpack.c.h.b16 %v3815
        %v3977 = vunpack.c.l.b16 %v3816
        %v3978 = vunpack.c.h.b16 %v3816
        %v3979 = vunpack.c.l.b16 %v3817
        %v3980 = vunpack.c.h.b16 %v3817
        %v3981 = vunpack.c.l.b16 %v3818
        %v3982 = vunpack.c.h.b16 %v3818
        %v3983 = vunpack.c.l.b16 %v3819
        %v3984 = vunpack.c.h.b16 %v3819
        %v3985 = vunpack.c.l.b16 %v3820
        %v3986 = vunpack.c.h.b16 %v3820
        %v3987 = vunpack.c.l.b16 %v3821
        %v3988 = vunpack.c.h.b16 %v3821
        %v3989 = vunpack.c.l.b16 %v3822
        %v3990 = vunpack.c.h.b16 %v3822
        %v3991 = vunpack.c.l.b16 %v3823
        %v3992 = vunpack.c.h.b16 %v3823
        %v3993 = vunpack.c.l.b16 %v3824
        %v3994 = vunpack.c.h.b16 %v3824
        %v3995 = vunpack.c.l.b16 %v3825
        %v3996 = vunpack.c.h.b16 %v3825
        %v3997 = vunpack.c.l.b16 %v3826
        %v3998 = vunpack.c.h.b16 %v3826
        %v3999 = vunpack.c.l.b16 %v3827
        %v4000 = vunpack.c.h.b16 %v3827
        %v4001 = vunpack.c.l.b16 %v3828
        %v4002 = vunpack.c.h.b16 %v3828
        %v4003 = vunpack.c.l.b16 %v3829
        %v4004 = vunpack.c.h.b16 %v3829
        %v4005 = vunpack.c.l.b16 %v3830
        %v4006 = vunpack.c.h.b16 %v3830
        %v4007 = vunpack.c.l.b16 %v3831
        %v4008 = vunpack.c.h.b16 %v3831
        %v4009 = vunpack.c.l.b16 %v3832
        %v4010 = vunpack.c.h.b16 %v3832
        %v4011 = vunpack.c.l.b16 %v3833
        %v4012 = vunpack.c.h.b16 %v3833
        %v4013 = vunpack.c.l.b16 %v3834
        %v4014 = vunpack.c.h.b16 %v3834
        %v4015 = vunpack.c.l.b16 %v3835
        %v4016 = vunpack.c.h.b16 %v3835
        %v4017 = vunpack.c.l.b16 %v3836
        %v4018 = vunpack.c.h.b16 %v3836
        %v4019 = vunpack.c.l.b16 %v3837
        %v4020 = vunpack.c.h.b16 %v3837
        %v4021 = vunpack.c.l.b16 %v3838
        %v4022 = vunpack.c.h.b16 %v3838
        %v4023 = vunpack.c.l.b16 %v3839
        %v4024 = vunpack.c.h.b16 %v3839
        %v4025 = vunpack.c.l.b16 %v3840
        %v4026 = vunpack.c.h.b16 %v3840
        %v4027 = vunpack.c.l.b16 %v3841
        %v4028 = vunpack.c.h.b16 %v3841
        %v4029 = vunpack.c.l.b16 %v3842
        %v4030 = vunpack.c.h.b16 %v3842
        %v4031 = vunpack.c.l.b16 %v3843
        %v4032 = vunpack.c.h.b16 %v3843
        %v4033 = vunpack.c.l.b16 %v3844
        %v4034 = vunpack.c.h.b16 %v3844
        %v4035 = vunpack.c.l.b16 %v3845
        %v4036 = vunpack.c.h.b16 %v3845
        %v4037 = vunpack.c.l.b16 %v3846
        %v4038 = vunpack.c.h.b16 %v3846
        %v4039 = vunpack.c.l.b16 %v3847
        %v4040 = vunpack.c.h.b16 %v3847
        %v4041 = vunpack.c.l.b16 %v3848
        %v4042 = vunpack.c.h.b16 %v3848
        %v4043 = vunpack.c.l.b16 %v3849
        %v4044 = vunpack.c.h.b16 %v3849
        %v4045 = vunpack.c.l.b16 %v3850
        %v4046 = vunpack.c.h.b16 %v3850
        %v4047 = vunpack.c.l.b16 %v3851
        %v4048 = vunpack.c.h.b16 %v3851
        %v4049 = vunpack.c.l.b16 %v3852
        %v4050 = vunpack.c.h.b16 %v3852
        %v4051 = vunpack.c.l.b16 %v3853
        %v4052 = vunpack.c.h.b16 %v3853
        %v4053 = vunpack.c.l.b16 %v3854
        %v4054 = vunpack.c.h.b16 %v3854
        %v4055 = vunpack.c.l.b16 %v3855
        %v4056 = vunpack.c.h.b16 %v3855
        %v4057 = vunpack.c.l.b16 %v3856
        %v4058 = vunpack.c.h.b16 %v3856
        %v4059 = vunpack.c.l.b16 %v3857
        %v4060 = vunpack.c.h.b16 %v3857
        %v4061 = vunpack.c.l.b16 %v3858
        %v4062 = vunpack.c.h.b16 %v3858
        %v4063 = vunpack.c.l.b16 %v3859
        %v4064 = vunpack.c.h.b16 %v3859
        %v4065 = vunpack.c.l.b16 %v3860
        %v4066 = vunpack.c.h.b16 %v3860
        %v4067 = vunpack.c.l.b16 %v3861
        %v4068 = vunpack.c.h.b16 %v3861
        %v4069 = vunpack.c.l.b16 %v3862
        %v4070 = vunpack.c.h.b16 %v3862
        %v4071 = vunpack.c.l.b16 %v3863
        %v4072 = vunpack.c.h.b16 %v3863
        %v4073 = vunpack.c.l.b16 %v3864
        %v4074 = vunpack.c.h.b16 %v3864
        %v4075 = vunpack.c.l.b16 %v3865
        %v4076 = vunpack.c.h.b16 %v3865
        %v4077 = vunpack.c.l.b16 %v3866
        %v4078 = vunpack.c.h.b16 %v3866
        %v4079 = vunpack.c.l.b16 %v3867
        %v4080 = vunpack.c.h.b16 %v3867
        %v4081 = vunpack.c.l.b16 %v3868
        %v4082 = vunpack.c.h.b16 %v3868
        %v4083 = vpack.c.b16 %v3959, %v3955
        %v4084 = vpack.c.b16 %v3960, %v3956
        %v4085 = vpack.c.b16 %v3961, %v3957
        %v4086 = vpack.c.b16 %v3962, %v3958
        %v4087 = vpack.c.b16 %v3967, %v3963
        %v4088 = vpack.c.b16 %v3968, %v3964
        %v4089 = vpack.c.b16 %v3969, %v3965
        %v4090 = vpack.c.b16 %v3970, %v3966
        %v4091 = vpack.c.b16 %v3975, %v3971
        %v4092 = vpack.c.b16 %v3976, %v3972
        %v4093 = vpack.c.b16 %v3977, %v3973
        %v4094 = vpack.c.b16 %v3978, %v3974
        %v4095 = vpack.c.b16 %v3983, %v3979
        %v4096 = vpack.c.b16 %v3984, %v3980
        %v4097 = vpack.c.b16 %v3985, %v3981
        %v4098 = vpack.c.b16 %v3986, %v3982
        %v4099 = vpack.c.b16 %v3991, %v3987
        %v4100 = vpack.c.b16 %v3992, %v3988
        %v4101 = vpack.c.b16 %v3993, %v3989
        %v4102 = vpack.c.b16 %v3994, %v3990
        %v4103 = vpack.c.b16 %v3999, %v3995
        %v4104 = vpack.c.b16 %v4000, %v3996
        %v4105 = vpack.c.b16 %v4001, %v3997
        %v4106 = vpack.c.b16 %v4002, %v3998
        %v4107 = vpack.c.b16 %v4007, %v4003
        %v4108 = vpack.c.b16 %v4008, %v4004
        %v4109 = vpack.c.b16 %v4009, %v4005
        %v4110 = vpack.c.b16 %v4010, %v4006
        %v4111 = vpack.c.b16 %v4015, %v4011
        %v4112 = vpack.c.b16 %v4016, %v4012
        %v4113 = vpack.c.b16 %v4017, %v4013
        %v4114 = vpack.c.b16 %v4018, %v4014
        %v4115 = vpack.c.b16 %v4023, %v4019
        %v4116 = vpack.c.b16 %v4024, %v4020
        %v4117 = vpack.c.b16 %v4025, %v4021
        %v4118 = vpack.c.b16 %v4026, %v4022
        %v4119 = vpack.c.b16 %v4031, %v4027
        %v4120 = vpack.c.b16 %v4032, %v4028
        %v4121 = vpack.c.b16 %v4033, %v4029
        %v4122 = vpack.c.b16 %v4034, %v4030
        %v4123 = vpack.c.b16 %v4039, %v4035
        %v4124 = vpack.c.b16 %v4040, %v4036
        %v4125 = vpack.c.b16 %v4041, %v4037
        %v4126 = vpack.c.b16 %v4042, %v4038
        %v4127 = vpack.c.b16 %v4047, %v4043
        %v4128 = vpack.c.b16 %v4048, %v4044
        %v4129 = vpack.c.b16 %v4049, %v4045
        %v4130 = vpack.c.b16 %v4050, %v4046
        %v4131 = vpack.c.b16 %v4055, %v4051
        %v4132 = vpack.c.b16 %v4056, %v4052
        %v4133 = vpack.c.b16 %v4057, %v4053
        %v4134 = vpack.c.b16 %v4058, %v4054
        %v4135 = vpack.c.b16 %v4063, %v4059
        %v4136 = vpack.c.b16 %v4064, %v4060
        %v4137 = vpack.c.b16 %v4065, %v4061
        %v4138 = vpack.c.b16 %v4066, %v4062
        %v4139 = vpack.c.b16 %v4071, %v4067
        %v4140 = vpack.c.b16 %v4072, %v4068
        %v4141 = vpack.c.b16 %v4073, %v4069
        %v4142 = vpack.c.b16 %v4074, %v4070
        %v4143 = vpack.c.b16 %v4079, %v4075
        %v4144 = vpack.c.b16 %v4080, %v4076
        %v4145 = vpack.c.b16 %v4081, %v4077
        %v4146 = vpack.c.b16 %v4082, %v4078
        %4211 = vmatprep.subr.bf16.mxu0 %v4084
        %4212 = vmatpush1.bf16.msra.mxu0 %v4083
        %4213 = vmatprep.subr.bf16.mxu0 %v4088
        %4214 = vmatpush1.bf16.msra.mxu0 %v4087
        %4215 = vmatprep.subr.bf16.mxu0 %v4092
        %4216 = vmatpush1.bf16.msra.mxu0 %v4091
        %4217 = vmatprep.subr.bf16.mxu0 %v4096
        %4218 = vmatpush1.bf16.msra.mxu0 %v4095
        %4219 = vmatprep.subr.bf16.mxu0 %v4100
        %4220 = vmatpush1.bf16.msra.mxu0 %v4099
        %4221 = vmatprep.subr.bf16.mxu0 %v4104
        %4222 = vmatpush1.bf16.msra.mxu0 %v4103
        %4223 = vmatprep.subr.bf16.mxu0 %v4108
        %4224 = vmatpush1.bf16.msra.mxu0 %v4107
        %4225 = vmatprep.subr.bf16.mxu0 %v4112
        %4226 = vmatpush1.bf16.msra.mxu0 %v4111
        %4227 = vmatprep.subr.bf16.mxu0 %v4116
        %4228 = vmatpush1.bf16.msra.mxu0 %v4115
        %4229 = vmatprep.subr.bf16.mxu0 %v4120
        %4230 = vmatpush1.bf16.msra.mxu0 %v4119
        %4231 = vmatprep.subr.bf16.mxu0 %v4124
        %4232 = vmatpush1.bf16.msra.mxu0 %v4123
        %4233 = vmatprep.subr.bf16.mxu0 %v4128
        %4234 = vmatpush1.bf16.msra.mxu0 %v4127
        %4235 = vmatprep.subr.bf16.mxu0 %v4132
        %4236 = vmatpush1.bf16.msra.mxu0 %v4131
        %4237 = vmatprep.subr.bf16.mxu0 %v4136
        %4238 = vmatpush1.bf16.msra.mxu0 %v4135
        %4239 = vmatprep.subr.bf16.mxu0 %v4140
        %4240 = vmatpush1.bf16.msra.mxu0 %v4139
        %4241 = vmatprep.subr.bf16.mxu0 %v4144
        %4242 = vmatpush1.bf16.msra.mxu0 %v4143
        %4243 = vmatprep.mubr.bf16.mxu0 %v3804
        %4244 = vmatmul.mubr.bf16.gmra.mrb[0].mxu0 %v3803
        %v4245 = vpop.f32.mrb[0].mxu0
        %v4246 = vadd.f32 %v3874, %v4245
        %v4247 = vpop.f32.mrb[0].mxu0
        %v4248 = vadd.f32 %v3878, %v4247
        %v4249 = vpop.f32.mrb[0].mxu0
        %v4250 = vpop.f32.mrb[0].mxu0
        %4251 = vdwg.mxu0
        %4252 = vmatprep.subr.bf16.mxu0 %v4086
        %4253 = vmatpush1.bf16.msra.mxu0 %v4085
        %4254 = vmatprep.subr.bf16.mxu0 %v4090
        %4255 = vmatpush1.bf16.msra.mxu0 %v4089
        %4256 = vmatprep.subr.bf16.mxu0 %v4094
        %4257 = vmatpush1.bf16.msra.mxu0 %v4093
        %4258 = vmatprep.subr.bf16.mxu0 %v4098
        %4259 = vmatpush1.bf16.msra.mxu0 %v4097
        %4260 = vmatprep.subr.bf16.mxu0 %v4102
        %4261 = vmatpush1.bf16.msra.mxu0 %v4101
        %4262 = vmatprep.subr.bf16.mxu0 %v4106
        %4263 = vmatpush1.bf16.msra.mxu0 %v4105
        %4264 = vmatprep.subr.bf16.mxu0 %v4110
        %4265 = vmatpush1.bf16.msra.mxu0 %v4109
        %4266 = vmatprep.subr.bf16.mxu0 %v4114
        %4267 = vmatpush1.bf16.msra.mxu0 %v4113
        %4268 = vmatprep.subr.bf16.mxu0 %v4118
        %4269 = vmatpush1.bf16.msra.mxu0 %v4117
        %4270 = vmatprep.subr.bf16.mxu0 %v4122
        %4271 = vmatpush1.bf16.msra.mxu0 %v4121
        %4272 = vmatprep.subr.bf16.mxu0 %v4126
        %4273 = vmatpush1.bf16.msra.mxu0 %v4125
        %4274 = vmatprep.subr.bf16.mxu0 %v4130
        %4275 = vmatpush1.bf16.msra.mxu0 %v4129
        %4276 = vmatprep.subr.bf16.mxu0 %v4134
        %4277 = vmatpush1.bf16.msra.mxu0 %v4133
        %4278 = vmatprep.subr.bf16.mxu0 %v4138
        %4279 = vmatpush1.bf16.msra.mxu0 %v4137
        %4280 = vmatprep.subr.bf16.mxu0 %v4142
        %4281 = vmatpush1.bf16.msra.mxu0 %v4141
        %4282 = vmatprep.subr.bf16.mxu0 %v4146
        %4283 = vmatpush1.bf16.msra.mxu0 %v4145
        %4284 = vmatprep.mubr.bf16.mxu0 %v3804
        %4285 = vmatmul.mubr.bf16.gmra.mrb[0].mxu0 %v3803
        %v4286 = vpop.f32.mrb[0].mxu0
        %v4287 = vadd.f32 %v3882, %v4286
        %v4288 = vpop.f32.mrb[0].mxu0
        %v4289 = vadd.f32 %v3886, %v4288
        %v4290 = vpop.f32.mrb[0].mxu0
        %v4291 = vpop.f32.mrb[0].mxu0
        %4292 = vdwg.mxu0
        %v4293 = vxor.u32 %v4246, 2147483648
        %v4294 = vmul.f32 %v4293, 1.442695
        %v4295 = vpow.pop %v4294
        %v4296 = vadd.f32 %v4295, 1.0
        %v4297 = vrcp.pop %v4296
        %v4298 = vmul.f32 1.0, %v4297
        %v4299 = vxor.u32 %v4248, 2147483648
        %v4300 = vmul.f32 %v4299, 1.442695
        %v4301 = vpow.pop %v4300
        %v4302 = vadd.f32 %v4301, 1.0
        %v4303 = vrcp.pop %v4302
        %v4304 = vmul.f32 1.0, %v4303
        %v4305 = vtanh.pop %v4287
        %v4306 = vxor.u32 %v4289, 2147483648
        %v4307 = vmul.f32 %v4306, 1.442695
        %v4308 = vpow.pop %v4307
        %v4309 = vadd.f32 %v4308, 1.0
        %v4310 = vrcp.pop %v4309
        %v4311 = vmul.f32 1.0, %v4310
        %v4312 = vmul.f32 %v4304, %v3798
        %v4313 = vmul.f32 %v4298, %v4305
        %v4314 = vadd.f32 %v4312, %v4313
        %v4315 = vtanh.pop %v4314
        %v4316 = vmul.f32 %v4311, %v4315
        %4317 = vst [vmem:[#allocation4] sm:$0xff] %v4316
        %4318 = vst [vmem:[#allocation5] sm:$0xff] %v4314
        %v4319 = vld [vmem:[%s1172] sm:$0xff]
        %v4320 = vld [vmem:[%s1174] sm:$0xff]
        %4321 = vst [vmem:[#allocation3] sm:$0xff] %v4316
        %4322 = vst [vmem:[#allocation3 + $0x8] sm:$0xff] %v4319
        %v4323 = vld [vmem:[#allocation3] sm:$0xff]
        %v4324 = vld [vmem:[#allocation3 + $0x8] sm:$0xff]
        %v4325 = vpack.c.bf16 %v4323, %v4323
        %v4326 = vpack.c.bf16 %v4324, %v4324
        %v4327 = vld [vmem:[%s1182] sm:$0xff]
        %v4328 = vld [vmem:[%s1182 + $0x8] sm:$0xff]
        %v4329 = vld [vmem:[%s1182 + $0x10] sm:$0xff]
        %v4330 = vld [vmem:[%s1182 + $0x18] sm:$0xff]
        %v4331 = vld [vmem:[%s1182 + $0x20] sm:$0xff]
        %v4332 = vld [vmem:[%s1182 + $0x28] sm:$0xff]
        %v4333 = vld [vmem:[%s1182 + $0x30] sm:$0xff]
        %v4334 = vld [vmem:[%s1182 + $0x38] sm:$0xff]
        %v4335 = vld [vmem:[%s1182 + $0x40] sm:$0xff]
        %v4336 = vld [vmem:[%s1182 + $0x48] sm:$0xff]
        %v4337 = vld [vmem:[%s1182 + $0x50] sm:$0xff]
        %v4338 = vld [vmem:[%s1182 + $0x58] sm:$0xff]
        %v4339 = vld [vmem:[%s1182 + $0x60] sm:$0xff]
        %v4340 = vld [vmem:[%s1182 + $0x68] sm:$0xff]
        %v4341 = vld [vmem:[%s1182 + $0x70] sm:$0xff]
        %v4342 = vld [vmem:[%s1182 + $0x78] sm:$0xff]
        %v4343 = vld [vmem:[%s1182 + $0x80] sm:$0xff]
        %v4344 = vld [vmem:[%s1182 + $0x88] sm:$0xff]
        %v4345 = vld [vmem:[%s1182 + $0x90] sm:$0xff]
        %v4346 = vld [vmem:[%s1182 + $0x98] sm:$0xff]
        %v4347 = vld [vmem:[%s1182 + $0xa0] sm:$0xff]
        %v4348 = vld [vmem:[%s1182 + $0xa8] sm:$0xff]
        %v4349 = vld [vmem:[%s1182 + $0xb0] sm:$0xff]
        %v4350 = vld [vmem:[%s1182 + $0xb8] sm:$0xff]
        %v4351 = vld [vmem:[%s1182 + $0xc0] sm:$0xff]
        %v4352 = vld [vmem:[%s1182 + $0xc8] sm:$0xff]
        %v4353 = vld [vmem:[%s1182 + $0xd0] sm:$0xff]
        %v4354 = vld [vmem:[%s1182 + $0xd8] sm:$0xff]
        %v4355 = vld [vmem:[%s1182 + $0xe0] sm:$0xff]
        %v4356 = vld [vmem:[%s1182 + $0xe8] sm:$0xff]
        %v4357 = vld [vmem:[%s1182 + $0xf0] sm:$0xff]
        %v4358 = vld [vmem:[%s1182 + $0xf8] sm:$0xff]
        %v4359 = vld [vmem:[%s1182 + $0x100] sm:$0xff]
        %v4360 = vld [vmem:[%s1182 + $0x108] sm:$0xff]
        %v4361 = vld [vmem:[%s1182 + $0x110] sm:$0xff]
        %v4362 = vld [vmem:[%s1182 + $0x118] sm:$0xff]
        %v4363 = vld [vmem:[%s1182 + $0x120] sm:$0xff]
        %v4364 = vld [vmem:[%s1182 + $0x128] sm:$0xff]
        %v4365 = vld [vmem:[%s1182 + $0x130] sm:$0xff]
        %v4366 = vld [vmem:[%s1182 + $0x138] sm:$0xff]
        %v4367 = vld [vmem:[%s1182 + $0x140] sm:$0xff]
        %v4368 = vld [vmem:[%s1182 + $0x148] sm:$0xff]
        %v4369 = vld [vmem:[%s1182 + $0x150] sm:$0xff]
        %v4370 = vld [vmem:[%s1182 + $0x158] sm:$0xff]
        %v4371 = vld [vmem:[%s1182 + $0x160] sm:$0xff]
        %v4372 = vld [vmem:[%s1182 + $0x168] sm:$0xff]
        %v4373 = vld [vmem:[%s1182 + $0x170] sm:$0xff]
        %v4374 = vld [vmem:[%s1182 + $0x178] sm:$0xff]
        %v4375 = vld [vmem:[%s1182 + $0x180] sm:$0xff]
        %v4376 = vld [vmem:[%s1182 + $0x188] sm:$0xff]
        %v4377 = vld [vmem:[%s1182 + $0x190] sm:$0xff]
        %v4378 = vld [vmem:[%s1182 + $0x198] sm:$0xff]
        %v4379 = vld [vmem:[%s1182 + $0x1a0] sm:$0xff]
        %v4380 = vld [vmem:[%s1182 + $0x1a8] sm:$0xff]
        %v4381 = vld [vmem:[%s1182 + $0x1b0] sm:$0xff]
        %v4382 = vld [vmem:[%s1182 + $0x1b8] sm:$0xff]
        %v4383 = vld [vmem:[%s1182 + $0x1c0] sm:$0xff]
        %v4384 = vld [vmem:[%s1182 + $0x1c8] sm:$0xff]
        %v4385 = vld [vmem:[%s1182 + $0x1d0] sm:$0xff]
        %v4386 = vld [vmem:[%s1182 + $0x1d8] sm:$0xff]
        %v4387 = vld [vmem:[%s1182 + $0x1e0] sm:$0xff]
        %v4388 = vld [vmem:[%s1182 + $0x1e8] sm:$0xff]
        %v4389 = vld [vmem:[%s1182 + $0x1f0] sm:$0xff]
        %v4390 = vld [vmem:[%s1182 + $0x1f8] sm:$0xff]
        %v4391 = vld [vmem:[%s1247] sm:$0xf]
        %v4393 = vlaneseq
        %v4394 = vshrl.u32 %v4393, 7
        %v4395 = vsub.s32 0, %v4394
        %v4396 = vrot.slane %v4391, %v4395
        %v4397 = vlaneseq
        %v4398 = vshrl.u32 %v4397, 7
        %v4399 = vsub.s32 1, %v4398
        %v4400 = vrot.slane %v4391, %v4399
        %v4401 = vlaneseq
        %v4402 = vshrl.u32 %v4401, 7
        %v4403 = vsub.s32 2, %v4402
        %v4404 = vrot.slane %v4391, %v4403
        %v4405 = vlaneseq
        %v4406 = vshrl.u32 %v4405, 7
        %v4407 = vsub.s32 3, %v4406
        %v4408 = vrot.slane %v4391, %v4407
        %v4477 = vunpack.c.l.b16 %v4327
        %v4478 = vunpack.c.h.b16 %v4327
        %v4479 = vunpack.c.l.b16 %v4328
        %v4480 = vunpack.c.h.b16 %v4328
        %v4481 = vunpack.c.l.b16 %v4329
        %v4482 = vunpack.c.h.b16 %v4329
        %v4483 = vunpack.c.l.b16 %v4330
        %v4484 = vunpack.c.h.b16 %v4330
        %v4485 = vunpack.c.l.b16 %v4331
        %v4486 = vunpack.c.h.b16 %v4331
        %v4487 = vunpack.c.l.b16 %v4332
        %v4488 = vunpack.c.h.b16 %v4332
        %v4489 = vunpack.c.l.b16 %v4333
        %v4490 = vunpack.c.h.b16 %v4333
        %v4491 = vunpack.c.l.b16 %v4334
        %v4492 = vunpack.c.h.b16 %v4334
        %v4493 = vunpack.c.l.b16 %v4335
        %v4494 = vunpack.c.h.b16 %v4335
        %v4495 = vunpack.c.l.b16 %v4336
        %v4496 = vunpack.c.h.b16 %v4336
        %v4497 = vunpack.c.l.b16 %v4337
        %v4498 = vunpack.c.h.b16 %v4337
        %v4499 = vunpack.c.l.b16 %v4338
        %v4500 = vunpack.c.h.b16 %v4338
        %v4501 = vunpack.c.l.b16 %v4339
        %v4502 = vunpack.c.h.b16 %v4339
        %v4503 = vunpack.c.l.b16 %v4340
        %v4504 = vunpack.c.h.b16 %v4340
        %v4505 = vunpack.c.l.b16 %v4341
        %v4506 = vunpack.c.h.b16 %v4341
        %v4507 = vunpack.c.l.b16 %v4342
        %v4508 = vunpack.c.h.b16 %v4342
        %v4509 = vunpack.c.l.b16 %v4343
        %v4510 = vunpack.c.h.b16 %v4343
        %v4511 = vunpack.c.l.b16 %v4344
        %v4512 = vunpack.c.h.b16 %v4344
        %v4513 = vunpack.c.l.b16 %v4345
        %v4514 = vunpack.c.h.b16 %v4345
        %v4515 = vunpack.c.l.b16 %v4346
        %v4516 = vunpack.c.h.b16 %v4346
        %v4517 = vunpack.c.l.b16 %v4347
        %v4518 = vunpack.c.h.b16 %v4347
        %v4519 = vunpack.c.l.b16 %v4348
        %v4520 = vunpack.c.h.b16 %v4348
        %v4521 = vunpack.c.l.b16 %v4349
        %v4522 = vunpack.c.h.b16 %v4349
        %v4523 = vunpack.c.l.b16 %v4350
        %v4524 = vunpack.c.h.b16 %v4350
        %v4525 = vunpack.c.l.b16 %v4351
        %v4526 = vunpack.c.h.b16 %v4351
        %v4527 = vunpack.c.l.b16 %v4352
        %v4528 = vunpack.c.h.b16 %v4352
        %v4529 = vunpack.c.l.b16 %v4353
        %v4530 = vunpack.c.h.b16 %v4353
        %v4531 = vunpack.c.l.b16 %v4354
        %v4532 = vunpack.c.h.b16 %v4354
        %v4533 = vunpack.c.l.b16 %v4355
        %v4534 = vunpack.c.h.b16 %v4355
        %v4535 = vunpack.c.l.b16 %v4356
        %v4536 = vunpack.c.h.b16 %v4356
        %v4537 = vunpack.c.l.b16 %v4357
        %v4538 = vunpack.c.h.b16 %v4357
        %v4539 = vunpack.c.l.b16 %v4358
        %v4540 = vunpack.c.h.b16 %v4358
        %v4541 = vunpack.c.l.b16 %v4359
        %v4542 = vunpack.c.h.b16 %v4359
        %v4543 = vunpack.c.l.b16 %v4360
        %v4544 = vunpack.c.h.b16 %v4360
        %v4545 = vunpack.c.l.b16 %v4361
        %v4546 = vunpack.c.h.b16 %v4361
        %v4547 = vunpack.c.l.b16 %v4362
        %v4548 = vunpack.c.h.b16 %v4362
        %v4549 = vunpack.c.l.b16 %v4363
        %v4550 = vunpack.c.h.b16 %v4363
        %v4551 = vunpack.c.l.b16 %v4364
        %v4552 = vunpack.c.h.b16 %v4364
        %v4553 = vunpack.c.l.b16 %v4365
        %v4554 = vunpack.c.h.b16 %v4365
        %v4555 = vunpack.c.l.b16 %v4366
        %v4556 = vunpack.c.h.b16 %v4366
        %v4557 = vunpack.c.l.b16 %v4367
        %v4558 = vunpack.c.h.b16 %v4367
        %v4559 = vunpack.c.l.b16 %v4368
        %v4560 = vunpack.c.h.b16 %v4368
        %v4561 = vunpack.c.l.b16 %v4369
        %v4562 = vunpack.c.h.b16 %v4369
        %v4563 = vunpack.c.l.b16 %v4370
        %v4564 = vunpack.c.h.b16 %v4370
        %v4565 = vunpack.c.l.b16 %v4371
        %v4566 = vunpack.c.h.b16 %v4371
        %v4567 = vunpack.c.l.b16 %v4372
        %v4568 = vunpack.c.h.b16 %v4372
        %v4569 = vunpack.c.l.b16 %v4373
        %v4570 = vunpack.c.h.b16 %v4373
        %v4571 = vunpack.c.l.b16 %v4374
        %v4572 = vunpack.c.h.b16 %v4374
        %v4573 = vunpack.c.l.b16 %v4375
        %v4574 = vunpack.c.h.b16 %v4375
        %v4575 = vunpack.c.l.b16 %v4376
        %v4576 = vunpack.c.h.b16 %v4376
        %v4577 = vunpack.c.l.b16 %v4377
        %v4578 = vunpack.c.h.b16 %v4377
        %v4579 = vunpack.c.l.b16 %v4378
        %v4580 = vunpack.c.h.b16 %v4378
        %v4581 = vunpack.c.l.b16 %v4379
        %v4582 = vunpack.c.h.b16 %v4379
        %v4583 = vunpack.c.l.b16 %v4380
        %v4584 = vunpack.c.h.b16 %v4380
        %v4585 = vunpack.c.l.b16 %v4381
        %v4586 = vunpack.c.h.b16 %v4381
        %v4587 = vunpack.c.l.b16 %v4382
        %v4588 = vunpack.c.h.b16 %v4382
        %v4589 = vunpack.c.l.b16 %v4383
        %v4590 = vunpack.c.h.b16 %v4383
        %v4591 = vunpack.c.l.b16 %v4384
        %v4592 = vunpack.c.h.b16 %v4384
        %v4593 = vunpack.c.l.b16 %v4385
        %v4594 = vunpack.c.h.b16 %v4385
        %v4595 = vunpack.c.l.b16 %v4386
        %v4596 = vunpack.c.h.b16 %v4386
        %v4597 = vunpack.c.l.b16 %v4387
        %v4598 = vunpack.c.h.b16 %v4387
        %v4599 = vunpack.c.l.b16 %v4388
        %v4600 = vunpack.c.h.b16 %v4388
        %v4601 = vunpack.c.l.b16 %v4389
        %v4602 = vunpack.c.h.b16 %v4389
        %v4603 = vunpack.c.l.b16 %v4390
        %v4604 = vunpack.c.h.b16 %v4390
        %v4605 = vpack.c.b16 %v4481, %v4477
        %v4606 = vpack.c.b16 %v4482, %v4478
        %v4607 = vpack.c.b16 %v4483, %v4479
        %v4608 = vpack.c.b16 %v4484, %v4480
        %v4609 = vpack.c.b16 %v4489, %v4485
        %v4610 = vpack.c.b16 %v4490, %v4486
        %v4611 = vpack.c.b16 %v4491, %v4487
        %v4612 = vpack.c.b16 %v4492, %v4488
        %v4613 = vpack.c.b16 %v4497, %v4493
        %v4614 = vpack.c.b16 %v4498, %v4494
        %v4615 = vpack.c.b16 %v4499, %v4495
        %v4616 = vpack.c.b16 %v4500, %v4496
        %v4617 = vpack.c.b16 %v4505, %v4501
        %v4618 = vpack.c.b16 %v4506, %v4502
        %v4619 = vpack.c.b16 %v4507, %v4503
        %v4620 = vpack.c.b16 %v4508, %v4504
        %v4621 = vpack.c.b16 %v4513, %v4509
        %v4622 = vpack.c.b16 %v4514, %v4510
        %v4623 = vpack.c.b16 %v4515, %v4511
        %v4624 = vpack.c.b16 %v4516, %v4512
        %v4625 = vpack.c.b16 %v4521, %v4517
        %v4626 = vpack.c.b16 %v4522, %v4518
        %v4627 = vpack.c.b16 %v4523, %v4519
        %v4628 = vpack.c.b16 %v4524, %v4520
        %v4629 = vpack.c.b16 %v4529, %v4525
        %v4630 = vpack.c.b16 %v4530, %v4526
        %v4631 = vpack.c.b16 %v4531, %v4527
        %v4632 = vpack.c.b16 %v4532, %v4528
        %v4633 = vpack.c.b16 %v4537, %v4533
        %v4634 = vpack.c.b16 %v4538, %v4534
        %v4635 = vpack.c.b16 %v4539, %v4535
        %v4636 = vpack.c.b16 %v4540, %v4536
        %v4637 = vpack.c.b16 %v4545, %v4541
        %v4638 = vpack.c.b16 %v4546, %v4542
        %v4639 = vpack.c.b16 %v4547, %v4543
        %v4640 = vpack.c.b16 %v4548, %v4544
        %v4641 = vpack.c.b16 %v4553, %v4549
        %v4642 = vpack.c.b16 %v4554, %v4550
        %v4643 = vpack.c.b16 %v4555, %v4551
        %v4644 = vpack.c.b16 %v4556, %v4552
        %v4645 = vpack.c.b16 %v4561, %v4557
        %v4646 = vpack.c.b16 %v4562, %v4558
        %v4647 = vpack.c.b16 %v4563, %v4559
        %v4648 = vpack.c.b16 %v4564, %v4560
        %v4649 = vpack.c.b16 %v4569, %v4565
        %v4650 = vpack.c.b16 %v4570, %v4566
        %v4651 = vpack.c.b16 %v4571, %v4567
        %v4652 = vpack.c.b16 %v4572, %v4568
        %v4653 = vpack.c.b16 %v4577, %v4573
        %v4654 = vpack.c.b16 %v4578, %v4574
        %v4655 = vpack.c.b16 %v4579, %v4575
        %v4656 = vpack.c.b16 %v4580, %v4576
        %v4657 = vpack.c.b16 %v4585, %v4581
        %v4658 = vpack.c.b16 %v4586, %v4582
        %v4659 = vpack.c.b16 %v4587, %v4583
        %v4660 = vpack.c.b16 %v4588, %v4584
        %v4661 = vpack.c.b16 %v4593, %v4589
        %v4662 = vpack.c.b16 %v4594, %v4590
        %v4663 = vpack.c.b16 %v4595, %v4591
        %v4664 = vpack.c.b16 %v4596, %v4592
        %v4665 = vpack.c.b16 %v4601, %v4597
        %v4666 = vpack.c.b16 %v4602, %v4598
        %v4667 = vpack.c.b16 %v4603, %v4599
        %v4668 = vpack.c.b16 %v4604, %v4600
        %4733 = vmatprep.subr.bf16.mxu0 %v4606
        %4734 = vmatpush1.bf16.msra.mxu0 %v4605
        %4735 = vmatprep.subr.bf16.mxu0 %v4610
        %4736 = vmatpush1.bf16.msra.mxu0 %v4609
        %4737 = vmatprep.subr.bf16.mxu0 %v4614
        %4738 = vmatpush1.bf16.msra.mxu0 %v4613
        %4739 = vmatprep.subr.bf16.mxu0 %v4618
        %4740 = vmatpush1.bf16.msra.mxu0 %v4617
        %4741 = vmatprep.subr.bf16.mxu0 %v4622
        %4742 = vmatpush1.bf16.msra.mxu0 %v4621
        %4743 = vmatprep.subr.bf16.mxu0 %v4626
        %4744 = vmatpush1.bf16.msra.mxu0 %v4625
        %4745 = vmatprep.subr.bf16.mxu0 %v4630
        %4746 = vmatpush1.bf16.msra.mxu0 %v4629
        %4747 = vmatprep.subr.bf16.mxu0 %v4634
        %4748 = vmatpush1.bf16.msra.mxu0 %v4633
        %4749 = vmatprep.subr.bf16.mxu0 %v4638
        %4750 = vmatpush1.bf16.msra.mxu0 %v4637
        %4751 = vmatprep.subr.bf16.mxu0 %v4642
        %4752 = vmatpush1.bf16.msra.mxu0 %v4641
        %4753 = vmatprep.subr.bf16.mxu0 %v4646
        %4754 = vmatpush1.bf16.msra.mxu0 %v4645
        %4755 = vmatprep.subr.bf16.mxu0 %v4650
        %4756 = vmatpush1.bf16.msra.mxu0 %v4649
        %4757 = vmatprep.subr.bf16.mxu0 %v4654
        %4758 = vmatpush1.bf16.msra.mxu0 %v4653
        %4759 = vmatprep.subr.bf16.mxu0 %v4658
        %4760 = vmatpush1.bf16.msra.mxu0 %v4657
        %4761 = vmatprep.subr.bf16.mxu0 %v4662
        %4762 = vmatpush1.bf16.msra.mxu0 %v4661
        %4763 = vmatprep.subr.bf16.mxu0 %v4666
        %4764 = vmatpush1.bf16.msra.mxu0 %v4665
        %4765 = vmatprep.mubr.bf16.mxu0 %v4326
        %4766 = vmatmul.mubr.bf16.gmra.mrb[0].mxu0 %v4325
        %v4767 = vpop.f32.mrb[0].mxu0
        %v4768 = vadd.f32 %v4396, %v4767
        %v4769 = vpop.f32.mrb[0].mxu0
        %v4770 = vadd.f32 %v4400, %v4769
        %v4771 = vpop.f32.mrb[0].mxu0
        %v4772 = vpop.f32.mrb[0].mxu0
        %4773 = vdwg.mxu0
        %4774 = vmatprep.subr.bf16.mxu0 %v4608
        %4775 = vmatpush1.bf16.msra.mxu0 %v4607
        %4776 = vmatprep.subr.bf16.mxu0 %v4612
        %4777 = vmatpush1.bf16.msra.mxu0 %v4611
        %4778 = vmatprep.subr.bf16.mxu0 %v4616
        %4779 = vmatpush1.bf16.msra.mxu0 %v4615
        %4780 = vmatprep.subr.bf16.mxu0 %v4620
        %4781 = vmatpush1.bf16.msra.mxu0 %v4619
        %4782 = vmatprep.subr.bf16.mxu0 %v4624
        %4783 = vmatpush1.bf16.msra.mxu0 %v4623
        %4784 = vmatprep.subr.bf16.mxu0 %v4628
        %4785 = vmatpush1.bf16.msra.mxu0 %v4627
        %4786 = vmatprep.subr.bf16.mxu0 %v4632
        %4787 = vmatpush1.bf16.msra.mxu0 %v4631
        %4788 = vmatprep.subr.bf16.mxu0 %v4636
        %4789 = vmatpush1.bf16.msra.mxu0 %v4635
        %4790 = vmatprep.subr.bf16.mxu0 %v4640
        %4791 = vmatpush1.bf16.msra.mxu0 %v4639
        %4792 = vmatprep.subr.bf16.mxu0 %v4644
        %4793 = vmatpush1.bf16.msra.mxu0 %v4643
        %4794 = vmatprep.subr.bf16.mxu0 %v4648
        %4795 = vmatpush1.bf16.msra.mxu0 %v4647
        %4796 = vmatprep.subr.bf16.mxu0 %v4652
        %4797 = vmatpush1.bf16.msra.mxu0 %v4651
        %4798 = vmatprep.subr.bf16.mxu0 %v4656
        %4799 = vmatpush1.bf16.msra.mxu0 %v4655
        %4800 = vmatprep.subr.bf16.mxu0 %v4660
        %4801 = vmatpush1.bf16.msra.mxu0 %v4659
        %4802 = vmatprep.subr.bf16.mxu0 %v4664
        %4803 = vmatpush1.bf16.msra.mxu0 %v4663
        %4804 = vmatprep.subr.bf16.mxu0 %v4668
        %4805 = vmatpush1.bf16.msra.mxu0 %v4667
        %4806 = vmatprep.mubr.bf16.mxu0 %v4326
        %4807 = vmatmul.mubr.bf16.gmra.mrb[0].mxu0 %v4325
        %v4808 = vpop.f32.mrb[0].mxu0
        %v4809 = vadd.f32 %v4404, %v4808
        %v4810 = vpop.f32.mrb[0].mxu0
        %v4811 = vadd.f32 %v4408, %v4810
        %v4812 = vpop.f32.mrb[0].mxu0
        %v4813 = vpop.f32.mrb[0].mxu0
        %4814 = vdwg.mxu0
        %v4815 = vxor.u32 %v4768, 2147483648
        %v4816 = vmul.f32 %v4815, 1.442695
        %v4817 = vpow.pop %v4816
        %v4818 = vadd.f32 %v4817, 1.0
        %v4819 = vrcp.pop %v4818
        %v4820 = vmul.f32 1.0, %v4819
        %v4821 = vxor.u32 %v4770, 2147483648
        %v4822 = vmul.f32 %v4821, 1.442695
        %v4823 = vpow.pop %v4822
        %v4824 = vadd.f32 %v4823, 1.0
        %v4825 = vrcp.pop %v4824
        %v4826 = vmul.f32 1.0, %v4825
        %v4827 = vtanh.pop %v4809
        %v4828 = vxor.u32 %v4811, 2147483648
        %v4829 = vmul.f32 %v4828, 1.442695
        %v4830 = vpow.pop %v4829
        %v4831 = vadd.f32 %v4830, 1.0
        %v4832 = vrcp.pop %v4831
        %v4833 = vmul.f32 1.0, %v4832
        %v4834 = vmul.f32 %v4826, %v4320
        %v4835 = vmul.f32 %v4820, %v4827
        %v4836 = vadd.f32 %v4834, %v4835
        %v4837 = vtanh.pop %v4836
        %v4838 = vmul.f32 %v4833, %v4837
        %4839 = vst [vmem:[%s1172] sm:$0xff] %v4838
        %4840 = vst [vmem:[%s1174] sm:$0xff] %v4836
        %s4841 = scalar_lea.vmem [#allocation6], 24
        %4842 = vst [vmem:[%s4841] sm:$0xff] %v4838
        %s4843 = scalar_lea.vmem [#allocation2], 32
        %v4844 = vld [vmem:[%s4843] sm:$0xff]
        %v4845 = vld [vmem:[#allocation4] sm:$0xff]
        %v4846 = vld [vmem:[#allocation5] sm:$0xff]
        %4847 = vst [vmem:[#allocation3] sm:$0xff] %v4844
        %4848 = vst [vmem:[#allocation3 + $0x8] sm:$0xff] %v4845
        %v4849 = vld [vmem:[#allocation3] sm:$0xff]
        %v4850 = vld [vmem:[#allocation3 + $0x8] sm:$0xff]
        %v4851 = vpack.c.bf16 %v4849, %v4849
        %v4852 = vpack.c.bf16 %v4850, %v4850
        %v4853 = vld [vmem:[#allocation7] sm:$0xff]
        %v4854 = vld [vmem:[#allocation7 + $0x8] sm:$0xff]
        %v4855 = vld [vmem:[#allocation7 + $0x10] sm:$0xff]
        %v4856 = vld [vmem:[#allocation7 + $0x18] sm:$0xff]
        %v4857 = vld [vmem:[#allocation7 + $0x20] sm:$0xff]
        %v4858 = vld [vmem:[#allocation7 + $0x28] sm:$0xff]
        %v4859 = vld [vmem:[#allocation7 + $0x30] sm:$0xff]
        %v4860 = vld [vmem:[#allocation7 + $0x38] sm:$0xff]
        %v4861 = vld [vmem:[#allocation7 + $0x40] sm:$0xff]
        %v4862 = vld [vmem:[#allocation7 + $0x48] sm:$0xff]
        %v4863 = vld [vmem:[#allocation7 + $0x50] sm:$0xff]
        %v4864 = vld [vmem:[#allocation7 + $0x58] sm:$0xff]
        %v4865 = vld [vmem:[#allocation7 + $0x60] sm:$0xff]
        %v4866 = vld [vmem:[#allocation7 + $0x68] sm:$0xff]
        %v4867 = vld [vmem:[#allocation7 + $0x70] sm:$0xff]
        %v4868 = vld [vmem:[#allocation7 + $0x78] sm:$0xff]
        %v4869 = vld [vmem:[#allocation7 + $0x80] sm:$0xff]
        %v4870 = vld [vmem:[#allocation7 + $0x88] sm:$0xff]
        %v4871 = vld [vmem:[#allocation7 + $0x90] sm:$0xff]
        %v4872 = vld [vmem:[#allocation7 + $0x98] sm:$0xff]
        %v4873 = vld [vmem:[#allocation7 + $0xa0] sm:$0xff]
        %v4874 = vld [vmem:[#allocation7 + $0xa8] sm:$0xff]
        %v4875 = vld [vmem:[#allocation7 + $0xb0] sm:$0xff]
        %v4876 = vld [vmem:[#allocation7 + $0xb8] sm:$0xff]
        %v4877 = vld [vmem:[#allocation7 + $0xc0] sm:$0xff]
        %v4878 = vld [vmem:[#allocation7 + $0xc8] sm:$0xff]
        %v4879 = vld [vmem:[#allocation7 + $0xd0] sm:$0xff]
        %v4880 = vld [vmem:[#allocation7 + $0xd8] sm:$0xff]
        %v4881 = vld [vmem:[#allocation7 + $0xe0] sm:$0xff]
        %v4882 = vld [vmem:[#allocation7 + $0xe8] sm:$0xff]
        %v4883 = vld [vmem:[#allocation7 + $0xf0] sm:$0xff]
        %v4884 = vld [vmem:[#allocation7 + $0xf8] sm:$0xff]
        %v4885 = vld [vmem:[#allocation7 + $0x100] sm:$0xff]
        %v4886 = vld [vmem:[#allocation7 + $0x108] sm:$0xff]
        %v4887 = vld [vmem:[#allocation7 + $0x110] sm:$0xff]
        %v4888 = vld [vmem:[#allocation7 + $0x118] sm:$0xff]
        %v4889 = vld [vmem:[#allocation7 + $0x120] sm:$0xff]
        %v4890 = vld [vmem:[#allocation7 + $0x128] sm:$0xff]
        %v4891 = vld [vmem:[#allocation7 + $0x130] sm:$0xff]
        %v4892 = vld [vmem:[#allocation7 + $0x138] sm:$0xff]
        %v4893 = vld [vmem:[#allocation7 + $0x140] sm:$0xff]
        %v4894 = vld [vmem:[#allocation7 + $0x148] sm:$0xff]
        %v4895 = vld [vmem:[#allocation7 + $0x150] sm:$0xff]
        %v4896 = vld [vmem:[#allocation7 + $0x158] sm:$0xff]
        %v4897 = vld [vmem:[#allocation7 + $0x160] sm:$0xff]
        %v4898 = vld [vmem:[#allocation7 + $0x168] sm:$0xff]
        %v4899 = vld [vmem:[#allocation7 + $0x170] sm:$0xff]
        %v4900 = vld [vmem:[#allocation7 + $0x178] sm:$0xff]
        %v4901 = vld [vmem:[#allocation7 + $0x180] sm:$0xff]
        %v4902 = vld [vmem:[#allocation7 + $0x188] sm:$0xff]
        %v4903 = vld [vmem:[#allocation7 + $0x190] sm:$0xff]
        %v4904 = vld [vmem:[#allocation7 + $0x198] sm:$0xff]
        %v4905 = vld [vmem:[#allocation7 + $0x1a0] sm:$0xff]
        %v4906 = vld [vmem:[#allocation7 + $0x1a8] sm:$0xff]
        %v4907 = vld [vmem:[#allocation7 + $0x1b0] sm:$0xff]
        %v4908 = vld [vmem:[#allocation7 + $0x1b8] sm:$0xff]
        %v4909 = vld [vmem:[#allocation7 + $0x1c0] sm:$0xff]
        %v4910 = vld [vmem:[#allocation7 + $0x1c8] sm:$0xff]
        %v4911 = vld [vmem:[#allocation7 + $0x1d0] sm:$0xff]
        %v4912 = vld [vmem:[#allocation7 + $0x1d8] sm:$0xff]
        %v4913 = vld [vmem:[#allocation7 + $0x1e0] sm:$0xff]
        %v4914 = vld [vmem:[#allocation7 + $0x1e8] sm:$0xff]
        %v4915 = vld [vmem:[#allocation7 + $0x1f0] sm:$0xff]
        %v4916 = vld [vmem:[#allocation7 + $0x1f8] sm:$0xff]
        %v4917 = vld [vmem:[%s5] sm:$0xf]
        %v4919 = vlaneseq
        %v4920 = vshrl.u32 %v4919, 7
        %v4921 = vsub.s32 0, %v4920
        %v4922 = vrot.slane %v4917, %v4921
        %v4923 = vlaneseq
        %v4924 = vshrl.u32 %v4923, 7
        %v4925 = vsub.s32 1, %v4924
        %v4926 = vrot.slane %v4917, %v4925
        %v4927 = vlaneseq
        %v4928 = vshrl.u32 %v4927, 7
        %v4929 = vsub.s32 2, %v4928
        %v4930 = vrot.slane %v4917, %v4929
        %v4931 = vlaneseq
        %v4932 = vshrl.u32 %v4931, 7
        %v4933 = vsub.s32 3, %v4932
        %v4934 = vrot.slane %v4917, %v4933
        %v5003 = vunpack.c.l.b16 %v4853
        %v5004 = vunpack.c.h.b16 %v4853
        %v5005 = vunpack.c.l.b16 %v4854
        %v5006 = vunpack.c.h.b16 %v4854
        %v5007 = vunpack.c.l.b16 %v4855
        %v5008 = vunpack.c.h.b16 %v4855
        %v5009 = vunpack.c.l.b16 %v4856
        %v5010 = vunpack.c.h.b16 %v4856
        %v5011 = vunpack.c.l.b16 %v4857
        %v5012 = vunpack.c.h.b16 %v4857
        %v5013 = vunpack.c.l.b16 %v4858
        %v5014 = vunpack.c.h.b16 %v4858
        %v5015 = vunpack.c.l.b16 %v4859
        %v5016 = vunpack.c.h.b16 %v4859
        %v5017 = vunpack.c.l.b16 %v4860
        %v5018 = vunpack.c.h.b16 %v4860
        %v5019 = vunpack.c.l.b16 %v4861
        %v5020 = vunpack.c.h.b16 %v4861
        %v5021 = vunpack.c.l.b16 %v4862
        %v5022 = vunpack.c.h.b16 %v4862
        %v5023 = vunpack.c.l.b16 %v4863
        %v5024 = vunpack.c.h.b16 %v4863
        %v5025 = vunpack.c.l.b16 %v4864
        %v5026 = vunpack.c.h.b16 %v4864
        %v5027 = vunpack.c.l.b16 %v4865
        %v5028 = vunpack.c.h.b16 %v4865
        %v5029 = vunpack.c.l.b16 %v4866
        %v5030 = vunpack.c.h.b16 %v4866
        %v5031 = vunpack.c.l.b16 %v4867
        %v5032 = vunpack.c.h.b16 %v4867
        %v5033 = vunpack.c.l.b16 %v4868
        %v5034 = vunpack.c.h.b16 %v4868
        %v5035 = vunpack.c.l.b16 %v4869
        %v5036 = vunpack.c.h.b16 %v4869
        %v5037 = vunpack.c.l.b16 %v4870
        %v5038 = vunpack.c.h.b16 %v4870
        %v5039 = vunpack.c.l.b16 %v4871
        %v5040 = vunpack.c.h.b16 %v4871
        %v5041 = vunpack.c.l.b16 %v4872
        %v5042 = vunpack.c.h.b16 %v4872
        %v5043 = vunpack.c.l.b16 %v4873
        %v5044 = vunpack.c.h.b16 %v4873
        %v5045 = vunpack.c.l.b16 %v4874
        %v5046 = vunpack.c.h.b16 %v4874
        %v5047 = vunpack.c.l.b16 %v4875
        %v5048 = vunpack.c.h.b16 %v4875
        %v5049 = vunpack.c.l.b16 %v4876
        %v5050 = vunpack.c.h.b16 %v4876
        %v5051 = vunpack.c.l.b16 %v4877
        %v5052 = vunpack.c.h.b16 %v4877
        %v5053 = vunpack.c.l.b16 %v4878
        %v5054 = vunpack.c.h.b16 %v4878
        %v5055 = vunpack.c.l.b16 %v4879
        %v5056 = vunpack.c.h.b16 %v4879
        %v5057 = vunpack.c.l.b16 %v4880
        %v5058 = vunpack.c.h.b16 %v4880
        %v5059 = vunpack.c.l.b16 %v4881
        %v5060 = vunpack.c.h.b16 %v4881
        %v5061 = vunpack.c.l.b16 %v4882
        %v5062 = vunpack.c.h.b16 %v4882
        %v5063 = vunpack.c.l.b16 %v4883
        %v5064 = vunpack.c.h.b16 %v4883
        %v5065 = vunpack.c.l.b16 %v4884
        %v5066 = vunpack.c.h.b16 %v4884
        %v5067 = vunpack.c.l.b16 %v4885
        %v5068 = vunpack.c.h.b16 %v4885
        %v5069 = vunpack.c.l.b16 %v4886
        %v5070 = vunpack.c.h.b16 %v4886
        %v5071 = vunpack.c.l.b16 %v4887
        %v5072 = vunpack.c.h.b16 %v4887
        %v5073 = vunpack.c.l.b16 %v4888
        %v5074 = vunpack.c.h.b16 %v4888
        %v5075 = vunpack.c.l.b16 %v4889
        %v5076 = vunpack.c.h.b16 %v4889
        %v5077 = vunpack.c.l.b16 %v4890
        %v5078 = vunpack.c.h.b16 %v4890
        %v5079 = vunpack.c.l.b16 %v4891
        %v5080 = vunpack.c.h.b16 %v4891
        %v5081 = vunpack.c.l.b16 %v4892
        %v5082 = vunpack.c.h.b16 %v4892
        %v5083 = vunpack.c.l.b16 %v4893
        %v5084 = vunpack.c.h.b16 %v4893
        %v5085 = vunpack.c.l.b16 %v4894
        %v5086 = vunpack.c.h.b16 %v4894
        %v5087 = vunpack.c.l.b16 %v4895
        %v5088 = vunpack.c.h.b16 %v4895
        %v5089 = vunpack.c.l.b16 %v4896
        %v5090 = vunpack.c.h.b16 %v4896
        %v5091 = vunpack.c.l.b16 %v4897
        %v5092 = vunpack.c.h.b16 %v4897
        %v5093 = vunpack.c.l.b16 %v4898
        %v5094 = vunpack.c.h.b16 %v4898
        %v5095 = vunpack.c.l.b16 %v4899
        %v5096 = vunpack.c.h.b16 %v4899
        %v5097 = vunpack.c.l.b16 %v4900
        %v5098 = vunpack.c.h.b16 %v4900
        %v5099 = vunpack.c.l.b16 %v4901
        %v5100 = vunpack.c.h.b16 %v4901
        %v5101 = vunpack.c.l.b16 %v4902
        %v5102 = vunpack.c.h.b16 %v4902
        %v5103 = vunpack.c.l.b16 %v4903
        %v5104 = vunpack.c.h.b16 %v4903
        %v5105 = vunpack.c.l.b16 %v4904
        %v5106 = vunpack.c.h.b16 %v4904
        %v5107 = vunpack.c.l.b16 %v4905
        %v5108 = vunpack.c.h.b16 %v4905
        %v5109 = vunpack.c.l.b16 %v4906
        %v5110 = vunpack.c.h.b16 %v4906
        %v5111 = vunpack.c.l.b16 %v4907
        %v5112 = vunpack.c.h.b16 %v4907
        %v5113 = vunpack.c.l.b16 %v4908
        %v5114 = vunpack.c.h.b16 %v4908
        %v5115 = vunpack.c.l.b16 %v4909
        %v5116 = vunpack.c.h.b16 %v4909
        %v5117 = vunpack.c.l.b16 %v4910
        %v5118 = vunpack.c.h.b16 %v4910
        %v5119 = vunpack.c.l.b16 %v4911
        %v5120 = vunpack.c.h.b16 %v4911
        %v5121 = vunpack.c.l.b16 %v4912
        %v5122 = vunpack.c.h.b16 %v4912
        %v5123 = vunpack.c.l.b16 %v4913
        %v5124 = vunpack.c.h.b16 %v4913
        %v5125 = vunpack.c.l.b16 %v4914
        %v5126 = vunpack.c.h.b16 %v4914
        %v5127 = vunpack.c.l.b16 %v4915
        %v5128 = vunpack.c.h.b16 %v4915
        %v5129 = vunpack.c.l.b16 %v4916
        %v5130 = vunpack.c.h.b16 %v4916
        %v5131 = vpack.c.b16 %v5007, %v5003
        %v5132 = vpack.c.b16 %v5008, %v5004
        %v5133 = vpack.c.b16 %v5009, %v5005
        %v5134 = vpack.c.b16 %v5010, %v5006
        %v5135 = vpack.c.b16 %v5015, %v5011
        %v5136 = vpack.c.b16 %v5016, %v5012
        %v5137 = vpack.c.b16 %v5017, %v5013
        %v5138 = vpack.c.b16 %v5018, %v5014
        %v5139 = vpack.c.b16 %v5023, %v5019
        %v5140 = vpack.c.b16 %v5024, %v5020
        %v5141 = vpack.c.b16 %v5025, %v5021
        %v5142 = vpack.c.b16 %v5026, %v5022
        %v5143 = vpack.c.b16 %v5031, %v5027
        %v5144 = vpack.c.b16 %v5032, %v5028
        %v5145 = vpack.c.b16 %v5033, %v5029
        %v5146 = vpack.c.b16 %v5034, %v5030
        %v5147 = vpack.c.b16 %v5039, %v5035
        %v5148 = vpack.c.b16 %v5040, %v5036
        %v5149 = vpack.c.b16 %v5041, %v5037
        %v5150 = vpack.c.b16 %v5042, %v5038
        %v5151 = vpack.c.b16 %v5047, %v5043
        %v5152 = vpack.c.b16 %v5048, %v5044
        %v5153 = vpack.c.b16 %v5049, %v5045
        %v5154 = vpack.c.b16 %v5050, %v5046
        %v5155 = vpack.c.b16 %v5055, %v5051
        %v5156 = vpack.c.b16 %v5056, %v5052
        %v5157 = vpack.c.b16 %v5057, %v5053
        %v5158 = vpack.c.b16 %v5058, %v5054
        %v5159 = vpack.c.b16 %v5063, %v5059
        %v5160 = vpack.c.b16 %v5064, %v5060
        %v5161 = vpack.c.b16 %v5065, %v5061
        %v5162 = vpack.c.b16 %v5066, %v5062
        %v5163 = vpack.c.b16 %v5071, %v5067
        %v5164 = vpack.c.b16 %v5072, %v5068
        %v5165 = vpack.c.b16 %v5073, %v5069
        %v5166 = vpack.c.b16 %v5074, %v5070
        %v5167 = vpack.c.b16 %v5079, %v5075
        %v5168 = vpack.c.b16 %v5080, %v5076
        %v5169 = vpack.c.b16 %v5081, %v5077
        %v5170 = vpack.c.b16 %v5082, %v5078
        %v5171 = vpack.c.b16 %v5087, %v5083
        %v5172 = vpack.c.b16 %v5088, %v5084
        %v5173 = vpack.c.b16 %v5089, %v5085
        %v5174 = vpack.c.b16 %v5090, %v5086
        %v5175 = vpack.c.b16 %v5095, %v5091
        %v5176 = vpack.c.b16 %v5096, %v5092
        %v5177 = vpack.c.b16 %v5097, %v5093
        %v5178 = vpack.c.b16 %v5098, %v5094
        %v5179 = vpack.c.b16 %v5103, %v5099
        %v5180 = vpack.c.b16 %v5104, %v5100
        %v5181 = vpack.c.b16 %v5105, %v5101
        %v5182 = vpack.c.b16 %v5106, %v5102
        %v5183 = vpack.c.b16 %v5111, %v5107
        %v5184 = vpack.c.b16 %v5112, %v5108
        %v5185 = vpack.c.b16 %v5113, %v5109
        %v5186 = vpack.c.b16 %v5114, %v5110
        %v5187 = vpack.c.b16 %v5119, %v5115
        %v5188 = vpack.c.b16 %v5120, %v5116
        %v5189 = vpack.c.b16 %v5121, %v5117
        %v5190 = vpack.c.b16 %v5122, %v5118
        %v5191 = vpack.c.b16 %v5127, %v5123
        %v5192 = vpack.c.b16 %v5128, %v5124
        %v5193 = vpack.c.b16 %v5129, %v5125
        %v5194 = vpack.c.b16 %v5130, %v5126
        %5259 = vmatprep.subr.bf16.mxu0 %v5132
        %5260 = vmatpush1.bf16.msra.mxu0 %v5131
        %5261 = vmatprep.subr.bf16.mxu0 %v5136
        %5262 = vmatpush1.bf16.msra.mxu0 %v5135
        %5263 = vmatprep.subr.bf16.mxu0 %v5140
        %5264 = vmatpush1.bf16.msra.mxu0 %v5139
        %5265 = vmatprep.subr.bf16.mxu0 %v5144
        %5266 = vmatpush1.bf16.msra.mxu0 %v5143
        %5267 = vmatprep.subr.bf16.mxu0 %v5148
        %5268 = vmatpush1.bf16.msra.mxu0 %v5147
        %5269 = vmatprep.subr.bf16.mxu0 %v5152
        %5270 = vmatpush1.bf16.msra.mxu0 %v5151
        %5271 = vmatprep.subr.bf16.mxu0 %v5156
        %5272 = vmatpush1.bf16.msra.mxu0 %v5155
        %5273 = vmatprep.subr.bf16.mxu0 %v5160
        %5274 = vmatpush1.bf16.msra.mxu0 %v5159
        %5275 = vmatprep.subr.bf16.mxu0 %v5164
        %5276 = vmatpush1.bf16.msra.mxu0 %v5163
        %5277 = vmatprep.subr.bf16.mxu0 %v5168
        %5278 = vmatpush1.bf16.msra.mxu0 %v5167
        %5279 = vmatprep.subr.bf16.mxu0 %v5172
        %5280 = vmatpush1.bf16.msra.mxu0 %v5171
        %5281 = vmatprep.subr.bf16.mxu0 %v5176
        %5282 = vmatpush1.bf16.msra.mxu0 %v5175
        %5283 = vmatprep.subr.bf16.mxu0 %v5180
        %5284 = vmatpush1.bf16.msra.mxu0 %v5179
        %5285 = vmatprep.subr.bf16.mxu0 %v5184
        %5286 = vmatpush1.bf16.msra.mxu0 %v5183
        %5287 = vmatprep.subr.bf16.mxu0 %v5188
        %5288 = vmatpush1.bf16.msra.mxu0 %v5187
        %5289 = vmatprep.subr.bf16.mxu0 %v5192
        %5290 = vmatpush1.bf16.msra.mxu0 %v5191
        %5291 = vmatprep.mubr.bf16.mxu0 %v4852
        %5292 = vmatmul.mubr.bf16.gmra.mrb[0].mxu0 %v4851
        %v5293 = vpop.f32.mrb[0].mxu0
        %v5294 = vadd.f32 %v4922, %v5293
        %v5295 = vpop.f32.mrb[0].mxu0
        %v5296 = vadd.f32 %v4926, %v5295
        %v5297 = vpop.f32.mrb[0].mxu0
        %v5298 = vpop.f32.mrb[0].mxu0
        %5299 = vdwg.mxu0
        %5300 = vmatprep.subr.bf16.mxu0 %v5134
        %5301 = vmatpush1.bf16.msra.mxu0 %v5133
        %5302 = vmatprep.subr.bf16.mxu0 %v5138
        %5303 = vmatpush1.bf16.msra.mxu0 %v5137
        %5304 = vmatprep.subr.bf16.mxu0 %v5142
        %5305 = vmatpush1.bf16.msra.mxu0 %v5141
        %5306 = vmatprep.subr.bf16.mxu0 %v5146
        %5307 = vmatpush1.bf16.msra.mxu0 %v5145
        %5308 = vmatprep.subr.bf16.mxu0 %v5150
        %5309 = vmatpush1.bf16.msra.mxu0 %v5149
        %5310 = vmatprep.subr.bf16.mxu0 %v5154
        %5311 = vmatpush1.bf16.msra.mxu0 %v5153
        %5312 = vmatprep.subr.bf16.mxu0 %v5158
        %5313 = vmatpush1.bf16.msra.mxu0 %v5157
        %5314 = vmatprep.subr.bf16.mxu0 %v5162
        %5315 = vmatpush1.bf16.msra.mxu0 %v5161
        %5316 = vmatprep.subr.bf16.mxu0 %v5166
        %5317 = vmatpush1.bf16.msra.mxu0 %v5165
        %5318 = vmatprep.subr.bf16.mxu0 %v5170
        %5319 = vmatpush1.bf16.msra.mxu0 %v5169
        %5320 = vmatprep.subr.bf16.mxu0 %v5174
        %5321 = vmatpush1.bf16.msra.mxu0 %v5173
        %5322 = vmatprep.subr.bf16.mxu0 %v5178
        %5323 = vmatpush1.bf16.msra.mxu0 %v5177
        %5324 = vmatprep.subr.bf16.mxu0 %v5182
        %5325 = vmatpush1.bf16.msra.mxu0 %v5181
        %5326 = vmatprep.subr.bf16.mxu0 %v5186
        %5327 = vmatpush1.bf16.msra.mxu0 %v5185
        %5328 = vmatprep.subr.bf16.mxu0 %v5190
        %5329 = vmatpush1.bf16.msra.mxu0 %v5189
        %5330 = vmatprep.subr.bf16.mxu0 %v5194
        %5331 = vmatpush1.bf16.msra.mxu0 %v5193
        %5332 = vmatprep.mubr.bf16.mxu0 %v4852
        %5333 = vmatmul.mubr.bf16.gmra.mrb[0].mxu0 %v4851
        %v5334 = vpop.f32.mrb[0].mxu0
        %v5335 = vadd.f32 %v4930, %v5334
        %v5336 = vpop.f32.mrb[0].mxu0
        %v5337 = vadd.f32 %v4934, %v5336
        %v5338 = vpop.f32.mrb[0].mxu0
        %v5339 = vpop.f32.mrb[0].mxu0
        %5340 = vdwg.mxu0
        %v5341 = vxor.u32 %v5294, 2147483648
        %v5342 = vmul.f32 %v5341, 1.442695
        %v5343 = vpow.pop %v5342
        %v5344 = vadd.f32 %v5343, 1.0
        %v5345 = vrcp.pop %v5344
        %v5346 = vmul.f32 1.0, %v5345
        %v5347 = vxor.u32 %v5296, 2147483648
        %v5348 = vmul.f32 %v5347, 1.442695
        %v5349 = vpow.pop %v5348
        %v5350 = vadd.f32 %v5349, 1.0
        %v5351 = vrcp.pop %v5350
        %v5352 = vmul.f32 1.0, %v5351
        %v5353 = vtanh.pop %v5335
        %v5354 = vxor.u32 %v5337, 2147483648
        %v5355 = vmul.f32 %v5354, 1.442695
        %v5356 = vpow.pop %v5355
        %v5357 = vadd.f32 %v5356, 1.0
        %v5358 = vrcp.pop %v5357
        %v5359 = vmul.f32 1.0, %v5358
        %v5360 = vmul.f32 %v5352, %v4846
        %v5361 = vmul.f32 %v5346, %v5353
        %v5362 = vadd.f32 %v5360, %v5361
        %v5363 = vtanh.pop %v5362
        %v5364 = vmul.f32 %v5359, %v5363
        %5365 = vst [vmem:[#allocation4] sm:$0xff] %v5364
        %5366 = vst [vmem:[#allocation5] sm:$0xff] %v5362
        %v5367 = vld [vmem:[%s1172] sm:$0xff]
        %v5368 = vld [vmem:[%s1174] sm:$0xff]
        %5369 = vst [vmem:[#allocation3] sm:$0xff] %v5364
        %5370 = vst [vmem:[#allocation3 + $0x8] sm:$0xff] %v5367
        %v5371 = vld [vmem:[#allocation3] sm:$0xff]
        %v5372 = vld [vmem:[#allocation3 + $0x8] sm:$0xff]
        %v5373 = vpack.c.bf16 %v5371, %v5371
        %v5374 = vpack.c.bf16 %v5372, %v5372
        %v5375 = vld [vmem:[%s1182] sm:$0xff]
        %v5376 = vld [vmem:[%s1182 + $0x8] sm:$0xff]
        %v5377 = vld [vmem:[%s1182 + $0x10] sm:$0xff]
        %v5378 = vld [vmem:[%s1182 + $0x18] sm:$0xff]
        %v5379 = vld [vmem:[%s1182 + $0x20] sm:$0xff]
        %v5380 = vld [vmem:[%s1182 + $0x28] sm:$0xff]
        %v5381 = vld [vmem:[%s1182 + $0x30] sm:$0xff]
        %v5382 = vld [vmem:[%s1182 + $0x38] sm:$0xff]
        %v5383 = vld [vmem:[%s1182 + $0x40] sm:$0xff]
        %v5384 = vld [vmem:[%s1182 + $0x48] sm:$0xff]
        %v5385 = vld [vmem:[%s1182 + $0x50] sm:$0xff]
        %v5386 = vld [vmem:[%s1182 + $0x58] sm:$0xff]
        %v5387 = vld [vmem:[%s1182 + $0x60] sm:$0xff]
        %v5388 = vld [vmem:[%s1182 + $0x68] sm:$0xff]
        %v5389 = vld [vmem:[%s1182 + $0x70] sm:$0xff]
        %v5390 = vld [vmem:[%s1182 + $0x78] sm:$0xff]
        %v5391 = vld [vmem:[%s1182 + $0x80] sm:$0xff]
        %v5392 = vld [vmem:[%s1182 + $0x88] sm:$0xff]
        %v5393 = vld [vmem:[%s1182 + $0x90] sm:$0xff]
        %v5394 = vld [vmem:[%s1182 + $0x98] sm:$0xff]
        %v5395 = vld [vmem:[%s1182 + $0xa0] sm:$0xff]
        %v5396 = vld [vmem:[%s1182 + $0xa8] sm:$0xff]
        %v5397 = vld [vmem:[%s1182 + $0xb0] sm:$0xff]
        %v5398 = vld [vmem:[%s1182 + $0xb8] sm:$0xff]
        %v5399 = vld [vmem:[%s1182 + $0xc0] sm:$0xff]
        %v5400 = vld [vmem:[%s1182 + $0xc8] sm:$0xff]
        %v5401 = vld [vmem:[%s1182 + $0xd0] sm:$0xff]
        %v5402 = vld [vmem:[%s1182 + $0xd8] sm:$0xff]
        %v5403 = vld [vmem:[%s1182 + $0xe0] sm:$0xff]
        %v5404 = vld [vmem:[%s1182 + $0xe8] sm:$0xff]
        %v5405 = vld [vmem:[%s1182 + $0xf0] sm:$0xff]
        %v5406 = vld [vmem:[%s1182 + $0xf8] sm:$0xff]
        %v5407 = vld [vmem:[%s1182 + $0x100] sm:$0xff]
        %v5408 = vld [vmem:[%s1182 + $0x108] sm:$0xff]
        %v5409 = vld [vmem:[%s1182 + $0x110] sm:$0xff]
        %v5410 = vld [vmem:[%s1182 + $0x118] sm:$0xff]
        %v5411 = vld [vmem:[%s1182 + $0x120] sm:$0xff]
        %v5412 = vld [vmem:[%s1182 + $0x128] sm:$0xff]
        %v5413 = vld [vmem:[%s1182 + $0x130] sm:$0xff]
        %v5414 = vld [vmem:[%s1182 + $0x138] sm:$0xff]
        %v5415 = vld [vmem:[%s1182 + $0x140] sm:$0xff]
        %v5416 = vld [vmem:[%s1182 + $0x148] sm:$0xff]
        %v5417 = vld [vmem:[%s1182 + $0x150] sm:$0xff]
        %v5418 = vld [vmem:[%s1182 + $0x158] sm:$0xff]
        %v5419 = vld [vmem:[%s1182 + $0x160] sm:$0xff]
        %v5420 = vld [vmem:[%s1182 + $0x168] sm:$0xff]
        %v5421 = vld [vmem:[%s1182 + $0x170] sm:$0xff]
        %v5422 = vld [vmem:[%s1182 + $0x178] sm:$0xff]
        %v5423 = vld [vmem:[%s1182 + $0x180] sm:$0xff]
        %v5424 = vld [vmem:[%s1182 + $0x188] sm:$0xff]
        %v5425 = vld [vmem:[%s1182 + $0x190] sm:$0xff]
        %v5426 = vld [vmem:[%s1182 + $0x198] sm:$0xff]
        %v5427 = vld [vmem:[%s1182 + $0x1a0] sm:$0xff]
        %v5428 = vld [vmem:[%s1182 + $0x1a8] sm:$0xff]
        %v5429 = vld [vmem:[%s1182 + $0x1b0] sm:$0xff]
        %v5430 = vld [vmem:[%s1182 + $0x1b8] sm:$0xff]
        %v5431 = vld [vmem:[%s1182 + $0x1c0] sm:$0xff]
        %v5432 = vld [vmem:[%s1182 + $0x1c8] sm:$0xff]
        %v5433 = vld [vmem:[%s1182 + $0x1d0] sm:$0xff]
        %v5434 = vld [vmem:[%s1182 + $0x1d8] sm:$0xff]
        %v5435 = vld [vmem:[%s1182 + $0x1e0] sm:$0xff]
        %v5436 = vld [vmem:[%s1182 + $0x1e8] sm:$0xff]
        %v5437 = vld [vmem:[%s1182 + $0x1f0] sm:$0xff]
        %v5438 = vld [vmem:[%s1182 + $0x1f8] sm:$0xff]
        %v5439 = vld [vmem:[%s1247] sm:$0xf]
        %v5441 = vlaneseq
        %v5442 = vshrl.u32 %v5441, 7
        %v5443 = vsub.s32 0, %v5442
        %v5444 = vrot.slane %v5439, %v5443
        %v5445 = vlaneseq
        %v5446 = vshrl.u32 %v5445, 7
        %v5447 = vsub.s32 1, %v5446
        %v5448 = vrot.slane %v5439, %v5447
        %v5449 = vlaneseq
        %v5450 = vshrl.u32 %v5449, 7
        %v5451 = vsub.s32 2, %v5450
        %v5452 = vrot.slane %v5439, %v5451
        %v5453 = vlaneseq
        %v5454 = vshrl.u32 %v5453, 7
        %v5455 = vsub.s32 3, %v5454
        %v5456 = vrot.slane %v5439, %v5455
        %v5525 = vunpack.c.l.b16 %v5375
        %v5526 = vunpack.c.h.b16 %v5375
        %v5527 = vunpack.c.l.b16 %v5376
        %v5528 = vunpack.c.h.b16 %v5376
        %v5529 = vunpack.c.l.b16 %v5377
        %v5530 = vunpack.c.h.b16 %v5377
        %v5531 = vunpack.c.l.b16 %v5378
        %v5532 = vunpack.c.h.b16 %v5378
        %v5533 = vunpack.c.l.b16 %v5379
        %v5534 = vunpack.c.h.b16 %v5379
        %v5535 = vunpack.c.l.b16 %v5380
        %v5536 = vunpack.c.h.b16 %v5380
        %v5537 = vunpack.c.l.b16 %v5381
        %v5538 = vunpack.c.h.b16 %v5381
        %v5539 = vunpack.c.l.b16 %v5382
        %v5540 = vunpack.c.h.b16 %v5382
        %v5541 = vunpack.c.l.b16 %v5383
        %v5542 = vunpack.c.h.b16 %v5383
        %v5543 = vunpack.c.l.b16 %v5384
        %v5544 = vunpack.c.h.b16 %v5384
        %v5545 = vunpack.c.l.b16 %v5385
        %v5546 = vunpack.c.h.b16 %v5385
        %v5547 = vunpack.c.l.b16 %v5386
        %v5548 = vunpack.c.h.b16 %v5386
        %v5549 = vunpack.c.l.b16 %v5387
        %v5550 = vunpack.c.h.b16 %v5387
        %v5551 = vunpack.c.l.b16 %v5388
        %v5552 = vunpack.c.h.b16 %v5388
        %v5553 = vunpack.c.l.b16 %v5389
        %v5554 = vunpack.c.h.b16 %v5389
        %v5555 = vunpack.c.l.b16 %v5390
        %v5556 = vunpack.c.h.b16 %v5390
        %v5557 = vunpack.c.l.b16 %v5391
        %v5558 = vunpack.c.h.b16 %v5391
        %v5559 = vunpack.c.l.b16 %v5392
        %v5560 = vunpack.c.h.b16 %v5392
        %v5561 = vunpack.c.l.b16 %v5393
        %v5562 = vunpack.c.h.b16 %v5393
        %v5563 = vunpack.c.l.b16 %v5394
        %v5564 = vunpack.c.h.b16 %v5394
        %v5565 = vunpack.c.l.b16 %v5395
        %v5566 = vunpack.c.h.b16 %v5395
        %v5567 = vunpack.c.l.b16 %v5396
        %v5568 = vunpack.c.h.b16 %v5396
        %v5569 = vunpack.c.l.b16 %v5397
        %v5570 = vunpack.c.h.b16 %v5397
        %v5571 = vunpack.c.l.b16 %v5398
        %v5572 = vunpack.c.h.b16 %v5398
        %v5573 = vunpack.c.l.b16 %v5399
        %v5574 = vunpack.c.h.b16 %v5399
        %v5575 = vunpack.c.l.b16 %v5400
        %v5576 = vunpack.c.h.b16 %v5400
        %v5577 = vunpack.c.l.b16 %v5401
        %v5578 = vunpack.c.h.b16 %v5401
        %v5579 = vunpack.c.l.b16 %v5402
        %v5580 = vunpack.c.h.b16 %v5402
        %v5581 = vunpack.c.l.b16 %v5403
        %v5582 = vunpack.c.h.b16 %v5403
        %v5583 = vunpack.c.l.b16 %v5404
        %v5584 = vunpack.c.h.b16 %v5404
        %v5585 = vunpack.c.l.b16 %v5405
        %v5586 = vunpack.c.h.b16 %v5405
        %v5587 = vunpack.c.l.b16 %v5406
        %v5588 = vunpack.c.h.b16 %v5406
        %v5589 = vunpack.c.l.b16 %v5407
        %v5590 = vunpack.c.h.b16 %v5407
        %v5591 = vunpack.c.l.b16 %v5408
        %v5592 = vunpack.c.h.b16 %v5408
        %v5593 = vunpack.c.l.b16 %v5409
        %v5594 = vunpack.c.h.b16 %v5409
        %v5595 = vunpack.c.l.b16 %v5410
        %v5596 = vunpack.c.h.b16 %v5410
        %v5597 = vunpack.c.l.b16 %v5411
        %v5598 = vunpack.c.h.b16 %v5411
        %v5599 = vunpack.c.l.b16 %v5412
        %v5600 = vunpack.c.h.b16 %v5412
        %v5601 = vunpack.c.l.b16 %v5413
        %v5602 = vunpack.c.h.b16 %v5413
        %v5603 = vunpack.c.l.b16 %v5414
        %v5604 = vunpack.c.h.b16 %v5414
        %v5605 = vunpack.c.l.b16 %v5415
        %v5606 = vunpack.c.h.b16 %v5415
        %v5607 = vunpack.c.l.b16 %v5416
        %v5608 = vunpack.c.h.b16 %v5416
        %v5609 = vunpack.c.l.b16 %v5417
        %v5610 = vunpack.c.h.b16 %v5417
        %v5611 = vunpack.c.l.b16 %v5418
        %v5612 = vunpack.c.h.b16 %v5418
        %v5613 = vunpack.c.l.b16 %v5419
        %v5614 = vunpack.c.h.b16 %v5419
        %v5615 = vunpack.c.l.b16 %v5420
        %v5616 = vunpack.c.h.b16 %v5420
        %v5617 = vunpack.c.l.b16 %v5421
        %v5618 = vunpack.c.h.b16 %v5421
        %v5619 = vunpack.c.l.b16 %v5422
        %v5620 = vunpack.c.h.b16 %v5422
        %v5621 = vunpack.c.l.b16 %v5423
        %v5622 = vunpack.c.h.b16 %v5423
        %v5623 = vunpack.c.l.b16 %v5424
        %v5624 = vunpack.c.h.b16 %v5424
        %v5625 = vunpack.c.l.b16 %v5425
        %v5626 = vunpack.c.h.b16 %v5425
        %v5627 = vunpack.c.l.b16 %v5426
        %v5628 = vunpack.c.h.b16 %v5426
        %v5629 = vunpack.c.l.b16 %v5427
        %v5630 = vunpack.c.h.b16 %v5427
        %v5631 = vunpack.c.l.b16 %v5428
        %v5632 = vunpack.c.h.b16 %v5428
        %v5633 = vunpack.c.l.b16 %v5429
        %v5634 = vunpack.c.h.b16 %v5429
        %v5635 = vunpack.c.l.b16 %v5430
        %v5636 = vunpack.c.h.b16 %v5430
        %v5637 = vunpack.c.l.b16 %v5431
        %v5638 = vunpack.c.h.b16 %v5431
        %v5639 = vunpack.c.l.b16 %v5432
        %v5640 = vunpack.c.h.b16 %v5432
        %v5641 = vunpack.c.l.b16 %v5433
        %v5642 = vunpack.c.h.b16 %v5433
        %v5643 = vunpack.c.l.b16 %v5434
        %v5644 = vunpack.c.h.b16 %v5434
        %v5645 = vunpack.c.l.b16 %v5435
        %v5646 = vunpack.c.h.b16 %v5435
        %v5647 = vunpack.c.l.b16 %v5436
        %v5648 = vunpack.c.h.b16 %v5436
        %v5649 = vunpack.c.l.b16 %v5437
        %v5650 = vunpack.c.h.b16 %v5437
        %v5651 = vunpack.c.l.b16 %v5438
        %v5652 = vunpack.c.h.b16 %v5438
        %v5653 = vpack.c.b16 %v5529, %v5525
        %v5654 = vpack.c.b16 %v5530, %v5526
        %v5655 = vpack.c.b16 %v5531, %v5527
        %v5656 = vpack.c.b16 %v5532, %v5528
        %v5657 = vpack.c.b16 %v5537, %v5533
        %v5658 = vpack.c.b16 %v5538, %v5534
        %v5659 = vpack.c.b16 %v5539, %v5535
        %v5660 = vpack.c.b16 %v5540, %v5536
        %v5661 = vpack.c.b16 %v5545, %v5541
        %v5662 = vpack.c.b16 %v5546, %v5542
        %v5663 = vpack.c.b16 %v5547, %v5543
        %v5664 = vpack.c.b16 %v5548, %v5544
        %v5665 = vpack.c.b16 %v5553, %v5549
        %v5666 = vpack.c.b16 %v5554, %v5550
        %v5667 = vpack.c.b16 %v5555, %v5551
        %v5668 = vpack.c.b16 %v5556, %v5552
        %v5669 = vpack.c.b16 %v5561, %v5557
        %v5670 = vpack.c.b16 %v5562, %v5558
        %v5671 = vpack.c.b16 %v5563, %v5559
        %v5672 = vpack.c.b16 %v5564, %v5560
        %v5673 = vpack.c.b16 %v5569, %v5565
        %v5674 = vpack.c.b16 %v5570, %v5566
        %v5675 = vpack.c.b16 %v5571, %v5567
        %v5676 = vpack.c.b16 %v5572, %v5568
        %v5677 = vpack.c.b16 %v5577, %v5573
        %v5678 = vpack.c.b16 %v5578, %v5574
        %v5679 = vpack.c.b16 %v5579, %v5575
        %v5680 = vpack.c.b16 %v5580, %v5576
        %v5681 = vpack.c.b16 %v5585, %v5581
        %v5682 = vpack.c.b16 %v5586, %v5582
        %v5683 = vpack.c.b16 %v5587, %v5583
        %v5684 = vpack.c.b16 %v5588, %v5584
        %v5685 = vpack.c.b16 %v5593, %v5589
        %v5686 = vpack.c.b16 %v5594, %v5590
        %v5687 = vpack.c.b16 %v5595, %v5591
        %v5688 = vpack.c.b16 %v5596, %v5592
        %v5689 = vpack.c.b16 %v5601, %v5597
        %v5690 = vpack.c.b16 %v5602, %v5598
        %v5691 = vpack.c.b16 %v5603, %v5599
        %v5692 = vpack.c.b16 %v5604, %v5600
        %v5693 = vpack.c.b16 %v5609, %v5605
        %v5694 = vpack.c.b16 %v5610, %v5606
        %v5695 = vpack.c.b16 %v5611, %v5607
        %v5696 = vpack.c.b16 %v5612, %v5608
        %v5697 = vpack.c.b16 %v5617, %v5613
        %v5698 = vpack.c.b16 %v5618, %v5614
        %v5699 = vpack.c.b16 %v5619, %v5615
        %v5700 = vpack.c.b16 %v5620, %v5616
        %v5701 = vpack.c.b16 %v5625, %v5621
        %v5702 = vpack.c.b16 %v5626, %v5622
        %v5703 = vpack.c.b16 %v5627, %v5623
        %v5704 = vpack.c.b16 %v5628, %v5624
        %v5705 = vpack.c.b16 %v5633, %v5629
        %v5706 = vpack.c.b16 %v5634, %v5630
        %v5707 = vpack.c.b16 %v5635, %v5631
        %v5708 = vpack.c.b16 %v5636, %v5632
        %v5709 = vpack.c.b16 %v5641, %v5637
        %v5710 = vpack.c.b16 %v5642, %v5638
        %v5711 = vpack.c.b16 %v5643, %v5639
        %v5712 = vpack.c.b16 %v5644, %v5640
        %v5713 = vpack.c.b16 %v5649, %v5645
        %v5714 = vpack.c.b16 %v5650, %v5646
        %v5715 = vpack.c.b16 %v5651, %v5647
        %v5716 = vpack.c.b16 %v5652, %v5648
        %5781 = vmatprep.subr.bf16.mxu0 %v5654
        %5782 = vmatpush1.bf16.msra.mxu0 %v5653
        %5783 = vmatprep.subr.bf16.mxu0 %v5658
        %5784 = vmatpush1.bf16.msra.mxu0 %v5657
        %5785 = vmatprep.subr.bf16.mxu0 %v5662
        %5786 = vmatpush1.bf16.msra.mxu0 %v5661
        %5787 = vmatprep.subr.bf16.mxu0 %v5666
        %5788 = vmatpush1.bf16.msra.mxu0 %v5665
        %5789 = vmatprep.subr.bf16.mxu0 %v5670
        %5790 = vmatpush1.bf16.msra.mxu0 %v5669
        %5791 = vmatprep.subr.bf16.mxu0 %v5674
        %5792 = vmatpush1.bf16.msra.mxu0 %v5673
        %5793 = vmatprep.subr.bf16.mxu0 %v5678
        %5794 = vmatpush1.bf16.msra.mxu0 %v5677
        %5795 = vmatprep.subr.bf16.mxu0 %v5682
        %5796 = vmatpush1.bf16.msra.mxu0 %v5681
        %5797 = vmatprep.subr.bf16.mxu0 %v5686
        %5798 = vmatpush1.bf16.msra.mxu0 %v5685
        %5799 = vmatprep.subr.bf16.mxu0 %v5690
        %5800 = vmatpush1.bf16.msra.mxu0 %v5689
        %5801 = vmatprep.subr.bf16.mxu0 %v5694
        %5802 = vmatpush1.bf16.msra.mxu0 %v5693
        %5803 = vmatprep.subr.bf16.mxu0 %v5698
        %5804 = vmatpush1.bf16.msra.mxu0 %v5697
        %5805 = vmatprep.subr.bf16.mxu0 %v5702
        %5806 = vmatpush1.bf16.msra.mxu0 %v5701
        %5807 = vmatprep.subr.bf16.mxu0 %v5706
        %5808 = vmatpush1.bf16.msra.mxu0 %v5705
        %5809 = vmatprep.subr.bf16.mxu0 %v5710
        %5810 = vmatpush1.bf16.msra.mxu0 %v5709
        %5811 = vmatprep.subr.bf16.mxu0 %v5714
        %5812 = vmatpush1.bf16.msra.mxu0 %v5713
        %5813 = vmatprep.mubr.bf16.mxu0 %v5374
        %5814 = vmatmul.mubr.bf16.gmra.mrb[0].mxu0 %v5373
        %v5815 = vpop.f32.mrb[0].mxu0
        %v5816 = vadd.f32 %v5444, %v5815
        %v5817 = vpop.f32.mrb[0].mxu0
        %v5818 = vadd.f32 %v5448, %v5817
        %v5819 = vpop.f32.mrb[0].mxu0
        %v5820 = vpop.f32.mrb[0].mxu0
        %5821 = vdwg.mxu0
        %5822 = vmatprep.subr.bf16.mxu0 %v5656
        %5823 = vmatpush1.bf16.msra.mxu0 %v5655
        %5824 = vmatprep.subr.bf16.mxu0 %v5660
        %5825 = vmatpush1.bf16.msra.mxu0 %v5659
        %5826 = vmatprep.subr.bf16.mxu0 %v5664
        %5827 = vmatpush1.bf16.msra.mxu0 %v5663
        %5828 = vmatprep.subr.bf16.mxu0 %v5668
        %5829 = vmatpush1.bf16.msra.mxu0 %v5667
        %5830 = vmatprep.subr.bf16.mxu0 %v5672
        %5831 = vmatpush1.bf16.msra.mxu0 %v5671
        %5832 = vmatprep.subr.bf16.mxu0 %v5676
        %5833 = vmatpush1.bf16.msra.mxu0 %v5675
        %5834 = vmatprep.subr.bf16.mxu0 %v5680
        %5835 = vmatpush1.bf16.msra.mxu0 %v5679
        %5836 = vmatprep.subr.bf16.mxu0 %v5684
        %5837 = vmatpush1.bf16.msra.mxu0 %v5683
        %5838 = vmatprep.subr.bf16.mxu0 %v5688
        %5839 = vmatpush1.bf16.msra.mxu0 %v5687
        %5840 = vmatprep.subr.bf16.mxu0 %v5692
        %5841 = vmatpush1.bf16.msra.mxu0 %v5691
        %5842 = vmatprep.subr.bf16.mxu0 %v5696
        %5843 = vmatpush1.bf16.msra.mxu0 %v5695
        %5844 = vmatprep.subr.bf16.mxu0 %v5700
        %5845 = vmatpush1.bf16.msra.mxu0 %v5699
        %5846 = vmatprep.subr.bf16.mxu0 %v5704
        %5847 = vmatpush1.bf16.msra.mxu0 %v5703
        %5848 = vmatprep.subr.bf16.mxu0 %v5708
        %5849 = vmatpush1.bf16.msra.mxu0 %v5707
        %5850 = vmatprep.subr.bf16.mxu0 %v5712
        %5851 = vmatpush1.bf16.msra.mxu0 %v5711
        %5852 = vmatprep.subr.bf16.mxu0 %v5716
        %5853 = vmatpush1.bf16.msra.mxu0 %v5715
        %5854 = vmatprep.mubr.bf16.mxu0 %v5374
        %5855 = vmatmul.mubr.bf16.gmra.mrb[0].mxu0 %v5373
        %v5856 = vpop.f32.mrb[0].mxu0
        %v5857 = vadd.f32 %v5452, %v5856
        %v5858 = vpop.f32.mrb[0].mxu0
        %v5859 = vadd.f32 %v5456, %v5858
        %v5860 = vpop.f32.mrb[0].mxu0
        %v5861 = vpop.f32.mrb[0].mxu0
        %5862 = vdwg.mxu0
        %v5863 = vxor.u32 %v5816, 2147483648
        %v5864 = vmul.f32 %v5863, 1.442695
        %v5865 = vpow.pop %v5864
        %v5866 = vadd.f32 %v5865, 1.0
        %v5867 = vrcp.pop %v5866
        %v5868 = vmul.f32 1.0, %v5867
        %v5869 = vxor.u32 %v5818, 2147483648
        %v5870 = vmul.f32 %v5869, 1.442695
        %v5871 = vpow.pop %v5870
        %v5872 = vadd.f32 %v5871, 1.0
        %v5873 = vrcp.pop %v5872
        %v5874 = vmul.f32 1.0, %v5873
        %v5875 = vtanh.pop %v5857
        %v5876 = vxor.u32 %v5859, 2147483648
        %v5877 = vmul.f32 %v5876, 1.442695
        %v5878 = vpow.pop %v5877
        %v5879 = vadd.f32 %v5878, 1.0
        %v5880 = vrcp.pop %v5879
        %v5881 = vmul.f32 1.0, %v5880
        %v5882 = vmul.f32 %v5874, %v5368
        %v5883 = vmul.f32 %v5868, %v5875
        %v5884 = vadd.f32 %v5882, %v5883
        %v5885 = vtanh.pop %v5884
        %v5886 = vmul.f32 %v5881, %v5885
        %5887 = vst [vmem:[%s1172] sm:$0xff] %v5886
        %5888 = vst [vmem:[%s1174] sm:$0xff] %v5884
        %s5889 = scalar_lea.vmem [#allocation6], 32
        %5890 = vst [vmem:[%s5889] sm:$0xff] %v5886
        %s5891 = scalar_lea.vmem [#allocation2], 40
        %v5892 = vld [vmem:[%s5891] sm:$0xff]
        %v5893 = vld [vmem:[#allocation4] sm:$0xff]
        %v5894 = vld [vmem:[#allocation5] sm:$0xff]
        %5895 = vst [vmem:[#allocation3] sm:$0xff] %v5892
        %5896 = vst [vmem:[#allocation3 + $0x8] sm:$0xff] %v5893
        %v5897 = vld [vmem:[#allocation3] sm:$0xff]
        %v5898 = vld [vmem:[#allocation3 + $0x8] sm:$0xff]
        %v5899 = vpack.c.bf16 %v5897, %v5897
        %v5900 = vpack.c.bf16 %v5898, %v5898
        %v5901 = vld [vmem:[#allocation7] sm:$0xff]
        %v5902 = vld [vmem:[#allocation7 + $0x8] sm:$0xff]
        %v5903 = vld [vmem:[#allocation7 + $0x10] sm:$0xff]
        %v5904 = vld [vmem:[#allocation7 + $0x18] sm:$0xff]
        %v5905 = vld [vmem:[#allocation7 + $0x20] sm:$0xff]
        %v5906 = vld [vmem:[#allocation7 + $0x28] sm:$0xff]
        %v5907 = vld [vmem:[#allocation7 + $0x30] sm:$0xff]
        %v5908 = vld [vmem:[#allocation7 + $0x38] sm:$0xff]
        %v5909 = vld [vmem:[#allocation7 + $0x40] sm:$0xff]
        %v5910 = vld [vmem:[#allocation7 + $0x48] sm:$0xff]
        %v5911 = vld [vmem:[#allocation7 + $0x50] sm:$0xff]
        %v5912 = vld [vmem:[#allocation7 + $0x58] sm:$0xff]
        %v5913 = vld [vmem:[#allocation7 + $0x60] sm:$0xff]
        %v5914 = vld [vmem:[#allocation7 + $0x68] sm:$0xff]
        %v5915 = vld [vmem:[#allocation7 + $0x70] sm:$0xff]
        %v5916 = vld [vmem:[#allocation7 + $0x78] sm:$0xff]
        %v5917 = vld [vmem:[#allocation7 + $0x80] sm:$0xff]
        %v5918 = vld [vmem:[#allocation7 + $0x88] sm:$0xff]
        %v5919 = vld [vmem:[#allocation7 + $0x90] sm:$0xff]
        %v5920 = vld [vmem:[#allocation7 + $0x98] sm:$0xff]
        %v5921 = vld [vmem:[#allocation7 + $0xa0] sm:$0xff]
        %v5922 = vld [vmem:[#allocation7 + $0xa8] sm:$0xff]
        %v5923 = vld [vmem:[#allocation7 + $0xb0] sm:$0xff]
        %v5924 = vld [vmem:[#allocation7 + $0xb8] sm:$0xff]
        %v5925 = vld [vmem:[#allocation7 + $0xc0] sm:$0xff]
        %v5926 = vld [vmem:[#allocation7 + $0xc8] sm:$0xff]
        %v5927 = vld [vmem:[#allocation7 + $0xd0] sm:$0xff]
        %v5928 = vld [vmem:[#allocation7 + $0xd8] sm:$0xff]
        %v5929 = vld [vmem:[#allocation7 + $0xe0] sm:$0xff]
        %v5930 = vld [vmem:[#allocation7 + $0xe8] sm:$0xff]
        %v5931 = vld [vmem:[#allocation7 + $0xf0] sm:$0xff]
        %v5932 = vld [vmem:[#allocation7 + $0xf8] sm:$0xff]
        %v5933 = vld [vmem:[#allocation7 + $0x100] sm:$0xff]
        %v5934 = vld [vmem:[#allocation7 + $0x108] sm:$0xff]
        %v5935 = vld [vmem:[#allocation7 + $0x110] sm:$0xff]
        %v5936 = vld [vmem:[#allocation7 + $0x118] sm:$0xff]
        %v5937 = vld [vmem:[#allocation7 + $0x120] sm:$0xff]
        %v5938 = vld [vmem:[#allocation7 + $0x128] sm:$0xff]
        %v5939 = vld [vmem:[#allocation7 + $0x130] sm:$0xff]
        %v5940 = vld [vmem:[#allocation7 + $0x138] sm:$0xff]
        %v5941 = vld [vmem:[#allocation7 + $0x140] sm:$0xff]
        %v5942 = vld [vmem:[#allocation7 + $0x148] sm:$0xff]
        %v5943 = vld [vmem:[#allocation7 + $0x150] sm:$0xff]
        %v5944 = vld [vmem:[#allocation7 + $0x158] sm:$0xff]
        %v5945 = vld [vmem:[#allocation7 + $0x160] sm:$0xff]
        %v5946 = vld [vmem:[#allocation7 + $0x168] sm:$0xff]
        %v5947 = vld [vmem:[#allocation7 + $0x170] sm:$0xff]
        %v5948 = vld [vmem:[#allocation7 + $0x178] sm:$0xff]
        %v5949 = vld [vmem:[#allocation7 + $0x180] sm:$0xff]
        %v5950 = vld [vmem:[#allocation7 + $0x188] sm:$0xff]
        %v5951 = vld [vmem:[#allocation7 + $0x190] sm:$0xff]
        %v5952 = vld [vmem:[#allocation7 + $0x198] sm:$0xff]
        %v5953 = vld [vmem:[#allocation7 + $0x1a0] sm:$0xff]
        %v5954 = vld [vmem:[#allocation7 + $0x1a8] sm:$0xff]
        %v5955 = vld [vmem:[#allocation7 + $0x1b0] sm:$0xff]
        %v5956 = vld [vmem:[#allocation7 + $0x1b8] sm:$0xff]
        %v5957 = vld [vmem:[#allocation7 + $0x1c0] sm:$0xff]
        %v5958 = vld [vmem:[#allocation7 + $0x1c8] sm:$0xff]
        %v5959 = vld [vmem:[#allocation7 + $0x1d0] sm:$0xff]
        %v5960 = vld [vmem:[#allocation7 + $0x1d8] sm:$0xff]
        %v5961 = vld [vmem:[#allocation7 + $0x1e0] sm:$0xff]
        %v5962 = vld [vmem:[#allocation7 + $0x1e8] sm:$0xff]
        %v5963 = vld [vmem:[#allocation7 + $0x1f0] sm:$0xff]
        %v5964 = vld [vmem:[#allocation7 + $0x1f8] sm:$0xff]
        %v5965 = vld [vmem:[%s5] sm:$0xf]
        %v5967 = vlaneseq
        %v5968 = vshrl.u32 %v5967, 7
        %v5969 = vsub.s32 0, %v5968
        %v5970 = vrot.slane %v5965, %v5969
        %v5971 = vlaneseq
        %v5972 = vshrl.u32 %v5971, 7
        %v5973 = vsub.s32 1, %v5972
        %v5974 = vrot.slane %v5965, %v5973
        %v5975 = vlaneseq
        %v5976 = vshrl.u32 %v5975, 7
        %v5977 = vsub.s32 2, %v5976
        %v5978 = vrot.slane %v5965, %v5977
        %v5979 = vlaneseq
        %v5980 = vshrl.u32 %v5979, 7
        %v5981 = vsub.s32 3, %v5980
        %v5982 = vrot.slane %v5965, %v5981
        %v6051 = vunpack.c.l.b16 %v5901
        %v6052 = vunpack.c.h.b16 %v5901
        %v6053 = vunpack.c.l.b16 %v5902
        %v6054 = vunpack.c.h.b16 %v5902
        %v6055 = vunpack.c.l.b16 %v5903
        %v6056 = vunpack.c.h.b16 %v5903
        %v6057 = vunpack.c.l.b16 %v5904
        %v6058 = vunpack.c.h.b16 %v5904
        %v6059 = vunpack.c.l.b16 %v5905
        %v6060 = vunpack.c.h.b16 %v5905
        %v6061 = vunpack.c.l.b16 %v5906
        %v6062 = vunpack.c.h.b16 %v5906
        %v6063 = vunpack.c.l.b16 %v5907
        %v6064 = vunpack.c.h.b16 %v5907
        %v6065 = vunpack.c.l.b16 %v5908
        %v6066 = vunpack.c.h.b16 %v5908
        %v6067 = vunpack.c.l.b16 %v5909
        %v6068 = vunpack.c.h.b16 %v5909
        %v6069 = vunpack.c.l.b16 %v5910
        %v6070 = vunpack.c.h.b16 %v5910
        %v6071 = vunpack.c.l.b16 %v5911
        %v6072 = vunpack.c.h.b16 %v5911
        %v6073 = vunpack.c.l.b16 %v5912
        %v6074 = vunpack.c.h.b16 %v5912
        %v6075 = vunpack.c.l.b16 %v5913
        %v6076 = vunpack.c.h.b16 %v5913
        %v6077 = vunpack.c.l.b16 %v5914
        %v6078 = vunpack.c.h.b16 %v5914
        %v6079 = vunpack.c.l.b16 %v5915
        %v6080 = vunpack.c.h.b16 %v5915
        %v6081 = vunpack.c.l.b16 %v5916
        %v6082 = vunpack.c.h.b16 %v5916
        %v6083 = vunpack.c.l.b16 %v5917
        %v6084 = vunpack.c.h.b16 %v5917
        %v6085 = vunpack.c.l.b16 %v5918
        %v6086 = vunpack.c.h.b16 %v5918
        %v6087 = vunpack.c.l.b16 %v5919
        %v6088 = vunpack.c.h.b16 %v5919
        %v6089 = vunpack.c.l.b16 %v5920
        %v6090 = vunpack.c.h.b16 %v5920
        %v6091 = vunpack.c.l.b16 %v5921
        %v6092 = vunpack.c.h.b16 %v5921
        %v6093 = vunpack.c.l.b16 %v5922
        %v6094 = vunpack.c.h.b16 %v5922
        %v6095 = vunpack.c.l.b16 %v5923
        %v6096 = vunpack.c.h.b16 %v5923
        %v6097 = vunpack.c.l.b16 %v5924
        %v6098 = vunpack.c.h.b16 %v5924
        %v6099 = vunpack.c.l.b16 %v5925
        %v6100 = vunpack.c.h.b16 %v5925
        %v6101 = vunpack.c.l.b16 %v5926
        %v6102 = vunpack.c.h.b16 %v5926
        %v6103 = vunpack.c.l.b16 %v5927
        %v6104 = vunpack.c.h.b16 %v5927
        %v6105 = vunpack.c.l.b16 %v5928
        %v6106 = vunpack.c.h.b16 %v5928
        %v6107 = vunpack.c.l.b16 %v5929
        %v6108 = vunpack.c.h.b16 %v5929
        %v6109 = vunpack.c.l.b16 %v5930
        %v6110 = vunpack.c.h.b16 %v5930
        %v6111 = vunpack.c.l.b16 %v5931
        %v6112 = vunpack.c.h.b16 %v5931
        %v6113 = vunpack.c.l.b16 %v5932
        %v6114 = vunpack.c.h.b16 %v5932
        %v6115 = vunpack.c.l.b16 %v5933
        %v6116 = vunpack.c.h.b16 %v5933
        %v6117 = vunpack.c.l.b16 %v5934
        %v6118 = vunpack.c.h.b16 %v5934
        %v6119 = vunpack.c.l.b16 %v5935
        %v6120 = vunpack.c.h.b16 %v5935
        %v6121 = vunpack.c.l.b16 %v5936
        %v6122 = vunpack.c.h.b16 %v5936
        %v6123 = vunpack.c.l.b16 %v5937
        %v6124 = vunpack.c.h.b16 %v5937
        %v6125 = vunpack.c.l.b16 %v5938
        %v6126 = vunpack.c.h.b16 %v5938
        %v6127 = vunpack.c.l.b16 %v5939
        %v6128 = vunpack.c.h.b16 %v5939
        %v6129 = vunpack.c.l.b16 %v5940
        %v6130 = vunpack.c.h.b16 %v5940
        %v6131 = vunpack.c.l.b16 %v5941
        %v6132 = vunpack.c.h.b16 %v5941
        %v6133 = vunpack.c.l.b16 %v5942
        %v6134 = vunpack.c.h.b16 %v5942
        %v6135 = vunpack.c.l.b16 %v5943
        %v6136 = vunpack.c.h.b16 %v5943
        %v6137 = vunpack.c.l.b16 %v5944
        %v6138 = vunpack.c.h.b16 %v5944
        %v6139 = vunpack.c.l.b16 %v5945
        %v6140 = vunpack.c.h.b16 %v5945
        %v6141 = vunpack.c.l.b16 %v5946
        %v6142 = vunpack.c.h.b16 %v5946
        %v6143 = vunpack.c.l.b16 %v5947
        %v6144 = vunpack.c.h.b16 %v5947
        %v6145 = vunpack.c.l.b16 %v5948
        %v6146 = vunpack.c.h.b16 %v5948
        %v6147 = vunpack.c.l.b16 %v5949
        %v6148 = vunpack.c.h.b16 %v5949
        %v6149 = vunpack.c.l.b16 %v5950
        %v6150 = vunpack.c.h.b16 %v5950
        %v6151 = vunpack.c.l.b16 %v5951
        %v6152 = vunpack.c.h.b16 %v5951
        %v6153 = vunpack.c.l.b16 %v5952
        %v6154 = vunpack.c.h.b16 %v5952
        %v6155 = vunpack.c.l.b16 %v5953
        %v6156 = vunpack.c.h.b16 %v5953
        %v6157 = vunpack.c.l.b16 %v5954
        %v6158 = vunpack.c.h.b16 %v5954
        %v6159 = vunpack.c.l.b16 %v5955
        %v6160 = vunpack.c.h.b16 %v5955
        %v6161 = vunpack.c.l.b16 %v5956
        %v6162 = vunpack.c.h.b16 %v5956
        %v6163 = vunpack.c.l.b16 %v5957
        %v6164 = vunpack.c.h.b16 %v5957
        %v6165 = vunpack.c.l.b16 %v5958
        %v6166 = vunpack.c.h.b16 %v5958
        %v6167 = vunpack.c.l.b16 %v5959
        %v6168 = vunpack.c.h.b16 %v5959
        %v6169 = vunpack.c.l.b16 %v5960
        %v6170 = vunpack.c.h.b16 %v5960
        %v6171 = vunpack.c.l.b16 %v5961
        %v6172 = vunpack.c.h.b16 %v5961
        %v6173 = vunpack.c.l.b16 %v5962
        %v6174 = vunpack.c.h.b16 %v5962
        %v6175 = vunpack.c.l.b16 %v5963
        %v6176 = vunpack.c.h.b16 %v5963
        %v6177 = vunpack.c.l.b16 %v5964
        %v6178 = vunpack.c.h.b16 %v5964
        %v6179 = vpack.c.b16 %v6055, %v6051
        %v6180 = vpack.c.b16 %v6056, %v6052
        %v6181 = vpack.c.b16 %v6057, %v6053
        %v6182 = vpack.c.b16 %v6058, %v6054
        %v6183 = vpack.c.b16 %v6063, %v6059
        %v6184 = vpack.c.b16 %v6064, %v6060
        %v6185 = vpack.c.b16 %v6065, %v6061
        %v6186 = vpack.c.b16 %v6066, %v6062
        %v6187 = vpack.c.b16 %v6071, %v6067
        %v6188 = vpack.c.b16 %v6072, %v6068
        %v6189 = vpack.c.b16 %v6073, %v6069
        %v6190 = vpack.c.b16 %v6074, %v6070
        %v6191 = vpack.c.b16 %v6079, %v6075
        %v6192 = vpack.c.b16 %v6080, %v6076
        %v6193 = vpack.c.b16 %v6081, %v6077
        %v6194 = vpack.c.b16 %v6082, %v6078
        %v6195 = vpack.c.b16 %v6087, %v6083
        %v6196 = vpack.c.b16 %v6088, %v6084
        %v6197 = vpack.c.b16 %v6089, %v6085
        %v6198 = vpack.c.b16 %v6090, %v6086
        %v6199 = vpack.c.b16 %v6095, %v6091
        %v6200 = vpack.c.b16 %v6096, %v6092
        %v6201 = vpack.c.b16 %v6097, %v6093
        %v6202 = vpack.c.b16 %v6098, %v6094
        %v6203 = vpack.c.b16 %v6103, %v6099
        %v6204 = vpack.c.b16 %v6104, %v6100
        %v6205 = vpack.c.b16 %v6105, %v6101
        %v6206 = vpack.c.b16 %v6106, %v6102
        %v6207 = vpack.c.b16 %v6111, %v6107
        %v6208 = vpack.c.b16 %v6112, %v6108
        %v6209 = vpack.c.b16 %v6113, %v6109
        %v6210 = vpack.c.b16 %v6114, %v6110
        %v6211 = vpack.c.b16 %v6119, %v6115
        %v6212 = vpack.c.b16 %v6120, %v6116
        %v6213 = vpack.c.b16 %v6121, %v6117
        %v6214 = vpack.c.b16 %v6122, %v6118
        %v6215 = vpack.c.b16 %v6127, %v6123
        %v6216 = vpack.c.b16 %v6128, %v6124
        %v6217 = vpack.c.b16 %v6129, %v6125
        %v6218 = vpack.c.b16 %v6130, %v6126
        %v6219 = vpack.c.b16 %v6135, %v6131
        %v6220 = vpack.c.b16 %v6136, %v6132
        %v6221 = vpack.c.b16 %v6137, %v6133
        %v6222 = vpack.c.b16 %v6138, %v6134
        %v6223 = vpack.c.b16 %v6143, %v6139
        %v6224 = vpack.c.b16 %v6144, %v6140
        %v6225 = vpack.c.b16 %v6145, %v6141
        %v6226 = vpack.c.b16 %v6146, %v6142
        %v6227 = vpack.c.b16 %v6151, %v6147
        %v6228 = vpack.c.b16 %v6152, %v6148
        %v6229 = vpack.c.b16 %v6153, %v6149
        %v6230 = vpack.c.b16 %v6154, %v6150
        %v6231 = vpack.c.b16 %v6159, %v6155
        %v6232 = vpack.c.b16 %v6160, %v6156
        %v6233 = vpack.c.b16 %v6161, %v6157
        %v6234 = vpack.c.b16 %v6162, %v6158
        %v6235 = vpack.c.b16 %v6167, %v6163
        %v6236 = vpack.c.b16 %v6168, %v6164
        %v6237 = vpack.c.b16 %v6169, %v6165
        %v6238 = vpack.c.b16 %v6170, %v6166
        %v6239 = vpack.c.b16 %v6175, %v6171
        %v6240 = vpack.c.b16 %v6176, %v6172
        %v6241 = vpack.c.b16 %v6177, %v6173
        %v6242 = vpack.c.b16 %v6178, %v6174
        %6307 = vmatprep.subr.bf16.mxu0 %v6180
        %6308 = vmatpush1.bf16.msra.mxu0 %v6179
        %6309 = vmatprep.subr.bf16.mxu0 %v6184
        %6310 = vmatpush1.bf16.msra.mxu0 %v6183
        %6311 = vmatprep.subr.bf16.mxu0 %v6188
        %6312 = vmatpush1.bf16.msra.mxu0 %v6187
        %6313 = vmatprep.subr.bf16.mxu0 %v6192
        %6314 = vmatpush1.bf16.msra.mxu0 %v6191
        %6315 = vmatprep.subr.bf16.mxu0 %v6196
        %6316 = vmatpush1.bf16.msra.mxu0 %v6195
        %6317 = vmatprep.subr.bf16.mxu0 %v6200
        %6318 = vmatpush1.bf16.msra.mxu0 %v6199
        %6319 = vmatprep.subr.bf16.mxu0 %v6204
        %6320 = vmatpush1.bf16.msra.mxu0 %v6203
        %6321 = vmatprep.subr.bf16.mxu0 %v6208
        %6322 = vmatpush1.bf16.msra.mxu0 %v6207
        %6323 = vmatprep.subr.bf16.mxu0 %v6212
        %6324 = vmatpush1.bf16.msra.mxu0 %v6211
        %6325 = vmatprep.subr.bf16.mxu0 %v6216
        %6326 = vmatpush1.bf16.msra.mxu0 %v6215
        %6327 = vmatprep.subr.bf16.mxu0 %v6220
        %6328 = vmatpush1.bf16.msra.mxu0 %v6219
        %6329 = vmatprep.subr.bf16.mxu0 %v6224
        %6330 = vmatpush1.bf16.msra.mxu0 %v6223
        %6331 = vmatprep.subr.bf16.mxu0 %v6228
        %6332 = vmatpush1.bf16.msra.mxu0 %v6227
        %6333 = vmatprep.subr.bf16.mxu0 %v6232
        %6334 = vmatpush1.bf16.msra.mxu0 %v6231
        %6335 = vmatprep.subr.bf16.mxu0 %v6236
        %6336 = vmatpush1.bf16.msra.mxu0 %v6235
        %6337 = vmatprep.subr.bf16.mxu0 %v6240
        %6338 = vmatpush1.bf16.msra.mxu0 %v6239
        %6339 = vmatprep.mubr.bf16.mxu0 %v5900
        %6340 = vmatmul.mubr.bf16.gmra.mrb[0].mxu0 %v5899
        %v6341 = vpop.f32.mrb[0].mxu0
        %v6342 = vadd.f32 %v5970, %v6341
        %v6343 = vpop.f32.mrb[0].mxu0
        %v6344 = vadd.f32 %v5974, %v6343
        %v6345 = vpop.f32.mrb[0].mxu0
        %v6346 = vpop.f32.mrb[0].mxu0
        %6347 = vdwg.mxu0
        %6348 = vmatprep.subr.bf16.mxu0 %v6182
        %6349 = vmatpush1.bf16.msra.mxu0 %v6181
        %6350 = vmatprep.subr.bf16.mxu0 %v6186
        %6351 = vmatpush1.bf16.msra.mxu0 %v6185
        %6352 = vmatprep.subr.bf16.mxu0 %v6190
        %6353 = vmatpush1.bf16.msra.mxu0 %v6189
        %6354 = vmatprep.subr.bf16.mxu0 %v6194
        %6355 = vmatpush1.bf16.msra.mxu0 %v6193
        %6356 = vmatprep.subr.bf16.mxu0 %v6198
        %6357 = vmatpush1.bf16.msra.mxu0 %v6197
        %6358 = vmatprep.subr.bf16.mxu0 %v6202
        %6359 = vmatpush1.bf16.msra.mxu0 %v6201
        %6360 = vmatprep.subr.bf16.mxu0 %v6206
        %6361 = vmatpush1.bf16.msra.mxu0 %v6205
        %6362 = vmatprep.subr.bf16.mxu0 %v6210
        %6363 = vmatpush1.bf16.msra.mxu0 %v6209
        %6364 = vmatprep.subr.bf16.mxu0 %v6214
        %6365 = vmatpush1.bf16.msra.mxu0 %v6213
        %6366 = vmatprep.subr.bf16.mxu0 %v6218
        %6367 = vmatpush1.bf16.msra.mxu0 %v6217
        %6368 = vmatprep.subr.bf16.mxu0 %v6222
        %6369 = vmatpush1.bf16.msra.mxu0 %v6221
        %6370 = vmatprep.subr.bf16.mxu0 %v6226
        %6371 = vmatpush1.bf16.msra.mxu0 %v6225
        %6372 = vmatprep.subr.bf16.mxu0 %v6230
        %6373 = vmatpush1.bf16.msra.mxu0 %v6229
        %6374 = vmatprep.subr.bf16.mxu0 %v6234
        %6375 = vmatpush1.bf16.msra.mxu0 %v6233
        %6376 = vmatprep.subr.bf16.mxu0 %v6238
        %6377 = vmatpush1.bf16.msra.mxu0 %v6237
        %6378 = vmatprep.subr.bf16.mxu0 %v6242
        %6379 = vmatpush1.bf16.msra.mxu0 %v6241
        %6380 = vmatprep.mubr.bf16.mxu0 %v5900
        %6381 = vmatmul.mubr.bf16.gmra.mrb[0].mxu0 %v5899
        %v6382 = vpop.f32.mrb[0].mxu0
        %v6383 = vadd.f32 %v5978, %v6382
        %v6384 = vpop.f32.mrb[0].mxu0
        %v6385 = vadd.f32 %v5982, %v6384
        %v6386 = vpop.f32.mrb[0].mxu0
        %v6387 = vpop.f32.mrb[0].mxu0
        %6388 = vdwg.mxu0
        %v6389 = vxor.u32 %v6342, 2147483648
        %v6390 = vmul.f32 %v6389, 1.442695
        %v6391 = vpow.pop %v6390
        %v6392 = vadd.f32 %v6391, 1.0
        %v6393 = vrcp.pop %v6392
        %v6394 = vmul.f32 1.0, %v6393
        %v6395 = vxor.u32 %v6344, 2147483648
        %v6396 = vmul.f32 %v6395, 1.442695
        %v6397 = vpow.pop %v6396
        %v6398 = vadd.f32 %v6397, 1.0
        %v6399 = vrcp.pop %v6398
        %v6400 = vmul.f32 1.0, %v6399
        %v6401 = vtanh.pop %v6383
        %v6402 = vxor.u32 %v6385, 2147483648
        %v6403 = vmul.f32 %v6402, 1.442695
        %v6404 = vpow.pop %v6403
        %v6405 = vadd.f32 %v6404, 1.0
        %v6406 = vrcp.pop %v6405
        %v6407 = vmul.f32 1.0, %v6406
        %v6408 = vmul.f32 %v6400, %v5894
        %v6409 = vmul.f32 %v6394, %v6401
        %v6410 = vadd.f32 %v6408, %v6409
        %v6411 = vtanh.pop %v6410
        %v6412 = vmul.f32 %v6407, %v6411
        %6413 = vst [vmem:[#allocation4] sm:$0xff] %v6412
        %6414 = vst [vmem:[#allocation5] sm:$0xff] %v6410
        %v6415 = vld [vmem:[%s1172] sm:$0xff]
        %v6416 = vld [vmem:[%s1174] sm:$0xff]
        %6417 = vst [vmem:[#allocation3] sm:$0xff] %v6412
        %6418 = vst [vmem:[#allocation3 + $0x8] sm:$0xff] %v6415
        %v6419 = vld [vmem:[#allocation3] sm:$0xff]
        %v6420 = vld [vmem:[#allocation3 + $0x8] sm:$0xff]
        %v6421 = vpack.c.bf16 %v6419, %v6419
        %v6422 = vpack.c.bf16 %v6420, %v6420
        %v6423 = vld [vmem:[%s1182] sm:$0xff]
        %v6424 = vld [vmem:[%s1182 + $0x8] sm:$0xff]
        %v6425 = vld [vmem:[%s1182 + $0x10] sm:$0xff]
        %v6426 = vld [vmem:[%s1182 + $0x18] sm:$0xff]
        %v6427 = vld [vmem:[%s1182 + $0x20] sm:$0xff]
        %v6428 = vld [vmem:[%s1182 + $0x28] sm:$0xff]
        %v6429 = vld [vmem:[%s1182 + $0x30] sm:$0xff]
        %v6430 = vld [vmem:[%s1182 + $0x38] sm:$0xff]
        %v6431 = vld [vmem:[%s1182 + $0x40] sm:$0xff]
        %v6432 = vld [vmem:[%s1182 + $0x48] sm:$0xff]
        %v6433 = vld [vmem:[%s1182 + $0x50] sm:$0xff]
        %v6434 = vld [vmem:[%s1182 + $0x58] sm:$0xff]
        %v6435 = vld [vmem:[%s1182 + $0x60] sm:$0xff]
        %v6436 = vld [vmem:[%s1182 + $0x68] sm:$0xff]
        %v6437 = vld [vmem:[%s1182 + $0x70] sm:$0xff]
        %v6438 = vld [vmem:[%s1182 + $0x78] sm:$0xff]
        %v6439 = vld [vmem:[%s1182 + $0x80] sm:$0xff]
        %v6440 = vld [vmem:[%s1182 + $0x88] sm:$0xff]
        %v6441 = vld [vmem:[%s1182 + $0x90] sm:$0xff]
        %v6442 = vld [vmem:[%s1182 + $0x98] sm:$0xff]
        %v6443 = vld [vmem:[%s1182 + $0xa0] sm:$0xff]
        %v6444 = vld [vmem:[%s1182 + $0xa8] sm:$0xff]
        %v6445 = vld [vmem:[%s1182 + $0xb0] sm:$0xff]
        %v6446 = vld [vmem:[%s1182 + $0xb8] sm:$0xff]
        %v6447 = vld [vmem:[%s1182 + $0xc0] sm:$0xff]
        %v6448 = vld [vmem:[%s1182 + $0xc8] sm:$0xff]
        %v6449 = vld [vmem:[%s1182 + $0xd0] sm:$0xff]
        %v6450 = vld [vmem:[%s1182 + $0xd8] sm:$0xff]
        %v6451 = vld [vmem:[%s1182 + $0xe0] sm:$0xff]
        %v6452 = vld [vmem:[%s1182 + $0xe8] sm:$0xff]
        %v6453 = vld [vmem:[%s1182 + $0xf0] sm:$0xff]
        %v6454 = vld [vmem:[%s1182 + $0xf8] sm:$0xff]
        %v6455 = vld [vmem:[%s1182 + $0x100] sm:$0xff]
        %v6456 = vld [vmem:[%s1182 + $0x108] sm:$0xff]
        %v6457 = vld [vmem:[%s1182 + $0x110] sm:$0xff]
        %v6458 = vld [vmem:[%s1182 + $0x118] sm:$0xff]
        %v6459 = vld [vmem:[%s1182 + $0x120] sm:$0xff]
        %v6460 = vld [vmem:[%s1182 + $0x128] sm:$0xff]
        %v6461 = vld [vmem:[%s1182 + $0x130] sm:$0xff]
        %v6462 = vld [vmem:[%s1182 + $0x138] sm:$0xff]
        %v6463 = vld [vmem:[%s1182 + $0x140] sm:$0xff]
        %v6464 = vld [vmem:[%s1182 + $0x148] sm:$0xff]
        %v6465 = vld [vmem:[%s1182 + $0x150] sm:$0xff]
        %v6466 = vld [vmem:[%s1182 + $0x158] sm:$0xff]
        %v6467 = vld [vmem:[%s1182 + $0x160] sm:$0xff]
        %v6468 = vld [vmem:[%s1182 + $0x168] sm:$0xff]
        %v6469 = vld [vmem:[%s1182 + $0x170] sm:$0xff]
        %v6470 = vld [vmem:[%s1182 + $0x178] sm:$0xff]
        %v6471 = vld [vmem:[%s1182 + $0x180] sm:$0xff]
        %v6472 = vld [vmem:[%s1182 + $0x188] sm:$0xff]
        %v6473 = vld [vmem:[%s1182 + $0x190] sm:$0xff]
        %v6474 = vld [vmem:[%s1182 + $0x198] sm:$0xff]
        %v6475 = vld [vmem:[%s1182 + $0x1a0] sm:$0xff]
        %v6476 = vld [vmem:[%s1182 + $0x1a8] sm:$0xff]
        %v6477 = vld [vmem:[%s1182 + $0x1b0] sm:$0xff]
        %v6478 = vld [vmem:[%s1182 + $0x1b8] sm:$0xff]
        %v6479 = vld [vmem:[%s1182 + $0x1c0] sm:$0xff]
        %v6480 = vld [vmem:[%s1182 + $0x1c8] sm:$0xff]
        %v6481 = vld [vmem:[%s1182 + $0x1d0] sm:$0xff]
        %v6482 = vld [vmem:[%s1182 + $0x1d8] sm:$0xff]
        %v6483 = vld [vmem:[%s1182 + $0x1e0] sm:$0xff]
        %v6484 = vld [vmem:[%s1182 + $0x1e8] sm:$0xff]
        %v6485 = vld [vmem:[%s1182 + $0x1f0] sm:$0xff]
        %v6486 = vld [vmem:[%s1182 + $0x1f8] sm:$0xff]
        %v6487 = vld [vmem:[%s1247] sm:$0xf]
        %v6489 = vlaneseq
        %v6490 = vshrl.u32 %v6489, 7
        %v6491 = vsub.s32 0, %v6490
        %v6492 = vrot.slane %v6487, %v6491
        %v6493 = vlaneseq
        %v6494 = vshrl.u32 %v6493, 7
        %v6495 = vsub.s32 1, %v6494
        %v6496 = vrot.slane %v6487, %v6495
        %v6497 = vlaneseq
        %v6498 = vshrl.u32 %v6497, 7
        %v6499 = vsub.s32 2, %v6498
        %v6500 = vrot.slane %v6487, %v6499
        %v6501 = vlaneseq
        %v6502 = vshrl.u32 %v6501, 7
        %v6503 = vsub.s32 3, %v6502
        %v6504 = vrot.slane %v6487, %v6503
        %v6573 = vunpack.c.l.b16 %v6423
        %v6574 = vunpack.c.h.b16 %v6423
        %v6575 = vunpack.c.l.b16 %v6424
        %v6576 = vunpack.c.h.b16 %v6424
        %v6577 = vunpack.c.l.b16 %v6425
        %v6578 = vunpack.c.h.b16 %v6425
        %v6579 = vunpack.c.l.b16 %v6426
        %v6580 = vunpack.c.h.b16 %v6426
        %v6581 = vunpack.c.l.b16 %v6427
        %v6582 = vunpack.c.h.b16 %v6427
        %v6583 = vunpack.c.l.b16 %v6428
        %v6584 = vunpack.c.h.b16 %v6428
        %v6585 = vunpack.c.l.b16 %v6429
        %v6586 = vunpack.c.h.b16 %v6429
        %v6587 = vunpack.c.l.b16 %v6430
        %v6588 = vunpack.c.h.b16 %v6430
        %v6589 = vunpack.c.l.b16 %v6431
        %v6590 = vunpack.c.h.b16 %v6431
        %v6591 = vunpack.c.l.b16 %v6432
        %v6592 = vunpack.c.h.b16 %v6432
        %v6593 = vunpack.c.l.b16 %v6433
        %v6594 = vunpack.c.h.b16 %v6433
        %v6595 = vunpack.c.l.b16 %v6434
        %v6596 = vunpack.c.h.b16 %v6434
        %v6597 = vunpack.c.l.b16 %v6435
        %v6598 = vunpack.c.h.b16 %v6435
        %v6599 = vunpack.c.l.b16 %v6436
        %v6600 = vunpack.c.h.b16 %v6436
        %v6601 = vunpack.c.l.b16 %v6437
        %v6602 = vunpack.c.h.b16 %v6437
        %v6603 = vunpack.c.l.b16 %v6438
        %v6604 = vunpack.c.h.b16 %v6438
        %v6605 = vunpack.c.l.b16 %v6439
        %v6606 = vunpack.c.h.b16 %v6439
        %v6607 = vunpack.c.l.b16 %v6440
        %v6608 = vunpack.c.h.b16 %v6440
        %v6609 = vunpack.c.l.b16 %v6441
        %v6610 = vunpack.c.h.b16 %v6441
        %v6611 = vunpack.c.l.b16 %v6442
        %v6612 = vunpack.c.h.b16 %v6442
        %v6613 = vunpack.c.l.b16 %v6443
        %v6614 = vunpack.c.h.b16 %v6443
        %v6615 = vunpack.c.l.b16 %v6444
        %v6616 = vunpack.c.h.b16 %v6444
        %v6617 = vunpack.c.l.b16 %v6445
        %v6618 = vunpack.c.h.b16 %v6445
        %v6619 = vunpack.c.l.b16 %v6446
        %v6620 = vunpack.c.h.b16 %v6446
        %v6621 = vunpack.c.l.b16 %v6447
        %v6622 = vunpack.c.h.b16 %v6447
        %v6623 = vunpack.c.l.b16 %v6448
        %v6624 = vunpack.c.h.b16 %v6448
        %v6625 = vunpack.c.l.b16 %v6449
        %v6626 = vunpack.c.h.b16 %v6449
        %v6627 = vunpack.c.l.b16 %v6450
        %v6628 = vunpack.c.h.b16 %v6450
        %v6629 = vunpack.c.l.b16 %v6451
        %v6630 = vunpack.c.h.b16 %v6451
        %v6631 = vunpack.c.l.b16 %v6452
        %v6632 = vunpack.c.h.b16 %v6452
        %v6633 = vunpack.c.l.b16 %v6453
        %v6634 = vunpack.c.h.b16 %v6453
        %v6635 = vunpack.c.l.b16 %v6454
        %v6636 = vunpack.c.h.b16 %v6454
        %v6637 = vunpack.c.l.b16 %v6455
        %v6638 = vunpack.c.h.b16 %v6455
        %v6639 = vunpack.c.l.b16 %v6456
        %v6640 = vunpack.c.h.b16 %v6456
        %v6641 = vunpack.c.l.b16 %v6457
        %v6642 = vunpack.c.h.b16 %v6457
        %v6643 = vunpack.c.l.b16 %v6458
        %v6644 = vunpack.c.h.b16 %v6458
        %v6645 = vunpack.c.l.b16 %v6459
        %v6646 = vunpack.c.h.b16 %v6459
        %v6647 = vunpack.c.l.b16 %v6460
        %v6648 = vunpack.c.h.b16 %v6460
        %v6649 = vunpack.c.l.b16 %v6461
        %v6650 = vunpack.c.h.b16 %v6461
        %v6651 = vunpack.c.l.b16 %v6462
        %v6652 = vunpack.c.h.b16 %v6462
        %v6653 = vunpack.c.l.b16 %v6463
        %v6654 = vunpack.c.h.b16 %v6463
        %v6655 = vunpack.c.l.b16 %v6464
        %v6656 = vunpack.c.h.b16 %v6464
        %v6657 = vunpack.c.l.b16 %v6465
        %v6658 = vunpack.c.h.b16 %v6465
        %v6659 = vunpack.c.l.b16 %v6466
        %v6660 = vunpack.c.h.b16 %v6466
        %v6661 = vunpack.c.l.b16 %v6467
        %v6662 = vunpack.c.h.b16 %v6467
        %v6663 = vunpack.c.l.b16 %v6468
        %v6664 = vunpack.c.h.b16 %v6468
        %v6665 = vunpack.c.l.b16 %v6469
        %v6666 = vunpack.c.h.b16 %v6469
        %v6667 = vunpack.c.l.b16 %v6470
        %v6668 = vunpack.c.h.b16 %v6470
        %v6669 = vunpack.c.l.b16 %v6471
        %v6670 = vunpack.c.h.b16 %v6471
        %v6671 = vunpack.c.l.b16 %v6472
        %v6672 = vunpack.c.h.b16 %v6472
        %v6673 = vunpack.c.l.b16 %v6473
        %v6674 = vunpack.c.h.b16 %v6473
        %v6675 = vunpack.c.l.b16 %v6474
        %v6676 = vunpack.c.h.b16 %v6474
        %v6677 = vunpack.c.l.b16 %v6475
        %v6678 = vunpack.c.h.b16 %v6475
        %v6679 = vunpack.c.l.b16 %v6476
        %v6680 = vunpack.c.h.b16 %v6476
        %v6681 = vunpack.c.l.b16 %v6477
        %v6682 = vunpack.c.h.b16 %v6477
        %v6683 = vunpack.c.l.b16 %v6478
        %v6684 = vunpack.c.h.b16 %v6478
        %v6685 = vunpack.c.l.b16 %v6479
        %v6686 = vunpack.c.h.b16 %v6479
        %v6687 = vunpack.c.l.b16 %v6480
        %v6688 = vunpack.c.h.b16 %v6480
        %v6689 = vunpack.c.l.b16 %v6481
        %v6690 = vunpack.c.h.b16 %v6481
        %v6691 = vunpack.c.l.b16 %v6482
        %v6692 = vunpack.c.h.b16 %v6482
        %v6693 = vunpack.c.l.b16 %v6483
        %v6694 = vunpack.c.h.b16 %v6483
        %v6695 = vunpack.c.l.b16 %v6484
        %v6696 = vunpack.c.h.b16 %v6484
        %v6697 = vunpack.c.l.b16 %v6485
        %v6698 = vunpack.c.h.b16 %v6485
        %v6699 = vunpack.c.l.b16 %v6486
        %v6700 = vunpack.c.h.b16 %v6486
        %v6701 = vpack.c.b16 %v6577, %v6573
        %v6702 = vpack.c.b16 %v6578, %v6574
        %v6703 = vpack.c.b16 %v6579, %v6575
        %v6704 = vpack.c.b16 %v6580, %v6576
        %v6705 = vpack.c.b16 %v6585, %v6581
        %v6706 = vpack.c.b16 %v6586, %v6582
        %v6707 = vpack.c.b16 %v6587, %v6583
        %v6708 = vpack.c.b16 %v6588, %v6584
        %v6709 = vpack.c.b16 %v6593, %v6589
        %v6710 = vpack.c.b16 %v6594, %v6590
        %v6711 = vpack.c.b16 %v6595, %v6591
        %v6712 = vpack.c.b16 %v6596, %v6592
        %v6713 = vpack.c.b16 %v6601, %v6597
        %v6714 = vpack.c.b16 %v6602, %v6598
        %v6715 = vpack.c.b16 %v6603, %v6599
        %v6716 = vpack.c.b16 %v6604, %v6600
        %v6717 = vpack.c.b16 %v6609, %v6605
        %v6718 = vpack.c.b16 %v6610, %v6606
        %v6719 = vpack.c.b16 %v6611, %v6607
        %v6720 = vpack.c.b16 %v6612, %v6608
        %v6721 = vpack.c.b16 %v6617, %v6613
        %v6722 = vpack.c.b16 %v6618, %v6614
        %v6723 = vpack.c.b16 %v6619, %v6615
        %v6724 = vpack.c.b16 %v6620, %v6616
        %v6725 = vpack.c.b16 %v6625, %v6621
        %v6726 = vpack.c.b16 %v6626, %v6622
        %v6727 = vpack.c.b16 %v6627, %v6623
        %v6728 = vpack.c.b16 %v6628, %v6624
        %v6729 = vpack.c.b16 %v6633, %v6629
        %v6730 = vpack.c.b16 %v6634, %v6630
        %v6731 = vpack.c.b16 %v6635, %v6631
        %v6732 = vpack.c.b16 %v6636, %v6632
        %v6733 = vpack.c.b16 %v6641, %v6637
        %v6734 = vpack.c.b16 %v6642, %v6638
        %v6735 = vpack.c.b16 %v6643, %v6639
        %v6736 = vpack.c.b16 %v6644, %v6640
        %v6737 = vpack.c.b16 %v6649, %v6645
        %v6738 = vpack.c.b16 %v6650, %v6646
        %v6739 = vpack.c.b16 %v6651, %v6647
        %v6740 = vpack.c.b16 %v6652, %v6648
        %v6741 = vpack.c.b16 %v6657, %v6653
        %v6742 = vpack.c.b16 %v6658, %v6654
        %v6743 = vpack.c.b16 %v6659, %v6655
        %v6744 = vpack.c.b16 %v6660, %v6656
        %v6745 = vpack.c.b16 %v6665, %v6661
        %v6746 = vpack.c.b16 %v6666, %v6662
        %v6747 = vpack.c.b16 %v6667, %v6663
        %v6748 = vpack.c.b16 %v6668, %v6664
        %v6749 = vpack.c.b16 %v6673, %v6669
        %v6750 = vpack.c.b16 %v6674, %v6670
        %v6751 = vpack.c.b16 %v6675, %v6671
        %v6752 = vpack.c.b16 %v6676, %v6672
        %v6753 = vpack.c.b16 %v6681, %v6677
        %v6754 = vpack.c.b16 %v6682, %v6678
        %v6755 = vpack.c.b16 %v6683, %v6679
        %v6756 = vpack.c.b16 %v6684, %v6680
        %v6757 = vpack.c.b16 %v6689, %v6685
        %v6758 = vpack.c.b16 %v6690, %v6686
        %v6759 = vpack.c.b16 %v6691, %v6687
        %v6760 = vpack.c.b16 %v6692, %v6688
        %v6761 = vpack.c.b16 %v6697, %v6693
        %v6762 = vpack.c.b16 %v6698, %v6694
        %v6763 = vpack.c.b16 %v6699, %v6695
        %v6764 = vpack.c.b16 %v6700, %v6696
        %6829 = vmatprep.subr.bf16.mxu0 %v6702
        %6830 = vmatpush1.bf16.msra.mxu0 %v6701
        %6831 = vmatprep.subr.bf16.mxu0 %v6706
        %6832 = vmatpush1.bf16.msra.mxu0 %v6705
        %6833 = vmatprep.subr.bf16.mxu0 %v6710
        %6834 = vmatpush1.bf16.msra.mxu0 %v6709
        %6835 = vmatprep.subr.bf16.mxu0 %v6714
        %6836 = vmatpush1.bf16.msra.mxu0 %v6713
        %6837 = vmatprep.subr.bf16.mxu0 %v6718
        %6838 = vmatpush1.bf16.msra.mxu0 %v6717
        %6839 = vmatprep.subr.bf16.mxu0 %v6722
        %6840 = vmatpush1.bf16.msra.mxu0 %v6721
        %6841 = vmatprep.subr.bf16.mxu0 %v6726
        %6842 = vmatpush1.bf16.msra.mxu0 %v6725
        %6843 = vmatprep.subr.bf16.mxu0 %v6730
        %6844 = vmatpush1.bf16.msra.mxu0 %v6729
        %6845 = vmatprep.subr.bf16.mxu0 %v6734
        %6846 = vmatpush1.bf16.msra.mxu0 %v6733
        %6847 = vmatprep.subr.bf16.mxu0 %v6738
        %6848 = vmatpush1.bf16.msra.mxu0 %v6737
        %6849 = vmatprep.subr.bf16.mxu0 %v6742
        %6850 = vmatpush1.bf16.msra.mxu0 %v6741
        %6851 = vmatprep.subr.bf16.mxu0 %v6746
        %6852 = vmatpush1.bf16.msra.mxu0 %v6745
        %6853 = vmatprep.subr.bf16.mxu0 %v6750
        %6854 = vmatpush1.bf16.msra.mxu0 %v6749
        %6855 = vmatprep.subr.bf16.mxu0 %v6754
        %6856 = vmatpush1.bf16.msra.mxu0 %v6753
        %6857 = vmatprep.subr.bf16.mxu0 %v6758
        %6858 = vmatpush1.bf16.msra.mxu0 %v6757
        %6859 = vmatprep.subr.bf16.mxu0 %v6762
        %6860 = vmatpush1.bf16.msra.mxu0 %v6761
        %6861 = vmatprep.mubr.bf16.mxu0 %v6422
        %6862 = vmatmul.mubr.bf16.gmra.mrb[0].mxu0 %v6421
        %v6863 = vpop.f32.mrb[0].mxu0
        %v6864 = vadd.f32 %v6492, %v6863
        %v6865 = vpop.f32.mrb[0].mxu0
        %v6866 = vadd.f32 %v6496, %v6865
        %v6867 = vpop.f32.mrb[0].mxu0
        %v6868 = vpop.f32.mrb[0].mxu0
        %6869 = vdwg.mxu0
        %6870 = vmatprep.subr.bf16.mxu0 %v6704
        %6871 = vmatpush1.bf16.msra.mxu0 %v6703
        %6872 = vmatprep.subr.bf16.mxu0 %v6708
        %6873 = vmatpush1.bf16.msra.mxu0 %v6707
        %6874 = vmatprep.subr.bf16.mxu0 %v6712
        %6875 = vmatpush1.bf16.msra.mxu0 %v6711
        %6876 = vmatprep.subr.bf16.mxu0 %v6716
        %6877 = vmatpush1.bf16.msra.mxu0 %v6715
        %6878 = vmatprep.subr.bf16.mxu0 %v6720
        %6879 = vmatpush1.bf16.msra.mxu0 %v6719
        %6880 = vmatprep.subr.bf16.mxu0 %v6724
        %6881 = vmatpush1.bf16.msra.mxu0 %v6723
        %6882 = vmatprep.subr.bf16.mxu0 %v6728
        %6883 = vmatpush1.bf16.msra.mxu0 %v6727
        %6884 = vmatprep.subr.bf16.mxu0 %v6732
        %6885 = vmatpush1.bf16.msra.mxu0 %v6731
        %6886 = vmatprep.subr.bf16.mxu0 %v6736
        %6887 = vmatpush1.bf16.msra.mxu0 %v6735
        %6888 = vmatprep.subr.bf16.mxu0 %v6740
        %6889 = vmatpush1.bf16.msra.mxu0 %v6739
        %6890 = vmatprep.subr.bf16.mxu0 %v6744
        %6891 = vmatpush1.bf16.msra.mxu0 %v6743
        %6892 = vmatprep.subr.bf16.mxu0 %v6748
        %6893 = vmatpush1.bf16.msra.mxu0 %v6747
        %6894 = vmatprep.subr.bf16.mxu0 %v6752
        %6895 = vmatpush1.bf16.msra.mxu0 %v6751
        %6896 = vmatprep.subr.bf16.mxu0 %v6756
        %6897 = vmatpush1.bf16.msra.mxu0 %v6755
        %6898 = vmatprep.subr.bf16.mxu0 %v6760
        %6899 = vmatpush1.bf16.msra.mxu0 %v6759
        %6900 = vmatprep.subr.bf16.mxu0 %v6764
        %6901 = vmatpush1.bf16.msra.mxu0 %v6763
        %6902 = vmatprep.mubr.bf16.mxu0 %v6422
        %6903 = vmatmul.mubr.bf16.gmra.mrb[0].mxu0 %v6421
        %v6904 = vpop.f32.mrb[0].mxu0
        %v6905 = vadd.f32 %v6500, %v6904
        %v6906 = vpop.f32.mrb[0].mxu0
        %v6907 = vadd.f32 %v6504, %v6906
        %v6908 = vpop.f32.mrb[0].mxu0
        %v6909 = vpop.f32.mrb[0].mxu0
        %6910 = vdwg.mxu0
        %v6911 = vxor.u32 %v6864, 2147483648
        %v6912 = vmul.f32 %v6911, 1.442695
        %v6913 = vpow.pop %v6912
        %v6914 = vadd.f32 %v6913, 1.0
        %v6915 = vrcp.pop %v6914
        %v6916 = vmul.f32 1.0, %v6915
        %v6917 = vxor.u32 %v6866, 2147483648
        %v6918 = vmul.f32 %v6917, 1.442695
        %v6919 = vpow.pop %v6918
        %v6920 = vadd.f32 %v6919, 1.0
        %v6921 = vrcp.pop %v6920
        %v6922 = vmul.f32 1.0, %v6921
        %v6923 = vtanh.pop %v6905
        %v6924 = vxor.u32 %v6907, 2147483648
        %v6925 = vmul.f32 %v6924, 1.442695
        %v6926 = vpow.pop %v6925
        %v6927 = vadd.f32 %v6926, 1.0
        %v6928 = vrcp.pop %v6927
        %v6929 = vmul.f32 1.0, %v6928
        %v6930 = vmul.f32 %v6922, %v6416
        %v6931 = vmul.f32 %v6916, %v6923
        %v6932 = vadd.f32 %v6930, %v6931
        %v6933 = vtanh.pop %v6932
        %v6934 = vmul.f32 %v6929, %v6933
        %6935 = vst [vmem:[%s1172] sm:$0xff] %v6934
        %6936 = vst [vmem:[%s1174] sm:$0xff] %v6932
        %s6937 = scalar_lea.vmem [#allocation6], 40
        %6938 = vst [vmem:[%s6937] sm:$0xff] %v6934
        %s6939 = scalar_lea.vmem [#allocation2], 48
        %v6940 = vld [vmem:[%s6939] sm:$0xff]
        %v6941 = vld [vmem:[#allocation4] sm:$0xff]
        %v6942 = vld [vmem:[#allocation5] sm:$0xff]
        %6943 = vst [vmem:[#allocation3] sm:$0xff] %v6940
        %6944 = vst [vmem:[#allocation3 + $0x8] sm:$0xff] %v6941
        %v6945 = vld [vmem:[#allocation3] sm:$0xff]
        %v6946 = vld [vmem:[#allocation3 + $0x8] sm:$0xff]
        %v6947 = vpack.c.bf16 %v6945, %v6945
        %v6948 = vpack.c.bf16 %v6946, %v6946
        %v6949 = vld [vmem:[#allocation7] sm:$0xff]
        %v6950 = vld [vmem:[#allocation7 + $0x8] sm:$0xff]
        %v6951 = vld [vmem:[#allocation7 + $0x10] sm:$0xff]
        %v6952 = vld [vmem:[#allocation7 + $0x18] sm:$0xff]
        %v6953 = vld [vmem:[#allocation7 + $0x20] sm:$0xff]
        %v6954 = vld [vmem:[#allocation7 + $0x28] sm:$0xff]
        %v6955 = vld [vmem:[#allocation7 + $0x30] sm:$0xff]
        %v6956 = vld [vmem:[#allocation7 + $0x38] sm:$0xff]
        %v6957 = vld [vmem:[#allocation7 + $0x40] sm:$0xff]
        %v6958 = vld [vmem:[#allocation7 + $0x48] sm:$0xff]
        %v6959 = vld [vmem:[#allocation7 + $0x50] sm:$0xff]
        %v6960 = vld [vmem:[#allocation7 + $0x58] sm:$0xff]
        %v6961 = vld [vmem:[#allocation7 + $0x60] sm:$0xff]
        %v6962 = vld [vmem:[#allocation7 + $0x68] sm:$0xff]
        %v6963 = vld [vmem:[#allocation7 + $0x70] sm:$0xff]
        %v6964 = vld [vmem:[#allocation7 + $0x78] sm:$0xff]
        %v6965 = vld [vmem:[#allocation7 + $0x80] sm:$0xff]
        %v6966 = vld [vmem:[#allocation7 + $0x88] sm:$0xff]
        %v6967 = vld [vmem:[#allocation7 + $0x90] sm:$0xff]
        %v6968 = vld [vmem:[#allocation7 + $0x98] sm:$0xff]
        %v6969 = vld [vmem:[#allocation7 + $0xa0] sm:$0xff]
        %v6970 = vld [vmem:[#allocation7 + $0xa8] sm:$0xff]
        %v6971 = vld [vmem:[#allocation7 + $0xb0] sm:$0xff]
        %v6972 = vld [vmem:[#allocation7 + $0xb8] sm:$0xff]
        %v6973 = vld [vmem:[#allocation7 + $0xc0] sm:$0xff]
        %v6974 = vld [vmem:[#allocation7 + $0xc8] sm:$0xff]
        %v6975 = vld [vmem:[#allocation7 + $0xd0] sm:$0xff]
        %v6976 = vld [vmem:[#allocation7 + $0xd8] sm:$0xff]
        %v6977 = vld [vmem:[#allocation7 + $0xe0] sm:$0xff]
        %v6978 = vld [vmem:[#allocation7 + $0xe8] sm:$0xff]
        %v6979 = vld [vmem:[#allocation7 + $0xf0] sm:$0xff]
        %v6980 = vld [vmem:[#allocation7 + $0xf8] sm:$0xff]
        %v6981 = vld [vmem:[#allocation7 + $0x100] sm:$0xff]
        %v6982 = vld [vmem:[#allocation7 + $0x108] sm:$0xff]
        %v6983 = vld [vmem:[#allocation7 + $0x110] sm:$0xff]
        %v6984 = vld [vmem:[#allocation7 + $0x118] sm:$0xff]
        %v6985 = vld [vmem:[#allocation7 + $0x120] sm:$0xff]
        %v6986 = vld [vmem:[#allocation7 + $0x128] sm:$0xff]
        %v6987 = vld [vmem:[#allocation7 + $0x130] sm:$0xff]
        %v6988 = vld [vmem:[#allocation7 + $0x138] sm:$0xff]
        %v6989 = vld [vmem:[#allocation7 + $0x140] sm:$0xff]
        %v6990 = vld [vmem:[#allocation7 + $0x148] sm:$0xff]
        %v6991 = vld [vmem:[#allocation7 + $0x150] sm:$0xff]
        %v6992 = vld [vmem:[#allocation7 + $0x158] sm:$0xff]
        %v6993 = vld [vmem:[#allocation7 + $0x160] sm:$0xff]
        %v6994 = vld [vmem:[#allocation7 + $0x168] sm:$0xff]
        %v6995 = vld [vmem:[#allocation7 + $0x170] sm:$0xff]
        %v6996 = vld [vmem:[#allocation7 + $0x178] sm:$0xff]
        %v6997 = vld [vmem:[#allocation7 + $0x180] sm:$0xff]
        %v6998 = vld [vmem:[#allocation7 + $0x188] sm:$0xff]
        %v6999 = vld [vmem:[#allocation7 + $0x190] sm:$0xff]
        %v7000 = vld [vmem:[#allocation7 + $0x198] sm:$0xff]
        %v7001 = vld [vmem:[#allocation7 + $0x1a0] sm:$0xff]
        %v7002 = vld [vmem:[#allocation7 + $0x1a8] sm:$0xff]
        %v7003 = vld [vmem:[#allocation7 + $0x1b0] sm:$0xff]
        %v7004 = vld [vmem:[#allocation7 + $0x1b8] sm:$0xff]
        %v7005 = vld [vmem:[#allocation7 + $0x1c0] sm:$0xff]
        %v7006 = vld [vmem:[#allocation7 + $0x1c8] sm:$0xff]
        %v7007 = vld [vmem:[#allocation7 + $0x1d0] sm:$0xff]
        %v7008 = vld [vmem:[#allocation7 + $0x1d8] sm:$0xff]
        %v7009 = vld [vmem:[#allocation7 + $0x1e0] sm:$0xff]
        %v7010 = vld [vmem:[#allocation7 + $0x1e8] sm:$0xff]
        %v7011 = vld [vmem:[#allocation7 + $0x1f0] sm:$0xff]
        %v7012 = vld [vmem:[#allocation7 + $0x1f8] sm:$0xff]
        %v7013 = vld [vmem:[%s5] sm:$0xf]
        %v7015 = vlaneseq
        %v7016 = vshrl.u32 %v7015, 7
        %v7017 = vsub.s32 0, %v7016
        %v7018 = vrot.slane %v7013, %v7017
        %v7019 = vlaneseq
        %v7020 = vshrl.u32 %v7019, 7
        %v7021 = vsub.s32 1, %v7020
        %v7022 = vrot.slane %v7013, %v7021
        %v7023 = vlaneseq
        %v7024 = vshrl.u32 %v7023, 7
        %v7025 = vsub.s32 2, %v7024
        %v7026 = vrot.slane %v7013, %v7025
        %v7027 = vlaneseq
        %v7028 = vshrl.u32 %v7027, 7
        %v7029 = vsub.s32 3, %v7028
        %v7030 = vrot.slane %v7013, %v7029
        %v7099 = vunpack.c.l.b16 %v6949
        %v7100 = vunpack.c.h.b16 %v6949
        %v7101 = vunpack.c.l.b16 %v6950
        %v7102 = vunpack.c.h.b16 %v6950
        %v7103 = vunpack.c.l.b16 %v6951
        %v7104 = vunpack.c.h.b16 %v6951
        %v7105 = vunpack.c.l.b16 %v6952
        %v7106 = vunpack.c.h.b16 %v6952
        %v7107 = vunpack.c.l.b16 %v6953
        %v7108 = vunpack.c.h.b16 %v6953
        %v7109 = vunpack.c.l.b16 %v6954
        %v7110 = vunpack.c.h.b16 %v6954
        %v7111 = vunpack.c.l.b16 %v6955
        %v7112 = vunpack.c.h.b16 %v6955
        %v7113 = vunpack.c.l.b16 %v6956
        %v7114 = vunpack.c.h.b16 %v6956
        %v7115 = vunpack.c.l.b16 %v6957
        %v7116 = vunpack.c.h.b16 %v6957
        %v7117 = vunpack.c.l.b16 %v6958
        %v7118 = vunpack.c.h.b16 %v6958
        %v7119 = vunpack.c.l.b16 %v6959
        %v7120 = vunpack.c.h.b16 %v6959
        %v7121 = vunpack.c.l.b16 %v6960
        %v7122 = vunpack.c.h.b16 %v6960
        %v7123 = vunpack.c.l.b16 %v6961
        %v7124 = vunpack.c.h.b16 %v6961
        %v7125 = vunpack.c.l.b16 %v6962
        %v7126 = vunpack.c.h.b16 %v6962
        %v7127 = vunpack.c.l.b16 %v6963
        %v7128 = vunpack.c.h.b16 %v6963
        %v7129 = vunpack.c.l.b16 %v6964
        %v7130 = vunpack.c.h.b16 %v6964
        %v7131 = vunpack.c.l.b16 %v6965
        %v7132 = vunpack.c.h.b16 %v6965
        %v7133 = vunpack.c.l.b16 %v6966
        %v7134 = vunpack.c.h.b16 %v6966
        %v7135 = vunpack.c.l.b16 %v6967
        %v7136 = vunpack.c.h.b16 %v6967
        %v7137 = vunpack.c.l.b16 %v6968
        %v7138 = vunpack.c.h.b16 %v6968
        %v7139 = vunpack.c.l.b16 %v6969
        %v7140 = vunpack.c.h.b16 %v6969
        %v7141 = vunpack.c.l.b16 %v6970
        %v7142 = vunpack.c.h.b16 %v6970
        %v7143 = vunpack.c.l.b16 %v6971
        %v7144 = vunpack.c.h.b16 %v6971
        %v7145 = vunpack.c.l.b16 %v6972
        %v7146 = vunpack.c.h.b16 %v6972
        %v7147 = vunpack.c.l.b16 %v6973
        %v7148 = vunpack.c.h.b16 %v6973
        %v7149 = vunpack.c.l.b16 %v6974
        %v7150 = vunpack.c.h.b16 %v6974
        %v7151 = vunpack.c.l.b16 %v6975
        %v7152 = vunpack.c.h.b16 %v6975
        %v7153 = vunpack.c.l.b16 %v6976
        %v7154 = vunpack.c.h.b16 %v6976
        %v7155 = vunpack.c.l.b16 %v6977
        %v7156 = vunpack.c.h.b16 %v6977
        %v7157 = vunpack.c.l.b16 %v6978
        %v7158 = vunpack.c.h.b16 %v6978
        %v7159 = vunpack.c.l.b16 %v6979
        %v7160 = vunpack.c.h.b16 %v6979
        %v7161 = vunpack.c.l.b16 %v6980
        %v7162 = vunpack.c.h.b16 %v6980
        %v7163 = vunpack.c.l.b16 %v6981
        %v7164 = vunpack.c.h.b16 %v6981
        %v7165 = vunpack.c.l.b16 %v6982
        %v7166 = vunpack.c.h.b16 %v6982
        %v7167 = vunpack.c.l.b16 %v6983
        %v7168 = vunpack.c.h.b16 %v6983
        %v7169 = vunpack.c.l.b16 %v6984
        %v7170 = vunpack.c.h.b16 %v6984
        %v7171 = vunpack.c.l.b16 %v6985
        %v7172 = vunpack.c.h.b16 %v6985
        %v7173 = vunpack.c.l.b16 %v6986
        %v7174 = vunpack.c.h.b16 %v6986
        %v7175 = vunpack.c.l.b16 %v6987
        %v7176 = vunpack.c.h.b16 %v6987
        %v7177 = vunpack.c.l.b16 %v6988
        %v7178 = vunpack.c.h.b16 %v6988
        %v7179 = vunpack.c.l.b16 %v6989
        %v7180 = vunpack.c.h.b16 %v6989
        %v7181 = vunpack.c.l.b16 %v6990
        %v7182 = vunpack.c.h.b16 %v6990
        %v7183 = vunpack.c.l.b16 %v6991
        %v7184 = vunpack.c.h.b16 %v6991
        %v7185 = vunpack.c.l.b16 %v6992
        %v7186 = vunpack.c.h.b16 %v6992
        %v7187 = vunpack.c.l.b16 %v6993
        %v7188 = vunpack.c.h.b16 %v6993
        %v7189 = vunpack.c.l.b16 %v6994
        %v7190 = vunpack.c.h.b16 %v6994
        %v7191 = vunpack.c.l.b16 %v6995
        %v7192 = vunpack.c.h.b16 %v6995
        %v7193 = vunpack.c.l.b16 %v6996
        %v7194 = vunpack.c.h.b16 %v6996
        %v7195 = vunpack.c.l.b16 %v6997
        %v7196 = vunpack.c.h.b16 %v6997
        %v7197 = vunpack.c.l.b16 %v6998
        %v7198 = vunpack.c.h.b16 %v6998
        %v7199 = vunpack.c.l.b16 %v6999
        %v7200 = vunpack.c.h.b16 %v6999
        %v7201 = vunpack.c.l.b16 %v7000
        %v7202 = vunpack.c.h.b16 %v7000
        %v7203 = vunpack.c.l.b16 %v7001
        %v7204 = vunpack.c.h.b16 %v7001
        %v7205 = vunpack.c.l.b16 %v7002
        %v7206 = vunpack.c.h.b16 %v7002
        %v7207 = vunpack.c.l.b16 %v7003
        %v7208 = vunpack.c.h.b16 %v7003
        %v7209 = vunpack.c.l.b16 %v7004
        %v7210 = vunpack.c.h.b16 %v7004
        %v7211 = vunpack.c.l.b16 %v7005
        %v7212 = vunpack.c.h.b16 %v7005
        %v7213 = vunpack.c.l.b16 %v7006
        %v7214 = vunpack.c.h.b16 %v7006
        %v7215 = vunpack.c.l.b16 %v7007
        %v7216 = vunpack.c.h.b16 %v7007
        %v7217 = vunpack.c.l.b16 %v7008
        %v7218 = vunpack.c.h.b16 %v7008
        %v7219 = vunpack.c.l.b16 %v7009
        %v7220 = vunpack.c.h.b16 %v7009
        %v7221 = vunpack.c.l.b16 %v7010
        %v7222 = vunpack.c.h.b16 %v7010
        %v7223 = vunpack.c.l.b16 %v7011
        %v7224 = vunpack.c.h.b16 %v7011
        %v7225 = vunpack.c.l.b16 %v7012
        %v7226 = vunpack.c.h.b16 %v7012
        %v7227 = vpack.c.b16 %v7103, %v7099
        %v7228 = vpack.c.b16 %v7104, %v7100
        %v7229 = vpack.c.b16 %v7105, %v7101
        %v7230 = vpack.c.b16 %v7106, %v7102
        %v7231 = vpack.c.b16 %v7111, %v7107
        %v7232 = vpack.c.b16 %v7112, %v7108
        %v7233 = vpack.c.b16 %v7113, %v7109
        %v7234 = vpack.c.b16 %v7114, %v7110
        %v7235 = vpack.c.b16 %v7119, %v7115
        %v7236 = vpack.c.b16 %v7120, %v7116
        %v7237 = vpack.c.b16 %v7121, %v7117
        %v7238 = vpack.c.b16 %v7122, %v7118
        %v7239 = vpack.c.b16 %v7127, %v7123
        %v7240 = vpack.c.b16 %v7128, %v7124
        %v7241 = vpack.c.b16 %v7129, %v7125
        %v7242 = vpack.c.b16 %v7130, %v7126
        %v7243 = vpack.c.b16 %v7135, %v7131
        %v7244 = vpack.c.b16 %v7136, %v7132
        %v7245 = vpack.c.b16 %v7137, %v7133
        %v7246 = vpack.c.b16 %v7138, %v7134
        %v7247 = vpack.c.b16 %v7143, %v7139
        %v7248 = vpack.c.b16 %v7144, %v7140
        %v7249 = vpack.c.b16 %v7145, %v7141
        %v7250 = vpack.c.b16 %v7146, %v7142
        %v7251 = vpack.c.b16 %v7151, %v7147
        %v7252 = vpack.c.b16 %v7152, %v7148
        %v7253 = vpack.c.b16 %v7153, %v7149
        %v7254 = vpack.c.b16 %v7154, %v7150
        %v7255 = vpack.c.b16 %v7159, %v7155
        %v7256 = vpack.c.b16 %v7160, %v7156
        %v7257 = vpack.c.b16 %v7161, %v7157
        %v7258 = vpack.c.b16 %v7162, %v7158
        %v7259 = vpack.c.b16 %v7167, %v7163
        %v7260 = vpack.c.b16 %v7168, %v7164
        %v7261 = vpack.c.b16 %v7169, %v7165
        %v7262 = vpack.c.b16 %v7170, %v7166
        %v7263 = vpack.c.b16 %v7175, %v7171
        %v7264 = vpack.c.b16 %v7176, %v7172
        %v7265 = vpack.c.b16 %v7177, %v7173
        %v7266 = vpack.c.b16 %v7178, %v7174
        %v7267 = vpack.c.b16 %v7183, %v7179
        %v7268 = vpack.c.b16 %v7184, %v7180
        %v7269 = vpack.c.b16 %v7185, %v7181
        %v7270 = vpack.c.b16 %v7186, %v7182
        %v7271 = vpack.c.b16 %v7191, %v7187
        %v7272 = vpack.c.b16 %v7192, %v7188
        %v7273 = vpack.c.b16 %v7193, %v7189
        %v7274 = vpack.c.b16 %v7194, %v7190
        %v7275 = vpack.c.b16 %v7199, %v7195
        %v7276 = vpack.c.b16 %v7200, %v7196
        %v7277 = vpack.c.b16 %v7201, %v7197
        %v7278 = vpack.c.b16 %v7202, %v7198
        %v7279 = vpack.c.b16 %v7207, %v7203
        %v7280 = vpack.c.b16 %v7208, %v7204
        %v7281 = vpack.c.b16 %v7209, %v7205
        %v7282 = vpack.c.b16 %v7210, %v7206
        %v7283 = vpack.c.b16 %v7215, %v7211
        %v7284 = vpack.c.b16 %v7216, %v7212
        %v7285 = vpack.c.b16 %v7217, %v7213
        %v7286 = vpack.c.b16 %v7218, %v7214
        %v7287 = vpack.c.b16 %v7223, %v7219
        %v7288 = vpack.c.b16 %v7224, %v7220
        %v7289 = vpack.c.b16 %v7225, %v7221
        %v7290 = vpack.c.b16 %v7226, %v7222
        %7355 = vmatprep.subr.bf16.mxu0 %v7228
        %7356 = vmatpush1.bf16.msra.mxu0 %v7227
        %7357 = vmatprep.subr.bf16.mxu0 %v7232
        %7358 = vmatpush1.bf16.msra.mxu0 %v7231
        %7359 = vmatprep.subr.bf16.mxu0 %v7236
        %7360 = vmatpush1.bf16.msra.mxu0 %v7235
        %7361 = vmatprep.subr.bf16.mxu0 %v7240
        %7362 = vmatpush1.bf16.msra.mxu0 %v7239
        %7363 = vmatprep.subr.bf16.mxu0 %v7244
        %7364 = vmatpush1.bf16.msra.mxu0 %v7243
        %7365 = vmatprep.subr.bf16.mxu0 %v7248
        %7366 = vmatpush1.bf16.msra.mxu0 %v7247
        %7367 = vmatprep.subr.bf16.mxu0 %v7252
        %7368 = vmatpush1.bf16.msra.mxu0 %v7251
        %7369 = vmatprep.subr.bf16.mxu0 %v7256
        %7370 = vmatpush1.bf16.msra.mxu0 %v7255
        %7371 = vmatprep.subr.bf16.mxu0 %v7260
        %7372 = vmatpush1.bf16.msra.mxu0 %v7259
        %7373 = vmatprep.subr.bf16.mxu0 %v7264
        %7374 = vmatpush1.bf16.msra.mxu0 %v7263
        %7375 = vmatprep.subr.bf16.mxu0 %v7268
        %7376 = vmatpush1.bf16.msra.mxu0 %v7267
        %7377 = vmatprep.subr.bf16.mxu0 %v7272
        %7378 = vmatpush1.bf16.msra.mxu0 %v7271
        %7379 = vmatprep.subr.bf16.mxu0 %v7276
        %7380 = vmatpush1.bf16.msra.mxu0 %v7275
        %7381 = vmatprep.subr.bf16.mxu0 %v7280
        %7382 = vmatpush1.bf16.msra.mxu0 %v7279
        %7383 = vmatprep.subr.bf16.mxu0 %v7284
        %7384 = vmatpush1.bf16.msra.mxu0 %v7283
        %7385 = vmatprep.subr.bf16.mxu0 %v7288
        %7386 = vmatpush1.bf16.msra.mxu0 %v7287
        %7387 = vmatprep.mubr.bf16.mxu0 %v6948
        %7388 = vmatmul.mubr.bf16.gmra.mrb[0].mxu0 %v6947
        %v7389 = vpop.f32.mrb[0].mxu0
        %v7390 = vadd.f32 %v7018, %v7389
        %v7391 = vpop.f32.mrb[0].mxu0
        %v7392 = vadd.f32 %v7022, %v7391
        %v7393 = vpop.f32.mrb[0].mxu0
        %v7394 = vpop.f32.mrb[0].mxu0
        %7395 = vdwg.mxu0
        %7396 = vmatprep.subr.bf16.mxu0 %v7230
        %7397 = vmatpush1.bf16.msra.mxu0 %v7229
        %7398 = vmatprep.subr.bf16.mxu0 %v7234
        %7399 = vmatpush1.bf16.msra.mxu0 %v7233
        %7400 = vmatprep.subr.bf16.mxu0 %v7238
        %7401 = vmatpush1.bf16.msra.mxu0 %v7237
        %7402 = vmatprep.subr.bf16.mxu0 %v7242
        %7403 = vmatpush1.bf16.msra.mxu0 %v7241
        %7404 = vmatprep.subr.bf16.mxu0 %v7246
        %7405 = vmatpush1.bf16.msra.mxu0 %v7245
        %7406 = vmatprep.subr.bf16.mxu0 %v7250
        %7407 = vmatpush1.bf16.msra.mxu0 %v7249
        %7408 = vmatprep.subr.bf16.mxu0 %v7254
        %7409 = vmatpush1.bf16.msra.mxu0 %v7253
        %7410 = vmatprep.subr.bf16.mxu0 %v7258
        %7411 = vmatpush1.bf16.msra.mxu0 %v7257
        %7412 = vmatprep.subr.bf16.mxu0 %v7262
        %7413 = vmatpush1.bf16.msra.mxu0 %v7261
        %7414 = vmatprep.subr.bf16.mxu0 %v7266
        %7415 = vmatpush1.bf16.msra.mxu0 %v7265
        %7416 = vmatprep.subr.bf16.mxu0 %v7270
        %7417 = vmatpush1.bf16.msra.mxu0 %v7269
        %7418 = vmatprep.subr.bf16.mxu0 %v7274
        %7419 = vmatpush1.bf16.msra.mxu0 %v7273
        %7420 = vmatprep.subr.bf16.mxu0 %v7278
        %7421 = vmatpush1.bf16.msra.mxu0 %v7277
        %7422 = vmatprep.subr.bf16.mxu0 %v7282
        %7423 = vmatpush1.bf16.msra.mxu0 %v7281
        %7424 = vmatprep.subr.bf16.mxu0 %v7286
        %7425 = vmatpush1.bf16.msra.mxu0 %v7285
        %7426 = vmatprep.subr.bf16.mxu0 %v7290
        %7427 = vmatpush1.bf16.msra.mxu0 %v7289
        %7428 = vmatprep.mubr.bf16.mxu0 %v6948
        %7429 = vmatmul.mubr.bf16.gmra.mrb[0].mxu0 %v6947
        %v7430 = vpop.f32.mrb[0].mxu0
        %v7431 = vadd.f32 %v7026, %v7430
        %v7432 = vpop.f32.mrb[0].mxu0
        %v7433 = vadd.f32 %v7030, %v7432
        %v7434 = vpop.f32.mrb[0].mxu0
        %v7435 = vpop.f32.mrb[0].mxu0
        %7436 = vdwg.mxu0
        %v7437 = vxor.u32 %v7390, 2147483648
        %v7438 = vmul.f32 %v7437, 1.442695
        %v7439 = vpow.pop %v7438
        %v7440 = vadd.f32 %v7439, 1.0
        %v7441 = vrcp.pop %v7440
        %v7442 = vmul.f32 1.0, %v7441
        %v7443 = vxor.u32 %v7392, 2147483648
        %v7444 = vmul.f32 %v7443, 1.442695
        %v7445 = vpow.pop %v7444
        %v7446 = vadd.f32 %v7445, 1.0
        %v7447 = vrcp.pop %v7446
        %v7448 = vmul.f32 1.0, %v7447
        %v7449 = vtanh.pop %v7431
        %v7450 = vxor.u32 %v7433, 2147483648
        %v7451 = vmul.f32 %v7450, 1.442695
        %v7452 = vpow.pop %v7451
        %v7453 = vadd.f32 %v7452, 1.0
        %v7454 = vrcp.pop %v7453
        %v7455 = vmul.f32 1.0, %v7454
        %v7456 = vmul.f32 %v7448, %v6942
        %v7457 = vmul.f32 %v7442, %v7449
        %v7458 = vadd.f32 %v7456, %v7457
        %v7459 = vtanh.pop %v7458
        %v7460 = vmul.f32 %v7455, %v7459
        %7461 = vst [vmem:[#allocation4] sm:$0xff] %v7460
        %7462 = vst [vmem:[#allocation5] sm:$0xff] %v7458
        %v7463 = vld [vmem:[%s1172] sm:$0xff]
        %v7464 = vld [vmem:[%s1174] sm:$0xff]
        %7465 = vst [vmem:[#allocation3] sm:$0xff] %v7460
        %7466 = vst [vmem:[#allocation3 + $0x8] sm:$0xff] %v7463
        %v7467 = vld [vmem:[#allocation3] sm:$0xff]
        %v7468 = vld [vmem:[#allocation3 + $0x8] sm:$0xff]
        %v7469 = vpack.c.bf16 %v7467, %v7467
        %v7470 = vpack.c.bf16 %v7468, %v7468
        %v7471 = vld [vmem:[%s1182] sm:$0xff]
        %v7472 = vld [vmem:[%s1182 + $0x8] sm:$0xff]
        %v7473 = vld [vmem:[%s1182 + $0x10] sm:$0xff]
        %v7474 = vld [vmem:[%s1182 + $0x18] sm:$0xff]
        %v7475 = vld [vmem:[%s1182 + $0x20] sm:$0xff]
        %v7476 = vld [vmem:[%s1182 + $0x28] sm:$0xff]
        %v7477 = vld [vmem:[%s1182 + $0x30] sm:$0xff]
        %v7478 = vld [vmem:[%s1182 + $0x38] sm:$0xff]
        %v7479 = vld [vmem:[%s1182 + $0x40] sm:$0xff]
        %v7480 = vld [vmem:[%s1182 + $0x48] sm:$0xff]
        %v7481 = vld [vmem:[%s1182 + $0x50] sm:$0xff]
        %v7482 = vld [vmem:[%s1182 + $0x58] sm:$0xff]
        %v7483 = vld [vmem:[%s1182 + $0x60] sm:$0xff]
        %v7484 = vld [vmem:[%s1182 + $0x68] sm:$0xff]
        %v7485 = vld [vmem:[%s1182 + $0x70] sm:$0xff]
        %v7486 = vld [vmem:[%s1182 + $0x78] sm:$0xff]
        %v7487 = vld [vmem:[%s1182 + $0x80] sm:$0xff]
        %v7488 = vld [vmem:[%s1182 + $0x88] sm:$0xff]
        %v7489 = vld [vmem:[%s1182 + $0x90] sm:$0xff]
        %v7490 = vld [vmem:[%s1182 + $0x98] sm:$0xff]
        %v7491 = vld [vmem:[%s1182 + $0xa0] sm:$0xff]
        %v7492 = vld [vmem:[%s1182 + $0xa8] sm:$0xff]
        %v7493 = vld [vmem:[%s1182 + $0xb0] sm:$0xff]
        %v7494 = vld [vmem:[%s1182 + $0xb8] sm:$0xff]
        %v7495 = vld [vmem:[%s1182 + $0xc0] sm:$0xff]
        %v7496 = vld [vmem:[%s1182 + $0xc8] sm:$0xff]
        %v7497 = vld [vmem:[%s1182 + $0xd0] sm:$0xff]
        %v7498 = vld [vmem:[%s1182 + $0xd8] sm:$0xff]
        %v7499 = vld [vmem:[%s1182 + $0xe0] sm:$0xff]
        %v7500 = vld [vmem:[%s1182 + $0xe8] sm:$0xff]
        %v7501 = vld [vmem:[%s1182 + $0xf0] sm:$0xff]
        %v7502 = vld [vmem:[%s1182 + $0xf8] sm:$0xff]
        %v7503 = vld [vmem:[%s1182 + $0x100] sm:$0xff]
        %v7504 = vld [vmem:[%s1182 + $0x108] sm:$0xff]
        %v7505 = vld [vmem:[%s1182 + $0x110] sm:$0xff]
        %v7506 = vld [vmem:[%s1182 + $0x118] sm:$0xff]
        %v7507 = vld [vmem:[%s1182 + $0x120] sm:$0xff]
        %v7508 = vld [vmem:[%s1182 + $0x128] sm:$0xff]
        %v7509 = vld [vmem:[%s1182 + $0x130] sm:$0xff]
        %v7510 = vld [vmem:[%s1182 + $0x138] sm:$0xff]
        %v7511 = vld [vmem:[%s1182 + $0x140] sm:$0xff]
        %v7512 = vld [vmem:[%s1182 + $0x148] sm:$0xff]
        %v7513 = vld [vmem:[%s1182 + $0x150] sm:$0xff]
        %v7514 = vld [vmem:[%s1182 + $0x158] sm:$0xff]
        %v7515 = vld [vmem:[%s1182 + $0x160] sm:$0xff]
        %v7516 = vld [vmem:[%s1182 + $0x168] sm:$0xff]
        %v7517 = vld [vmem:[%s1182 + $0x170] sm:$0xff]
        %v7518 = vld [vmem:[%s1182 + $0x178] sm:$0xff]
        %v7519 = vld [vmem:[%s1182 + $0x180] sm:$0xff]
        %v7520 = vld [vmem:[%s1182 + $0x188] sm:$0xff]
        %v7521 = vld [vmem:[%s1182 + $0x190] sm:$0xff]
        %v7522 = vld [vmem:[%s1182 + $0x198] sm:$0xff]
        %v7523 = vld [vmem:[%s1182 + $0x1a0] sm:$0xff]
        %v7524 = vld [vmem:[%s1182 + $0x1a8] sm:$0xff]
        %v7525 = vld [vmem:[%s1182 + $0x1b0] sm:$0xff]
        %v7526 = vld [vmem:[%s1182 + $0x1b8] sm:$0xff]
        %v7527 = vld [vmem:[%s1182 + $0x1c0] sm:$0xff]
        %v7528 = vld [vmem:[%s1182 + $0x1c8] sm:$0xff]
        %v7529 = vld [vmem:[%s1182 + $0x1d0] sm:$0xff]
        %v7530 = vld [vmem:[%s1182 + $0x1d8] sm:$0xff]
        %v7531 = vld [vmem:[%s1182 + $0x1e0] sm:$0xff]
        %v7532 = vld [vmem:[%s1182 + $0x1e8] sm:$0xff]
        %v7533 = vld [vmem:[%s1182 + $0x1f0] sm:$0xff]
        %v7534 = vld [vmem:[%s1182 + $0x1f8] sm:$0xff]
        %v7535 = vld [vmem:[%s1247] sm:$0xf]
        %v7537 = vlaneseq
        %v7538 = vshrl.u32 %v7537, 7
        %v7539 = vsub.s32 0, %v7538
        %v7540 = vrot.slane %v7535, %v7539
        %v7541 = vlaneseq
        %v7542 = vshrl.u32 %v7541, 7
        %v7543 = vsub.s32 1, %v7542
        %v7544 = vrot.slane %v7535, %v7543
        %v7545 = vlaneseq
        %v7546 = vshrl.u32 %v7545, 7
        %v7547 = vsub.s32 2, %v7546
        %v7548 = vrot.slane %v7535, %v7547
        %v7549 = vlaneseq
        %v7550 = vshrl.u32 %v7549, 7
        %v7551 = vsub.s32 3, %v7550
        %v7552 = vrot.slane %v7535, %v7551
        %v7621 = vunpack.c.l.b16 %v7471
        %v7622 = vunpack.c.h.b16 %v7471
        %v7623 = vunpack.c.l.b16 %v7472
        %v7624 = vunpack.c.h.b16 %v7472
        %v7625 = vunpack.c.l.b16 %v7473
        %v7626 = vunpack.c.h.b16 %v7473
        %v7627 = vunpack.c.l.b16 %v7474
        %v7628 = vunpack.c.h.b16 %v7474
        %v7629 = vunpack.c.l.b16 %v7475
        %v7630 = vunpack.c.h.b16 %v7475
        %v7631 = vunpack.c.l.b16 %v7476
        %v7632 = vunpack.c.h.b16 %v7476
        %v7633 = vunpack.c.l.b16 %v7477
        %v7634 = vunpack.c.h.b16 %v7477
        %v7635 = vunpack.c.l.b16 %v7478
        %v7636 = vunpack.c.h.b16 %v7478
        %v7637 = vunpack.c.l.b16 %v7479
        %v7638 = vunpack.c.h.b16 %v7479
        %v7639 = vunpack.c.l.b16 %v7480
        %v7640 = vunpack.c.h.b16 %v7480
        %v7641 = vunpack.c.l.b16 %v7481
        %v7642 = vunpack.c.h.b16 %v7481
        %v7643 = vunpack.c.l.b16 %v7482
        %v7644 = vunpack.c.h.b16 %v7482
        %v7645 = vunpack.c.l.b16 %v7483
        %v7646 = vunpack.c.h.b16 %v7483
        %v7647 = vunpack.c.l.b16 %v7484
        %v7648 = vunpack.c.h.b16 %v7484
        %v7649 = vunpack.c.l.b16 %v7485
        %v7650 = vunpack.c.h.b16 %v7485
        %v7651 = vunpack.c.l.b16 %v7486
        %v7652 = vunpack.c.h.b16 %v7486
        %v7653 = vunpack.c.l.b16 %v7487
        %v7654 = vunpack.c.h.b16 %v7487
        %v7655 = vunpack.c.l.b16 %v7488
        %v7656 = vunpack.c.h.b16 %v7488
        %v7657 = vunpack.c.l.b16 %v7489
        %v7658 = vunpack.c.h.b16 %v7489
        %v7659 = vunpack.c.l.b16 %v7490
        %v7660 = vunpack.c.h.b16 %v7490
        %v7661 = vunpack.c.l.b16 %v7491
        %v7662 = vunpack.c.h.b16 %v7491
        %v7663 = vunpack.c.l.b16 %v7492
        %v7664 = vunpack.c.h.b16 %v7492
        %v7665 = vunpack.c.l.b16 %v7493
        %v7666 = vunpack.c.h.b16 %v7493
        %v7667 = vunpack.c.l.b16 %v7494
        %v7668 = vunpack.c.h.b16 %v7494
        %v7669 = vunpack.c.l.b16 %v7495
        %v7670 = vunpack.c.h.b16 %v7495
        %v7671 = vunpack.c.l.b16 %v7496
        %v7672 = vunpack.c.h.b16 %v7496
        %v7673 = vunpack.c.l.b16 %v7497
        %v7674 = vunpack.c.h.b16 %v7497
        %v7675 = vunpack.c.l.b16 %v7498
        %v7676 = vunpack.c.h.b16 %v7498
        %v7677 = vunpack.c.l.b16 %v7499
        %v7678 = vunpack.c.h.b16 %v7499
        %v7679 = vunpack.c.l.b16 %v7500
        %v7680 = vunpack.c.h.b16 %v7500
        %v7681 = vunpack.c.l.b16 %v7501
        %v7682 = vunpack.c.h.b16 %v7501
        %v7683 = vunpack.c.l.b16 %v7502
        %v7684 = vunpack.c.h.b16 %v7502
        %v7685 = vunpack.c.l.b16 %v7503
        %v7686 = vunpack.c.h.b16 %v7503
        %v7687 = vunpack.c.l.b16 %v7504
        %v7688 = vunpack.c.h.b16 %v7504
        %v7689 = vunpack.c.l.b16 %v7505
        %v7690 = vunpack.c.h.b16 %v7505
        %v7691 = vunpack.c.l.b16 %v7506
        %v7692 = vunpack.c.h.b16 %v7506
        %v7693 = vunpack.c.l.b16 %v7507
        %v7694 = vunpack.c.h.b16 %v7507
        %v7695 = vunpack.c.l.b16 %v7508
        %v7696 = vunpack.c.h.b16 %v7508
        %v7697 = vunpack.c.l.b16 %v7509
        %v7698 = vunpack.c.h.b16 %v7509
        %v7699 = vunpack.c.l.b16 %v7510
        %v7700 = vunpack.c.h.b16 %v7510
        %v7701 = vunpack.c.l.b16 %v7511
        %v7702 = vunpack.c.h.b16 %v7511
        %v7703 = vunpack.c.l.b16 %v7512
        %v7704 = vunpack.c.h.b16 %v7512
        %v7705 = vunpack.c.l.b16 %v7513
        %v7706 = vunpack.c.h.b16 %v7513
        %v7707 = vunpack.c.l.b16 %v7514
        %v7708 = vunpack.c.h.b16 %v7514
        %v7709 = vunpack.c.l.b16 %v7515
        %v7710 = vunpack.c.h.b16 %v7515
        %v7711 = vunpack.c.l.b16 %v7516
        %v7712 = vunpack.c.h.b16 %v7516
        %v7713 = vunpack.c.l.b16 %v7517
        %v7714 = vunpack.c.h.b16 %v7517
        %v7715 = vunpack.c.l.b16 %v7518
        %v7716 = vunpack.c.h.b16 %v7518
        %v7717 = vunpack.c.l.b16 %v7519
        %v7718 = vunpack.c.h.b16 %v7519
        %v7719 = vunpack.c.l.b16 %v7520
        %v7720 = vunpack.c.h.b16 %v7520
        %v7721 = vunpack.c.l.b16 %v7521
        %v7722 = vunpack.c.h.b16 %v7521
        %v7723 = vunpack.c.l.b16 %v7522
        %v7724 = vunpack.c.h.b16 %v7522
        %v7725 = vunpack.c.l.b16 %v7523
        %v7726 = vunpack.c.h.b16 %v7523
        %v7727 = vunpack.c.l.b16 %v7524
        %v7728 = vunpack.c.h.b16 %v7524
        %v7729 = vunpack.c.l.b16 %v7525
        %v7730 = vunpack.c.h.b16 %v7525
        %v7731 = vunpack.c.l.b16 %v7526
        %v7732 = vunpack.c.h.b16 %v7526
        %v7733 = vunpack.c.l.b16 %v7527
        %v7734 = vunpack.c.h.b16 %v7527
        %v7735 = vunpack.c.l.b16 %v7528
        %v7736 = vunpack.c.h.b16 %v7528
        %v7737 = vunpack.c.l.b16 %v7529
        %v7738 = vunpack.c.h.b16 %v7529
        %v7739 = vunpack.c.l.b16 %v7530
        %v7740 = vunpack.c.h.b16 %v7530
        %v7741 = vunpack.c.l.b16 %v7531
        %v7742 = vunpack.c.h.b16 %v7531
        %v7743 = vunpack.c.l.b16 %v7532
        %v7744 = vunpack.c.h.b16 %v7532
        %v7745 = vunpack.c.l.b16 %v7533
        %v7746 = vunpack.c.h.b16 %v7533
        %v7747 = vunpack.c.l.b16 %v7534
        %v7748 = vunpack.c.h.b16 %v7534
        %v7749 = vpack.c.b16 %v7625, %v7621
        %v7750 = vpack.c.b16 %v7626, %v7622
        %v7751 = vpack.c.b16 %v7627, %v7623
        %v7752 = vpack.c.b16 %v7628, %v7624
        %v7753 = vpack.c.b16 %v7633, %v7629
        %v7754 = vpack.c.b16 %v7634, %v7630
        %v7755 = vpack.c.b16 %v7635, %v7631
        %v7756 = vpack.c.b16 %v7636, %v7632
        %v7757 = vpack.c.b16 %v7641, %v7637
        %v7758 = vpack.c.b16 %v7642, %v7638
        %v7759 = vpack.c.b16 %v7643, %v7639
        %v7760 = vpack.c.b16 %v7644, %v7640
        %v7761 = vpack.c.b16 %v7649, %v7645
        %v7762 = vpack.c.b16 %v7650, %v7646
        %v7763 = vpack.c.b16 %v7651, %v7647
        %v7764 = vpack.c.b16 %v7652, %v7648
        %v7765 = vpack.c.b16 %v7657, %v7653
        %v7766 = vpack.c.b16 %v7658, %v7654
        %v7767 = vpack.c.b16 %v7659, %v7655
        %v7768 = vpack.c.b16 %v7660, %v7656
        %v7769 = vpack.c.b16 %v7665, %v7661
        %v7770 = vpack.c.b16 %v7666, %v7662
        %v7771 = vpack.c.b16 %v7667, %v7663
        %v7772 = vpack.c.b16 %v7668, %v7664
        %v7773 = vpack.c.b16 %v7673, %v7669
        %v7774 = vpack.c.b16 %v7674, %v7670
        %v7775 = vpack.c.b16 %v7675, %v7671
        %v7776 = vpack.c.b16 %v7676, %v7672
        %v7777 = vpack.c.b16 %v7681, %v7677
        %v7778 = vpack.c.b16 %v7682, %v7678
        %v7779 = vpack.c.b16 %v7683, %v7679
        %v7780 = vpack.c.b16 %v7684, %v7680
        %v7781 = vpack.c.b16 %v7689, %v7685
        %v7782 = vpack.c.b16 %v7690, %v7686
        %v7783 = vpack.c.b16 %v7691, %v7687
        %v7784 = vpack.c.b16 %v7692, %v7688
        %v7785 = vpack.c.b16 %v7697, %v7693
        %v7786 = vpack.c.b16 %v7698, %v7694
        %v7787 = vpack.c.b16 %v7699, %v7695
        %v7788 = vpack.c.b16 %v7700, %v7696
        %v7789 = vpack.c.b16 %v7705, %v7701
        %v7790 = vpack.c.b16 %v7706, %v7702
        %v7791 = vpack.c.b16 %v7707, %v7703
        %v7792 = vpack.c.b16 %v7708, %v7704
        %v7793 = vpack.c.b16 %v7713, %v7709
        %v7794 = vpack.c.b16 %v7714, %v7710
        %v7795 = vpack.c.b16 %v7715, %v7711
        %v7796 = vpack.c.b16 %v7716, %v7712
        %v7797 = vpack.c.b16 %v7721, %v7717
        %v7798 = vpack.c.b16 %v7722, %v7718
        %v7799 = vpack.c.b16 %v7723, %v7719
        %v7800 = vpack.c.b16 %v7724, %v7720
        %v7801 = vpack.c.b16 %v7729, %v7725
        %v7802 = vpack.c.b16 %v7730, %v7726
        %v7803 = vpack.c.b16 %v7731, %v7727
        %v7804 = vpack.c.b16 %v7732, %v7728
        %v7805 = vpack.c.b16 %v7737, %v7733
        %v7806 = vpack.c.b16 %v7738, %v7734
        %v7807 = vpack.c.b16 %v7739, %v7735
        %v7808 = vpack.c.b16 %v7740, %v7736
        %v7809 = vpack.c.b16 %v7745, %v7741
        %v7810 = vpack.c.b16 %v7746, %v7742
        %v7811 = vpack.c.b16 %v7747, %v7743
        %v7812 = vpack.c.b16 %v7748, %v7744
        %7877 = vmatprep.subr.bf16.mxu0 %v7750
        %7878 = vmatpush1.bf16.msra.mxu0 %v7749
        %7879 = vmatprep.subr.bf16.mxu0 %v7754
        %7880 = vmatpush1.bf16.msra.mxu0 %v7753
        %7881 = vmatprep.subr.bf16.mxu0 %v7758
        %7882 = vmatpush1.bf16.msra.mxu0 %v7757
        %7883 = vmatprep.subr.bf16.mxu0 %v7762
        %7884 = vmatpush1.bf16.msra.mxu0 %v7761
        %7885 = vmatprep.subr.bf16.mxu0 %v7766
        %7886 = vmatpush1.bf16.msra.mxu0 %v7765
        %7887 = vmatprep.subr.bf16.mxu0 %v7770
        %7888 = vmatpush1.bf16.msra.mxu0 %v7769
        %7889 = vmatprep.subr.bf16.mxu0 %v7774
        %7890 = vmatpush1.bf16.msra.mxu0 %v7773
        %7891 = vmatprep.subr.bf16.mxu0 %v7778
        %7892 = vmatpush1.bf16.msra.mxu0 %v7777
        %7893 = vmatprep.subr.bf16.mxu0 %v7782
        %7894 = vmatpush1.bf16.msra.mxu0 %v7781
        %7895 = vmatprep.subr.bf16.mxu0 %v7786
        %7896 = vmatpush1.bf16.msra.mxu0 %v7785
        %7897 = vmatprep.subr.bf16.mxu0 %v7790
        %7898 = vmatpush1.bf16.msra.mxu0 %v7789
        %7899 = vmatprep.subr.bf16.mxu0 %v7794
        %7900 = vmatpush1.bf16.msra.mxu0 %v7793
        %7901 = vmatprep.subr.bf16.mxu0 %v7798
        %7902 = vmatpush1.bf16.msra.mxu0 %v7797
        %7903 = vmatprep.subr.bf16.mxu0 %v7802
        %7904 = vmatpush1.bf16.msra.mxu0 %v7801
        %7905 = vmatprep.subr.bf16.mxu0 %v7806
        %7906 = vmatpush1.bf16.msra.mxu0 %v7805
        %7907 = vmatprep.subr.bf16.mxu0 %v7810
        %7908 = vmatpush1.bf16.msra.mxu0 %v7809
        %7909 = vmatprep.mubr.bf16.mxu0 %v7470
        %7910 = vmatmul.mubr.bf16.gmra.mrb[0].mxu0 %v7469
        %v7911 = vpop.f32.mrb[0].mxu0
        %v7912 = vadd.f32 %v7540, %v7911
        %v7913 = vpop.f32.mrb[0].mxu0
        %v7914 = vadd.f32 %v7544, %v7913
        %v7915 = vpop.f32.mrb[0].mxu0
        %v7916 = vpop.f32.mrb[0].mxu0
        %7917 = vdwg.mxu0
        %7918 = vmatprep.subr.bf16.mxu0 %v7752
        %7919 = vmatpush1.bf16.msra.mxu0 %v7751
        %7920 = vmatprep.subr.bf16.mxu0 %v7756
        %7921 = vmatpush1.bf16.msra.mxu0 %v7755
        %7922 = vmatprep.subr.bf16.mxu0 %v7760
        %7923 = vmatpush1.bf16.msra.mxu0 %v7759
        %7924 = vmatprep.subr.bf16.mxu0 %v7764
        %7925 = vmatpush1.bf16.msra.mxu0 %v7763
        %7926 = vmatprep.subr.bf16.mxu0 %v7768
        %7927 = vmatpush1.bf16.msra.mxu0 %v7767
        %7928 = vmatprep.subr.bf16.mxu0 %v7772
        %7929 = vmatpush1.bf16.msra.mxu0 %v7771
        %7930 = vmatprep.subr.bf16.mxu0 %v7776
        %7931 = vmatpush1.bf16.msra.mxu0 %v7775
        %7932 = vmatprep.subr.bf16.mxu0 %v7780
        %7933 = vmatpush1.bf16.msra.mxu0 %v7779
        %7934 = vmatprep.subr.bf16.mxu0 %v7784
        %7935 = vmatpush1.bf16.msra.mxu0 %v7783
        %7936 = vmatprep.subr.bf16.mxu0 %v7788
        %7937 = vmatpush1.bf16.msra.mxu0 %v7787
        %7938 = vmatprep.subr.bf16.mxu0 %v7792
        %7939 = vmatpush1.bf16.msra.mxu0 %v7791
        %7940 = vmatprep.subr.bf16.mxu0 %v7796
        %7941 = vmatpush1.bf16.msra.mxu0 %v7795
        %7942 = vmatprep.subr.bf16.mxu0 %v7800
        %7943 = vmatpush1.bf16.msra.mxu0 %v7799
        %7944 = vmatprep.subr.bf16.mxu0 %v7804
        %7945 = vmatpush1.bf16.msra.mxu0 %v7803
        %7946 = vmatprep.subr.bf16.mxu0 %v7808
        %7947 = vmatpush1.bf16.msra.mxu0 %v7807
        %7948 = vmatprep.subr.bf16.mxu0 %v7812
        %7949 = vmatpush1.bf16.msra.mxu0 %v7811
        %7950 = vmatprep.mubr.bf16.mxu0 %v7470
        %7951 = vmatmul.mubr.bf16.gmra.mrb[0].mxu0 %v7469
        %v7952 = vpop.f32.mrb[0].mxu0
        %v7953 = vadd.f32 %v7548, %v7952
        %v7954 = vpop.f32.mrb[0].mxu0
        %v7955 = vadd.f32 %v7552, %v7954
        %v7956 = vpop.f32.mrb[0].mxu0
        %v7957 = vpop.f32.mrb[0].mxu0
        %7958 = vdwg.mxu0
        %v7959 = vxor.u32 %v7912, 2147483648
        %v7960 = vmul.f32 %v7959, 1.442695
        %v7961 = vpow.pop %v7960
        %v7962 = vadd.f32 %v7961, 1.0
        %v7963 = vrcp.pop %v7962
        %v7964 = vmul.f32 1.0, %v7963
        %v7965 = vxor.u32 %v7914, 2147483648
        %v7966 = vmul.f32 %v7965, 1.442695
        %v7967 = vpow.pop %v7966
        %v7968 = vadd.f32 %v7967, 1.0
        %v7969 = vrcp.pop %v7968
        %v7970 = vmul.f32 1.0, %v7969
        %v7971 = vtanh.pop %v7953
        %v7972 = vxor.u32 %v7955, 2147483648
        %v7973 = vmul.f32 %v7972, 1.442695
        %v7974 = vpow.pop %v7973
        %v7975 = vadd.f32 %v7974, 1.0
        %v7976 = vrcp.pop %v7975
        %v7977 = vmul.f32 1.0, %v7976
        %v7978 = vmul.f32 %v7970, %v7464
        %v7979 = vmul.f32 %v7964, %v7971
        %v7980 = vadd.f32 %v7978, %v7979
        %v7981 = vtanh.pop %v7980
        %v7982 = vmul.f32 %v7977, %v7981
        %7983 = vst [vmem:[%s1172] sm:$0xff] %v7982
        %7984 = vst [vmem:[%s1174] sm:$0xff] %v7980
        %s7985 = scalar_lea.vmem [#allocation6], 48
        %7986 = vst [vmem:[%s7985] sm:$0xff] %v7982
        %s7987 = scalar_lea.vmem [#allocation2], 56
        %v7988 = vld [vmem:[%s7987] sm:$0xff]
        %v7989 = vld [vmem:[#allocation4] sm:$0xff]
        %v7990 = vld [vmem:[#allocation5] sm:$0xff]
        %7991 = vst [vmem:[#allocation3] sm:$0xff] %v7988
        %7992 = vst [vmem:[#allocation3 + $0x8] sm:$0xff] %v7989
        %v7993 = vld [vmem:[#allocation3] sm:$0xff]
        %v7994 = vld [vmem:[#allocation3 + $0x8] sm:$0xff]
        %v7995 = vpack.c.bf16 %v7993, %v7993
        %v7996 = vpack.c.bf16 %v7994, %v7994
        %v7997 = vld [vmem:[#allocation7] sm:$0xff]
        %v7998 = vld [vmem:[#allocation7 + $0x8] sm:$0xff]
        %v7999 = vld [vmem:[#allocation7 + $0x10] sm:$0xff]
        %v8000 = vld [vmem:[#allocation7 + $0x18] sm:$0xff]
        %v8001 = vld [vmem:[#allocation7 + $0x20] sm:$0xff]
        %v8002 = vld [vmem:[#allocation7 + $0x28] sm:$0xff]
        %v8003 = vld [vmem:[#allocation7 + $0x30] sm:$0xff]
        %v8004 = vld [vmem:[#allocation7 + $0x38] sm:$0xff]
        %v8005 = vld [vmem:[#allocation7 + $0x40] sm:$0xff]
        %v8006 = vld [vmem:[#allocation7 + $0x48] sm:$0xff]
        %v8007 = vld [vmem:[#allocation7 + $0x50] sm:$0xff]
        %v8008 = vld [vmem:[#allocation7 + $0x58] sm:$0xff]
        %v8009 = vld [vmem:[#allocation7 + $0x60] sm:$0xff]
        %v8010 = vld [vmem:[#allocation7 + $0x68] sm:$0xff]
        %v8011 = vld [vmem:[#allocation7 + $0x70] sm:$0xff]
        %v8012 = vld [vmem:[#allocation7 + $0x78] sm:$0xff]
        %v8013 = vld [vmem:[#allocation7 + $0x80] sm:$0xff]
        %v8014 = vld [vmem:[#allocation7 + $0x88] sm:$0xff]
        %v8015 = vld [vmem:[#allocation7 + $0x90] sm:$0xff]
        %v8016 = vld [vmem:[#allocation7 + $0x98] sm:$0xff]
        %v8017 = vld [vmem:[#allocation7 + $0xa0] sm:$0xff]
        %v8018 = vld [vmem:[#allocation7 + $0xa8] sm:$0xff]
        %v8019 = vld [vmem:[#allocation7 + $0xb0] sm:$0xff]
        %v8020 = vld [vmem:[#allocation7 + $0xb8] sm:$0xff]
        %v8021 = vld [vmem:[#allocation7 + $0xc0] sm:$0xff]
        %v8022 = vld [vmem:[#allocation7 + $0xc8] sm:$0xff]
        %v8023 = vld [vmem:[#allocation7 + $0xd0] sm:$0xff]
        %v8024 = vld [vmem:[#allocation7 + $0xd8] sm:$0xff]
        %v8025 = vld [vmem:[#allocation7 + $0xe0] sm:$0xff]
        %v8026 = vld [vmem:[#allocation7 + $0xe8] sm:$0xff]
        %v8027 = vld [vmem:[#allocation7 + $0xf0] sm:$0xff]
        %v8028 = vld [vmem:[#allocation7 + $0xf8] sm:$0xff]
        %v8029 = vld [vmem:[#allocation7 + $0x100] sm:$0xff]
        %v8030 = vld [vmem:[#allocation7 + $0x108] sm:$0xff]
        %v8031 = vld [vmem:[#allocation7 + $0x110] sm:$0xff]
        %v8032 = vld [vmem:[#allocation7 + $0x118] sm:$0xff]
        %v8033 = vld [vmem:[#allocation7 + $0x120] sm:$0xff]
        %v8034 = vld [vmem:[#allocation7 + $0x128] sm:$0xff]
        %v8035 = vld [vmem:[#allocation7 + $0x130] sm:$0xff]
        %v8036 = vld [vmem:[#allocation7 + $0x138] sm:$0xff]
        %v8037 = vld [vmem:[#allocation7 + $0x140] sm:$0xff]
        %v8038 = vld [vmem:[#allocation7 + $0x148] sm:$0xff]
        %v8039 = vld [vmem:[#allocation7 + $0x150] sm:$0xff]
        %v8040 = vld [vmem:[#allocation7 + $0x158] sm:$0xff]
        %v8041 = vld [vmem:[#allocation7 + $0x160] sm:$0xff]
        %v8042 = vld [vmem:[#allocation7 + $0x168] sm:$0xff]
        %v8043 = vld [vmem:[#allocation7 + $0x170] sm:$0xff]
        %v8044 = vld [vmem:[#allocation7 + $0x178] sm:$0xff]
        %v8045 = vld [vmem:[#allocation7 + $0x180] sm:$0xff]
        %v8046 = vld [vmem:[#allocation7 + $0x188] sm:$0xff]
        %v8047 = vld [vmem:[#allocation7 + $0x190] sm:$0xff]
        %v8048 = vld [vmem:[#allocation7 + $0x198] sm:$0xff]
        %v8049 = vld [vmem:[#allocation7 + $0x1a0] sm:$0xff]
        %v8050 = vld [vmem:[#allocation7 + $0x1a8] sm:$0xff]
        %v8051 = vld [vmem:[#allocation7 + $0x1b0] sm:$0xff]
        %v8052 = vld [vmem:[#allocation7 + $0x1b8] sm:$0xff]
        %v8053 = vld [vmem:[#allocation7 + $0x1c0] sm:$0xff]
        %v8054 = vld [vmem:[#allocation7 + $0x1c8] sm:$0xff]
        %v8055 = vld [vmem:[#allocation7 + $0x1d0] sm:$0xff]
        %v8056 = vld [vmem:[#allocation7 + $0x1d8] sm:$0xff]
        %v8057 = vld [vmem:[#allocation7 + $0x1e0] sm:$0xff]
        %v8058 = vld [vmem:[#allocation7 + $0x1e8] sm:$0xff]
        %v8059 = vld [vmem:[#allocation7 + $0x1f0] sm:$0xff]
        %v8060 = vld [vmem:[#allocation7 + $0x1f8] sm:$0xff]
        %v8061 = vld [vmem:[%s5] sm:$0xf]
        %v8063 = vlaneseq
        %v8064 = vshrl.u32 %v8063, 7
        %v8065 = vsub.s32 0, %v8064
        %v8066 = vrot.slane %v8061, %v8065
        %v8067 = vlaneseq
        %v8068 = vshrl.u32 %v8067, 7
        %v8069 = vsub.s32 1, %v8068
        %v8070 = vrot.slane %v8061, %v8069
        %v8071 = vlaneseq
        %v8072 = vshrl.u32 %v8071, 7
        %v8073 = vsub.s32 2, %v8072
        %v8074 = vrot.slane %v8061, %v8073
        %v8075 = vlaneseq
        %v8076 = vshrl.u32 %v8075, 7
        %v8077 = vsub.s32 3, %v8076
        %v8078 = vrot.slane %v8061, %v8077
        %v8147 = vunpack.c.l.b16 %v7997
        %v8148 = vunpack.c.h.b16 %v7997
        %v8149 = vunpack.c.l.b16 %v7998
        %v8150 = vunpack.c.h.b16 %v7998
        %v8151 = vunpack.c.l.b16 %v7999
        %v8152 = vunpack.c.h.b16 %v7999
        %v8153 = vunpack.c.l.b16 %v8000
        %v8154 = vunpack.c.h.b16 %v8000
        %v8155 = vunpack.c.l.b16 %v8001
        %v8156 = vunpack.c.h.b16 %v8001
        %v8157 = vunpack.c.l.b16 %v8002
        %v8158 = vunpack.c.h.b16 %v8002
        %v8159 = vunpack.c.l.b16 %v8003
        %v8160 = vunpack.c.h.b16 %v8003
        %v8161 = vunpack.c.l.b16 %v8004
        %v8162 = vunpack.c.h.b16 %v8004
        %v8163 = vunpack.c.l.b16 %v8005
        %v8164 = vunpack.c.h.b16 %v8005
        %v8165 = vunpack.c.l.b16 %v8006
        %v8166 = vunpack.c.h.b16 %v8006
        %v8167 = vunpack.c.l.b16 %v8007
        %v8168 = vunpack.c.h.b16 %v8007
        %v8169 = vunpack.c.l.b16 %v8008
        %v8170 = vunpack.c.h.b16 %v8008
        %v8171 = vunpack.c.l.b16 %v8009
        %v8172 = vunpack.c.h.b16 %v8009
        %v8173 = vunpack.c.l.b16 %v8010
        %v8174 = vunpack.c.h.b16 %v8010
        %v8175 = vunpack.c.l.b16 %v8011
        %v8176 = vunpack.c.h.b16 %v8011
        %v8177 = vunpack.c.l.b16 %v8012
        %v8178 = vunpack.c.h.b16 %v8012
        %v8179 = vunpack.c.l.b16 %v8013
        %v8180 = vunpack.c.h.b16 %v8013
        %v8181 = vunpack.c.l.b16 %v8014
        %v8182 = vunpack.c.h.b16 %v8014
        %v8183 = vunpack.c.l.b16 %v8015
        %v8184 = vunpack.c.h.b16 %v8015
        %v8185 = vunpack.c.l.b16 %v8016
        %v8186 = vunpack.c.h.b16 %v8016
        %v8187 = vunpack.c.l.b16 %v8017
        %v8188 = vunpack.c.h.b16 %v8017
        %v8189 = vunpack.c.l.b16 %v8018
        %v8190 = vunpack.c.h.b16 %v8018
        %v8191 = vunpack.c.l.b16 %v8019
        %v8192 = vunpack.c.h.b16 %v8019
        %v8193 = vunpack.c.l.b16 %v8020
        %v8194 = vunpack.c.h.b16 %v8020
        %v8195 = vunpack.c.l.b16 %v8021
        %v8196 = vunpack.c.h.b16 %v8021
        %v8197 = vunpack.c.l.b16 %v8022
        %v8198 = vunpack.c.h.b16 %v8022
        %v8199 = vunpack.c.l.b16 %v8023
        %v8200 = vunpack.c.h.b16 %v8023
        %v8201 = vunpack.c.l.b16 %v8024
        %v8202 = vunpack.c.h.b16 %v8024
        %v8203 = vunpack.c.l.b16 %v8025
        %v8204 = vunpack.c.h.b16 %v8025
        %v8205 = vunpack.c.l.b16 %v8026
        %v8206 = vunpack.c.h.b16 %v8026
        %v8207 = vunpack.c.l.b16 %v8027
        %v8208 = vunpack.c.h.b16 %v8027
        %v8209 = vunpack.c.l.b16 %v8028
        %v8210 = vunpack.c.h.b16 %v8028
        %v8211 = vunpack.c.l.b16 %v8029
        %v8212 = vunpack.c.h.b16 %v8029
        %v8213 = vunpack.c.l.b16 %v8030
        %v8214 = vunpack.c.h.b16 %v8030
        %v8215 = vunpack.c.l.b16 %v8031
        %v8216 = vunpack.c.h.b16 %v8031
        %v8217 = vunpack.c.l.b16 %v8032
        %v8218 = vunpack.c.h.b16 %v8032
        %v8219 = vunpack.c.l.b16 %v8033
        %v8220 = vunpack.c.h.b16 %v8033
        %v8221 = vunpack.c.l.b16 %v8034
        %v8222 = vunpack.c.h.b16 %v8034
        %v8223 = vunpack.c.l.b16 %v8035
        %v8224 = vunpack.c.h.b16 %v8035
        %v8225 = vunpack.c.l.b16 %v8036
        %v8226 = vunpack.c.h.b16 %v8036
        %v8227 = vunpack.c.l.b16 %v8037
        %v8228 = vunpack.c.h.b16 %v8037
        %v8229 = vunpack.c.l.b16 %v8038
        %v8230 = vunpack.c.h.b16 %v8038
        %v8231 = vunpack.c.l.b16 %v8039
        %v8232 = vunpack.c.h.b16 %v8039
        %v8233 = vunpack.c.l.b16 %v8040
        %v8234 = vunpack.c.h.b16 %v8040
        %v8235 = vunpack.c.l.b16 %v8041
        %v8236 = vunpack.c.h.b16 %v8041
        %v8237 = vunpack.c.l.b16 %v8042
        %v8238 = vunpack.c.h.b16 %v8042
        %v8239 = vunpack.c.l.b16 %v8043
        %v8240 = vunpack.c.h.b16 %v8043
        %v8241 = vunpack.c.l.b16 %v8044
        %v8242 = vunpack.c.h.b16 %v8044
        %v8243 = vunpack.c.l.b16 %v8045
        %v8244 = vunpack.c.h.b16 %v8045
        %v8245 = vunpack.c.l.b16 %v8046
        %v8246 = vunpack.c.h.b16 %v8046
        %v8247 = vunpack.c.l.b16 %v8047
        %v8248 = vunpack.c.h.b16 %v8047
        %v8249 = vunpack.c.l.b16 %v8048
        %v8250 = vunpack.c.h.b16 %v8048
        %v8251 = vunpack.c.l.b16 %v8049
        %v8252 = vunpack.c.h.b16 %v8049
        %v8253 = vunpack.c.l.b16 %v8050
        %v8254 = vunpack.c.h.b16 %v8050
        %v8255 = vunpack.c.l.b16 %v8051
        %v8256 = vunpack.c.h.b16 %v8051
        %v8257 = vunpack.c.l.b16 %v8052
        %v8258 = vunpack.c.h.b16 %v8052
        %v8259 = vunpack.c.l.b16 %v8053
        %v8260 = vunpack.c.h.b16 %v8053
        %v8261 = vunpack.c.l.b16 %v8054
        %v8262 = vunpack.c.h.b16 %v8054
        %v8263 = vunpack.c.l.b16 %v8055
        %v8264 = vunpack.c.h.b16 %v8055
        %v8265 = vunpack.c.l.b16 %v8056
        %v8266 = vunpack.c.h.b16 %v8056
        %v8267 = vunpack.c.l.b16 %v8057
        %v8268 = vunpack.c.h.b16 %v8057
        %v8269 = vunpack.c.l.b16 %v8058
        %v8270 = vunpack.c.h.b16 %v8058
        %v8271 = vunpack.c.l.b16 %v8059
        %v8272 = vunpack.c.h.b16 %v8059
        %v8273 = vunpack.c.l.b16 %v8060
        %v8274 = vunpack.c.h.b16 %v8060
        %v8275 = vpack.c.b16 %v8151, %v8147
        %v8276 = vpack.c.b16 %v8152, %v8148
        %v8277 = vpack.c.b16 %v8153, %v8149
        %v8278 = vpack.c.b16 %v8154, %v8150
        %v8279 = vpack.c.b16 %v8159, %v8155
        %v8280 = vpack.c.b16 %v8160, %v8156
        %v8281 = vpack.c.b16 %v8161, %v8157
        %v8282 = vpack.c.b16 %v8162, %v8158
        %v8283 = vpack.c.b16 %v8167, %v8163
        %v8284 = vpack.c.b16 %v8168, %v8164
        %v8285 = vpack.c.b16 %v8169, %v8165
        %v8286 = vpack.c.b16 %v8170, %v8166
        %v8287 = vpack.c.b16 %v8175, %v8171
        %v8288 = vpack.c.b16 %v8176, %v8172
        %v8289 = vpack.c.b16 %v8177, %v8173
        %v8290 = vpack.c.b16 %v8178, %v8174
        %v8291 = vpack.c.b16 %v8183, %v8179
        %v8292 = vpack.c.b16 %v8184, %v8180
        %v8293 = vpack.c.b16 %v8185, %v8181
        %v8294 = vpack.c.b16 %v8186, %v8182
        %v8295 = vpack.c.b16 %v8191, %v8187
        %v8296 = vpack.c.b16 %v8192, %v8188
        %v8297 = vpack.c.b16 %v8193, %v8189
        %v8298 = vpack.c.b16 %v8194, %v8190
        %v8299 = vpack.c.b16 %v8199, %v8195
        %v8300 = vpack.c.b16 %v8200, %v8196
        %v8301 = vpack.c.b16 %v8201, %v8197
        %v8302 = vpack.c.b16 %v8202, %v8198
        %v8303 = vpack.c.b16 %v8207, %v8203
        %v8304 = vpack.c.b16 %v8208, %v8204
        %v8305 = vpack.c.b16 %v8209, %v8205
        %v8306 = vpack.c.b16 %v8210, %v8206
        %v8307 = vpack.c.b16 %v8215, %v8211
        %v8308 = vpack.c.b16 %v8216, %v8212
        %v8309 = vpack.c.b16 %v8217, %v8213
        %v8310 = vpack.c.b16 %v8218, %v8214
        %v8311 = vpack.c.b16 %v8223, %v8219
        %v8312 = vpack.c.b16 %v8224, %v8220
        %v8313 = vpack.c.b16 %v8225, %v8221
        %v8314 = vpack.c.b16 %v8226, %v8222
        %v8315 = vpack.c.b16 %v8231, %v8227
        %v8316 = vpack.c.b16 %v8232, %v8228
        %v8317 = vpack.c.b16 %v8233, %v8229
        %v8318 = vpack.c.b16 %v8234, %v8230
        %v8319 = vpack.c.b16 %v8239, %v8235
        %v8320 = vpack.c.b16 %v8240, %v8236
        %v8321 = vpack.c.b16 %v8241, %v8237
        %v8322 = vpack.c.b16 %v8242, %v8238
        %v8323 = vpack.c.b16 %v8247, %v8243
        %v8324 = vpack.c.b16 %v8248, %v8244
        %v8325 = vpack.c.b16 %v8249, %v8245
        %v8326 = vpack.c.b16 %v8250, %v8246
        %v8327 = vpack.c.b16 %v8255, %v8251
        %v8328 = vpack.c.b16 %v8256, %v8252
        %v8329 = vpack.c.b16 %v8257, %v8253
        %v8330 = vpack.c.b16 %v8258, %v8254
        %v8331 = vpack.c.b16 %v8263, %v8259
        %v8332 = vpack.c.b16 %v8264, %v8260
        %v8333 = vpack.c.b16 %v8265, %v8261
        %v8334 = vpack.c.b16 %v8266, %v8262
        %v8335 = vpack.c.b16 %v8271, %v8267
        %v8336 = vpack.c.b16 %v8272, %v8268
        %v8337 = vpack.c.b16 %v8273, %v8269
        %v8338 = vpack.c.b16 %v8274, %v8270
        %8403 = vmatprep.subr.bf16.mxu0 %v8276
        %8404 = vmatpush1.bf16.msra.mxu0 %v8275
        %8405 = vmatprep.subr.bf16.mxu0 %v8280
        %8406 = vmatpush1.bf16.msra.mxu0 %v8279
        %8407 = vmatprep.subr.bf16.mxu0 %v8284
        %8408 = vmatpush1.bf16.msra.mxu0 %v8283
        %8409 = vmatprep.subr.bf16.mxu0 %v8288
        %8410 = vmatpush1.bf16.msra.mxu0 %v8287
        %8411 = vmatprep.subr.bf16.mxu0 %v8292
        %8412 = vmatpush1.bf16.msra.mxu0 %v8291
        %8413 = vmatprep.subr.bf16.mxu0 %v8296
        %8414 = vmatpush1.bf16.msra.mxu0 %v8295
        %8415 = vmatprep.subr.bf16.mxu0 %v8300
        %8416 = vmatpush1.bf16.msra.mxu0 %v8299
        %8417 = vmatprep.subr.bf16.mxu0 %v8304
        %8418 = vmatpush1.bf16.msra.mxu0 %v8303
        %8419 = vmatprep.subr.bf16.mxu0 %v8308
        %8420 = vmatpush1.bf16.msra.mxu0 %v8307
        %8421 = vmatprep.subr.bf16.mxu0 %v8312
        %8422 = vmatpush1.bf16.msra.mxu0 %v8311
        %8423 = vmatprep.subr.bf16.mxu0 %v8316
        %8424 = vmatpush1.bf16.msra.mxu0 %v8315
        %8425 = vmatprep.subr.bf16.mxu0 %v8320
        %8426 = vmatpush1.bf16.msra.mxu0 %v8319
        %8427 = vmatprep.subr.bf16.mxu0 %v8324
        %8428 = vmatpush1.bf16.msra.mxu0 %v8323
        %8429 = vmatprep.subr.bf16.mxu0 %v8328
        %8430 = vmatpush1.bf16.msra.mxu0 %v8327
        %8431 = vmatprep.subr.bf16.mxu0 %v8332
        %8432 = vmatpush1.bf16.msra.mxu0 %v8331
        %8433 = vmatprep.subr.bf16.mxu0 %v8336
        %8434 = vmatpush1.bf16.msra.mxu0 %v8335
        %8435 = vmatprep.mubr.bf16.mxu0 %v7996
        %8436 = vmatmul.mubr.bf16.gmra.mrb[0].mxu0 %v7995
        %v8437 = vpop.f32.mrb[0].mxu0
        %v8438 = vadd.f32 %v8066, %v8437
        %v8439 = vpop.f32.mrb[0].mxu0
        %v8440 = vadd.f32 %v8070, %v8439
        %v8441 = vpop.f32.mrb[0].mxu0
        %v8442 = vpop.f32.mrb[0].mxu0
        %8443 = vdwg.mxu0
        %8444 = vmatprep.subr.bf16.mxu0 %v8278
        %8445 = vmatpush1.bf16.msra.mxu0 %v8277
        %8446 = vmatprep.subr.bf16.mxu0 %v8282
        %8447 = vmatpush1.bf16.msra.mxu0 %v8281
        %8448 = vmatprep.subr.bf16.mxu0 %v8286
        %8449 = vmatpush1.bf16.msra.mxu0 %v8285
        %8450 = vmatprep.subr.bf16.mxu0 %v8290
        %8451 = vmatpush1.bf16.msra.mxu0 %v8289
        %8452 = vmatprep.subr.bf16.mxu0 %v8294
        %8453 = vmatpush1.bf16.msra.mxu0 %v8293
        %8454 = vmatprep.subr.bf16.mxu0 %v8298
        %8455 = vmatpush1.bf16.msra.mxu0 %v8297
        %8456 = vmatprep.subr.bf16.mxu0 %v8302
        %8457 = vmatpush1.bf16.msra.mxu0 %v8301
        %8458 = vmatprep.subr.bf16.mxu0 %v8306
        %8459 = vmatpush1.bf16.msra.mxu0 %v8305
        %8460 = vmatprep.subr.bf16.mxu0 %v8310
        %8461 = vmatpush1.bf16.msra.mxu0 %v8309
        %8462 = vmatprep.subr.bf16.mxu0 %v8314
        %8463 = vmatpush1.bf16.msra.mxu0 %v8313
        %8464 = vmatprep.subr.bf16.mxu0 %v8318
        %8465 = vmatpush1.bf16.msra.mxu0 %v8317
        %8466 = vmatprep.subr.bf16.mxu0 %v8322
        %8467 = vmatpush1.bf16.msra.mxu0 %v8321
        %8468 = vmatprep.subr.bf16.mxu0 %v8326
        %8469 = vmatpush1.bf16.msra.mxu0 %v8325
        %8470 = vmatprep.subr.bf16.mxu0 %v8330
        %8471 = vmatpush1.bf16.msra.mxu0 %v8329
        %8472 = vmatprep.subr.bf16.mxu0 %v8334
        %8473 = vmatpush1.bf16.msra.mxu0 %v8333
        %8474 = vmatprep.subr.bf16.mxu0 %v8338
        %8475 = vmatpush1.bf16.msra.mxu0 %v8337
        %8476 = vmatprep.mubr.bf16.mxu0 %v7996
        %8477 = vmatmul.mubr.bf16.gmra.mrb[0].mxu0 %v7995
        %v8478 = vpop.f32.mrb[0].mxu0
        %v8479 = vadd.f32 %v8074, %v8478
        %v8480 = vpop.f32.mrb[0].mxu0
        %v8481 = vadd.f32 %v8078, %v8480
        %v8482 = vpop.f32.mrb[0].mxu0
        %v8483 = vpop.f32.mrb[0].mxu0
        %8484 = vdwg.mxu0
        %v8485 = vxor.u32 %v8438, 2147483648
        %v8486 = vmul.f32 %v8485, 1.442695
        %v8487 = vpow.pop %v8486
        %v8488 = vadd.f32 %v8487, 1.0
        %v8489 = vrcp.pop %v8488
        %v8490 = vmul.f32 1.0, %v8489
        %v8491 = vxor.u32 %v8440, 2147483648
        %v8492 = vmul.f32 %v8491, 1.442695
        %v8493 = vpow.pop %v8492
        %v8494 = vadd.f32 %v8493, 1.0
        %v8495 = vrcp.pop %v8494
        %v8496 = vmul.f32 1.0, %v8495
        %v8497 = vtanh.pop %v8479
        %v8498 = vxor.u32 %v8481, 2147483648
        %v8499 = vmul.f32 %v8498, 1.442695
        %v8500 = vpow.pop %v8499
        %v8501 = vadd.f32 %v8500, 1.0
        %v8502 = vrcp.pop %v8501
        %v8503 = vmul.f32 1.0, %v8502
        %v8504 = vmul.f32 %v8496, %v7990
        %v8505 = vmul.f32 %v8490, %v8497
        %v8506 = vadd.f32 %v8504, %v8505
        %v8507 = vtanh.pop %v8506
        %v8508 = vmul.f32 %v8503, %v8507
        %8509 = vst [vmem:[#allocation4] sm:$0xff] %v8508
        %8510 = vst [vmem:[#allocation5] sm:$0xff] %v8506
        %v8511 = vld [vmem:[%s1172] sm:$0xff]
        %v8512 = vld [vmem:[%s1174] sm:$0xff]
        %8513 = vst [vmem:[#allocation3] sm:$0xff] %v8508
        %8514 = vst [vmem:[#allocation3 + $0x8] sm:$0xff] %v8511
        %v8515 = vld [vmem:[#allocation3] sm:$0xff]
        %v8516 = vld [vmem:[#allocation3 + $0x8] sm:$0xff]
        %v8517 = vpack.c.bf16 %v8515, %v8515
        %v8518 = vpack.c.bf16 %v8516, %v8516
        %v8519 = vld [vmem:[%s1182] sm:$0xff]
        %v8520 = vld [vmem:[%s1182 + $0x8] sm:$0xff]
        %v8521 = vld [vmem:[%s1182 + $0x10] sm:$0xff]
        %v8522 = vld [vmem:[%s1182 + $0x18] sm:$0xff]
        %v8523 = vld [vmem:[%s1182 + $0x20] sm:$0xff]
        %v8524 = vld [vmem:[%s1182 + $0x28] sm:$0xff]
        %v8525 = vld [vmem:[%s1182 + $0x30] sm:$0xff]
        %v8526 = vld [vmem:[%s1182 + $0x38] sm:$0xff]
        %v8527 = vld [vmem:[%s1182 + $0x40] sm:$0xff]
        %v8528 = vld [vmem:[%s1182 + $0x48] sm:$0xff]
        %v8529 = vld [vmem:[%s1182 + $0x50] sm:$0xff]
        %v8530 = vld [vmem:[%s1182 + $0x58] sm:$0xff]
        %v8531 = vld [vmem:[%s1182 + $0x60] sm:$0xff]
        %v8532 = vld [vmem:[%s1182 + $0x68] sm:$0xff]
        %v8533 = vld [vmem:[%s1182 + $0x70] sm:$0xff]
        %v8534 = vld [vmem:[%s1182 + $0x78] sm:$0xff]
        %v8535 = vld [vmem:[%s1182 + $0x80] sm:$0xff]
        %v8536 = vld [vmem:[%s1182 + $0x88] sm:$0xff]
        %v8537 = vld [vmem:[%s1182 + $0x90] sm:$0xff]
        %v8538 = vld [vmem:[%s1182 + $0x98] sm:$0xff]
        %v8539 = vld [vmem:[%s1182 + $0xa0] sm:$0xff]
        %v8540 = vld [vmem:[%s1182 + $0xa8] sm:$0xff]
        %v8541 = vld [vmem:[%s1182 + $0xb0] sm:$0xff]
        %v8542 = vld [vmem:[%s1182 + $0xb8] sm:$0xff]
        %v8543 = vld [vmem:[%s1182 + $0xc0] sm:$0xff]
        %v8544 = vld [vmem:[%s1182 + $0xc8] sm:$0xff]
        %v8545 = vld [vmem:[%s1182 + $0xd0] sm:$0xff]
        %v8546 = vld [vmem:[%s1182 + $0xd8] sm:$0xff]
        %v8547 = vld [vmem:[%s1182 + $0xe0] sm:$0xff]
        %v8548 = vld [vmem:[%s1182 + $0xe8] sm:$0xff]
        %v8549 = vld [vmem:[%s1182 + $0xf0] sm:$0xff]
        %v8550 = vld [vmem:[%s1182 + $0xf8] sm:$0xff]
        %v8551 = vld [vmem:[%s1182 + $0x100] sm:$0xff]
        %v8552 = vld [vmem:[%s1182 + $0x108] sm:$0xff]
        %v8553 = vld [vmem:[%s1182 + $0x110] sm:$0xff]
        %v8554 = vld [vmem:[%s1182 + $0x118] sm:$0xff]
        %v8555 = vld [vmem:[%s1182 + $0x120] sm:$0xff]
        %v8556 = vld [vmem:[%s1182 + $0x128] sm:$0xff]
        %v8557 = vld [vmem:[%s1182 + $0x130] sm:$0xff]
        %v8558 = vld [vmem:[%s1182 + $0x138] sm:$0xff]
        %v8559 = vld [vmem:[%s1182 + $0x140] sm:$0xff]
        %v8560 = vld [vmem:[%s1182 + $0x148] sm:$0xff]
        %v8561 = vld [vmem:[%s1182 + $0x150] sm:$0xff]
        %v8562 = vld [vmem:[%s1182 + $0x158] sm:$0xff]
        %v8563 = vld [vmem:[%s1182 + $0x160] sm:$0xff]
        %v8564 = vld [vmem:[%s1182 + $0x168] sm:$0xff]
        %v8565 = vld [vmem:[%s1182 + $0x170] sm:$0xff]
        %v8566 = vld [vmem:[%s1182 + $0x178] sm:$0xff]
        %v8567 = vld [vmem:[%s1182 + $0x180] sm:$0xff]
        %v8568 = vld [vmem:[%s1182 + $0x188] sm:$0xff]
        %v8569 = vld [vmem:[%s1182 + $0x190] sm:$0xff]
        %v8570 = vld [vmem:[%s1182 + $0x198] sm:$0xff]
        %v8571 = vld [vmem:[%s1182 + $0x1a0] sm:$0xff]
        %v8572 = vld [vmem:[%s1182 + $0x1a8] sm:$0xff]
        %v8573 = vld [vmem:[%s1182 + $0x1b0] sm:$0xff]
        %v8574 = vld [vmem:[%s1182 + $0x1b8] sm:$0xff]
        %v8575 = vld [vmem:[%s1182 + $0x1c0] sm:$0xff]
        %v8576 = vld [vmem:[%s1182 + $0x1c8] sm:$0xff]
        %v8577 = vld [vmem:[%s1182 + $0x1d0] sm:$0xff]
        %v8578 = vld [vmem:[%s1182 + $0x1d8] sm:$0xff]
        %v8579 = vld [vmem:[%s1182 + $0x1e0] sm:$0xff]
        %v8580 = vld [vmem:[%s1182 + $0x1e8] sm:$0xff]
        %v8581 = vld [vmem:[%s1182 + $0x1f0] sm:$0xff]
        %v8582 = vld [vmem:[%s1182 + $0x1f8] sm:$0xff]
        %v8583 = vld [vmem:[%s1247] sm:$0xf]
        %v8585 = vlaneseq
        %v8586 = vshrl.u32 %v8585, 7
        %v8587 = vsub.s32 0, %v8586
        %v8588 = vrot.slane %v8583, %v8587
        %v8589 = vlaneseq
        %v8590 = vshrl.u32 %v8589, 7
        %v8591 = vsub.s32 1, %v8590
        %v8592 = vrot.slane %v8583, %v8591
        %v8593 = vlaneseq
        %v8594 = vshrl.u32 %v8593, 7
        %v8595 = vsub.s32 2, %v8594
        %v8596 = vrot.slane %v8583, %v8595
        %v8597 = vlaneseq
        %v8598 = vshrl.u32 %v8597, 7
        %v8599 = vsub.s32 3, %v8598
        %v8600 = vrot.slane %v8583, %v8599
        %v8669 = vunpack.c.l.b16 %v8519
        %v8670 = vunpack.c.h.b16 %v8519
        %v8671 = vunpack.c.l.b16 %v8520
        %v8672 = vunpack.c.h.b16 %v8520
        %v8673 = vunpack.c.l.b16 %v8521
        %v8674 = vunpack.c.h.b16 %v8521
        %v8675 = vunpack.c.l.b16 %v8522
        %v8676 = vunpack.c.h.b16 %v8522
        %v8677 = vunpack.c.l.b16 %v8523
        %v8678 = vunpack.c.h.b16 %v8523
        %v8679 = vunpack.c.l.b16 %v8524
        %v8680 = vunpack.c.h.b16 %v8524
        %v8681 = vunpack.c.l.b16 %v8525
        %v8682 = vunpack.c.h.b16 %v8525
        %v8683 = vunpack.c.l.b16 %v8526
        %v8684 = vunpack.c.h.b16 %v8526
        %v8685 = vunpack.c.l.b16 %v8527
        %v8686 = vunpack.c.h.b16 %v8527
        %v8687 = vunpack.c.l.b16 %v8528
        %v8688 = vunpack.c.h.b16 %v8528
        %v8689 = vunpack.c.l.b16 %v8529
        %v8690 = vunpack.c.h.b16 %v8529
        %v8691 = vunpack.c.l.b16 %v8530
        %v8692 = vunpack.c.h.b16 %v8530
        %v8693 = vunpack.c.l.b16 %v8531
        %v8694 = vunpack.c.h.b16 %v8531
        %v8695 = vunpack.c.l.b16 %v8532
        %v8696 = vunpack.c.h.b16 %v8532
        %v8697 = vunpack.c.l.b16 %v8533
        %v8698 = vunpack.c.h.b16 %v8533
        %v8699 = vunpack.c.l.b16 %v8534
        %v8700 = vunpack.c.h.b16 %v8534
        %v8701 = vunpack.c.l.b16 %v8535
        %v8702 = vunpack.c.h.b16 %v8535
        %v8703 = vunpack.c.l.b16 %v8536
        %v8704 = vunpack.c.h.b16 %v8536
        %v8705 = vunpack.c.l.b16 %v8537
        %v8706 = vunpack.c.h.b16 %v8537
        %v8707 = vunpack.c.l.b16 %v8538
        %v8708 = vunpack.c.h.b16 %v8538
        %v8709 = vunpack.c.l.b16 %v8539
        %v8710 = vunpack.c.h.b16 %v8539
        %v8711 = vunpack.c.l.b16 %v8540
        %v8712 = vunpack.c.h.b16 %v8540
        %v8713 = vunpack.c.l.b16 %v8541
        %v8714 = vunpack.c.h.b16 %v8541
        %v8715 = vunpack.c.l.b16 %v8542
        %v8716 = vunpack.c.h.b16 %v8542
        %v8717 = vunpack.c.l.b16 %v8543
        %v8718 = vunpack.c.h.b16 %v8543
        %v8719 = vunpack.c.l.b16 %v8544
        %v8720 = vunpack.c.h.b16 %v8544
        %v8721 = vunpack.c.l.b16 %v8545
        %v8722 = vunpack.c.h.b16 %v8545
        %v8723 = vunpack.c.l.b16 %v8546
        %v8724 = vunpack.c.h.b16 %v8546
        %v8725 = vunpack.c.l.b16 %v8547
        %v8726 = vunpack.c.h.b16 %v8547
        %v8727 = vunpack.c.l.b16 %v8548
        %v8728 = vunpack.c.h.b16 %v8548
        %v8729 = vunpack.c.l.b16 %v8549
        %v8730 = vunpack.c.h.b16 %v8549
        %v8731 = vunpack.c.l.b16 %v8550
        %v8732 = vunpack.c.h.b16 %v8550
        %v8733 = vunpack.c.l.b16 %v8551
        %v8734 = vunpack.c.h.b16 %v8551
        %v8735 = vunpack.c.l.b16 %v8552
        %v8736 = vunpack.c.h.b16 %v8552
        %v8737 = vunpack.c.l.b16 %v8553
        %v8738 = vunpack.c.h.b16 %v8553
        %v8739 = vunpack.c.l.b16 %v8554
        %v8740 = vunpack.c.h.b16 %v8554
        %v8741 = vunpack.c.l.b16 %v8555
        %v8742 = vunpack.c.h.b16 %v8555
        %v8743 = vunpack.c.l.b16 %v8556
        %v8744 = vunpack.c.h.b16 %v8556
        %v8745 = vunpack.c.l.b16 %v8557
        %v8746 = vunpack.c.h.b16 %v8557
        %v8747 = vunpack.c.l.b16 %v8558
        %v8748 = vunpack.c.h.b16 %v8558
        %v8749 = vunpack.c.l.b16 %v8559
        %v8750 = vunpack.c.h.b16 %v8559
        %v8751 = vunpack.c.l.b16 %v8560
        %v8752 = vunpack.c.h.b16 %v8560
        %v8753 = vunpack.c.l.b16 %v8561
        %v8754 = vunpack.c.h.b16 %v8561
        %v8755 = vunpack.c.l.b16 %v8562
        %v8756 = vunpack.c.h.b16 %v8562
        %v8757 = vunpack.c.l.b16 %v8563
        %v8758 = vunpack.c.h.b16 %v8563
        %v8759 = vunpack.c.l.b16 %v8564
        %v8760 = vunpack.c.h.b16 %v8564
        %v8761 = vunpack.c.l.b16 %v8565
        %v8762 = vunpack.c.h.b16 %v8565
        %v8763 = vunpack.c.l.b16 %v8566
        %v8764 = vunpack.c.h.b16 %v8566
        %v8765 = vunpack.c.l.b16 %v8567
        %v8766 = vunpack.c.h.b16 %v8567
        %v8767 = vunpack.c.l.b16 %v8568
        %v8768 = vunpack.c.h.b16 %v8568
        %v8769 = vunpack.c.l.b16 %v8569
        %v8770 = vunpack.c.h.b16 %v8569
        %v8771 = vunpack.c.l.b16 %v8570
        %v8772 = vunpack.c.h.b16 %v8570
        %v8773 = vunpack.c.l.b16 %v8571
        %v8774 = vunpack.c.h.b16 %v8571
        %v8775 = vunpack.c.l.b16 %v8572
        %v8776 = vunpack.c.h.b16 %v8572
        %v8777 = vunpack.c.l.b16 %v8573
        %v8778 = vunpack.c.h.b16 %v8573
        %v8779 = vunpack.c.l.b16 %v8574
        %v8780 = vunpack.c.h.b16 %v8574
        %v8781 = vunpack.c.l.b16 %v8575
        %v8782 = vunpack.c.h.b16 %v8575
        %v8783 = vunpack.c.l.b16 %v8576
        %v8784 = vunpack.c.h.b16 %v8576
        %v8785 = vunpack.c.l.b16 %v8577
        %v8786 = vunpack.c.h.b16 %v8577
        %v8787 = vunpack.c.l.b16 %v8578
        %v8788 = vunpack.c.h.b16 %v8578
        %v8789 = vunpack.c.l.b16 %v8579
        %v8790 = vunpack.c.h.b16 %v8579
        %v8791 = vunpack.c.l.b16 %v8580
        %v8792 = vunpack.c.h.b16 %v8580
        %v8793 = vunpack.c.l.b16 %v8581
        %v8794 = vunpack.c.h.b16 %v8581
        %v8795 = vunpack.c.l.b16 %v8582
        %v8796 = vunpack.c.h.b16 %v8582
        %v8797 = vpack.c.b16 %v8673, %v8669
        %v8798 = vpack.c.b16 %v8674, %v8670
        %v8799 = vpack.c.b16 %v8675, %v8671
        %v8800 = vpack.c.b16 %v8676, %v8672
        %v8801 = vpack.c.b16 %v8681, %v8677
        %v8802 = vpack.c.b16 %v8682, %v8678
        %v8803 = vpack.c.b16 %v8683, %v8679
        %v8804 = vpack.c.b16 %v8684, %v8680
        %v8805 = vpack.c.b16 %v8689, %v8685
        %v8806 = vpack.c.b16 %v8690, %v8686
        %v8807 = vpack.c.b16 %v8691, %v8687
        %v8808 = vpack.c.b16 %v8692, %v8688
        %v8809 = vpack.c.b16 %v8697, %v8693
        %v8810 = vpack.c.b16 %v8698, %v8694
        %v8811 = vpack.c.b16 %v8699, %v8695
        %v8812 = vpack.c.b16 %v8700, %v8696
        %v8813 = vpack.c.b16 %v8705, %v8701
        %v8814 = vpack.c.b16 %v8706, %v8702
        %v8815 = vpack.c.b16 %v8707, %v8703
        %v8816 = vpack.c.b16 %v8708, %v8704
        %v8817 = vpack.c.b16 %v8713, %v8709
        %v8818 = vpack.c.b16 %v8714, %v8710
        %v8819 = vpack.c.b16 %v8715, %v8711
        %v8820 = vpack.c.b16 %v8716, %v8712
        %v8821 = vpack.c.b16 %v8721, %v8717
        %v8822 = vpack.c.b16 %v8722, %v8718
        %v8823 = vpack.c.b16 %v8723, %v8719
        %v8824 = vpack.c.b16 %v8724, %v8720
        %v8825 = vpack.c.b16 %v8729, %v8725
        %v8826 = vpack.c.b16 %v8730, %v8726
        %v8827 = vpack.c.b16 %v8731, %v8727
        %v8828 = vpack.c.b16 %v8732, %v8728
        %v8829 = vpack.c.b16 %v8737, %v8733
        %v8830 = vpack.c.b16 %v8738, %v8734
        %v8831 = vpack.c.b16 %v8739, %v8735
        %v8832 = vpack.c.b16 %v8740, %v8736
        %v8833 = vpack.c.b16 %v8745, %v8741
        %v8834 = vpack.c.b16 %v8746, %v8742
        %v8835 = vpack.c.b16 %v8747, %v8743
        %v8836 = vpack.c.b16 %v8748, %v8744
        %v8837 = vpack.c.b16 %v8753, %v8749
        %v8838 = vpack.c.b16 %v8754, %v8750
        %v8839 = vpack.c.b16 %v8755, %v8751
        %v8840 = vpack.c.b16 %v8756, %v8752
        %v8841 = vpack.c.b16 %v8761, %v8757
        %v8842 = vpack.c.b16 %v8762, %v8758
        %v8843 = vpack.c.b16 %v8763, %v8759
        %v8844 = vpack.c.b16 %v8764, %v8760
        %v8845 = vpack.c.b16 %v8769, %v8765
        %v8846 = vpack.c.b16 %v8770, %v8766
        %v8847 = vpack.c.b16 %v8771, %v8767
        %v8848 = vpack.c.b16 %v8772, %v8768
        %v8849 = vpack.c.b16 %v8777, %v8773
        %v8850 = vpack.c.b16 %v8778, %v8774
        %v8851 = vpack.c.b16 %v8779, %v8775
        %v8852 = vpack.c.b16 %v8780, %v8776
        %v8853 = vpack.c.b16 %v8785, %v8781
        %v8854 = vpack.c.b16 %v8786, %v8782
        %v8855 = vpack.c.b16 %v8787, %v8783
        %v8856 = vpack.c.b16 %v8788, %v8784
        %v8857 = vpack.c.b16 %v8793, %v8789
        %v8858 = vpack.c.b16 %v8794, %v8790
        %v8859 = vpack.c.b16 %v8795, %v8791
        %v8860 = vpack.c.b16 %v8796, %v8792
        %8925 = vmatprep.subr.bf16.mxu0 %v8798
        %8926 = vmatpush1.bf16.msra.mxu0 %v8797
        %8927 = vmatprep.subr.bf16.mxu0 %v8802
        %8928 = vmatpush1.bf16.msra.mxu0 %v8801
        %8929 = vmatprep.subr.bf16.mxu0 %v8806
        %8930 = vmatpush1.bf16.msra.mxu0 %v8805
        %8931 = vmatprep.subr.bf16.mxu0 %v8810
        %8932 = vmatpush1.bf16.msra.mxu0 %v8809
        %8933 = vmatprep.subr.bf16.mxu0 %v8814
        %8934 = vmatpush1.bf16.msra.mxu0 %v8813
        %8935 = vmatprep.subr.bf16.mxu0 %v8818
        %8936 = vmatpush1.bf16.msra.mxu0 %v8817
        %8937 = vmatprep.subr.bf16.mxu0 %v8822
        %8938 = vmatpush1.bf16.msra.mxu0 %v8821
        %8939 = vmatprep.subr.bf16.mxu0 %v8826
        %8940 = vmatpush1.bf16.msra.mxu0 %v8825
        %8941 = vmatprep.subr.bf16.mxu0 %v8830
        %8942 = vmatpush1.bf16.msra.mxu0 %v8829
        %8943 = vmatprep.subr.bf16.mxu0 %v8834
        %8944 = vmatpush1.bf16.msra.mxu0 %v8833
        %8945 = vmatprep.subr.bf16.mxu0 %v8838
        %8946 = vmatpush1.bf16.msra.mxu0 %v8837
        %8947 = vmatprep.subr.bf16.mxu0 %v8842
        %8948 = vmatpush1.bf16.msra.mxu0 %v8841
        %8949 = vmatprep.subr.bf16.mxu0 %v8846
        %8950 = vmatpush1.bf16.msra.mxu0 %v8845
        %8951 = vmatprep.subr.bf16.mxu0 %v8850
        %8952 = vmatpush1.bf16.msra.mxu0 %v8849
        %8953 = vmatprep.subr.bf16.mxu0 %v8854
        %8954 = vmatpush1.bf16.msra.mxu0 %v8853
        %8955 = vmatprep.subr.bf16.mxu0 %v8858
        %8956 = vmatpush1.bf16.msra.mxu0 %v8857
        %8957 = vmatprep.mubr.bf16.mxu0 %v8518
        %8958 = vmatmul.mubr.bf16.gmra.mrb[0].mxu0 %v8517
        %v8959 = vpop.f32.mrb[0].mxu0
        %v8960 = vadd.f32 %v8588, %v8959
        %v8961 = vpop.f32.mrb[0].mxu0
        %v8962 = vadd.f32 %v8592, %v8961
        %v8963 = vpop.f32.mrb[0].mxu0
        %v8964 = vpop.f32.mrb[0].mxu0
        %8965 = vdwg.mxu0
        %8966 = vmatprep.subr.bf16.mxu0 %v8800
        %8967 = vmatpush1.bf16.msra.mxu0 %v8799
        %8968 = vmatprep.subr.bf16.mxu0 %v8804
        %8969 = vmatpush1.bf16.msra.mxu0 %v8803
        %8970 = vmatprep.subr.bf16.mxu0 %v8808
        %8971 = vmatpush1.bf16.msra.mxu0 %v8807
        %8972 = vmatprep.subr.bf16.mxu0 %v8812
        %8973 = vmatpush1.bf16.msra.mxu0 %v8811
        %8974 = vmatprep.subr.bf16.mxu0 %v8816
        %8975 = vmatpush1.bf16.msra.mxu0 %v8815
        %8976 = vmatprep.subr.bf16.mxu0 %v8820
        %8977 = vmatpush1.bf16.msra.mxu0 %v8819
        %8978 = vmatprep.subr.bf16.mxu0 %v8824
        %8979 = vmatpush1.bf16.msra.mxu0 %v8823
        %8980 = vmatprep.subr.bf16.mxu0 %v8828
        %8981 = vmatpush1.bf16.msra.mxu0 %v8827
        %8982 = vmatprep.subr.bf16.mxu0 %v8832
        %8983 = vmatpush1.bf16.msra.mxu0 %v8831
        %8984 = vmatprep.subr.bf16.mxu0 %v8836
        %8985 = vmatpush1.bf16.msra.mxu0 %v8835
        %8986 = vmatprep.subr.bf16.mxu0 %v8840
        %8987 = vmatpush1.bf16.msra.mxu0 %v8839
        %8988 = vmatprep.subr.bf16.mxu0 %v8844
        %8989 = vmatpush1.bf16.msra.mxu0 %v8843
        %8990 = vmatprep.subr.bf16.mxu0 %v8848
        %8991 = vmatpush1.bf16.msra.mxu0 %v8847
        %8992 = vmatprep.subr.bf16.mxu0 %v8852
        %8993 = vmatpush1.bf16.msra.mxu0 %v8851
        %8994 = vmatprep.subr.bf16.mxu0 %v8856
        %8995 = vmatpush1.bf16.msra.mxu0 %v8855
        %8996 = vmatprep.subr.bf16.mxu0 %v8860
        %8997 = vmatpush1.bf16.msra.mxu0 %v8859
        %8998 = vmatprep.mubr.bf16.mxu0 %v8518
        %8999 = vmatmul.mubr.bf16.gmra.mrb[0].mxu0 %v8517
        %v9000 = vpop.f32.mrb[0].mxu0
        %v9001 = vadd.f32 %v8596, %v9000
        %v9002 = vpop.f32.mrb[0].mxu0
        %v9003 = vadd.f32 %v8600, %v9002
        %v9004 = vpop.f32.mrb[0].mxu0
        %v9005 = vpop.f32.mrb[0].mxu0
        %9006 = vdwg.mxu0
        %v9007 = vxor.u32 %v8960, 2147483648
        %v9008 = vmul.f32 %v9007, 1.442695
        %v9009 = vpow.pop %v9008
        %v9010 = vadd.f32 %v9009, 1.0
        %v9011 = vrcp.pop %v9010
        %v9012 = vmul.f32 1.0, %v9011
        %v9013 = vxor.u32 %v8962, 2147483648
        %v9014 = vmul.f32 %v9013, 1.442695
        %v9015 = vpow.pop %v9014
        %v9016 = vadd.f32 %v9015, 1.0
        %v9017 = vrcp.pop %v9016
        %v9018 = vmul.f32 1.0, %v9017
        %v9019 = vtanh.pop %v9001
        %v9020 = vxor.u32 %v9003, 2147483648
        %v9021 = vmul.f32 %v9020, 1.442695
        %v9022 = vpow.pop %v9021
        %v9023 = vadd.f32 %v9022, 1.0
        %v9024 = vrcp.pop %v9023
        %v9025 = vmul.f32 1.0, %v9024
        %v9026 = vmul.f32 %v9018, %v8512
        %v9027 = vmul.f32 %v9012, %v9019
        %v9028 = vadd.f32 %v9026, %v9027
        %v9029 = vtanh.pop %v9028
        %v9030 = vmul.f32 %v9025, %v9029
        %9031 = vst [vmem:[%s1172] sm:$0xff] %v9030
        %9032 = vst [vmem:[%s1174] sm:$0xff] %v9028
        %s9033 = scalar_lea.vmem [#allocation6], 56
        %9034 = vst [vmem:[%s9033] sm:$0xff] %v9030
        %v9035 = vld [vmem:[#allocation6] sm:$0xff]
        %v9036 = vld [vmem:[#allocation6 + $0x8] sm:$0xff]
        %v9037 = vld [vmem:[#allocation6 + $0x10] sm:$0xff]
        %v9038 = vld [vmem:[#allocation6 + $0x18] sm:$0xff]
        %v9039 = vld [vmem:[#allocation6 + $0x20] sm:$0xff]
        %v9040 = vld [vmem:[#allocation6 + $0x28] sm:$0xff]
        %v9041 = vld [vmem:[#allocation6 + $0x30] sm:$0xff]
        %v9042 = vld [vmem:[#allocation6 + $0x38] sm:$0xff]
        %v9043 = vpack.c.bf16 %v9036, %v9035
        %v9044 = vpack.c.bf16 %v9038, %v9037
        %v9045 = vpack.c.bf16 %v9040, %v9039
        %v9046 = vpack.c.bf16 %v9042, %v9041
        %v9047 = vld [vmem:[#allocation10] sm:$0xf]
        %v9048 = vld [vmem:[#allocation10 + $0x4] sm:$0xf]
        %v9049 = vld [vmem:[#allocation10 + $0x8] sm:$0xf]
        %v9050 = vld [vmem:[#allocation10 + $0xc] sm:$0xf]
        %v9051 = vld [vmem:[#allocation10 + $0x10] sm:$0xf]
        %v9052 = vld [vmem:[#allocation10 + $0x14] sm:$0xf]
        %v9053 = vld [vmem:[#allocation10 + $0x18] sm:$0xf]
        %v9054 = vld [vmem:[#allocation10 + $0x1c] sm:$0xf]
        %v9055 = vld [vmem:[#allocation10 + $0x20] sm:$0xf]
        %v9056 = vld [vmem:[#allocation10 + $0x24] sm:$0xf]
        %v9057 = vld [vmem:[#allocation10 + $0x28] sm:$0xf]
        %v9058 = vld [vmem:[#allocation10 + $0x2c] sm:$0xf]
        %v9059 = vld [vmem:[#allocation10 + $0x30] sm:$0xf]
        %v9060 = vld [vmem:[#allocation10 + $0x34] sm:$0xf]
        %v9061 = vld [vmem:[#allocation10 + $0x38] sm:$0xf]
        %v9062 = vld [vmem:[#allocation10 + $0x3c] sm:$0xf]
        %v9063 = vld [vmem:[%s7] sm:$0x1]
        %v9065 = vlaneseq
        %v9066 = vshrl.u32 %v9065, 7
        %v9067 = vsub.s32 0, %v9066
        %v9068 = vrot.slane %v9063, %v9067
        %v9086 = vunpack.c.l.b16 %v9047
        %v9087 = vunpack.c.l.b16 %v9048
        %v9088 = vunpack.c.l.b16 %v9049
        %v9089 = vunpack.c.l.b16 %v9050
        %v9090 = vunpack.c.l.b16 %v9051
        %v9091 = vunpack.c.l.b16 %v9052
        %v9092 = vunpack.c.l.b16 %v9053
        %v9093 = vunpack.c.l.b16 %v9054
        %v9094 = vunpack.c.l.b16 %v9055
        %v9095 = vunpack.c.l.b16 %v9056
        %v9096 = vunpack.c.l.b16 %v9057
        %v9097 = vunpack.c.l.b16 %v9058
        %v9098 = vunpack.c.l.b16 %v9059
        %v9099 = vunpack.c.l.b16 %v9060
        %v9100 = vunpack.c.l.b16 %v9061
        %v9101 = vunpack.c.l.b16 %v9062
        %v9102 = vpack.c.b16 %v9087, %v9086
        %v9103 = vpack.c.b16 %v9089, %v9088
        %v9104 = vpack.c.b16 %v9091, %v9090
        %v9105 = vpack.c.b16 %v9093, %v9092
        %v9106 = vpack.c.b16 %v9095, %v9094
        %v9107 = vpack.c.b16 %v9097, %v9096
        %v9108 = vpack.c.b16 %v9099, %v9098
        %v9109 = vpack.c.b16 %v9101, %v9100
        %9118 = vmatprep.subr.bf16.mxu0 0
        %9119 = vmatpush1.bf16.msra.mxu0 %v9102
        %9120 = vmatprep.subr.bf16.mxu0 0
        %9121 = vmatpush1.bf16.msra.mxu0 %v9103
        %9122 = vmatprep.subr.bf16.mxu0 0
        %9123 = vmatpush1.bf16.msra.mxu0 %v9104
        %9124 = vmatprep.subr.bf16.mxu0 0
        %9125 = vmatpush1.bf16.msra.mxu0 %v9105
        %9126 = vmatprep.subr.bf16.mxu0 0
        %9127 = vmatpush1.bf16.msra.mxu0 %v9106
        %9128 = vmatprep.subr.bf16.mxu0 0
        %9129 = vmatpush1.bf16.msra.mxu0 %v9107
        %9130 = vmatprep.subr.bf16.mxu0 0
        %9131 = vmatpush1.bf16.msra.mxu0 %v9108
        %9132 = vmatprep.subr.bf16.mxu0 0
        %9133 = vmatpush1.bf16.msra.mxu0 %v9109
        %9134 = vmatprep.subr.bf16.mxu0 0
        %9135 = vmatpush1.bf16.msra.mxu0 0
        %9136 = vmatprep.subr.bf16.mxu0 0
        %9137 = vmatpush1.bf16.msra.mxu0 0
        %9138 = vmatprep.subr.bf16.mxu0 0
        %9139 = vmatpush1.bf16.msra.mxu0 0
        %9140 = vmatprep.subr.bf16.mxu0 0
        %9141 = vmatpush1.bf16.msra.mxu0 0
        %9142 = vmatprep.subr.bf16.mxu0 0
        %9143 = vmatpush1.bf16.msra.mxu0 0
        %9144 = vmatprep.subr.bf16.mxu0 0
        %9145 = vmatpush1.bf16.msra.mxu0 0
        %9146 = vmatprep.subr.bf16.mxu0 0
        %9147 = vmatpush1.bf16.msra.mxu0 0
        %9148 = vmatprep.subr.bf16.mxu0 0
        %9149 = vmatpush1.bf16.msra.mxu0 0
        %9150 = vmatprep.mubr.bf16.mxu0 0
        %9151 = vmatmul.mubr.bf16.gmra.mrb[0].mxu0 %v9043
        %v9152 = vpop.f32.mrb[0].mxu0
        %v9153 = vadd.f32 %v9068, %v9152
        %v9154 = vpop.f32.mrb[0].mxu0
        %v9155 = vpop.f32.mrb[0].mxu0
        %v9156 = vadd.f32 %v9068, %v9155
        %v9157 = vpop.f32.mrb[0].mxu0
        %9158 = vmatprep.mubr.bf16.mxu0 0
        %9159 = vmatmul.mubr.bf16.gmra.mrb[0].mxu0 %v9044
        %v9160 = vpop.f32.mrb[0].mxu0
        %v9161 = vadd.f32 %v9068, %v9160
        %v9162 = vpop.f32.mrb[0].mxu0
        %v9163 = vpop.f32.mrb[0].mxu0
        %v9164 = vadd.f32 %v9068, %v9163
        %v9165 = vpop.f32.mrb[0].mxu0
        %9166 = vmatprep.mubr.bf16.mxu0 0
        %9167 = vmatmul.mubr.bf16.gmra.mrb[0].mxu0 %v9045
        %v9168 = vpop.f32.mrb[0].mxu0
        %v9169 = vadd.f32 %v9068, %v9168
        %v9170 = vpop.f32.mrb[0].mxu0
        %v9171 = vpop.f32.mrb[0].mxu0
        %v9172 = vadd.f32 %v9068, %v9171
        %v9173 = vpop.f32.mrb[0].mxu0
        %9174 = vmatprep.mubr.bf16.mxu0 0
        %9175 = vmatmul.mubr.bf16.gmra.mrb[0].mxu0 %v9046
        %v9176 = vpop.f32.mrb[0].mxu0
        %v9177 = vadd.f32 %v9068, %v9176
        %v9178 = vpop.f32.mrb[0].mxu0
        %v9179 = vpop.f32.mrb[0].mxu0
        %v9180 = vadd.f32 %v9068, %v9179
        %v9181 = vpop.f32.mrb[0].mxu0
        %9182 = vdwg.mxu0
        %9183 = vst [vmem:[%s388] sm:$0xff] %v9153
        %9184 = vst [vmem:[%s388 + $0x8] sm:$0xff] %v9156
        %9185 = vst [vmem:[%s388 + $0x10] sm:$0xff] %v9161
        %9186 = vst [vmem:[%s388 + $0x18] sm:$0xff] %v9164
        %9187 = vst [vmem:[%s388 + $0x20] sm:$0xff] %v9169
        %9188 = vst [vmem:[%s388 + $0x28] sm:$0xff] %v9172
        %9189 = vst [vmem:[%s388 + $0x30] sm:$0xff] %v9177
        %9190 = vst [vmem:[%s388 + $0x38] sm:$0xff] %v9180
        %s9191 = sand.u32 %s233, 1
        %s9192 = scalar_lea.sflag [#allocation9], %s9191
        %s9193 = sand.u32 %s233, 1
        %s9194 = smul.addr %s9193, 64
        %s9195 = scalar_lea.vmem [#allocation12], %s9194
        // Predicated region
        $region69: #{tpu_custom_call.1} parent=51 // pred_check
          %p9196 = pneg %p243
        $region70: #{tpu_custom_call.1} parent=51 // pred_check_branch
          %9198 = sbr.rel (%p9196) target = $region72
        $region71: #{tpu_custom_call.1} parent=51 // pred_region
          %s9199 = smul.u32 8, %s29
          %s9201 = ssub.s32 1024, 1024
          %9202 = vsyncadd %s9192, %s9201
          %s9203 = sadd.s32 %s28, %s9199
          %s9204 = smul.addr %s9203, 128
          %s9205 = scalar_lea.hbm %s8, %s9204
          %s9206 = sshll.u32 %s9195, 4
          %s9207 = int_to_ptr.vmem [resolvable:$true] %s9206
          %9212 = dma.vmem_to_hbm [thread:$0]  %s9207, 1024, %s9205, %s9192, 128, 128, 8
        $region72: #{tpu_custom_call.1} parent=51 // pred_fallthru
          _
      $region52: #{tpu_custom_call.1} parent=5 // pred_fallthru
        _
      %p9213 = scmp.le.s32.totalorder 2, %s19
      // Predicated region
      $region73: #{tpu_custom_call.1} parent=5 // pred_check
        %p9214 = pneg %p9213
      $region74: #{tpu_custom_call.1} parent=5 // pred_check_branch
        %9216 = sbr.rel (%p9214) target = $region76
      $region75: #{tpu_custom_call.1} parent=5 // pred_region
        %s9217 = ssub.s32 %s19, 2
        // Predicated region
        $region77: #{tpu_custom_call.1} parent=75 // pred_check
          %p9218 = pneg %p249
        $region78: #{tpu_custom_call.1} parent=75 // pred_check_branch
          %9220 = sbr.rel (%p9218) target = $region80
        $region79: #{tpu_custom_call.1} parent=75 // pred_region
          %s9221 = sand.u32 %s234, 1
          %s9222 = scalar_lea.sflag [#allocation9], %s9221
          %s9223 = sand.u32 %s234, 1
          %s9224 = smul.addr %s9223, 64
          %s9225 = scalar_lea.vmem [#allocation12], %s9224
          %9226 = dma.done %s9222, 1024
        $region80: #{tpu_custom_call.1} parent=75 // pred_fallthru
          _
      $region76: #{tpu_custom_call.1} parent=5 // pred_fallthru
        _
    $region6: #{tpu_custom_call.1} parent=1 // loop_footer
      %s23 = sadd.s32 1, %s19
    $region7: #{tpu_custom_call.1} parent=1 // loop_footer_branch
      %18 = sbr.rel target = $region3
    $region8: #{tpu_custom_call.1} parent=1 // loop_exit
      _
    %9227 = vsyncpa [#allocation8], 1
    %s9228 = scalar_lea.sflag [#allocation8], 1
    %9229 = vsyncpa %s9228, 1
    %9230 = vsyncpa [#allocation11], 1
    %9231 = vsyncpa [#allocation9], 1
    %s9232 = scalar_lea.sflag [#allocation9], 1
    %9233 = vsyncpa %s9232, 1

</llo_original>
